<compile_context>
chip_gen: v7x
topology: tpu7x:2x2x1
jax: 0.10.0
libtpu: 0.0.40
codegen_flags: <defaults>
</compile_context>

<pallas_src>
import math

import jax
import jax.numpy as jnp
from jax.experimental import pallas as pl
from jax.experimental.pallas import tpu as pltpu

KH, KW = 3, 3
C_IN, C_OUT = 3, 64
K_TAPS = C_IN * KH * KW          # 27 im2col taps
K_BIAS = K_TAPS                  # tap 27 carries the bias (its patch row is 1.0)
K_PAD = 32                       # contraction dim padded to a sublane multiple


def _conv3x3_kernel(x_ref, w_ref, o_ref, patch_ref):
    """One grid step: one batch element x one row-tile of the output.

    x_ref     : (1, C_IN, H_pad, W)   whole image, resident across row tiles
    w_ref     : (C_OUT, K_PAD)        im2col weight; col 27 = bias, cols 28.. = 0
    o_ref     : (1, C_OUT, TH*W_OUT)  flattened-NCHW output tile (lane-dense)
    patch_ref : (K_PAD, TH*W_OUT)     VMEM scratch holding the flat im2col patch
    """
    tile_s = o_ref.shape[2]
    w_in = x_ref.shape[3]
    wo = w_in - (KW - 1)                     # output width
    th = tile_s // wo                        # output rows in this tile

    r0 = pl.program_id(1) * th               # first output row of this tile

    # Constant K rows: row 27 = 1.0 (bias tap), rows 28..31 = 0.0 (0 * garbage
    # would be unsafe if VMEM held NaN/Inf).  Written every step: a one-time
    # init keyed on program_id == 0 is unsafe when the grid is split across
    # megacore TensorCores.  Cost: 5 rows per tile (cheap).
    patch_ref[pl.ds(K_BIAS, 1), :] = jnp.ones((1, tile_s), dtype=patch_ref.dtype)
    patch_ref[pl.ds(K_BIAS + 1, K_PAD - K_BIAS - 1), :] = jnp.zeros(
        (K_PAD - K_BIAS - 1, tile_s), dtype=patch_ref.dtype)

    # im2col fill: for output row y of the tile, write all 27 taps into the
    # flat patch at lane offset y*W_OUT.
    def fill_row(y):
        dst = y * wo
        k = 0
        for c in range(C_IN):
            for kh in range(KH):
                for kw in range(KW):
                    patch_ref[pl.ds(k, 1), pl.ds(dst, wo)] = (
                        x_ref[0, c, pl.ds(r0 + y + kh, 1), pl.ds(kw, wo)])
                    k += 1

    if th <= 16:
        # Small tiles (incl. the self-test): fully static fill.
        for y in range(th):
            fill_row(y)
    else:
        # Large tiles: bound code size / vreg pressure with a real loop.
        def body(y, carry):
            fill_row(y)
            return carry
        jax.lax.fori_loop(0, th, body, 0, unroll=4)

    # One fused (C_OUT, 32) @ (32, TH*W_OUT) MXU matmul per tile; the bias
    # rides the MXU via the ones-row x bias-column, and the result is written
    # with a single lane-dense store into the flattened NCHW output block.
    acc = jnp.dot(w_ref[...], patch_ref[...], preferred_element_type=jnp.float32)
    o_ref[0, :, :] = acc.astype(o_ref.dtype)


def _vmem_capacity_bytes():
    """Per-core VMEM capacity (128 MiB v5e/v6e, 64 MiB v7x); safe fallback."""
    try:
        return int(pltpu.get_tpu_info().vmem_capacity_bytes)
    except Exception:
        return 64 * 1024 * 1024


def _pick_tile_h(h_out, w_out, h_in, w_in, budget):
    """Output rows per tile.

    Constraints:
      * TH*W_OUT must be a multiple of 128 (unmasked, lane-dense output
        stores) unless a single tile covers the whole output extent.
      * resident (double-buffered) image + double-buffered output tile +
        im2col patch must fit the generation's VMEM budget.
    """
    itemsize = 4
    input_resident = 2 * C_IN * (h_in + 8) * w_in * itemsize  # incl. halo pad slack
    per_row = (2 * C_OUT + K_PAD) * w_out * itemsize          # out (x2) + patch
    avail = budget - input_resident
    if avail <= per_row:
        # TODO(synk): for huge images replace the resident whole-image block
        # with a manually DMA'd, halo'd row window (pl.ANY + make_async_copy).
        return h_out
    th_budget = avail // per_row
    if th_budget >= h_out:
        return h_out                               # single tile == full extent
    m0 = 128 // math.gcd(w_out, 128)               # smallest TH with TH*W_OUT % 128 == 0
    if th_budget >= m0:
        return int((th_budget // m0) * m0)
    return h_out                                   # cannot satisfy both; one big tile


def tudui_forward(x_nchw, weight_oihw, bias):
    """nn.Conv2d(3, 64, 3) forward: NCHW in -> NCHW out (valid, stride 1).

    x_nchw      : (N, 3, H, W)  float32
    weight_oihw : (64, 3, 3, 3) float32 (PyTorch OIHW layout)
    bias        : (64,)         float32
    returns     : (N, 64, H-2, W-2) float32
    """
    n, c_in, h, w = x_nchw.shape
    assert c_in == C_IN
    h_out, w_out = h - KH + 1, w - KW + 1
    s_out = h_out * w_out

    cap = _vmem_capacity_bytes()
    budget = (cap * 3) // 4
    th = _pick_tile_h(h_out, w_out, h, w, budget)
    n_tiles = pl.cdiv(h_out, th)
    tile_s = th * w_out

    # Pad input rows so the last tile's 2-row halo never reads out of bounds.
    h_need = n_tiles * th + (KH - 1)
    if h_need > h:
        x_nchw = jnp.pad(x_nchw, ((0, 0), (0, 0), (0, h_need - h), (0, 0)))
    h_pad = x_nchw.shape[2]

    # im2col weight: OIHW -> (C_OUT, 27); fold bias into column 27; pad to 32.
    w2d = weight_oihw.reshape(C_OUT, K_TAPS).astype(jnp.float32)
    w2d = jnp.concatenate(
        [w2d,
         bias.reshape(C_OUT, 1).astype(jnp.float32),
         jnp.zeros((C_OUT, K_PAD - K_TAPS - 1), dtype=jnp.float32)], axis=1)

    # VMEM: resident (double-buffered) image + double-buffered output tile +
    # im2col patch + weights.
    in_block = C_IN * h_pad * w * 4
    out_block = C_OUT * tile_s * 4
    scratch = K_PAD * tile_s * 4
    est = 2 * in_block + 2 * out_block + scratch + 2 * C_OUT * K_PAD * 4
    vmem_limit = int(min(cap - 4 * 1024 * 1024,
                         max(16 * 1024 * 1024, (3 * est) // 2)))

    out_flat = pl.pallas_call(
        _conv3x3_kernel,
        out_shape=jax.ShapeDtypeStruct((n, C_OUT, s_out), x_nchw.dtype),
        grid=(n, n_tiles),
        in_specs=[
            # Whole (padded) image per batch element; constant in the row-tile
            # axis so the block stays resident in VMEM across row tiles.
            pl.BlockSpec((1, C_IN, h_pad, w), lambda ni, ti: (ni, 0, 0, 0)),
            pl.BlockSpec((C_OUT, K_PAD), lambda ni, ti: (0, 0)),
        ],
        # Flattened NCHW output: one lane-dense block of TH output rows/step.
        out_specs=pl.BlockSpec((1, C_OUT, tile_s), lambda ni, ti: (ni, 0, ti)),
        scratch_shapes=[pltpu.VMEM((K_PAD, tile_s), jnp.float32)],
        compiler_params=pltpu.CompilerParams(
            # Batch axis parallel: megacore shards whole images, so the
            # resident input block is not duplicated across cores.
            dimension_semantics=("parallel", "arbitrary"),
            vmem_limit_bytes=vmem_limit),
    )(x_nchw, w2d)

    # Free metadata reshape of the contiguous flattened-NCHW result.
    return out_flat.reshape(n, C_OUT, h_out, w_out)


def reference_conv(x_nchw, weight_oihw, bias):
    """Pure-JAX reference (lax conv) for correctness checking."""
    out = jax.lax.conv_general_dilated(
        x_nchw, weight_oihw,
        window_strides=(1, 1), padding="VALID",
        dimension_numbers=("NCHW", "OIHW", "NCHW"))
    return out + bias.reshape(1, C_OUT, 1, 1)


if __name__ == "__main__":
    key = jax.random.PRNGKey(0)
    kx, kwt, kb = jax.random.split(key, 3)

    # Small deterministic example consistent with Conv2d(3, 64, 3): NCHW input.
    N, H, W = 2, 16, 16
    x = jax.random.normal(kx, (N, C_IN, H, W), dtype=jnp.float32)

    # Deterministic synthetic parameters (PyTorch-style uniform 1/sqrt(fan_in)).
    fan_in = C_IN * KH * KW
    bound = 1.0 / (fan_in ** 0.5)
    weight = jax.random.uniform(kwt, (C_OUT, C_IN, KH, KW),
                                minval=-bound, maxval=bound, dtype=jnp.float32)
    bias = jax.random.uniform(kb, (C_OUT,),
                              minval=-bound, maxval=bound, dtype=jnp.float32)

    out = jax.block_until_ready(tudui_forward(x, weight, bias))
    ref = jax.block_until_ready(reference_conv(x, weight, bias))

    assert out.shape == (N, C_OUT, H - 2, W - 2), out.shape
    assert jnp.allclose(out, ref, atol=1e-4, rtol=1e-4), float(
        jnp.max(jnp.abs(out - ref)))
    print("KERNEL_OK")
</pallas_src>

<mosaic_0001>
module attributes {stable_mosaic.version = 11 : i64} {
  func.func @_conv3x3_kernel(%arg0: i32, %arg1: i32, %arg2: memref<1x3x16x16xf32, #tpu.memory_space<vmem>>, %arg3: memref<64x32xf32, #tpu.memory_space<vmem>>, %arg4: memref<1x64x196xf32, #tpu.memory_space<vmem>>, %arg5: memref<32x196xf32, #tpu.memory_space<vmem>>) attributes {dimension_semantics = [#tpu.dimension_semantics<parallel>, #tpu.dimension_semantics<arbitrary>], iteration_bounds = array<i64: 2, 1>, scalar_prefetch = 0 : i64, scratch_operands = 1 : i64, tpu.core_type = #tpu.core_type<tc>, window_params = [{transform_indices = @transform_0, window_bounds = array<i64: 1, 3, 16, 16>}, {pipeline_mode = #tpu.pipeline_mode<synchronous>, transform_indices = @transform_1, window_bounds = array<i64: 64, 32>}, {transform_indices = @transform_2, window_bounds = array<i64: 1, 64, 196>}]} {
    %c14_i32 = arith.constant 14 : i32
    %0 = arith.muli %arg1, %c14_i32 : i32
    %cst = arith.constant 1.000000e+00 : f32
    %1 = vector.broadcast %cst : f32 to vector<1x196xf32>
    %c27 = arith.constant 27 : index
    %c0 = arith.constant 0 : index
    %2 = vector.load %arg5[%c27, %c0] : memref<32x196xf32, #tpu.memory_space<vmem>>, vector<1x196xf32>
    tpu.vector_store %arg5[%c27, %c0], %1 {strides = array<i32>} : memref<32x196xf32, #tpu.memory_space<vmem>>, vector<1x196xf32>,
    %cst_0 = arith.constant 0.000000e+00 : f32
    %3 = vector.broadcast %cst_0 : f32 to vector<4x196xf32>
    %c28 = arith.constant 28 : index
    %c0_1 = arith.constant 0 : index
    %4 = vector.load %arg5[%c28, %c0_1] : memref<32x196xf32, #tpu.memory_space<vmem>>, vector<4x196xf32>
    tpu.vector_store %arg5[%c28, %c0_1], %3 {strides = array<i32>} : memref<32x196xf32, #tpu.memory_space<vmem>>, vector<4x196xf32>,
    %c0_i32 = arith.constant 0 : i32
    %5 = arith.addi %0, %c0_i32 : i32
    %c0_i32_2 = arith.constant 0 : i32
    %6 = arith.addi %5, %c0_i32_2 : i32
    %c0_3 = arith.constant 0 : index
    %c0_4 = arith.constant 0 : index
    %7 = arith.index_cast %6 : i32 to index
    %c0_5 = arith.constant 0 : index
    %8 = vector.load %arg2[%c0_3, %c0_4, %7, %c0_5] : memref<1x3x16x16xf32, #tpu.memory_space<vmem>>, vector<1x1x1x14xf32>
    %9 = vector.shape_cast %8 : vector<1x1x1x14xf32> to vector<1x14xf32>
    %c0_6 = arith.constant 0 : index
    %c0_7 = arith.constant 0 : index
    %10 = vector.load %arg5[%c0_6, %c0_7] : memref<32x196xf32, #tpu.memory_space<vmem>>, vector<1x14xf32>
    tpu.vector_store %arg5[%c0_6, %c0_7], %9 {strides = array<i32>} : memref<32x196xf32, #tpu.memory_space<vmem>>, vector<1x14xf32>,
    %c0_i32_8 = arith.constant 0 : i32
    %11 = arith.addi %0, %c0_i32_8 : i32
    %c0_i32_9 = arith.constant 0 : i32
    %12 = arith.addi %11, %c0_i32_9 : i32
    %c0_10 = arith.constant 0 : index
    %c0_11 = arith.constant 0 : index
    %13 = arith.index_cast %12 : i32 to index
    %c1 = arith.constant 1 : index
    %14 = vector.load %arg2[%c0_10, %c0_11, %13, %c1] : memref<1x3x16x16xf32, #tpu.memory_space<vmem>>, vector<1x1x1x14xf32>
    %15 = vector.shape_cast %14 : vector<1x1x1x14xf32> to vector<1x14xf32>
    %c1_12 = arith.constant 1 : index
    %c0_13 = arith.constant 0 : index
    %16 = vector.load %arg5[%c1_12, %c0_13] : memref<32x196xf32, #tpu.memory_space<vmem>>, vector<1x14xf32>
    tpu.vector_store %arg5[%c1_12, %c0_13], %15 {strides = array<i32>} : memref<32x196xf32, #tpu.memory_space<vmem>>, vector<1x14xf32>,
    %c0_i32_14 = arith.constant 0 : i32
    %17 = arith.addi %0, %c0_i32_14 : i32
    %c0_i32_15 = arith.constant 0 : i32
    %18 = arith.addi %17, %c0_i32_15 : i32
    %c0_16 = arith.constant 0 : index
    %c0_17 = arith.constant 0 : index
    %19 = arith.index_cast %18 : i32 to index
    %c2 = arith.constant 2 : index
    %20 = vector.load %arg2[%c0_16, %c0_17, %19, %c2] : memref<1x3x16x16xf32, #tpu.memory_space<vmem>>, vector<1x1x1x14xf32>
    %21 = vector.shape_cast %20 : vector<1x1x1x14xf32> to vector<1x14xf32>
    %c2_18 = arith.constant 2 : index
    %c0_19 = arith.constant 0 : index
    %22 = vector.load %arg5[%c2_18, %c0_19] : memref<32x196xf32, #tpu.memory_space<vmem>>, vector<1x14xf32>
    tpu.vector_store %arg5[%c2_18, %c0_19], %21 {strides = array<i32>} : memref<32x196xf32, #tpu.memory_space<vmem>>, vector<1x14xf32>,
    %c0_i32_20 = arith.constant 0 : i32
    %23 = arith.addi %0, %c0_i32_20 : i32
    %c1_i32 = arith.constant 1 : i32
    %24 = arith.addi %23, %c1_i32 : i32
    %c0_21 = arith.constant 0 : index
    %c0_22 = arith.constant 0 : index
    %25 = arith.index_cast %24 : i32 to index
    %c0_23 = arith.constant 0 : index
    %26 = vector.load %arg2[%c0_21, %c0_22, %25, %c0_23] : memref<1x3x16x16xf32, #tpu.memory_space<vmem>>, vector<1x1x1x14xf32>
    %27 = vector.shape_cast %26 : vector<1x1x1x14xf32> to vector<1x14xf32>
    %c3 = arith.constant 3 : index
    %c0_24 = arith.constant 0 : index
    %28 = vector.load %arg5[%c3, %c0_24] : memref<32x196xf32, #tpu.memory_space<vmem>>, vector<1x14xf32>
    tpu.vector_store %arg5[%c3, %c0_24], %27 {strides = array<i32>} : memref<32x196xf32, #tpu.memory_space<vmem>>, vector<1x14xf32>,
    %c0_i32_25 = arith.constant 0 : i32
    %29 = arith.addi %0, %c0_i32_25 : i32
    %c1_i32_26 = arith.constant 1 : i32
    %30 = arith.addi %29, %c1_i32_26 : i32
    %c0_27 = arith.constant 0 : index
    %c0_28 = arith.constant 0 : index
    %31 = arith.index_cast %30 : i32 to index
    %c1_29 = arith.constant 1 : index
    %32 = vector.load %arg2[%c0_27, %c0_28, %31, %c1_29] : memref<1x3x16x16xf32, #tpu.memory_space<vmem>>, vector<1x1x1x14xf32>
    %33 = vector.shape_cast %32 : vector<1x1x1x14xf32> to vector<1x14xf32>
    %c4 = arith.constant 4 : index
    %c0_30 = arith.constant 0 : index
    %34 = vector.load %arg5[%c4, %c0_30] : memref<32x196xf32, #tpu.memory_space<vmem>>, vector<1x14xf32>
    tpu.vector_store %arg5[%c4, %c0_30], %33 {strides = array<i32>} : memref<32x196xf32, #tpu.memory_space<vmem>>, vector<1x14xf32>,
    %c0_i32_31 = arith.constant 0 : i32
    %35 = arith.addi %0, %c0_i32_31 : i32
    %c1_i32_32 = arith.constant 1 : i32
    %36 = arith.addi %35, %c1_i32_32 : i32
    %c0_33 = arith.constant 0 : index
    %c0_34 = arith.constant 0 : index
    %37 = arith.index_cast %36 : i32 to index
    %c2_35 = arith.constant 2 : index
    %38 = vector.load %arg2[%c0_33, %c0_34, %37, %c2_35] : memref<1x3x16x16xf32, #tpu.memory_space<vmem>>, vector<1x1x1x14xf32>
    %39 = vector.shape_cast %38 : vector<1x1x1x14xf32> to vector<1x14xf32>
    %c5 = arith.constant 5 : index
    %c0_36 = arith.constant 0 : index
    %40 = vector.load %arg5[%c5, %c0_36] : memref<32x196xf32, #tpu.memory_space<vmem>>, vector<1x14xf32>
    tpu.vector_store %arg5[%c5, %c0_36], %39 {strides = array<i32>} : memref<32x196xf32, #tpu.memory_space<vmem>>, vector<1x14xf32>,
    %c0_i32_37 = arith.constant 0 : i32
    %41 = arith.addi %0, %c0_i32_37 : i32
    %c2_i32 = arith.constant 2 : i32
    %42 = arith.addi %41, %c2_i32 : i32
    %c0_38 = arith.constant 0 : index
    %c0_39 = arith.constant 0 : index
    %43 = arith.index_cast %42 : i32 to index
    %c0_40 = arith.constant 0 : index
    %44 = vector.load %arg2[%c0_38, %c0_39, %43, %c0_40] : memref<1x3x16x16xf32, #tpu.memory_space<vmem>>, vector<1x1x1x14xf32>
    %45 = vector.shape_cast %44 : vector<1x1x1x14xf32> to vector<1x14xf32>
    %c6 = arith.constant 6 : index
    %c0_41 = arith.constant 0 : index
    %46 = vector.load %arg5[%c6, %c0_41] : memref<32x196xf32, #tpu.memory_space<vmem>>, vector<1x14xf32>
    tpu.vector_store %arg5[%c6, %c0_41], %45 {strides = array<i32>} : memref<32x196xf32, #tpu.memory_space<vmem>>, vector<1x14xf32>,
    %c0_i32_42 = arith.constant 0 : i32
    %47 = arith.addi %0, %c0_i32_42 : i32
    %c2_i32_43 = arith.constant 2 : i32
    %48 = arith.addi %47, %c2_i32_43 : i32
    %c0_44 = arith.constant 0 : index
    %c0_45 = arith.constant 0 : index
    %49 = arith.index_cast %48 : i32 to index
    %c1_46 = arith.constant 1 : index
    %50 = vector.load %arg2[%c0_44, %c0_45, %49, %c1_46] : memref<1x3x16x16xf32, #tpu.memory_space<vmem>>, vector<1x1x1x14xf32>
    %51 = vector.shape_cast %50 : vector<1x1x1x14xf32> to vector<1x14xf32>
    %c7 = arith.constant 7 : index
    %c0_47 = arith.constant 0 : index
    %52 = vector.load %arg5[%c7, %c0_47] : memref<32x196xf32, #tpu.memory_space<vmem>>, vector<1x14xf32>
    tpu.vector_store %arg5[%c7, %c0_47], %51 {strides = array<i32>} : memref<32x196xf32, #tpu.memory_space<vmem>>, vector<1x14xf32>,
    %c0_i32_48 = arith.constant 0 : i32
    %53 = arith.addi %0, %c0_i32_48 : i32
    %c2_i32_49 = arith.constant 2 : i32
    %54 = arith.addi %53, %c2_i32_49 : i32
    %c0_50 = arith.constant 0 : index
    %c0_51 = arith.constant 0 : index
    %55 = arith.index_cast %54 : i32 to index
    %c2_52 = arith.constant 2 : index
    %56 = vector.load %arg2[%c0_50, %c0_51, %55, %c2_52] : memref<1x3x16x16xf32, #tpu.memory_space<vmem>>, vector<1x1x1x14xf32>
    %57 = vector.shape_cast %56 : vector<1x1x1x14xf32> to vector<1x14xf32>
    %c8 = arith.constant 8 : index
    %c0_53 = arith.constant 0 : index
    %58 = vector.load %arg5[%c8, %c0_53] : memref<32x196xf32, #tpu.memory_space<vmem>>, vector<1x14xf32>
    tpu.vector_store %arg5[%c8, %c0_53], %57 {strides = array<i32>} : memref<32x196xf32, #tpu.memory_space<vmem>>, vector<1x14xf32>,
    %c0_i32_54 = arith.constant 0 : i32
    %59 = arith.addi %0, %c0_i32_54 : i32
    %c0_i32_55 = arith.constant 0 : i32
    %60 = arith.addi %59, %c0_i32_55 : i32
    %c0_56 = arith.constant 0 : index
    %c1_57 = arith.constant 1 : index
    %61 = arith.index_cast %60 : i32 to index
    %c0_58 = arith.constant 0 : index
    %62 = vector.load %arg2[%c0_56, %c1_57, %61, %c0_58] : memref<1x3x16x16xf32, #tpu.memory_space<vmem>>, vector<1x1x1x14xf32>
    %63 = vector.shape_cast %62 : vector<1x1x1x14xf32> to vector<1x14xf32>
    %c9 = arith.constant 9 : index
    %c0_59 = arith.constant 0 : index
    %64 = vector.load %arg5[%c9, %c0_59] : memref<32x196xf32, #tpu.memory_space<vmem>>, vector<1x14xf32>
    tpu.vector_store %arg5[%c9, %c0_59], %63 {strides = array<i32>} : memref<32x196xf32, #tpu.memory_space<vmem>>, vector<1x14xf32>,
    %c0_i32_60 = arith.constant 0 : i32
    %65 = arith.addi %0, %c0_i32_60 : i32
    %c0_i32_61 = arith.constant 0 : i32
    %66 = arith.addi %65, %c0_i32_61 : i32
    %c0_62 = arith.constant 0 : index
    %c1_63 = arith.constant 1 : index
    %67 = arith.index_cast %66 : i32 to index
    %c1_64 = arith.constant 1 : index
    %68 = vector.load %arg2[%c0_62, %c1_63, %67, %c1_64] : memref<1x3x16x16xf32, #tpu.memory_space<vmem>>, vector<1x1x1x14xf32>
    %69 = vector.shape_cast %68 : vector<1x1x1x14xf32> to vector<1x14xf32>
    %c10 = arith.constant 10 : index
    %c0_65 = arith.constant 0 : index
    %70 = vector.load %arg5[%c10, %c0_65] : memref<32x196xf32, #tpu.memory_space<vmem>>, vector<1x14xf32>
    tpu.vector_store %arg5[%c10, %c0_65], %69 {strides = array<i32>} : memref<32x196xf32, #tpu.memory_space<vmem>>, vector<1x14xf32>,
    %c0_i32_66 = arith.constant 0 : i32
    %71 = arith.addi %0, %c0_i32_66 : i32
    %c0_i32_67 = arith.constant 0 : i32
    %72 = arith.addi %71, %c0_i32_67 : i32
    %c0_68 = arith.constant 0 : index
    %c1_69 = arith.constant 1 : index
    %73 = arith.index_cast %72 : i32 to index
    %c2_70 = arith.constant 2 : index
    %74 = vector.load %arg2[%c0_68, %c1_69, %73, %c2_70] : memref<1x3x16x16xf32, #tpu.memory_space<vmem>>, vector<1x1x1x14xf32>
    %75 = vector.shape_cast %74 : vector<1x1x1x14xf32> to vector<1x14xf32>
    %c11 = arith.constant 11 : index
    %c0_71 = arith.constant 0 : index
    %76 = vector.load %arg5[%c11, %c0_71] : memref<32x196xf32, #tpu.memory_space<vmem>>, vector<1x14xf32>
    tpu.vector_store %arg5[%c11, %c0_71], %75 {strides = array<i32>} : memref<32x196xf32, #tpu.memory_space<vmem>>, vector<1x14xf32>,
    %c0_i32_72 = arith.constant 0 : i32
    %77 = arith.addi %0, %c0_i32_72 : i32
    %c1_i32_73 = arith.constant 1 : i32
    %78 = arith.addi %77, %c1_i32_73 : i32
    %c0_74 = arith.constant 0 : index
    %c1_75 = arith.constant 1 : index
    %79 = arith.index_cast %78 : i32 to index
    %c0_76 = arith.constant 0 : index
    %80 = vector.load %arg2[%c0_74, %c1_75, %79, %c0_76] : memref<1x3x16x16xf32, #tpu.memory_space<vmem>>, vector<1x1x1x14xf32>
    %81 = vector.shape_cast %80 : vector<1x1x1x14xf32> to vector<1x14xf32>
    %c12 = arith.constant 12 : index
    %c0_77 = arith.constant 0 : index
    %82 = vector.load %arg5[%c12, %c0_77] : memref<32x196xf32, #tpu.memory_space<vmem>>, vector<1x14xf32>
    tpu.vector_store %arg5[%c12, %c0_77], %81 {strides = array<i32>} : memref<32x196xf32, #tpu.memory_space<vmem>>, vector<1x14xf32>,
    %c0_i32_78 = arith.constant 0 : i32
    %83 = arith.addi %0, %c0_i32_78 : i32
    %c1_i32_79 = arith.constant 1 : i32
    %84 = arith.addi %83, %c1_i32_79 : i32
    %c0_80 = arith.constant 0 : index
    %c1_81 = arith.constant 1 : index
    %85 = arith.index_cast %84 : i32 to index
    %c1_82 = arith.constant 1 : index
    %86 = vector.load %arg2[%c0_80, %c1_81, %85, %c1_82] : memref<1x3x16x16xf32, #tpu.memory_space<vmem>>, vector<1x1x1x14xf32>
    %87 = vector.shape_cast %86 : vector<1x1x1x14xf32> to vector<1x14xf32>
    %c13 = arith.constant 13 : index
    %c0_83 = arith.constant 0 : index
    %88 = vector.load %arg5[%c13, %c0_83] : memref<32x196xf32, #tpu.memory_space<vmem>>, vector<1x14xf32>
    tpu.vector_store %arg5[%c13, %c0_83], %87 {strides = array<i32>} : memref<32x196xf32, #tpu.memory_space<vmem>>, vector<1x14xf32>,
    %c0_i32_84 = arith.constant 0 : i32
    %89 = arith.addi %0, %c0_i32_84 : i32
    %c1_i32_85 = arith.constant 1 : i32
    %90 = arith.addi %89, %c1_i32_85 : i32
    %c0_86 = arith.constant 0 : index
    %c1_87 = arith.constant 1 : index
    %91 = arith.index_cast %90 : i32 to index
    %c2_88 = arith.constant 2 : index
    %92 = vector.load %arg2[%c0_86, %c1_87, %91, %c2_88] : memref<1x3x16x16xf32, #tpu.memory_space<vmem>>, vector<1x1x1x14xf32>
    %93 = vector.shape_cast %92 : vector<1x1x1x14xf32> to vector<1x14xf32>
    %c14 = arith.constant 14 : index
    %c0_89 = arith.constant 0 : index
    %94 = vector.load %arg5[%c14, %c0_89] : memref<32x196xf32, #tpu.memory_space<vmem>>, vector<1x14xf32>
    tpu.vector_store %arg5[%c14, %c0_89], %93 {strides = array<i32>} : memref<32x196xf32, #tpu.memory_space<vmem>>, vector<1x14xf32>,
    %c0_i32_90 = arith.constant 0 : i32
    %95 = arith.addi %0, %c0_i32_90 : i32
    %c2_i32_91 = arith.constant 2 : i32
    %96 = arith.addi %95, %c2_i32_91 : i32
    %c0_92 = arith.constant 0 : index
    %c1_93 = arith.constant 1 : index
    %97 = arith.index_cast %96 : i32 to index
    %c0_94 = arith.constant 0 : index
    %98 = vector.load %arg2[%c0_92, %c1_93, %97, %c0_94] : memref<1x3x16x16xf32, #tpu.memory_space<vmem>>, vector<1x1x1x14xf32>
    %99 = vector.shape_cast %98 : vector<1x1x1x14xf32> to vector<1x14xf32>
    %c15 = arith.constant 15 : index
    %c0_95 = arith.constant 0 : index
    %100 = vector.load %arg5[%c15, %c0_95] : memref<32x196xf32, #tpu.memory_space<vmem>>, vector<1x14xf32>
    tpu.vector_store %arg5[%c15, %c0_95], %99 {strides = array<i32>} : memref<32x196xf32, #tpu.memory_space<vmem>>, vector<1x14xf32>,
    %c0_i32_96 = arith.constant 0 : i32
    %101 = arith.addi %0, %c0_i32_96 : i32
    %c2_i32_97 = arith.constant 2 : i32
    %102 = arith.addi %101, %c2_i32_97 : i32
    %c0_98 = arith.constant 0 : index
    %c1_99 = arith.constant 1 : index
    %103 = arith.index_cast %102 : i32 to index
    %c1_100 = arith.constant 1 : index
    %104 = vector.load %arg2[%c0_98, %c1_99, %103, %c1_100] : memref<1x3x16x16xf32, #tpu.memory_space<vmem>>, vector<1x1x1x14xf32>
    %105 = vector.shape_cast %104 : vector<1x1x1x14xf32> to vector<1x14xf32>
    %c16 = arith.constant 16 : index
    %c0_101 = arith.constant 0 : index
    %106 = vector.load %arg5[%c16, %c0_101] : memref<32x196xf32, #tpu.memory_space<vmem>>, vector<1x14xf32>
    tpu.vector_store %arg5[%c16, %c0_101], %105 {strides = array<i32>} : memref<32x196xf32, #tpu.memory_space<vmem>>, vector<1x14xf32>,
    %c0_i32_102 = arith.constant 0 : i32
    %107 = arith.addi %0, %c0_i32_102 : i32
    %c2_i32_103 = arith.constant 2 : i32
    %108 = arith.addi %107, %c2_i32_103 : i32
    %c0_104 = arith.constant 0 : index
    %c1_105 = arith.constant 1 : index
    %109 = arith.index_cast %108 : i32 to index
    %c2_106 = arith.constant 2 : index
    %110 = vector.load %arg2[%c0_104, %c1_105, %109, %c2_106] : memref<1x3x16x16xf32, #tpu.memory_space<vmem>>, vector<1x1x1x14xf32>
    %111 = vector.shape_cast %110 : vector<1x1x1x14xf32> to vector<1x14xf32>
    %c17 = arith.constant 17 : index
    %c0_107 = arith.constant 0 : index
    %112 = vector.load %arg5[%c17, %c0_107] : memref<32x196xf32, #tpu.memory_space<vmem>>, vector<1x14xf32>
    tpu.vector_store %arg5[%c17, %c0_107], %111 {strides = array<i32>} : memref<32x196xf32, #tpu.memory_space<vmem>>, vector<1x14xf32>,
    %c0_i32_108 = arith.constant 0 : i32
    %113 = arith.addi %0, %c0_i32_108 : i32
    %c0_i32_109 = arith.constant 0 : i32
    %114 = arith.addi %113, %c0_i32_109 : i32
    %c0_110 = arith.constant 0 : index
    %c2_111 = arith.constant 2 : index
    %115 = arith.index_cast %114 : i32 to index
    %c0_112 = arith.constant 0 : index
    %116 = vector.load %arg2[%c0_110, %c2_111, %115, %c0_112] : memref<1x3x16x16xf32, #tpu.memory_space<vmem>>, vector<1x1x1x14xf32>
    %117 = vector.shape_cast %116 : vector<1x1x1x14xf32> to vector<1x14xf32>
    %c18 = arith.constant 18 : index
    %c0_113 = arith.constant 0 : index
    %118 = vector.load %arg5[%c18, %c0_113] : memref<32x196xf32, #tpu.memory_space<vmem>>, vector<1x14xf32>
    tpu.vector_store %arg5[%c18, %c0_113], %117 {strides = array<i32>} : memref<32x196xf32, #tpu.memory_space<vmem>>, vector<1x14xf32>,
    %c0_i32_114 = arith.constant 0 : i32
    %119 = arith.addi %0, %c0_i32_114 : i32
    %c0_i32_115 = arith.constant 0 : i32
    %120 = arith.addi %119, %c0_i32_115 : i32
    %c0_116 = arith.constant 0 : index
    %c2_117 = arith.constant 2 : index
    %121 = arith.index_cast %120 : i32 to index
    %c1_118 = arith.constant 1 : index
    %122 = vector.load %arg2[%c0_116, %c2_117, %121, %c1_118] : memref<1x3x16x16xf32, #tpu.memory_space<vmem>>, vector<1x1x1x14xf32>
    %123 = vector.shape_cast %122 : vector<1x1x1x14xf32> to vector<1x14xf32>
    %c19 = arith.constant 19 : index
    %c0_119 = arith.constant 0 : index
    %124 = vector.load %arg5[%c19, %c0_119] : memref<32x196xf32, #tpu.memory_space<vmem>>, vector<1x14xf32>
    tpu.vector_store %arg5[%c19, %c0_119], %123 {strides = array<i32>} : memref<32x196xf32, #tpu.memory_space<vmem>>, vector<1x14xf32>,
    %c0_i32_120 = arith.constant 0 : i32
    %125 = arith.addi %0, %c0_i32_120 : i32
    %c0_i32_121 = arith.constant 0 : i32
    %126 = arith.addi %125, %c0_i32_121 : i32
    %c0_122 = arith.constant 0 : index
    %c2_123 = arith.constant 2 : index
    %127 = arith.index_cast %126 : i32 to index
    %c2_124 = arith.constant 2 : index
    %128 = vector.load %arg2[%c0_122, %c2_123, %127, %c2_124] : memref<1x3x16x16xf32, #tpu.memory_space<vmem>>, vector<1x1x1x14xf32>
    %129 = vector.shape_cast %128 : vector<1x1x1x14xf32> to vector<1x14xf32>
    %c20 = arith.constant 20 : index
    %c0_125 = arith.constant 0 : index
    %130 = vector.load %arg5[%c20, %c0_125] : memref<32x196xf32, #tpu.memory_space<vmem>>, vector<1x14xf32>
    tpu.vector_store %arg5[%c20, %c0_125], %129 {strides = array<i32>} : memref<32x196xf32, #tpu.memory_space<vmem>>, vector<1x14xf32>,
    %c0_i32_126 = arith.constant 0 : i32
    %131 = arith.addi %0, %c0_i32_126 : i32
    %c1_i32_127 = arith.constant 1 : i32
    %132 = arith.addi %131, %c1_i32_127 : i32
    %c0_128 = arith.constant 0 : index
    %c2_129 = arith.constant 2 : index
    %133 = arith.index_cast %132 : i32 to index
    %c0_130 = arith.constant 0 : index
    %134 = vector.load %arg2[%c0_128, %c2_129, %133, %c0_130] : memref<1x3x16x16xf32, #tpu.memory_space<vmem>>, vector<1x1x1x14xf32>
    %135 = vector.shape_cast %134 : vector<1x1x1x14xf32> to vector<1x14xf32>
    %c21 = arith.constant 21 : index
    %c0_131 = arith.constant 0 : index
    %136 = vector.load %arg5[%c21, %c0_131] : memref<32x196xf32, #tpu.memory_space<vmem>>, vector<1x14xf32>
    tpu.vector_store %arg5[%c21, %c0_131], %135 {strides = array<i32>} : memref<32x196xf32, #tpu.memory_space<vmem>>, vector<1x14xf32>,
    %c0_i32_132 = arith.constant 0 : i32
    %137 = arith.addi %0, %c0_i32_132 : i32
    %c1_i32_133 = arith.constant 1 : i32
    %138 = arith.addi %137, %c1_i32_133 : i32
    %c0_134 = arith.constant 0 : index
    %c2_135 = arith.constant 2 : index
    %139 = arith.index_cast %138 : i32 to index
    %c1_136 = arith.constant 1 : index
    %140 = vector.load %arg2[%c0_134, %c2_135, %139, %c1_136] : memref<1x3x16x16xf32, #tpu.memory_space<vmem>>, vector<1x1x1x14xf32>
    %141 = vector.shape_cast %140 : vector<1x1x1x14xf32> to vector<1x14xf32>
    %c22 = arith.constant 22 : index
    %c0_137 = arith.constant 0 : index
    %142 = vector.load %arg5[%c22, %c0_137] : memref<32x196xf32, #tpu.memory_space<vmem>>, vector<1x14xf32>
    tpu.vector_store %arg5[%c22, %c0_137], %141 {strides = array<i32>} : memref<32x196xf32, #tpu.memory_space<vmem>>, vector<1x14xf32>,
    %c0_i32_138 = arith.constant 0 : i32
    %143 = arith.addi %0, %c0_i32_138 : i32
    %c1_i32_139 = arith.constant 1 : i32
    %144 = arith.addi %143, %c1_i32_139 : i32
    %c0_140 = arith.constant 0 : index
    %c2_141 = arith.constant 2 : index
    %145 = arith.index_cast %144 : i32 to index
    %c2_142 = arith.constant 2 : index
    %146 = vector.load %arg2[%c0_140, %c2_141, %145, %c2_142] : memref<1x3x16x16xf32, #tpu.memory_space<vmem>>, vector<1x1x1x14xf32>
    %147 = vector.shape_cast %146 : vector<1x1x1x14xf32> to vector<1x14xf32>
    %c23 = arith.constant 23 : index
    %c0_143 = arith.constant 0 : index
    %148 = vector.load %arg5[%c23, %c0_143] : memref<32x196xf32, #tpu.memory_space<vmem>>, vector<1x14xf32>
    tpu.vector_store %arg5[%c23, %c0_143], %147 {strides = array<i32>} : memref<32x196xf32, #tpu.memory_space<vmem>>, vector<1x14xf32>,
    %c0_i32_144 = arith.constant 0 : i32
    %149 = arith.addi %0, %c0_i32_144 : i32
    %c2_i32_145 = arith.constant 2 : i32
    %150 = arith.addi %149, %c2_i32_145 : i32
    %c0_146 = arith.constant 0 : index
    %c2_147 = arith.constant 2 : index
    %151 = arith.index_cast %150 : i32 to index
    %c0_148 = arith.constant 0 : index
    %152 = vector.load %arg2[%c0_146, %c2_147, %151, %c0_148] : memref<1x3x16x16xf32, #tpu.memory_space<vmem>>, vector<1x1x1x14xf32>
    %153 = vector.shape_cast %152 : vector<1x1x1x14xf32> to vector<1x14xf32>
    %c24 = arith.constant 24 : index
    %c0_149 = arith.constant 0 : index
    %154 = vector.load %arg5[%c24, %c0_149] : memref<32x196xf32, #tpu.memory_space<vmem>>, vector<1x14xf32>
    tpu.vector_store %arg5[%c24, %c0_149], %153 {strides = array<i32>} : memref<32x196xf32, #tpu.memory_space<vmem>>, vector<1x14xf32>,
    %c0_i32_150 = arith.constant 0 : i32
    %155 = arith.addi %0, %c0_i32_150 : i32
    %c2_i32_151 = arith.constant 2 : i32
    %156 = arith.addi %155, %c2_i32_151 : i32
    %c0_152 = arith.constant 0 : index
    %c2_153 = arith.constant 2 : index
    %157 = arith.index_cast %156 : i32 to index
    %c1_154 = arith.constant 1 : index
    %158 = vector.load %arg2[%c0_152, %c2_153, %157, %c1_154] : memref<1x3x16x16xf32, #tpu.memory_space<vmem>>, vector<1x1x1x14xf32>
    %159 = vector.shape_cast %158 : vector<1x1x1x14xf32> to vector<1x14xf32>
    %c25 = arith.constant 25 : index
    %c0_155 = arith.constant 0 : index
    %160 = vector.load %arg5[%c25, %c0_155] : memref<32x196xf32, #tpu.memory_space<vmem>>, vector<1x14xf32>
    tpu.vector_store %arg5[%c25, %c0_155], %159 {strides = array<i32>} : memref<32x196xf32, #tpu.memory_space<vmem>>, vector<1x14xf32>,
    %c0_i32_156 = arith.constant 0 : i32
    %161 = arith.addi %0, %c0_i32_156 : i32
    %c2_i32_157 = arith.constant 2 : i32
    %162 = arith.addi %161, %c2_i32_157 : i32
    %c0_158 = arith.constant 0 : index
    %c2_159 = arith.constant 2 : index
    %163 = arith.index_cast %162 : i32 to index
    %c2_160 = arith.constant 2 : index
    %164 = vector.load %arg2[%c0_158, %c2_159, %163, %c2_160] : memref<1x3x16x16xf32, #tpu.memory_space<vmem>>, vector<1x1x1x14xf32>
    %165 = vector.shape_cast %164 : vector<1x1x1x14xf32> to vector<1x14xf32>
    %c26 = arith.constant 26 : index
    %c0_161 = arith.constant 0 : index
    %166 = vector.load %arg5[%c26, %c0_161] : memref<32x196xf32, #tpu.memory_space<vmem>>, vector<1x14xf32>
    tpu.vector_store %arg5[%c26, %c0_161], %165 {strides = array<i32>} : memref<32x196xf32, #tpu.memory_space<vmem>>, vector<1x14xf32>,
    %c1_i32_162 = arith.constant 1 : i32
    %167 = arith.addi %0, %c1_i32_162 : i32
    %c0_i32_163 = arith.constant 0 : i32
    %168 = arith.addi %167, %c0_i32_163 : i32
    %c0_164 = arith.constant 0 : index
    %c0_165 = arith.constant 0 : index
    %169 = arith.index_cast %168 : i32 to index
    %c0_166 = arith.constant 0 : index
    %170 = vector.load %arg2[%c0_164, %c0_165, %169, %c0_166] : memref<1x3x16x16xf32, #tpu.memory_space<vmem>>, vector<1x1x1x14xf32>
    %171 = vector.shape_cast %170 : vector<1x1x1x14xf32> to vector<1x14xf32>
    %c0_167 = arith.constant 0 : index
    %c14_168 = arith.constant 14 : index
    %172 = vector.load %arg5[%c0_167, %c14_168] : memref<32x196xf32, #tpu.memory_space<vmem>>, vector<1x14xf32>
    tpu.vector_store %arg5[%c0_167, %c14_168], %171 {strides = array<i32>} : memref<32x196xf32, #tpu.memory_space<vmem>>, vector<1x14xf32>,
    %c1_i32_169 = arith.constant 1 : i32
    %173 = arith.addi %0, %c1_i32_169 : i32
    %c0_i32_170 = arith.constant 0 : i32
    %174 = arith.addi %173, %c0_i32_170 : i32
    %c0_171 = arith.constant 0 : index
    %c0_172 = arith.constant 0 : index
    %175 = arith.index_cast %174 : i32 to index
    %c1_173 = arith.constant 1 : index
    %176 = vector.load %arg2[%c0_171, %c0_172, %175, %c1_173] : memref<1x3x16x16xf32, #tpu.memory_space<vmem>>, vector<1x1x1x14xf32>
    %177 = vector.shape_cast %176 : vector<1x1x1x14xf32> to vector<1x14xf32>
    %c1_174 = arith.constant 1 : index
    %c14_175 = arith.constant 14 : index
    %178 = vector.load %arg5[%c1_174, %c14_175] : memref<32x196xf32, #tpu.memory_space<vmem>>, vector<1x14xf32>
    tpu.vector_store %arg5[%c1_174, %c14_175], %177 {strides = array<i32>} : memref<32x196xf32, #tpu.memory_space<vmem>>, vector<1x14xf32>,
    %c1_i32_176 = arith.constant 1 : i32
    %179 = arith.addi %0, %c1_i32_176 : i32
    %c0_i32_177 = arith.constant 0 : i32
    %180 = arith.addi %179, %c0_i32_177 : i32
    %c0_178 = arith.constant 0 : index
    %c0_179 = arith.constant 0 : index
    %181 = arith.index_cast %180 : i32 to index
    %c2_180 = arith.constant 2 : index
    %182 = vector.load %arg2[%c0_178, %c0_179, %181, %c2_180] : memref<1x3x16x16xf32, #tpu.memory_space<vmem>>, vector<1x1x1x14xf32>
    %183 = vector.shape_cast %182 : vector<1x1x1x14xf32> to vector<1x14xf32>
    %c2_181 = arith.constant 2 : index
    %c14_182 = arith.constant 14 : index
    %184 = vector.load %arg5[%c2_181, %c14_182] : memref<32x196xf32, #tpu.memory_space<vmem>>, vector<1x14xf32>
    tpu.vector_store %arg5[%c2_181, %c14_182], %183 {strides = array<i32>} : memref<32x196xf32, #tpu.memory_space<vmem>>, vector<1x14xf32>,
    %c1_i32_183 = arith.constant 1 : i32
    %185 = arith.addi %0, %c1_i32_183 : i32
    %c1_i32_184 = arith.constant 1 : i32
    %186 = arith.addi %185, %c1_i32_184 : i32
    %c0_185 = arith.constant 0 : index
    %c0_186 = arith.constant 0 : index
    %187 = arith.index_cast %186 : i32 to index
    %c0_187 = arith.constant 0 : index
    %188 = vector.load %arg2[%c0_185, %c0_186, %187, %c0_187] : memref<1x3x16x16xf32, #tpu.memory_space<vmem>>, vector<1x1x1x14xf32>
    %189 = vector.shape_cast %188 : vector<1x1x1x14xf32> to vector<1x14xf32>
    %c3_188 = arith.constant 3 : index
    %c14_189 = arith.constant 14 : index
    %190 = vector.load %arg5[%c3_188, %c14_189] : memref<32x196xf32, #tpu.memory_space<vmem>>, vector<1x14xf32>
    tpu.vector_store %arg5[%c3_188, %c14_189], %189 {strides = array<i32>} : memref<32x196xf32, #tpu.memory_space<vmem>>, vector<1x14xf32>,
    %c1_i32_190 = arith.constant 1 : i32
    %191 = arith.addi %0, %c1_i32_190 : i32
    %c1_i32_191 = arith.constant 1 : i32
    %192 = arith.addi %191, %c1_i32_191 : i32
    %c0_192 = arith.constant 0 : index
    %c0_193 = arith.constant 0 : index
    %193 = arith.index_cast %192 : i32 to index
    %c1_194 = arith.constant 1 : index
    %194 = vector.load %arg2[%c0_192, %c0_193, %193, %c1_194] : memref<1x3x16x16xf32, #tpu.memory_space<vmem>>, vector<1x1x1x14xf32>
    %195 = vector.shape_cast %194 : vector<1x1x1x14xf32> to vector<1x14xf32>
    %c4_195 = arith.constant 4 : index
    %c14_196 = arith.constant 14 : index
    %196 = vector.load %arg5[%c4_195, %c14_196] : memref<32x196xf32, #tpu.memory_space<vmem>>, vector<1x14xf32>
    tpu.vector_store %arg5[%c4_195, %c14_196], %195 {strides = array<i32>} : memref<32x196xf32, #tpu.memory_space<vmem>>, vector<1x14xf32>,
    %c1_i32_197 = arith.constant 1 : i32
    %197 = arith.addi %0, %c1_i32_197 : i32
    %c1_i32_198 = arith.constant 1 : i32
    %198 = arith.addi %197, %c1_i32_198 : i32
    %c0_199 = arith.constant 0 : index
    %c0_200 = arith.constant 0 : index
    %199 = arith.index_cast %198 : i32 to index
    %c2_201 = arith.constant 2 : index
    %200 = vector.load %arg2[%c0_199, %c0_200, %199, %c2_201] : memref<1x3x16x16xf32, #tpu.memory_space<vmem>>, vector<1x1x1x14xf32>
    %201 = vector.shape_cast %200 : vector<1x1x1x14xf32> to vector<1x14xf32>
    %c5_202 = arith.constant 5 : index
    %c14_203 = arith.constant 14 : index
    %202 = vector.load %arg5[%c5_202, %c14_203] : memref<32x196xf32, #tpu.memory_space<vmem>>, vector<1x14xf32>
    tpu.vector_store %arg5[%c5_202, %c14_203], %201 {strides = array<i32>} : memref<32x196xf32, #tpu.memory_space<vmem>>, vector<1x14xf32>,
    %c1_i32_204 = arith.constant 1 : i32
    %203 = arith.addi %0, %c1_i32_204 : i32
    %c2_i32_205 = arith.constant 2 : i32
    %204 = arith.addi %203, %c2_i32_205 : i32
    %c0_206 = arith.constant 0 : index
    %c0_207 = arith.constant 0 : index
    %205 = arith.index_cast %204 : i32 to index
    %c0_208 = arith.constant 0 : index
    %206 = vector.load %arg2[%c0_206, %c0_207, %205, %c0_208] : memref<1x3x16x16xf32, #tpu.memory_space<vmem>>, vector<1x1x1x14xf32>
    %207 = vector.shape_cast %206 : vector<1x1x1x14xf32> to vector<1x14xf32>
    %c6_209 = arith.constant 6 : index
    %c14_210 = arith.constant 14 : index
    %208 = vector.load %arg5[%c6_209, %c14_210] : memref<32x196xf32, #tpu.memory_space<vmem>>, vector<1x14xf32>
    tpu.vector_store %arg5[%c6_209, %c14_210], %207 {strides = array<i32>} : memref<32x196xf32, #tpu.memory_space<vmem>>, vector<1x14xf32>,
    %c1_i32_211 = arith.constant 1 : i32
    %209 = arith.addi %0, %c1_i32_211 : i32
    %c2_i32_212 = arith.constant 2 : i32
    %210 = arith.addi %209, %c2_i32_212 : i32
    %c0_213 = arith.constant 0 : index
    %c0_214 = arith.constant 0 : index
    %211 = arith.index_cast %210 : i32 to index
    %c1_215 = arith.constant 1 : index
    %212 = vector.load %arg2[%c0_213, %c0_214, %211, %c1_215] : memref<1x3x16x16xf32, #tpu.memory_space<vmem>>, vector<1x1x1x14xf32>
    %213 = vector.shape_cast %212 : vector<1x1x1x14xf32> to vector<1x14xf32>
    %c7_216 = arith.constant 7 : index
    %c14_217 = arith.constant 14 : index
    %214 = vector.load %arg5[%c7_216, %c14_217] : memref<32x196xf32, #tpu.memory_space<vmem>>, vector<1x14xf32>
    tpu.vector_store %arg5[%c7_216, %c14_217], %213 {strides = array<i32>} : memref<32x196xf32, #tpu.memory_space<vmem>>, vector<1x14xf32>,
    %c1_i32_218 = arith.constant 1 : i32
    %215 = arith.addi %0, %c1_i32_218 : i32
    %c2_i32_219 = arith.constant 2 : i32
    %216 = arith.addi %215, %c2_i32_219 : i32
    %c0_220 = arith.constant 0 : index
    %c0_221 = arith.constant 0 : index
    %217 = arith.index_cast %216 : i32 to index
    %c2_222 = arith.constant 2 : index
    %218 = vector.load %arg2[%c0_220, %c0_221, %217, %c2_222] : memref<1x3x16x16xf32, #tpu.memory_space<vmem>>, vector<1x1x1x14xf32>
    %219 = vector.shape_cast %218 : vector<1x1x1x14xf32> to vector<1x14xf32>
    %c8_223 = arith.constant 8 : index
    %c14_224 = arith.constant 14 : index
    %220 = vector.load %arg5[%c8_223, %c14_224] : memref<32x196xf32, #tpu.memory_space<vmem>>, vector<1x14xf32>
    tpu.vector_store %arg5[%c8_223, %c14_224], %219 {strides = array<i32>} : memref<32x196xf32, #tpu.memory_space<vmem>>, vector<1x14xf32>,
    %c1_i32_225 = arith.constant 1 : i32
    %221 = arith.addi %0, %c1_i32_225 : i32
    %c0_i32_226 = arith.constant 0 : i32
    %222 = arith.addi %221, %c0_i32_226 : i32
    %c0_227 = arith.constant 0 : index
    %c1_228 = arith.constant 1 : index
    %223 = arith.index_cast %222 : i32 to index
    %c0_229 = arith.constant 0 : index
    %224 = vector.load %arg2[%c0_227, %c1_228, %223, %c0_229] : memref<1x3x16x16xf32, #tpu.memory_space<vmem>>, vector<1x1x1x14xf32>
    %225 = vector.shape_cast %224 : vector<1x1x1x14xf32> to vector<1x14xf32>
    %c9_230 = arith.constant 9 : index
    %c14_231 = arith.constant 14 : index
    %226 = vector.load %arg5[%c9_230, %c14_231] : memref<32x196xf32, #tpu.memory_space<vmem>>, vector<1x14xf32>
    tpu.vector_store %arg5[%c9_230, %c14_231], %225 {strides = array<i32>} : memref<32x196xf32, #tpu.memory_space<vmem>>, vector<1x14xf32>,
    %c1_i32_232 = arith.constant 1 : i32
    %227 = arith.addi %0, %c1_i32_232 : i32
    %c0_i32_233 = arith.constant 0 : i32
    %228 = arith.addi %227, %c0_i32_233 : i32
    %c0_234 = arith.constant 0 : index
    %c1_235 = arith.constant 1 : index
    %229 = arith.index_cast %228 : i32 to index
    %c1_236 = arith.constant 1 : index
    %230 = vector.load %arg2[%c0_234, %c1_235, %229, %c1_236] : memref<1x3x16x16xf32, #tpu.memory_space<vmem>>, vector<1x1x1x14xf32>
    %231 = vector.shape_cast %230 : vector<1x1x1x14xf32> to vector<1x14xf32>
    %c10_237 = arith.constant 10 : index
    %c14_238 = arith.constant 14 : index
    %232 = vector.load %arg5[%c10_237, %c14_238] : memref<32x196xf32, #tpu.memory_space<vmem>>, vector<1x14xf32>
    tpu.vector_store %arg5[%c10_237, %c14_238], %231 {strides = array<i32>} : memref<32x196xf32, #tpu.memory_space<vmem>>, vector<1x14xf32>,
    %c1_i32_239 = arith.constant 1 : i32
    %233 = arith.addi %0, %c1_i32_239 : i32
    %c0_i32_240 = arith.constant 0 : i32
    %234 = arith.addi %233, %c0_i32_240 : i32
    %c0_241 = arith.constant 0 : index
    %c1_242 = arith.constant 1 : index
    %235 = arith.index_cast %234 : i32 to index
    %c2_243 = arith.constant 2 : index
    %236 = vector.load %arg2[%c0_241, %c1_242, %235, %c2_243] : memref<1x3x16x16xf32, #tpu.memory_space<vmem>>, vector<1x1x1x14xf32>
    %237 = vector.shape_cast %236 : vector<1x1x1x14xf32> to vector<1x14xf32>
    %c11_244 = arith.constant 11 : index
    %c14_245 = arith.constant 14 : index
    %238 = vector.load %arg5[%c11_244, %c14_245] : memref<32x196xf32, #tpu.memory_space<vmem>>, vector<1x14xf32>
    tpu.vector_store %arg5[%c11_244, %c14_245], %237 {strides = array<i32>} : memref<32x196xf32, #tpu.memory_space<vmem>>, vector<1x14xf32>,
    %c1_i32_246 = arith.constant 1 : i32
    %239 = arith.addi %0, %c1_i32_246 : i32
    %c1_i32_247 = arith.constant 1 : i32
    %240 = arith.addi %239, %c1_i32_247 : i32
    %c0_248 = arith.constant 0 : index
    %c1_249 = arith.constant 1 : index
    %241 = arith.index_cast %240 : i32 to index
    %c0_250 = arith.constant 0 : index
    %242 = vector.load %arg2[%c0_248, %c1_249, %241, %c0_250] : memref<1x3x16x16xf32, #tpu.memory_space<vmem>>, vector<1x1x1x14xf32>
    %243 = vector.shape_cast %242 : vector<1x1x1x14xf32> to vector<1x14xf32>
    %c12_251 = arith.constant 12 : index
    %c14_252 = arith.constant 14 : index
    %244 = vector.load %arg5[%c12_251, %c14_252] : memref<32x196xf32, #tpu.memory_space<vmem>>, vector<1x14xf32>
    tpu.vector_store %arg5[%c12_251, %c14_252], %243 {strides = array<i32>} : memref<32x196xf32, #tpu.memory_space<vmem>>, vector<1x14xf32>,
    %c1_i32_253 = arith.constant 1 : i32
    %245 = arith.addi %0, %c1_i32_253 : i32
    %c1_i32_254 = arith.constant 1 : i32
    %246 = arith.addi %245, %c1_i32_254 : i32
    %c0_255 = arith.constant 0 : index
    %c1_256 = arith.constant 1 : index
    %247 = arith.index_cast %246 : i32 to index
    %c1_257 = arith.constant 1 : index
    %248 = vector.load %arg2[%c0_255, %c1_256, %247, %c1_257] : memref<1x3x16x16xf32, #tpu.memory_space<vmem>>, vector<1x1x1x14xf32>
    %249 = vector.shape_cast %248 : vector<1x1x1x14xf32> to vector<1x14xf32>
    %c13_258 = arith.constant 13 : index
    %c14_259 = arith.constant 14 : index
    %250 = vector.load %arg5[%c13_258, %c14_259] : memref<32x196xf32, #tpu.memory_space<vmem>>, vector<1x14xf32>
    tpu.vector_store %arg5[%c13_258, %c14_259], %249 {strides = array<i32>} : memref<32x196xf32, #tpu.memory_space<vmem>>, vector<1x14xf32>,
    %c1_i32_260 = arith.constant 1 : i32
    %251 = arith.addi %0, %c1_i32_260 : i32
    %c1_i32_261 = arith.constant 1 : i32
    %252 = arith.addi %251, %c1_i32_261 : i32
    %c0_262 = arith.constant 0 : index
    %c1_263 = arith.constant 1 : index
    %253 = arith.index_cast %252 : i32 to index
    %c2_264 = arith.constant 2 : index
    %254 = vector.load %arg2[%c0_262, %c1_263, %253, %c2_264] : memref<1x3x16x16xf32, #tpu.memory_space<vmem>>, vector<1x1x1x14xf32>
    %255 = vector.shape_cast %254 : vector<1x1x1x14xf32> to vector<1x14xf32>
    %c14_265 = arith.constant 14 : index
    %c14_266 = arith.constant 14 : index
    %256 = vector.load %arg5[%c14_265, %c14_266] : memref<32x196xf32, #tpu.memory_space<vmem>>, vector<1x14xf32>
    tpu.vector_store %arg5[%c14_265, %c14_266], %255 {strides = array<i32>} : memref<32x196xf32, #tpu.memory_space<vmem>>, vector<1x14xf32>,
    %c1_i32_267 = arith.constant 1 : i32
    %257 = arith.addi %0, %c1_i32_267 : i32
    %c2_i32_268 = arith.constant 2 : i32
    %258 = arith.addi %257, %c2_i32_268 : i32
    %c0_269 = arith.constant 0 : index
    %c1_270 = arith.constant 1 : index
    %259 = arith.index_cast %258 : i32 to index
    %c0_271 = arith.constant 0 : index
    %260 = vector.load %arg2[%c0_269, %c1_270, %259, %c0_271] : memref<1x3x16x16xf32, #tpu.memory_space<vmem>>, vector<1x1x1x14xf32>
    %261 = vector.shape_cast %260 : vector<1x1x1x14xf32> to vector<1x14xf32>
    %c15_272 = arith.constant 15 : index
    %c14_273 = arith.constant 14 : index
    %262 = vector.load %arg5[%c15_272, %c14_273] : memref<32x196xf32, #tpu.memory_space<vmem>>, vector<1x14xf32>
    tpu.vector_store %arg5[%c15_272, %c14_273], %261 {strides = array<i32>} : memref<32x196xf32, #tpu.memory_space<vmem>>, vector<1x14xf32>,
    %c1_i32_274 = arith.constant 1 : i32
    %263 = arith.addi %0, %c1_i32_274 : i32
    %c2_i32_275 = arith.constant 2 : i32
    %264 = arith.addi %263, %c2_i32_275 : i32
    %c0_276 = arith.constant 0 : index
    %c1_277 = arith.constant 1 : index
    %265 = arith.index_cast %264 : i32 to index
    %c1_278 = arith.constant 1 : index
    %266 = vector.load %arg2[%c0_276, %c1_277, %265, %c1_278] : memref<1x3x16x16xf32, #tpu.memory_space<vmem>>, vector<1x1x1x14xf32>
    %267 = vector.shape_cast %266 : vector<1x1x1x14xf32> to vector<1x14xf32>
    %c16_279 = arith.constant 16 : index
    %c14_280 = arith.constant 14 : index
    %268 = vector.load %arg5[%c16_279, %c14_280] : memref<32x196xf32, #tpu.memory_space<vmem>>, vector<1x14xf32>
    tpu.vector_store %arg5[%c16_279, %c14_280], %267 {strides = array<i32>} : memref<32x196xf32, #tpu.memory_space<vmem>>, vector<1x14xf32>,
    %c1_i32_281 = arith.constant 1 : i32
    %269 = arith.addi %0, %c1_i32_281 : i32
    %c2_i32_282 = arith.constant 2 : i32
    %270 = arith.addi %269, %c2_i32_282 : i32
    %c0_283 = arith.constant 0 : index
    %c1_284 = arith.constant 1 : index
    %271 = arith.index_cast %270 : i32 to index
    %c2_285 = arith.constant 2 : index
    %272 = vector.load %arg2[%c0_283, %c1_284, %271, %c2_285] : memref<1x3x16x16xf32, #tpu.memory_space<vmem>>, vector<1x1x1x14xf32>
    %273 = vector.shape_cast %272 : vector<1x1x1x14xf32> to vector<1x14xf32>
    %c17_286 = arith.constant 17 : index
    %c14_287 = arith.constant 14 : index
    %274 = vector.load %arg5[%c17_286, %c14_287] : memref<32x196xf32, #tpu.memory_space<vmem>>, vector<1x14xf32>
    tpu.vector_store %arg5[%c17_286, %c14_287], %273 {strides = array<i32>} : memref<32x196xf32, #tpu.memory_space<vmem>>, vector<1x14xf32>,
    %c1_i32_288 = arith.constant 1 : i32
    %275 = arith.addi %0, %c1_i32_288 : i32
    %c0_i32_289 = arith.constant 0 : i32
    %276 = arith.addi %275, %c0_i32_289 : i32
    %c0_290 = arith.constant 0 : index
    %c2_291 = arith.constant 2 : index
    %277 = arith.index_cast %276 : i32 to index
    %c0_292 = arith.constant 0 : index
    %278 = vector.load %arg2[%c0_290, %c2_291, %277, %c0_292] : memref<1x3x16x16xf32, #tpu.memory_space<vmem>>, vector<1x1x1x14xf32>
    %279 = vector.shape_cast %278 : vector<1x1x1x14xf32> to vector<1x14xf32>
    %c18_293 = arith.constant 18 : index
    %c14_294 = arith.constant 14 : index
    %280 = vector.load %arg5[%c18_293, %c14_294] : memref<32x196xf32, #tpu.memory_space<vmem>>, vector<1x14xf32>
    tpu.vector_store %arg5[%c18_293, %c14_294], %279 {strides = array<i32>} : memref<32x196xf32, #tpu.memory_space<vmem>>, vector<1x14xf32>,
    %c1_i32_295 = arith.constant 1 : i32
    %281 = arith.addi %0, %c1_i32_295 : i32
    %c0_i32_296 = arith.constant 0 : i32
    %282 = arith.addi %281, %c0_i32_296 : i32
    %c0_297 = arith.constant 0 : index
    %c2_298 = arith.constant 2 : index
    %283 = arith.index_cast %282 : i32 to index
    %c1_299 = arith.constant 1 : index
    %284 = vector.load %arg2[%c0_297, %c2_298, %283, %c1_299] : memref<1x3x16x16xf32, #tpu.memory_space<vmem>>, vector<1x1x1x14xf32>
    %285 = vector.shape_cast %284 : vector<1x1x1x14xf32> to vector<1x14xf32>
    %c19_300 = arith.constant 19 : index
    %c14_301 = arith.constant 14 : index
    %286 = vector.load %arg5[%c19_300, %c14_301] : memref<32x196xf32, #tpu.memory_space<vmem>>, vector<1x14xf32>
    tpu.vector_store %arg5[%c19_300, %c14_301], %285 {strides = array<i32>} : memref<32x196xf32, #tpu.memory_space<vmem>>, vector<1x14xf32>,
    %c1_i32_302 = arith.constant 1 : i32
    %287 = arith.addi %0, %c1_i32_302 : i32
    %c0_i32_303 = arith.constant 0 : i32
    %288 = arith.addi %287, %c0_i32_303 : i32
    %c0_304 = arith.constant 0 : index
    %c2_305 = arith.constant 2 : index
    %289 = arith.index_cast %288 : i32 to index
    %c2_306 = arith.constant 2 : index
    %290 = vector.load %arg2[%c0_304, %c2_305, %289, %c2_306] : memref<1x3x16x16xf32, #tpu.memory_space<vmem>>, vector<1x1x1x14xf32>
    %291 = vector.shape_cast %290 : vector<1x1x1x14xf32> to vector<1x14xf32>
    %c20_307 = arith.constant 20 : index
    %c14_308 = arith.constant 14 : index
    %292 = vector.load %arg5[%c20_307, %c14_308] : memref<32x196xf32, #tpu.memory_space<vmem>>, vector<1x14xf32>
    tpu.vector_store %arg5[%c20_307, %c14_308], %291 {strides = array<i32>} : memref<32x196xf32, #tpu.memory_space<vmem>>, vector<1x14xf32>,
    %c1_i32_309 = arith.constant 1 : i32
    %293 = arith.addi %0, %c1_i32_309 : i32
    %c1_i32_310 = arith.constant 1 : i32
    %294 = arith.addi %293, %c1_i32_310 : i32
    %c0_311 = arith.constant 0 : index
    %c2_312 = arith.constant 2 : index
    %295 = arith.index_cast %294 : i32 to index
    %c0_313 = arith.constant 0 : index
    %296 = vector.load %arg2[%c0_311, %c2_312, %295, %c0_313] : memref<1x3x16x16xf32, #tpu.memory_space<vmem>>, vector<1x1x1x14xf32>
    %297 = vector.shape_cast %296 : vector<1x1x1x14xf32> to vector<1x14xf32>
    %c21_314 = arith.constant 21 : index
    %c14_315 = arith.constant 14 : index
    %298 = vector.load %arg5[%c21_314, %c14_315] : memref<32x196xf32, #tpu.memory_space<vmem>>, vector<1x14xf32>
    tpu.vector_store %arg5[%c21_314, %c14_315], %297 {strides = array<i32>} : memref<32x196xf32, #tpu.memory_space<vmem>>, vector<1x14xf32>,
    %c1_i32_316 = arith.constant 1 : i32
    %299 = arith.addi %0, %c1_i32_316 : i32
    %c1_i32_317 = arith.constant 1 : i32
    %300 = arith.addi %299, %c1_i32_317 : i32
    %c0_318 = arith.constant 0 : index
    %c2_319 = arith.constant 2 : index
    %301 = arith.index_cast %300 : i32 to index
    %c1_320 = arith.constant 1 : index
    %302 = vector.load %arg2[%c0_318, %c2_319, %301, %c1_320] : memref<1x3x16x16xf32, #tpu.memory_space<vmem>>, vector<1x1x1x14xf32>
    %303 = vector.shape_cast %302 : vector<1x1x1x14xf32> to vector<1x14xf32>
    %c22_321 = arith.constant 22 : index
    %c14_322 = arith.constant 14 : index
    %304 = vector.load %arg5[%c22_321, %c14_322] : memref<32x196xf32, #tpu.memory_space<vmem>>, vector<1x14xf32>
    tpu.vector_store %arg5[%c22_321, %c14_322], %303 {strides = array<i32>} : memref<32x196xf32, #tpu.memory_space<vmem>>, vector<1x14xf32>,
    %c1_i32_323 = arith.constant 1 : i32
    %305 = arith.addi %0, %c1_i32_323 : i32
    %c1_i32_324 = arith.constant 1 : i32
    %306 = arith.addi %305, %c1_i32_324 : i32
    %c0_325 = arith.constant 0 : index
    %c2_326 = arith.constant 2 : index
    %307 = arith.index_cast %306 : i32 to index
    %c2_327 = arith.constant 2 : index
    %308 = vector.load %arg2[%c0_325, %c2_326, %307, %c2_327] : memref<1x3x16x16xf32, #tpu.memory_space<vmem>>, vector<1x1x1x14xf32>
    %309 = vector.shape_cast %308 : vector<1x1x1x14xf32> to vector<1x14xf32>
    %c23_328 = arith.constant 23 : index
    %c14_329 = arith.constant 14 : index
    %310 = vector.load %arg5[%c23_328, %c14_329] : memref<32x196xf32, #tpu.memory_space<vmem>>, vector<1x14xf32>
    tpu.vector_store %arg5[%c23_328, %c14_329], %309 {strides = array<i32>} : memref<32x196xf32, #tpu.memory_space<vmem>>, vector<1x14xf32>,
    %c1_i32_330 = arith.constant 1 : i32
    %311 = arith.addi %0, %c1_i32_330 : i32
    %c2_i32_331 = arith.constant 2 : i32
    %312 = arith.addi %311, %c2_i32_331 : i32
    %c0_332 = arith.constant 0 : index
    %c2_333 = arith.constant 2 : index
    %313 = arith.index_cast %312 : i32 to index
    %c0_334 = arith.constant 0 : index
    %314 = vector.load %arg2[%c0_332, %c2_333, %313, %c0_334] : memref<1x3x16x16xf32, #tpu.memory_space<vmem>>, vector<1x1x1x14xf32>
    %315 = vector.shape_cast %314 : vector<1x1x1x14xf32> to vector<1x14xf32>
    %c24_335 = arith.constant 24 : index
    %c14_336 = arith.constant 14 : index
    %316 = vector.load %arg5[%c24_335, %c14_336] : memref<32x196xf32, #tpu.memory_space<vmem>>, vector<1x14xf32>
    tpu.vector_store %arg5[%c24_335, %c14_336], %315 {strides = array<i32>} : memref<32x196xf32, #tpu.memory_space<vmem>>, vector<1x14xf32>,
    %c1_i32_337 = arith.constant 1 : i32
    %317 = arith.addi %0, %c1_i32_337 : i32
    %c2_i32_338 = arith.constant 2 : i32
    %318 = arith.addi %317, %c2_i32_338 : i32
    %c0_339 = arith.constant 0 : index
    %c2_340 = arith.constant 2 : index
    %319 = arith.index_cast %318 : i32 to index
    %c1_341 = arith.constant 1 : index
    %320 = vector.load %arg2[%c0_339, %c2_340, %319, %c1_341] : memref<1x3x16x16xf32, #tpu.memory_space<vmem>>, vector<1x1x1x14xf32>
    %321 = vector.shape_cast %320 : vector<1x1x1x14xf32> to vector<1x14xf32>
    %c25_342 = arith.constant 25 : index
    %c14_343 = arith.constant 14 : index
    %322 = vector.load %arg5[%c25_342, %c14_343] : memref<32x196xf32, #tpu.memory_space<vmem>>, vector<1x14xf32>
    tpu.vector_store %arg5[%c25_342, %c14_343], %321 {strides = array<i32>} : memref<32x196xf32, #tpu.memory_space<vmem>>, vector<1x14xf32>,
    %c1_i32_344 = arith.constant 1 : i32
    %323 = arith.addi %0, %c1_i32_344 : i32
    %c2_i32_345 = arith.constant 2 : i32
    %324 = arith.addi %323, %c2_i32_345 : i32
    %c0_346 = arith.constant 0 : index
    %c2_347 = arith.constant 2 : index
    %325 = arith.index_cast %324 : i32 to index
    %c2_348 = arith.constant 2 : index
    %326 = vector.load %arg2[%c0_346, %c2_347, %325, %c2_348] : memref<1x3x16x16xf32, #tpu.memory_space<vmem>>, vector<1x1x1x14xf32>
    %327 = vector.shape_cast %326 : vector<1x1x1x14xf32> to vector<1x14xf32>
    %c26_349 = arith.constant 26 : index
    %c14_350 = arith.constant 14 : index
    %328 = vector.load %arg5[%c26_349, %c14_350] : memref<32x196xf32, #tpu.memory_space<vmem>>, vector<1x14xf32>
    tpu.vector_store %arg5[%c26_349, %c14_350], %327 {strides = array<i32>} : memref<32x196xf32, #tpu.memory_space<vmem>>, vector<1x14xf32>,
    %c2_i32_351 = arith.constant 2 : i32
    %329 = arith.addi %0, %c2_i32_351 : i32
    %c0_i32_352 = arith.constant 0 : i32
    %330 = arith.addi %329, %c0_i32_352 : i32
    %c0_353 = arith.constant 0 : index
    %c0_354 = arith.constant 0 : index
    %331 = arith.index_cast %330 : i32 to index
    %c0_355 = arith.constant 0 : index
    %332 = vector.load %arg2[%c0_353, %c0_354, %331, %c0_355] : memref<1x3x16x16xf32, #tpu.memory_space<vmem>>, vector<1x1x1x14xf32>
    %333 = vector.shape_cast %332 : vector<1x1x1x14xf32> to vector<1x14xf32>
    %c0_356 = arith.constant 0 : index
    %c28_357 = arith.constant 28 : index
    %334 = vector.load %arg5[%c0_356, %c28_357] : memref<32x196xf32, #tpu.memory_space<vmem>>, vector<1x14xf32>
    tpu.vector_store %arg5[%c0_356, %c28_357], %333 {strides = array<i32>} : memref<32x196xf32, #tpu.memory_space<vmem>>, vector<1x14xf32>,
    %c2_i32_358 = arith.constant 2 : i32
    %335 = arith.addi %0, %c2_i32_358 : i32
    %c0_i32_359 = arith.constant 0 : i32
    %336 = arith.addi %335, %c0_i32_359 : i32
    %c0_360 = arith.constant 0 : index
    %c0_361 = arith.constant 0 : index
    %337 = arith.index_cast %336 : i32 to index
    %c1_362 = arith.constant 1 : index
    %338 = vector.load %arg2[%c0_360, %c0_361, %337, %c1_362] : memref<1x3x16x16xf32, #tpu.memory_space<vmem>>, vector<1x1x1x14xf32>
    %339 = vector.shape_cast %338 : vector<1x1x1x14xf32> to vector<1x14xf32>
    %c1_363 = arith.constant 1 : index
    %c28_364 = arith.constant 28 : index
    %340 = vector.load %arg5[%c1_363, %c28_364] : memref<32x196xf32, #tpu.memory_space<vmem>>, vector<1x14xf32>
    tpu.vector_store %arg5[%c1_363, %c28_364], %339 {strides = array<i32>} : memref<32x196xf32, #tpu.memory_space<vmem>>, vector<1x14xf32>,
    %c2_i32_365 = arith.constant 2 : i32
    %341 = arith.addi %0, %c2_i32_365 : i32
    %c0_i32_366 = arith.constant 0 : i32
    %342 = arith.addi %341, %c0_i32_366 : i32
    %c0_367 = arith.constant 0 : index
    %c0_368 = arith.constant 0 : index
    %343 = arith.index_cast %342 : i32 to index
    %c2_369 = arith.constant 2 : index
    %344 = vector.load %arg2[%c0_367, %c0_368, %343, %c2_369] : memref<1x3x16x16xf32, #tpu.memory_space<vmem>>, vector<1x1x1x14xf32>
    %345 = vector.shape_cast %344 : vector<1x1x1x14xf32> to vector<1x14xf32>
    %c2_370 = arith.constant 2 : index
    %c28_371 = arith.constant 28 : index
    %346 = vector.load %arg5[%c2_370, %c28_371] : memref<32x196xf32, #tpu.memory_space<vmem>>, vector<1x14xf32>
    tpu.vector_store %arg5[%c2_370, %c28_371], %345 {strides = array<i32>} : memref<32x196xf32, #tpu.memory_space<vmem>>, vector<1x14xf32>,
    %c2_i32_372 = arith.constant 2 : i32
    %347 = arith.addi %0, %c2_i32_372 : i32
    %c1_i32_373 = arith.constant 1 : i32
    %348 = arith.addi %347, %c1_i32_373 : i32
    %c0_374 = arith.constant 0 : index
    %c0_375 = arith.constant 0 : index
    %349 = arith.index_cast %348 : i32 to index
    %c0_376 = arith.constant 0 : index
    %350 = vector.load %arg2[%c0_374, %c0_375, %349, %c0_376] : memref<1x3x16x16xf32, #tpu.memory_space<vmem>>, vector<1x1x1x14xf32>
    %351 = vector.shape_cast %350 : vector<1x1x1x14xf32> to vector<1x14xf32>
    %c3_377 = arith.constant 3 : index
    %c28_378 = arith.constant 28 : index
    %352 = vector.load %arg5[%c3_377, %c28_378] : memref<32x196xf32, #tpu.memory_space<vmem>>, vector<1x14xf32>
    tpu.vector_store %arg5[%c3_377, %c28_378], %351 {strides = array<i32>} : memref<32x196xf32, #tpu.memory_space<vmem>>, vector<1x14xf32>,
    %c2_i32_379 = arith.constant 2 : i32
    %353 = arith.addi %0, %c2_i32_379 : i32
    %c1_i32_380 = arith.constant 1 : i32
    %354 = arith.addi %353, %c1_i32_380 : i32
    %c0_381 = arith.constant 0 : index
    %c0_382 = arith.constant 0 : index
    %355 = arith.index_cast %354 : i32 to index
    %c1_383 = arith.constant 1 : index
    %356 = vector.load %arg2[%c0_381, %c0_382, %355, %c1_383] : memref<1x3x16x16xf32, #tpu.memory_space<vmem>>, vector<1x1x1x14xf32>
    %357 = vector.shape_cast %356 : vector<1x1x1x14xf32> to vector<1x14xf32>
    %c4_384 = arith.constant 4 : index
    %c28_385 = arith.constant 28 : index
    %358 = vector.load %arg5[%c4_384, %c28_385] : memref<32x196xf32, #tpu.memory_space<vmem>>, vector<1x14xf32>
    tpu.vector_store %arg5[%c4_384, %c28_385], %357 {strides = array<i32>} : memref<32x196xf32, #tpu.memory_space<vmem>>, vector<1x14xf32>,
    %c2_i32_386 = arith.constant 2 : i32
    %359 = arith.addi %0, %c2_i32_386 : i32
    %c1_i32_387 = arith.constant 1 : i32
    %360 = arith.addi %359, %c1_i32_387 : i32
    %c0_388 = arith.constant 0 : index
    %c0_389 = arith.constant 0 : index
    %361 = arith.index_cast %360 : i32 to index
    %c2_390 = arith.constant 2 : index
    %362 = vector.load %arg2[%c0_388, %c0_389, %361, %c2_390] : memref<1x3x16x16xf32, #tpu.memory_space<vmem>>, vector<1x1x1x14xf32>
    %363 = vector.shape_cast %362 : vector<1x1x1x14xf32> to vector<1x14xf32>
    %c5_391 = arith.constant 5 : index
    %c28_392 = arith.constant 28 : index
    %364 = vector.load %arg5[%c5_391, %c28_392] : memref<32x196xf32, #tpu.memory_space<vmem>>, vector<1x14xf32>
    tpu.vector_store %arg5[%c5_391, %c28_392], %363 {strides = array<i32>} : memref<32x196xf32, #tpu.memory_space<vmem>>, vector<1x14xf32>,
    %c2_i32_393 = arith.constant 2 : i32
    %365 = arith.addi %0, %c2_i32_393 : i32
    %c2_i32_394 = arith.constant 2 : i32
    %366 = arith.addi %365, %c2_i32_394 : i32
    %c0_395 = arith.constant 0 : index
    %c0_396 = arith.constant 0 : index
    %367 = arith.index_cast %366 : i32 to index
    %c0_397 = arith.constant 0 : index
    %368 = vector.load %arg2[%c0_395, %c0_396, %367, %c0_397] : memref<1x3x16x16xf32, #tpu.memory_space<vmem>>, vector<1x1x1x14xf32>
    %369 = vector.shape_cast %368 : vector<1x1x1x14xf32> to vector<1x14xf32>
    %c6_398 = arith.constant 6 : index
    %c28_399 = arith.constant 28 : index
    %370 = vector.load %arg5[%c6_398, %c28_399] : memref<32x196xf32, #tpu.memory_space<vmem>>, vector<1x14xf32>
    tpu.vector_store %arg5[%c6_398, %c28_399], %369 {strides = array<i32>} : memref<32x196xf32, #tpu.memory_space<vmem>>, vector<1x14xf32>,
    %c2_i32_400 = arith.constant 2 : i32
    %371 = arith.addi %0, %c2_i32_400 : i32
    %c2_i32_401 = arith.constant 2 : i32
    %372 = arith.addi %371, %c2_i32_401 : i32
    %c0_402 = arith.constant 0 : index
    %c0_403 = arith.constant 0 : index
    %373 = arith.index_cast %372 : i32 to index
    %c1_404 = arith.constant 1 : index
    %374 = vector.load %arg2[%c0_402, %c0_403, %373, %c1_404] : memref<1x3x16x16xf32, #tpu.memory_space<vmem>>, vector<1x1x1x14xf32>
    %375 = vector.shape_cast %374 : vector<1x1x1x14xf32> to vector<1x14xf32>
    %c7_405 = arith.constant 7 : index
    %c28_406 = arith.constant 28 : index
    %376 = vector.load %arg5[%c7_405, %c28_406] : memref<32x196xf32, #tpu.memory_space<vmem>>, vector<1x14xf32>
    tpu.vector_store %arg5[%c7_405, %c28_406], %375 {strides = array<i32>} : memref<32x196xf32, #tpu.memory_space<vmem>>, vector<1x14xf32>,
    %c2_i32_407 = arith.constant 2 : i32
    %377 = arith.addi %0, %c2_i32_407 : i32
    %c2_i32_408 = arith.constant 2 : i32
    %378 = arith.addi %377, %c2_i32_408 : i32
    %c0_409 = arith.constant 0 : index
    %c0_410 = arith.constant 0 : index
    %379 = arith.index_cast %378 : i32 to index
    %c2_411 = arith.constant 2 : index
    %380 = vector.load %arg2[%c0_409, %c0_410, %379, %c2_411] : memref<1x3x16x16xf32, #tpu.memory_space<vmem>>, vector<1x1x1x14xf32>
    %381 = vector.shape_cast %380 : vector<1x1x1x14xf32> to vector<1x14xf32>
    %c8_412 = arith.constant 8 : index
    %c28_413 = arith.constant 28 : index
    %382 = vector.load %arg5[%c8_412, %c28_413] : memref<32x196xf32, #tpu.memory_space<vmem>>, vector<1x14xf32>
    tpu.vector_store %arg5[%c8_412, %c28_413], %381 {strides = array<i32>} : memref<32x196xf32, #tpu.memory_space<vmem>>, vector<1x14xf32>,
    %c2_i32_414 = arith.constant 2 : i32
    %383 = arith.addi %0, %c2_i32_414 : i32
    %c0_i32_415 = arith.constant 0 : i32
    %384 = arith.addi %383, %c0_i32_415 : i32
    %c0_416 = arith.constant 0 : index
    %c1_417 = arith.constant 1 : index
    %385 = arith.index_cast %384 : i32 to index
    %c0_418 = arith.constant 0 : index
    %386 = vector.load %arg2[%c0_416, %c1_417, %385, %c0_418] : memref<1x3x16x16xf32, #tpu.memory_space<vmem>>, vector<1x1x1x14xf32>
    %387 = vector.shape_cast %386 : vector<1x1x1x14xf32> to vector<1x14xf32>
    %c9_419 = arith.constant 9 : index
    %c28_420 = arith.constant 28 : index
    %388 = vector.load %arg5[%c9_419, %c28_420] : memref<32x196xf32, #tpu.memory_space<vmem>>, vector<1x14xf32>
    tpu.vector_store %arg5[%c9_419, %c28_420], %387 {strides = array<i32>} : memref<32x196xf32, #tpu.memory_space<vmem>>, vector<1x14xf32>,
    %c2_i32_421 = arith.constant 2 : i32
    %389 = arith.addi %0, %c2_i32_421 : i32
    %c0_i32_422 = arith.constant 0 : i32
    %390 = arith.addi %389, %c0_i32_422 : i32
    %c0_423 = arith.constant 0 : index
    %c1_424 = arith.constant 1 : index
    %391 = arith.index_cast %390 : i32 to index
    %c1_425 = arith.constant 1 : index
    %392 = vector.load %arg2[%c0_423, %c1_424, %391, %c1_425] : memref<1x3x16x16xf32, #tpu.memory_space<vmem>>, vector<1x1x1x14xf32>
    %393 = vector.shape_cast %392 : vector<1x1x1x14xf32> to vector<1x14xf32>
    %c10_426 = arith.constant 10 : index
    %c28_427 = arith.constant 28 : index
    %394 = vector.load %arg5[%c10_426, %c28_427] : memref<32x196xf32, #tpu.memory_space<vmem>>, vector<1x14xf32>
    tpu.vector_store %arg5[%c10_426, %c28_427], %393 {strides = array<i32>} : memref<32x196xf32, #tpu.memory_space<vmem>>, vector<1x14xf32>,
    %c2_i32_428 = arith.constant 2 : i32
    %395 = arith.addi %0, %c2_i32_428 : i32
    %c0_i32_429 = arith.constant 0 : i32
    %396 = arith.addi %395, %c0_i32_429 : i32
    %c0_430 = arith.constant 0 : index
    %c1_431 = arith.constant 1 : index
    %397 = arith.index_cast %396 : i32 to index
    %c2_432 = arith.constant 2 : index
    %398 = vector.load %arg2[%c0_430, %c1_431, %397, %c2_432] : memref<1x3x16x16xf32, #tpu.memory_space<vmem>>, vector<1x1x1x14xf32>
    %399 = vector.shape_cast %398 : vector<1x1x1x14xf32> to vector<1x14xf32>
    %c11_433 = arith.constant 11 : index
    %c28_434 = arith.constant 28 : index
    %400 = vector.load %arg5[%c11_433, %c28_434] : memref<32x196xf32, #tpu.memory_space<vmem>>, vector<1x14xf32>
    tpu.vector_store %arg5[%c11_433, %c28_434], %399 {strides = array<i32>} : memref<32x196xf32, #tpu.memory_space<vmem>>, vector<1x14xf32>,
    %c2_i32_435 = arith.constant 2 : i32
    %401 = arith.addi %0, %c2_i32_435 : i32
    %c1_i32_436 = arith.constant 1 : i32
    %402 = arith.addi %401, %c1_i32_436 : i32
    %c0_437 = arith.constant 0 : index
    %c1_438 = arith.constant 1 : index
    %403 = arith.index_cast %402 : i32 to index
    %c0_439 = arith.constant 0 : index
    %404 = vector.load %arg2[%c0_437, %c1_438, %403, %c0_439] : memref<1x3x16x16xf32, #tpu.memory_space<vmem>>, vector<1x1x1x14xf32>
    %405 = vector.shape_cast %404 : vector<1x1x1x14xf32> to vector<1x14xf32>
    %c12_440 = arith.constant 12 : index
    %c28_441 = arith.constant 28 : index
    %406 = vector.load %arg5[%c12_440, %c28_441] : memref<32x196xf32, #tpu.memory_space<vmem>>, vector<1x14xf32>
    tpu.vector_store %arg5[%c12_440, %c28_441], %405 {strides = array<i32>} : memref<32x196xf32, #tpu.memory_space<vmem>>, vector<1x14xf32>,
    %c2_i32_442 = arith.constant 2 : i32
    %407 = arith.addi %0, %c2_i32_442 : i32
    %c1_i32_443 = arith.constant 1 : i32
    %408 = arith.addi %407, %c1_i32_443 : i32
    %c0_444 = arith.constant 0 : index
    %c1_445 = arith.constant 1 : index
    %409 = arith.index_cast %408 : i32 to index
    %c1_446 = arith.constant 1 : index
    %410 = vector.load %arg2[%c0_444, %c1_445, %409, %c1_446] : memref<1x3x16x16xf32, #tpu.memory_space<vmem>>, vector<1x1x1x14xf32>
    %411 = vector.shape_cast %410 : vector<1x1x1x14xf32> to vector<1x14xf32>
    %c13_447 = arith.constant 13 : index
    %c28_448 = arith.constant 28 : index
    %412 = vector.load %arg5[%c13_447, %c28_448] : memref<32x196xf32, #tpu.memory_space<vmem>>, vector<1x14xf32>
    tpu.vector_store %arg5[%c13_447, %c28_448], %411 {strides = array<i32>} : memref<32x196xf32, #tpu.memory_space<vmem>>, vector<1x14xf32>,
    %c2_i32_449 = arith.constant 2 : i32
    %413 = arith.addi %0, %c2_i32_449 : i32
    %c1_i32_450 = arith.constant 1 : i32
    %414 = arith.addi %413, %c1_i32_450 : i32
    %c0_451 = arith.constant 0 : index
    %c1_452 = arith.constant 1 : index
    %415 = arith.index_cast %414 : i32 to index
    %c2_453 = arith.constant 2 : index
    %416 = vector.load %arg2[%c0_451, %c1_452, %415, %c2_453] : memref<1x3x16x16xf32, #tpu.memory_space<vmem>>, vector<1x1x1x14xf32>
    %417 = vector.shape_cast %416 : vector<1x1x1x14xf32> to vector<1x14xf32>
    %c14_454 = arith.constant 14 : index
    %c28_455 = arith.constant 28 : index
    %418 = vector.load %arg5[%c14_454, %c28_455] : memref<32x196xf32, #tpu.memory_space<vmem>>, vector<1x14xf32>
    tpu.vector_store %arg5[%c14_454, %c28_455], %417 {strides = array<i32>} : memref<32x196xf32, #tpu.memory_space<vmem>>, vector<1x14xf32>,
    %c2_i32_456 = arith.constant 2 : i32
    %419 = arith.addi %0, %c2_i32_456 : i32
    %c2_i32_457 = arith.constant 2 : i32
    %420 = arith.addi %419, %c2_i32_457 : i32
    %c0_458 = arith.constant 0 : index
    %c1_459 = arith.constant 1 : index
    %421 = arith.index_cast %420 : i32 to index
    %c0_460 = arith.constant 0 : index
    %422 = vector.load %arg2[%c0_458, %c1_459, %421, %c0_460] : memref<1x3x16x16xf32, #tpu.memory_space<vmem>>, vector<1x1x1x14xf32>
    %423 = vector.shape_cast %422 : vector<1x1x1x14xf32> to vector<1x14xf32>
    %c15_461 = arith.constant 15 : index
    %c28_462 = arith.constant 28 : index
    %424 = vector.load %arg5[%c15_461, %c28_462] : memref<32x196xf32, #tpu.memory_space<vmem>>, vector<1x14xf32>
    tpu.vector_store %arg5[%c15_461, %c28_462], %423 {strides = array<i32>} : memref<32x196xf32, #tpu.memory_space<vmem>>, vector<1x14xf32>,
    %c2_i32_463 = arith.constant 2 : i32
    %425 = arith.addi %0, %c2_i32_463 : i32
    %c2_i32_464 = arith.constant 2 : i32
    %426 = arith.addi %425, %c2_i32_464 : i32
    %c0_465 = arith.constant 0 : index
    %c1_466 = arith.constant 1 : index
    %427 = arith.index_cast %426 : i32 to index
    %c1_467 = arith.constant 1 : index
    %428 = vector.load %arg2[%c0_465, %c1_466, %427, %c1_467] : memref<1x3x16x16xf32, #tpu.memory_space<vmem>>, vector<1x1x1x14xf32>
    %429 = vector.shape_cast %428 : vector<1x1x1x14xf32> to vector<1x14xf32>
    %c16_468 = arith.constant 16 : index
    %c28_469 = arith.constant 28 : index
    %430 = vector.load %arg5[%c16_468, %c28_469] : memref<32x196xf32, #tpu.memory_space<vmem>>, vector<1x14xf32>
    tpu.vector_store %arg5[%c16_468, %c28_469], %429 {strides = array<i32>} : memref<32x196xf32, #tpu.memory_space<vmem>>, vector<1x14xf32>,
    %c2_i32_470 = arith.constant 2 : i32
    %431 = arith.addi %0, %c2_i32_470 : i32
    %c2_i32_471 = arith.constant 2 : i32
    %432 = arith.addi %431, %c2_i32_471 : i32
    %c0_472 = arith.constant 0 : index
    %c1_473 = arith.constant 1 : index
    %433 = arith.index_cast %432 : i32 to index
    %c2_474 = arith.constant 2 : index
    %434 = vector.load %arg2[%c0_472, %c1_473, %433, %c2_474] : memref<1x3x16x16xf32, #tpu.memory_space<vmem>>, vector<1x1x1x14xf32>
    %435 = vector.shape_cast %434 : vector<1x1x1x14xf32> to vector<1x14xf32>
    %c17_475 = arith.constant 17 : index
    %c28_476 = arith.constant 28 : index
    %436 = vector.load %arg5[%c17_475, %c28_476] : memref<32x196xf32, #tpu.memory_space<vmem>>, vector<1x14xf32>
    tpu.vector_store %arg5[%c17_475, %c28_476], %435 {strides = array<i32>} : memref<32x196xf32, #tpu.memory_space<vmem>>, vector<1x14xf32>,
    %c2_i32_477 = arith.constant 2 : i32
    %437 = arith.addi %0, %c2_i32_477 : i32
    %c0_i32_478 = arith.constant 0 : i32
    %438 = arith.addi %437, %c0_i32_478 : i32
    %c0_479 = arith.constant 0 : index
    %c2_480 = arith.constant 2 : index
    %439 = arith.index_cast %438 : i32 to index
    %c0_481 = arith.constant 0 : index
    %440 = vector.load %arg2[%c0_479, %c2_480, %439, %c0_481] : memref<1x3x16x16xf32, #tpu.memory_space<vmem>>, vector<1x1x1x14xf32>
    %441 = vector.shape_cast %440 : vector<1x1x1x14xf32> to vector<1x14xf32>
    %c18_482 = arith.constant 18 : index
    %c28_483 = arith.constant 28 : index
    %442 = vector.load %arg5[%c18_482, %c28_483] : memref<32x196xf32, #tpu.memory_space<vmem>>, vector<1x14xf32>
    tpu.vector_store %arg5[%c18_482, %c28_483], %441 {strides = array<i32>} : memref<32x196xf32, #tpu.memory_space<vmem>>, vector<1x14xf32>,
    %c2_i32_484 = arith.constant 2 : i32
    %443 = arith.addi %0, %c2_i32_484 : i32
    %c0_i32_485 = arith.constant 0 : i32
    %444 = arith.addi %443, %c0_i32_485 : i32
    %c0_486 = arith.constant 0 : index
    %c2_487 = arith.constant 2 : index
    %445 = arith.index_cast %444 : i32 to index
    %c1_488 = arith.constant 1 : index
    %446 = vector.load %arg2[%c0_486, %c2_487, %445, %c1_488] : memref<1x3x16x16xf32, #tpu.memory_space<vmem>>, vector<1x1x1x14xf32>
    %447 = vector.shape_cast %446 : vector<1x1x1x14xf32> to vector<1x14xf32>
    %c19_489 = arith.constant 19 : index
    %c28_490 = arith.constant 28 : index
    %448 = vector.load %arg5[%c19_489, %c28_490] : memref<32x196xf32, #tpu.memory_space<vmem>>, vector<1x14xf32>
    tpu.vector_store %arg5[%c19_489, %c28_490], %447 {strides = array<i32>} : memref<32x196xf32, #tpu.memory_space<vmem>>, vector<1x14xf32>,
    %c2_i32_491 = arith.constant 2 : i32
    %449 = arith.addi %0, %c2_i32_491 : i32
    %c0_i32_492 = arith.constant 0 : i32
    %450 = arith.addi %449, %c0_i32_492 : i32
    %c0_493 = arith.constant 0 : index
    %c2_494 = arith.constant 2 : index
    %451 = arith.index_cast %450 : i32 to index
    %c2_495 = arith.constant 2 : index
    %452 = vector.load %arg2[%c0_493, %c2_494, %451, %c2_495] : memref<1x3x16x16xf32, #tpu.memory_space<vmem>>, vector<1x1x1x14xf32>
    %453 = vector.shape_cast %452 : vector<1x1x1x14xf32> to vector<1x14xf32>
    %c20_496 = arith.constant 20 : index
    %c28_497 = arith.constant 28 : index
    %454 = vector.load %arg5[%c20_496, %c28_497] : memref<32x196xf32, #tpu.memory_space<vmem>>, vector<1x14xf32>
    tpu.vector_store %arg5[%c20_496, %c28_497], %453 {strides = array<i32>} : memref<32x196xf32, #tpu.memory_space<vmem>>, vector<1x14xf32>,
    %c2_i32_498 = arith.constant 2 : i32
    %455 = arith.addi %0, %c2_i32_498 : i32
    %c1_i32_499 = arith.constant 1 : i32
    %456 = arith.addi %455, %c1_i32_499 : i32
    %c0_500 = arith.constant 0 : index
    %c2_501 = arith.constant 2 : index
    %457 = arith.index_cast %456 : i32 to index
    %c0_502 = arith.constant 0 : index
    %458 = vector.load %arg2[%c0_500, %c2_501, %457, %c0_502] : memref<1x3x16x16xf32, #tpu.memory_space<vmem>>, vector<1x1x1x14xf32>
    %459 = vector.shape_cast %458 : vector<1x1x1x14xf32> to vector<1x14xf32>
    %c21_503 = arith.constant 21 : index
    %c28_504 = arith.constant 28 : index
    %460 = vector.load %arg5[%c21_503, %c28_504] : memref<32x196xf32, #tpu.memory_space<vmem>>, vector<1x14xf32>
    tpu.vector_store %arg5[%c21_503, %c28_504], %459 {strides = array<i32>} : memref<32x196xf32, #tpu.memory_space<vmem>>, vector<1x14xf32>,
    %c2_i32_505 = arith.constant 2 : i32
    %461 = arith.addi %0, %c2_i32_505 : i32
    %c1_i32_506 = arith.constant 1 : i32
    %462 = arith.addi %461, %c1_i32_506 : i32
    %c0_507 = arith.constant 0 : index
    %c2_508 = arith.constant 2 : index
    %463 = arith.index_cast %462 : i32 to index
    %c1_509 = arith.constant 1 : index
    %464 = vector.load %arg2[%c0_507, %c2_508, %463, %c1_509] : memref<1x3x16x16xf32, #tpu.memory_space<vmem>>, vector<1x1x1x14xf32>
    %465 = vector.shape_cast %464 : vector<1x1x1x14xf32> to vector<1x14xf32>
    %c22_510 = arith.constant 22 : index
    %c28_511 = arith.constant 28 : index
    %466 = vector.load %arg5[%c22_510, %c28_511] : memref<32x196xf32, #tpu.memory_space<vmem>>, vector<1x14xf32>
    tpu.vector_store %arg5[%c22_510, %c28_511], %465 {strides = array<i32>} : memref<32x196xf32, #tpu.memory_space<vmem>>, vector<1x14xf32>,
    %c2_i32_512 = arith.constant 2 : i32
    %467 = arith.addi %0, %c2_i32_512 : i32
    %c1_i32_513 = arith.constant 1 : i32
    %468 = arith.addi %467, %c1_i32_513 : i32
    %c0_514 = arith.constant 0 : index
    %c2_515 = arith.constant 2 : index
    %469 = arith.index_cast %468 : i32 to index
    %c2_516 = arith.constant 2 : index
    %470 = vector.load %arg2[%c0_514, %c2_515, %469, %c2_516] : memref<1x3x16x16xf32, #tpu.memory_space<vmem>>, vector<1x1x1x14xf32>
    %471 = vector.shape_cast %470 : vector<1x1x1x14xf32> to vector<1x14xf32>
    %c23_517 = arith.constant 23 : index
    %c28_518 = arith.constant 28 : index
    %472 = vector.load %arg5[%c23_517, %c28_518] : memref<32x196xf32, #tpu.memory_space<vmem>>, vector<1x14xf32>
    tpu.vector_store %arg5[%c23_517, %c28_518], %471 {strides = array<i32>} : memref<32x196xf32, #tpu.memory_space<vmem>>, vector<1x14xf32>,
    %c2_i32_519 = arith.constant 2 : i32
    %473 = arith.addi %0, %c2_i32_519 : i32
    %c2_i32_520 = arith.constant 2 : i32
    %474 = arith.addi %473, %c2_i32_520 : i32
    %c0_521 = arith.constant 0 : index
    %c2_522 = arith.constant 2 : index
    %475 = arith.index_cast %474 : i32 to index
    %c0_523 = arith.constant 0 : index
    %476 = vector.load %arg2[%c0_521, %c2_522, %475, %c0_523] : memref<1x3x16x16xf32, #tpu.memory_space<vmem>>, vector<1x1x1x14xf32>
    %477 = vector.shape_cast %476 : vector<1x1x1x14xf32> to vector<1x14xf32>
    %c24_524 = arith.constant 24 : index
    %c28_525 = arith.constant 28 : index
    %478 = vector.load %arg5[%c24_524, %c28_525] : memref<32x196xf32, #tpu.memory_space<vmem>>, vector<1x14xf32>
    tpu.vector_store %arg5[%c24_524, %c28_525], %477 {strides = array<i32>} : memref<32x196xf32, #tpu.memory_space<vmem>>, vector<1x14xf32>,
    %c2_i32_526 = arith.constant 2 : i32
    %479 = arith.addi %0, %c2_i32_526 : i32
    %c2_i32_527 = arith.constant 2 : i32
    %480 = arith.addi %479, %c2_i32_527 : i32
    %c0_528 = arith.constant 0 : index
    %c2_529 = arith.constant 2 : index
    %481 = arith.index_cast %480 : i32 to index
    %c1_530 = arith.constant 1 : index
    %482 = vector.load %arg2[%c0_528, %c2_529, %481, %c1_530] : memref<1x3x16x16xf32, #tpu.memory_space<vmem>>, vector<1x1x1x14xf32>
    %483 = vector.shape_cast %482 : vector<1x1x1x14xf32> to vector<1x14xf32>
    %c25_531 = arith.constant 25 : index
    %c28_532 = arith.constant 28 : index
    %484 = vector.load %arg5[%c25_531, %c28_532] : memref<32x196xf32, #tpu.memory_space<vmem>>, vector<1x14xf32>
    tpu.vector_store %arg5[%c25_531, %c28_532], %483 {strides = array<i32>} : memref<32x196xf32, #tpu.memory_space<vmem>>, vector<1x14xf32>,
    %c2_i32_533 = arith.constant 2 : i32
    %485 = arith.addi %0, %c2_i32_533 : i32
    %c2_i32_534 = arith.constant 2 : i32
    %486 = arith.addi %485, %c2_i32_534 : i32
    %c0_535 = arith.constant 0 : index
    %c2_536 = arith.constant 2 : index
    %487 = arith.index_cast %486 : i32 to index
    %c2_537 = arith.constant 2 : index
    %488 = vector.load %arg2[%c0_535, %c2_536, %487, %c2_537] : memref<1x3x16x16xf32, #tpu.memory_space<vmem>>, vector<1x1x1x14xf32>
    %489 = vector.shape_cast %488 : vector<1x1x1x14xf32> to vector<1x14xf32>
    %c26_538 = arith.constant 26 : index
    %c28_539 = arith.constant 28 : index
    %490 = vector.load %arg5[%c26_538, %c28_539] : memref<32x196xf32, #tpu.memory_space<vmem>>, vector<1x14xf32>
    tpu.vector_store %arg5[%c26_538, %c28_539], %489 {strides = array<i32>} : memref<32x196xf32, #tpu.memory_space<vmem>>, vector<1x14xf32>,
    %c3_i32 = arith.constant 3 : i32
    %491 = arith.addi %0, %c3_i32 : i32
    %c0_i32_540 = arith.constant 0 : i32
    %492 = arith.addi %491, %c0_i32_540 : i32
    %c0_541 = arith.constant 0 : index
    %c0_542 = arith.constant 0 : index
    %493 = arith.index_cast %492 : i32 to index
    %c0_543 = arith.constant 0 : index
    %494 = vector.load %arg2[%c0_541, %c0_542, %493, %c0_543] : memref<1x3x16x16xf32, #tpu.memory_space<vmem>>, vector<1x1x1x14xf32>
    %495 = vector.shape_cast %494 : vector<1x1x1x14xf32> to vector<1x14xf32>
    %c0_544 = arith.constant 0 : index
    %c42 = arith.constant 42 : index
    %496 = vector.load %arg5[%c0_544, %c42] : memref<32x196xf32, #tpu.memory_space<vmem>>, vector<1x14xf32>
    tpu.vector_store %arg5[%c0_544, %c42], %495 {strides = array<i32>} : memref<32x196xf32, #tpu.memory_space<vmem>>, vector<1x14xf32>,
    %c3_i32_545 = arith.constant 3 : i32
    %497 = arith.addi %0, %c3_i32_545 : i32
    %c0_i32_546 = arith.constant 0 : i32
    %498 = arith.addi %497, %c0_i32_546 : i32
    %c0_547 = arith.constant 0 : index
    %c0_548 = arith.constant 0 : index
    %499 = arith.index_cast %498 : i32 to index
    %c1_549 = arith.constant 1 : index
    %500 = vector.load %arg2[%c0_547, %c0_548, %499, %c1_549] : memref<1x3x16x16xf32, #tpu.memory_space<vmem>>, vector<1x1x1x14xf32>
    %501 = vector.shape_cast %500 : vector<1x1x1x14xf32> to vector<1x14xf32>
    %c1_550 = arith.constant 1 : index
    %c42_551 = arith.constant 42 : index
    %502 = vector.load %arg5[%c1_550, %c42_551] : memref<32x196xf32, #tpu.memory_space<vmem>>, vector<1x14xf32>
    tpu.vector_store %arg5[%c1_550, %c42_551], %501 {strides = array<i32>} : memref<32x196xf32, #tpu.memory_space<vmem>>, vector<1x14xf32>,
    %c3_i32_552 = arith.constant 3 : i32
    %503 = arith.addi %0, %c3_i32_552 : i32
    %c0_i32_553 = arith.constant 0 : i32
    %504 = arith.addi %503, %c0_i32_553 : i32
    %c0_554 = arith.constant 0 : index
    %c0_555 = arith.constant 0 : index
    %505 = arith.index_cast %504 : i32 to index
    %c2_556 = arith.constant 2 : index
    %506 = vector.load %arg2[%c0_554, %c0_555, %505, %c2_556] : memref<1x3x16x16xf32, #tpu.memory_space<vmem>>, vector<1x1x1x14xf32>
    %507 = vector.shape_cast %506 : vector<1x1x1x14xf32> to vector<1x14xf32>
    %c2_557 = arith.constant 2 : index
    %c42_558 = arith.constant 42 : index
    %508 = vector.load %arg5[%c2_557, %c42_558] : memref<32x196xf32, #tpu.memory_space<vmem>>, vector<1x14xf32>
    tpu.vector_store %arg5[%c2_557, %c42_558], %507 {strides = array<i32>} : memref<32x196xf32, #tpu.memory_space<vmem>>, vector<1x14xf32>,
    %c3_i32_559 = arith.constant 3 : i32
    %509 = arith.addi %0, %c3_i32_559 : i32
    %c1_i32_560 = arith.constant 1 : i32
    %510 = arith.addi %509, %c1_i32_560 : i32
    %c0_561 = arith.constant 0 : index
    %c0_562 = arith.constant 0 : index
    %511 = arith.index_cast %510 : i32 to index
    %c0_563 = arith.constant 0 : index
    %512 = vector.load %arg2[%c0_561, %c0_562, %511, %c0_563] : memref<1x3x16x16xf32, #tpu.memory_space<vmem>>, vector<1x1x1x14xf32>
    %513 = vector.shape_cast %512 : vector<1x1x1x14xf32> to vector<1x14xf32>
    %c3_564 = arith.constant 3 : index
    %c42_565 = arith.constant 42 : index
    %514 = vector.load %arg5[%c3_564, %c42_565] : memref<32x196xf32, #tpu.memory_space<vmem>>, vector<1x14xf32>
    tpu.vector_store %arg5[%c3_564, %c42_565], %513 {strides = array<i32>} : memref<32x196xf32, #tpu.memory_space<vmem>>, vector<1x14xf32>,
    %c3_i32_566 = arith.constant 3 : i32
    %515 = arith.addi %0, %c3_i32_566 : i32
    %c1_i32_567 = arith.constant 1 : i32
    %516 = arith.addi %515, %c1_i32_567 : i32
    %c0_568 = arith.constant 0 : index
    %c0_569 = arith.constant 0 : index
    %517 = arith.index_cast %516 : i32 to index
    %c1_570 = arith.constant 1 : index
    %518 = vector.load %arg2[%c0_568, %c0_569, %517, %c1_570] : memref<1x3x16x16xf32, #tpu.memory_space<vmem>>, vector<1x1x1x14xf32>
    %519 = vector.shape_cast %518 : vector<1x1x1x14xf32> to vector<1x14xf32>
    %c4_571 = arith.constant 4 : index
    %c42_572 = arith.constant 42 : index
    %520 = vector.load %arg5[%c4_571, %c42_572] : memref<32x196xf32, #tpu.memory_space<vmem>>, vector<1x14xf32>
    tpu.vector_store %arg5[%c4_571, %c42_572], %519 {strides = array<i32>} : memref<32x196xf32, #tpu.memory_space<vmem>>, vector<1x14xf32>,
    %c3_i32_573 = arith.constant 3 : i32
    %521 = arith.addi %0, %c3_i32_573 : i32
    %c1_i32_574 = arith.constant 1 : i32
    %522 = arith.addi %521, %c1_i32_574 : i32
    %c0_575 = arith.constant 0 : index
    %c0_576 = arith.constant 0 : index
    %523 = arith.index_cast %522 : i32 to index
    %c2_577 = arith.constant 2 : index
    %524 = vector.load %arg2[%c0_575, %c0_576, %523, %c2_577] : memref<1x3x16x16xf32, #tpu.memory_space<vmem>>, vector<1x1x1x14xf32>
    %525 = vector.shape_cast %524 : vector<1x1x1x14xf32> to vector<1x14xf32>
    %c5_578 = arith.constant 5 : index
    %c42_579 = arith.constant 42 : index
    %526 = vector.load %arg5[%c5_578, %c42_579] : memref<32x196xf32, #tpu.memory_space<vmem>>, vector<1x14xf32>
    tpu.vector_store %arg5[%c5_578, %c42_579], %525 {strides = array<i32>} : memref<32x196xf32, #tpu.memory_space<vmem>>, vector<1x14xf32>,
    %c3_i32_580 = arith.constant 3 : i32
    %527 = arith.addi %0, %c3_i32_580 : i32
    %c2_i32_581 = arith.constant 2 : i32
    %528 = arith.addi %527, %c2_i32_581 : i32
    %c0_582 = arith.constant 0 : index
    %c0_583 = arith.constant 0 : index
    %529 = arith.index_cast %528 : i32 to index
    %c0_584 = arith.constant 0 : index
    %530 = vector.load %arg2[%c0_582, %c0_583, %529, %c0_584] : memref<1x3x16x16xf32, #tpu.memory_space<vmem>>, vector<1x1x1x14xf32>
    %531 = vector.shape_cast %530 : vector<1x1x1x14xf32> to vector<1x14xf32>
    %c6_585 = arith.constant 6 : index
    %c42_586 = arith.constant 42 : index
    %532 = vector.load %arg5[%c6_585, %c42_586] : memref<32x196xf32, #tpu.memory_space<vmem>>, vector<1x14xf32>
    tpu.vector_store %arg5[%c6_585, %c42_586], %531 {strides = array<i32>} : memref<32x196xf32, #tpu.memory_space<vmem>>, vector<1x14xf32>,
    %c3_i32_587 = arith.constant 3 : i32
    %533 = arith.addi %0, %c3_i32_587 : i32
    %c2_i32_588 = arith.constant 2 : i32
    %534 = arith.addi %533, %c2_i32_588 : i32
    %c0_589 = arith.constant 0 : index
    %c0_590 = arith.constant 0 : index
    %535 = arith.index_cast %534 : i32 to index
    %c1_591 = arith.constant 1 : index
    %536 = vector.load %arg2[%c0_589, %c0_590, %535, %c1_591] : memref<1x3x16x16xf32, #tpu.memory_space<vmem>>, vector<1x1x1x14xf32>
    %537 = vector.shape_cast %536 : vector<1x1x1x14xf32> to vector<1x14xf32>
    %c7_592 = arith.constant 7 : index
    %c42_593 = arith.constant 42 : index
    %538 = vector.load %arg5[%c7_592, %c42_593] : memref<32x196xf32, #tpu.memory_space<vmem>>, vector<1x14xf32>
    tpu.vector_store %arg5[%c7_592, %c42_593], %537 {strides = array<i32>} : memref<32x196xf32, #tpu.memory_space<vmem>>, vector<1x14xf32>,
    %c3_i32_594 = arith.constant 3 : i32
    %539 = arith.addi %0, %c3_i32_594 : i32
    %c2_i32_595 = arith.constant 2 : i32
    %540 = arith.addi %539, %c2_i32_595 : i32
    %c0_596 = arith.constant 0 : index
    %c0_597 = arith.constant 0 : index
    %541 = arith.index_cast %540 : i32 to index
    %c2_598 = arith.constant 2 : index
    %542 = vector.load %arg2[%c0_596, %c0_597, %541, %c2_598] : memref<1x3x16x16xf32, #tpu.memory_space<vmem>>, vector<1x1x1x14xf32>
    %543 = vector.shape_cast %542 : vector<1x1x1x14xf32> to vector<1x14xf32>
    %c8_599 = arith.constant 8 : index
    %c42_600 = arith.constant 42 : index
    %544 = vector.load %arg5[%c8_599, %c42_600] : memref<32x196xf32, #tpu.memory_space<vmem>>, vector<1x14xf32>
    tpu.vector_store %arg5[%c8_599, %c42_600], %543 {strides = array<i32>} : memref<32x196xf32, #tpu.memory_space<vmem>>, vector<1x14xf32>,
    %c3_i32_601 = arith.constant 3 : i32
    %545 = arith.addi %0, %c3_i32_601 : i32
    %c0_i32_602 = arith.constant 0 : i32
    %546 = arith.addi %545, %c0_i32_602 : i32
    %c0_603 = arith.constant 0 : index
    %c1_604 = arith.constant 1 : index
    %547 = arith.index_cast %546 : i32 to index
    %c0_605 = arith.constant 0 : index
    %548 = vector.load %arg2[%c0_603, %c1_604, %547, %c0_605] : memref<1x3x16x16xf32, #tpu.memory_space<vmem>>, vector<1x1x1x14xf32>
    %549 = vector.shape_cast %548 : vector<1x1x1x14xf32> to vector<1x14xf32>
    %c9_606 = arith.constant 9 : index
    %c42_607 = arith.constant 42 : index
    %550 = vector.load %arg5[%c9_606, %c42_607] : memref<32x196xf32, #tpu.memory_space<vmem>>, vector<1x14xf32>
    tpu.vector_store %arg5[%c9_606, %c42_607], %549 {strides = array<i32>} : memref<32x196xf32, #tpu.memory_space<vmem>>, vector<1x14xf32>,
    %c3_i32_608 = arith.constant 3 : i32
    %551 = arith.addi %0, %c3_i32_608 : i32
    %c0_i32_609 = arith.constant 0 : i32
    %552 = arith.addi %551, %c0_i32_609 : i32
    %c0_610 = arith.constant 0 : index
    %c1_611 = arith.constant 1 : index
    %553 = arith.index_cast %552 : i32 to index
    %c1_612 = arith.constant 1 : index
    %554 = vector.load %arg2[%c0_610, %c1_611, %553, %c1_612] : memref<1x3x16x16xf32, #tpu.memory_space<vmem>>, vector<1x1x1x14xf32>
    %555 = vector.shape_cast %554 : vector<1x1x1x14xf32> to vector<1x14xf32>
    %c10_613 = arith.constant 10 : index
    %c42_614 = arith.constant 42 : index
    %556 = vector.load %arg5[%c10_613, %c42_614] : memref<32x196xf32, #tpu.memory_space<vmem>>, vector<1x14xf32>
    tpu.vector_store %arg5[%c10_613, %c42_614], %555 {strides = array<i32>} : memref<32x196xf32, #tpu.memory_space<vmem>>, vector<1x14xf32>,
    %c3_i32_615 = arith.constant 3 : i32
    %557 = arith.addi %0, %c3_i32_615 : i32
    %c0_i32_616 = arith.constant 0 : i32
    %558 = arith.addi %557, %c0_i32_616 : i32
    %c0_617 = arith.constant 0 : index
    %c1_618 = arith.constant 1 : index
    %559 = arith.index_cast %558 : i32 to index
    %c2_619 = arith.constant 2 : index
    %560 = vector.load %arg2[%c0_617, %c1_618, %559, %c2_619] : memref<1x3x16x16xf32, #tpu.memory_space<vmem>>, vector<1x1x1x14xf32>
    %561 = vector.shape_cast %560 : vector<1x1x1x14xf32> to vector<1x14xf32>
    %c11_620 = arith.constant 11 : index
    %c42_621 = arith.constant 42 : index
    %562 = vector.load %arg5[%c11_620, %c42_621] : memref<32x196xf32, #tpu.memory_space<vmem>>, vector<1x14xf32>
    tpu.vector_store %arg5[%c11_620, %c42_621], %561 {strides = array<i32>} : memref<32x196xf32, #tpu.memory_space<vmem>>, vector<1x14xf32>,
    %c3_i32_622 = arith.constant 3 : i32
    %563 = arith.addi %0, %c3_i32_622 : i32
    %c1_i32_623 = arith.constant 1 : i32
    %564 = arith.addi %563, %c1_i32_623 : i32
    %c0_624 = arith.constant 0 : index
    %c1_625 = arith.constant 1 : index
    %565 = arith.index_cast %564 : i32 to index
    %c0_626 = arith.constant 0 : index
    %566 = vector.load %arg2[%c0_624, %c1_625, %565, %c0_626] : memref<1x3x16x16xf32, #tpu.memory_space<vmem>>, vector<1x1x1x14xf32>
    %567 = vector.shape_cast %566 : vector<1x1x1x14xf32> to vector<1x14xf32>
    %c12_627 = arith.constant 12 : index
    %c42_628 = arith.constant 42 : index
    %568 = vector.load %arg5[%c12_627, %c42_628] : memref<32x196xf32, #tpu.memory_space<vmem>>, vector<1x14xf32>
    tpu.vector_store %arg5[%c12_627, %c42_628], %567 {strides = array<i32>} : memref<32x196xf32, #tpu.memory_space<vmem>>, vector<1x14xf32>,
    %c3_i32_629 = arith.constant 3 : i32
    %569 = arith.addi %0, %c3_i32_629 : i32
    %c1_i32_630 = arith.constant 1 : i32
    %570 = arith.addi %569, %c1_i32_630 : i32
    %c0_631 = arith.constant 0 : index
    %c1_632 = arith.constant 1 : index
    %571 = arith.index_cast %570 : i32 to index
    %c1_633 = arith.constant 1 : index
    %572 = vector.load %arg2[%c0_631, %c1_632, %571, %c1_633] : memref<1x3x16x16xf32, #tpu.memory_space<vmem>>, vector<1x1x1x14xf32>
    %573 = vector.shape_cast %572 : vector<1x1x1x14xf32> to vector<1x14xf32>
    %c13_634 = arith.constant 13 : index
    %c42_635 = arith.constant 42 : index
    %574 = vector.load %arg5[%c13_634, %c42_635] : memref<32x196xf32, #tpu.memory_space<vmem>>, vector<1x14xf32>
    tpu.vector_store %arg5[%c13_634, %c42_635], %573 {strides = array<i32>} : memref<32x196xf32, #tpu.memory_space<vmem>>, vector<1x14xf32>,
    %c3_i32_636 = arith.constant 3 : i32
    %575 = arith.addi %0, %c3_i32_636 : i32
    %c1_i32_637 = arith.constant 1 : i32
    %576 = arith.addi %575, %c1_i32_637 : i32
    %c0_638 = arith.constant 0 : index
    %c1_639 = arith.constant 1 : index
    %577 = arith.index_cast %576 : i32 to index
    %c2_640 = arith.constant 2 : index
    %578 = vector.load %arg2[%c0_638, %c1_639, %577, %c2_640] : memref<1x3x16x16xf32, #tpu.memory_space<vmem>>, vector<1x1x1x14xf32>
    %579 = vector.shape_cast %578 : vector<1x1x1x14xf32> to vector<1x14xf32>
    %c14_641 = arith.constant 14 : index
    %c42_642 = arith.constant 42 : index
    %580 = vector.load %arg5[%c14_641, %c42_642] : memref<32x196xf32, #tpu.memory_space<vmem>>, vector<1x14xf32>
    tpu.vector_store %arg5[%c14_641, %c42_642], %579 {strides = array<i32>} : memref<32x196xf32, #tpu.memory_space<vmem>>, vector<1x14xf32>,
    %c3_i32_643 = arith.constant 3 : i32
    %581 = arith.addi %0, %c3_i32_643 : i32
    %c2_i32_644 = arith.constant 2 : i32
    %582 = arith.addi %581, %c2_i32_644 : i32
    %c0_645 = arith.constant 0 : index
    %c1_646 = arith.constant 1 : index
    %583 = arith.index_cast %582 : i32 to index
    %c0_647 = arith.constant 0 : index
    %584 = vector.load %arg2[%c0_645, %c1_646, %583, %c0_647] : memref<1x3x16x16xf32, #tpu.memory_space<vmem>>, vector<1x1x1x14xf32>
    %585 = vector.shape_cast %584 : vector<1x1x1x14xf32> to vector<1x14xf32>
    %c15_648 = arith.constant 15 : index
    %c42_649 = arith.constant 42 : index
    %586 = vector.load %arg5[%c15_648, %c42_649] : memref<32x196xf32, #tpu.memory_space<vmem>>, vector<1x14xf32>
    tpu.vector_store %arg5[%c15_648, %c42_649], %585 {strides = array<i32>} : memref<32x196xf32, #tpu.memory_space<vmem>>, vector<1x14xf32>,
    %c3_i32_650 = arith.constant 3 : i32
    %587 = arith.addi %0, %c3_i32_650 : i32
    %c2_i32_651 = arith.constant 2 : i32
    %588 = arith.addi %587, %c2_i32_651 : i32
    %c0_652 = arith.constant 0 : index
    %c1_653 = arith.constant 1 : index
    %589 = arith.index_cast %588 : i32 to index
    %c1_654 = arith.constant 1 : index
    %590 = vector.load %arg2[%c0_652, %c1_653, %589, %c1_654] : memref<1x3x16x16xf32, #tpu.memory_space<vmem>>, vector<1x1x1x14xf32>
    %591 = vector.shape_cast %590 : vector<1x1x1x14xf32> to vector<1x14xf32>
    %c16_655 = arith.constant 16 : index
    %c42_656 = arith.constant 42 : index
    %592 = vector.load %arg5[%c16_655, %c42_656] : memref<32x196xf32, #tpu.memory_space<vmem>>, vector<1x14xf32>
    tpu.vector_store %arg5[%c16_655, %c42_656], %591 {strides = array<i32>} : memref<32x196xf32, #tpu.memory_space<vmem>>, vector<1x14xf32>,
    %c3_i32_657 = arith.constant 3 : i32
    %593 = arith.addi %0, %c3_i32_657 : i32
    %c2_i32_658 = arith.constant 2 : i32
    %594 = arith.addi %593, %c2_i32_658 : i32
    %c0_659 = arith.constant 0 : index
    %c1_660 = arith.constant 1 : index
    %595 = arith.index_cast %594 : i32 to index
    %c2_661 = arith.constant 2 : index
    %596 = vector.load %arg2[%c0_659, %c1_660, %595, %c2_661] : memref<1x3x16x16xf32, #tpu.memory_space<vmem>>, vector<1x1x1x14xf32>
    %597 = vector.shape_cast %596 : vector<1x1x1x14xf32> to vector<1x14xf32>
    %c17_662 = arith.constant 17 : index
    %c42_663 = arith.constant 42 : index
    %598 = vector.load %arg5[%c17_662, %c42_663] : memref<32x196xf32, #tpu.memory_space<vmem>>, vector<1x14xf32>
    tpu.vector_store %arg5[%c17_662, %c42_663], %597 {strides = array<i32>} : memref<32x196xf32, #tpu.memory_space<vmem>>, vector<1x14xf32>,
    %c3_i32_664 = arith.constant 3 : i32
    %599 = arith.addi %0, %c3_i32_664 : i32
    %c0_i32_665 = arith.constant 0 : i32
    %600 = arith.addi %599, %c0_i32_665 : i32
    %c0_666 = arith.constant 0 : index
    %c2_667 = arith.constant 2 : index
    %601 = arith.index_cast %600 : i32 to index
    %c0_668 = arith.constant 0 : index
    %602 = vector.load %arg2[%c0_666, %c2_667, %601, %c0_668] : memref<1x3x16x16xf32, #tpu.memory_space<vmem>>, vector<1x1x1x14xf32>
    %603 = vector.shape_cast %602 : vector<1x1x1x14xf32> to vector<1x14xf32>
    %c18_669 = arith.constant 18 : index
    %c42_670 = arith.constant 42 : index
    %604 = vector.load %arg5[%c18_669, %c42_670] : memref<32x196xf32, #tpu.memory_space<vmem>>, vector<1x14xf32>
    tpu.vector_store %arg5[%c18_669, %c42_670], %603 {strides = array<i32>} : memref<32x196xf32, #tpu.memory_space<vmem>>, vector<1x14xf32>,
    %c3_i32_671 = arith.constant 3 : i32
    %605 = arith.addi %0, %c3_i32_671 : i32
    %c0_i32_672 = arith.constant 0 : i32
    %606 = arith.addi %605, %c0_i32_672 : i32
    %c0_673 = arith.constant 0 : index
    %c2_674 = arith.constant 2 : index
    %607 = arith.index_cast %606 : i32 to index
    %c1_675 = arith.constant 1 : index
    %608 = vector.load %arg2[%c0_673, %c2_674, %607, %c1_675] : memref<1x3x16x16xf32, #tpu.memory_space<vmem>>, vector<1x1x1x14xf32>
    %609 = vector.shape_cast %608 : vector<1x1x1x14xf32> to vector<1x14xf32>
    %c19_676 = arith.constant 19 : index
    %c42_677 = arith.constant 42 : index
    %610 = vector.load %arg5[%c19_676, %c42_677] : memref<32x196xf32, #tpu.memory_space<vmem>>, vector<1x14xf32>
    tpu.vector_store %arg5[%c19_676, %c42_677], %609 {strides = array<i32>} : memref<32x196xf32, #tpu.memory_space<vmem>>, vector<1x14xf32>,
    %c3_i32_678 = arith.constant 3 : i32
    %611 = arith.addi %0, %c3_i32_678 : i32
    %c0_i32_679 = arith.constant 0 : i32
    %612 = arith.addi %611, %c0_i32_679 : i32
    %c0_680 = arith.constant 0 : index
    %c2_681 = arith.constant 2 : index
    %613 = arith.index_cast %612 : i32 to index
    %c2_682 = arith.constant 2 : index
    %614 = vector.load %arg2[%c0_680, %c2_681, %613, %c2_682] : memref<1x3x16x16xf32, #tpu.memory_space<vmem>>, vector<1x1x1x14xf32>
    %615 = vector.shape_cast %614 : vector<1x1x1x14xf32> to vector<1x14xf32>
    %c20_683 = arith.constant 20 : index
    %c42_684 = arith.constant 42 : index
    %616 = vector.load %arg5[%c20_683, %c42_684] : memref<32x196xf32, #tpu.memory_space<vmem>>, vector<1x14xf32>
    tpu.vector_store %arg5[%c20_683, %c42_684], %615 {strides = array<i32>} : memref<32x196xf32, #tpu.memory_space<vmem>>, vector<1x14xf32>,
    %c3_i32_685 = arith.constant 3 : i32
    %617 = arith.addi %0, %c3_i32_685 : i32
    %c1_i32_686 = arith.constant 1 : i32
    %618 = arith.addi %617, %c1_i32_686 : i32
    %c0_687 = arith.constant 0 : index
    %c2_688 = arith.constant 2 : index
    %619 = arith.index_cast %618 : i32 to index
    %c0_689 = arith.constant 0 : index
    %620 = vector.load %arg2[%c0_687, %c2_688, %619, %c0_689] : memref<1x3x16x16xf32, #tpu.memory_space<vmem>>, vector<1x1x1x14xf32>
    %621 = vector.shape_cast %620 : vector<1x1x1x14xf32> to vector<1x14xf32>
    %c21_690 = arith.constant 21 : index
    %c42_691 = arith.constant 42 : index
    %622 = vector.load %arg5[%c21_690, %c42_691] : memref<32x196xf32, #tpu.memory_space<vmem>>, vector<1x14xf32>
    tpu.vector_store %arg5[%c21_690, %c42_691], %621 {strides = array<i32>} : memref<32x196xf32, #tpu.memory_space<vmem>>, vector<1x14xf32>,
    %c3_i32_692 = arith.constant 3 : i32
    %623 = arith.addi %0, %c3_i32_692 : i32
    %c1_i32_693 = arith.constant 1 : i32
    %624 = arith.addi %623, %c1_i32_693 : i32
    %c0_694 = arith.constant 0 : index
    %c2_695 = arith.constant 2 : index
    %625 = arith.index_cast %624 : i32 to index
    %c1_696 = arith.constant 1 : index
    %626 = vector.load %arg2[%c0_694, %c2_695, %625, %c1_696] : memref<1x3x16x16xf32, #tpu.memory_space<vmem>>, vector<1x1x1x14xf32>
    %627 = vector.shape_cast %626 : vector<1x1x1x14xf32> to vector<1x14xf32>
    %c22_697 = arith.constant 22 : index
    %c42_698 = arith.constant 42 : index
    %628 = vector.load %arg5[%c22_697, %c42_698] : memref<32x196xf32, #tpu.memory_space<vmem>>, vector<1x14xf32>
    tpu.vector_store %arg5[%c22_697, %c42_698], %627 {strides = array<i32>} : memref<32x196xf32, #tpu.memory_space<vmem>>, vector<1x14xf32>,
    %c3_i32_699 = arith.constant 3 : i32
    %629 = arith.addi %0, %c3_i32_699 : i32
    %c1_i32_700 = arith.constant 1 : i32
    %630 = arith.addi %629, %c1_i32_700 : i32
    %c0_701 = arith.constant 0 : index
    %c2_702 = arith.constant 2 : index
    %631 = arith.index_cast %630 : i32 to index
    %c2_703 = arith.constant 2 : index
    %632 = vector.load %arg2[%c0_701, %c2_702, %631, %c2_703] : memref<1x3x16x16xf32, #tpu.memory_space<vmem>>, vector<1x1x1x14xf32>
    %633 = vector.shape_cast %632 : vector<1x1x1x14xf32> to vector<1x14xf32>
    %c23_704 = arith.constant 23 : index
    %c42_705 = arith.constant 42 : index
    %634 = vector.load %arg5[%c23_704, %c42_705] : memref<32x196xf32, #tpu.memory_space<vmem>>, vector<1x14xf32>
    tpu.vector_store %arg5[%c23_704, %c42_705], %633 {strides = array<i32>} : memref<32x196xf32, #tpu.memory_space<vmem>>, vector<1x14xf32>,
    %c3_i32_706 = arith.constant 3 : i32
    %635 = arith.addi %0, %c3_i32_706 : i32
    %c2_i32_707 = arith.constant 2 : i32
    %636 = arith.addi %635, %c2_i32_707 : i32
    %c0_708 = arith.constant 0 : index
    %c2_709 = arith.constant 2 : index
    %637 = arith.index_cast %636 : i32 to index
    %c0_710 = arith.constant 0 : index
    %638 = vector.load %arg2[%c0_708, %c2_709, %637, %c0_710] : memref<1x3x16x16xf32, #tpu.memory_space<vmem>>, vector<1x1x1x14xf32>
    %639 = vector.shape_cast %638 : vector<1x1x1x14xf32> to vector<1x14xf32>
    %c24_711 = arith.constant 24 : index
    %c42_712 = arith.constant 42 : index
    %640 = vector.load %arg5[%c24_711, %c42_712] : memref<32x196xf32, #tpu.memory_space<vmem>>, vector<1x14xf32>
    tpu.vector_store %arg5[%c24_711, %c42_712], %639 {strides = array<i32>} : memref<32x196xf32, #tpu.memory_space<vmem>>, vector<1x14xf32>,
    %c3_i32_713 = arith.constant 3 : i32
    %641 = arith.addi %0, %c3_i32_713 : i32
    %c2_i32_714 = arith.constant 2 : i32
    %642 = arith.addi %641, %c2_i32_714 : i32
    %c0_715 = arith.constant 0 : index
    %c2_716 = arith.constant 2 : index
    %643 = arith.index_cast %642 : i32 to index
    %c1_717 = arith.constant 1 : index
    %644 = vector.load %arg2[%c0_715, %c2_716, %643, %c1_717] : memref<1x3x16x16xf32, #tpu.memory_space<vmem>>, vector<1x1x1x14xf32>
    %645 = vector.shape_cast %644 : vector<1x1x1x14xf32> to vector<1x14xf32>
    %c25_718 = arith.constant 25 : index
    %c42_719 = arith.constant 42 : index
    %646 = vector.load %arg5[%c25_718, %c42_719] : memref<32x196xf32, #tpu.memory_space<vmem>>, vector<1x14xf32>
    tpu.vector_store %arg5[%c25_718, %c42_719], %645 {strides = array<i32>} : memref<32x196xf32, #tpu.memory_space<vmem>>, vector<1x14xf32>,
    %c3_i32_720 = arith.constant 3 : i32
    %647 = arith.addi %0, %c3_i32_720 : i32
    %c2_i32_721 = arith.constant 2 : i32
    %648 = arith.addi %647, %c2_i32_721 : i32
    %c0_722 = arith.constant 0 : index
    %c2_723 = arith.constant 2 : index
    %649 = arith.index_cast %648 : i32 to index
    %c2_724 = arith.constant 2 : index
    %650 = vector.load %arg2[%c0_722, %c2_723, %649, %c2_724] : memref<1x3x16x16xf32, #tpu.memory_space<vmem>>, vector<1x1x1x14xf32>
    %651 = vector.shape_cast %650 : vector<1x1x1x14xf32> to vector<1x14xf32>
    %c26_725 = arith.constant 26 : index
    %c42_726 = arith.constant 42 : index
    %652 = vector.load %arg5[%c26_725, %c42_726] : memref<32x196xf32, #tpu.memory_space<vmem>>, vector<1x14xf32>
    tpu.vector_store %arg5[%c26_725, %c42_726], %651 {strides = array<i32>} : memref<32x196xf32, #tpu.memory_space<vmem>>, vector<1x14xf32>,
    %c4_i32 = arith.constant 4 : i32
    %653 = arith.addi %0, %c4_i32 : i32
    %c0_i32_727 = arith.constant 0 : i32
    %654 = arith.addi %653, %c0_i32_727 : i32
    %c0_728 = arith.constant 0 : index
    %c0_729 = arith.constant 0 : index
    %655 = arith.index_cast %654 : i32 to index
    %c0_730 = arith.constant 0 : index
    %656 = vector.load %arg2[%c0_728, %c0_729, %655, %c0_730] : memref<1x3x16x16xf32, #tpu.memory_space<vmem>>, vector<1x1x1x14xf32>
    %657 = vector.shape_cast %656 : vector<1x1x1x14xf32> to vector<1x14xf32>
    %c0_731 = arith.constant 0 : index
    %c56 = arith.constant 56 : index
    %658 = vector.load %arg5[%c0_731, %c56] : memref<32x196xf32, #tpu.memory_space<vmem>>, vector<1x14xf32>
    tpu.vector_store %arg5[%c0_731, %c56], %657 {strides = array<i32>} : memref<32x196xf32, #tpu.memory_space<vmem>>, vector<1x14xf32>,
    %c4_i32_732 = arith.constant 4 : i32
    %659 = arith.addi %0, %c4_i32_732 : i32
    %c0_i32_733 = arith.constant 0 : i32
    %660 = arith.addi %659, %c0_i32_733 : i32
    %c0_734 = arith.constant 0 : index
    %c0_735 = arith.constant 0 : index
    %661 = arith.index_cast %660 : i32 to index
    %c1_736 = arith.constant 1 : index
    %662 = vector.load %arg2[%c0_734, %c0_735, %661, %c1_736] : memref<1x3x16x16xf32, #tpu.memory_space<vmem>>, vector<1x1x1x14xf32>
    %663 = vector.shape_cast %662 : vector<1x1x1x14xf32> to vector<1x14xf32>
    %c1_737 = arith.constant 1 : index
    %c56_738 = arith.constant 56 : index
    %664 = vector.load %arg5[%c1_737, %c56_738] : memref<32x196xf32, #tpu.memory_space<vmem>>, vector<1x14xf32>
    tpu.vector_store %arg5[%c1_737, %c56_738], %663 {strides = array<i32>} : memref<32x196xf32, #tpu.memory_space<vmem>>, vector<1x14xf32>,
    %c4_i32_739 = arith.constant 4 : i32
    %665 = arith.addi %0, %c4_i32_739 : i32
    %c0_i32_740 = arith.constant 0 : i32
    %666 = arith.addi %665, %c0_i32_740 : i32
    %c0_741 = arith.constant 0 : index
    %c0_742 = arith.constant 0 : index
    %667 = arith.index_cast %666 : i32 to index
    %c2_743 = arith.constant 2 : index
    %668 = vector.load %arg2[%c0_741, %c0_742, %667, %c2_743] : memref<1x3x16x16xf32, #tpu.memory_space<vmem>>, vector<1x1x1x14xf32>
    %669 = vector.shape_cast %668 : vector<1x1x1x14xf32> to vector<1x14xf32>
    %c2_744 = arith.constant 2 : index
    %c56_745 = arith.constant 56 : index
    %670 = vector.load %arg5[%c2_744, %c56_745] : memref<32x196xf32, #tpu.memory_space<vmem>>, vector<1x14xf32>
    tpu.vector_store %arg5[%c2_744, %c56_745], %669 {strides = array<i32>} : memref<32x196xf32, #tpu.memory_space<vmem>>, vector<1x14xf32>,
    %c4_i32_746 = arith.constant 4 : i32
    %671 = arith.addi %0, %c4_i32_746 : i32
    %c1_i32_747 = arith.constant 1 : i32
    %672 = arith.addi %671, %c1_i32_747 : i32
    %c0_748 = arith.constant 0 : index
    %c0_749 = arith.constant 0 : index
    %673 = arith.index_cast %672 : i32 to index
    %c0_750 = arith.constant 0 : index
    %674 = vector.load %arg2[%c0_748, %c0_749, %673, %c0_750] : memref<1x3x16x16xf32, #tpu.memory_space<vmem>>, vector<1x1x1x14xf32>
    %675 = vector.shape_cast %674 : vector<1x1x1x14xf32> to vector<1x14xf32>
    %c3_751 = arith.constant 3 : index
    %c56_752 = arith.constant 56 : index
    %676 = vector.load %arg5[%c3_751, %c56_752] : memref<32x196xf32, #tpu.memory_space<vmem>>, vector<1x14xf32>
    tpu.vector_store %arg5[%c3_751, %c56_752], %675 {strides = array<i32>} : memref<32x196xf32, #tpu.memory_space<vmem>>, vector<1x14xf32>,
    %c4_i32_753 = arith.constant 4 : i32
    %677 = arith.addi %0, %c4_i32_753 : i32
    %c1_i32_754 = arith.constant 1 : i32
    %678 = arith.addi %677, %c1_i32_754 : i32
    %c0_755 = arith.constant 0 : index
    %c0_756 = arith.constant 0 : index
    %679 = arith.index_cast %678 : i32 to index
    %c1_757 = arith.constant 1 : index
    %680 = vector.load %arg2[%c0_755, %c0_756, %679, %c1_757] : memref<1x3x16x16xf32, #tpu.memory_space<vmem>>, vector<1x1x1x14xf32>
    %681 = vector.shape_cast %680 : vector<1x1x1x14xf32> to vector<1x14xf32>
    %c4_758 = arith.constant 4 : index
    %c56_759 = arith.constant 56 : index
    %682 = vector.load %arg5[%c4_758, %c56_759] : memref<32x196xf32, #tpu.memory_space<vmem>>, vector<1x14xf32>
    tpu.vector_store %arg5[%c4_758, %c56_759], %681 {strides = array<i32>} : memref<32x196xf32, #tpu.memory_space<vmem>>, vector<1x14xf32>,
    %c4_i32_760 = arith.constant 4 : i32
    %683 = arith.addi %0, %c4_i32_760 : i32
    %c1_i32_761 = arith.constant 1 : i32
    %684 = arith.addi %683, %c1_i32_761 : i32
    %c0_762 = arith.constant 0 : index
    %c0_763 = arith.constant 0 : index
    %685 = arith.index_cast %684 : i32 to index
    %c2_764 = arith.constant 2 : index
    %686 = vector.load %arg2[%c0_762, %c0_763, %685, %c2_764] : memref<1x3x16x16xf32, #tpu.memory_space<vmem>>, vector<1x1x1x14xf32>
    %687 = vector.shape_cast %686 : vector<1x1x1x14xf32> to vector<1x14xf32>
    %c5_765 = arith.constant 5 : index
    %c56_766 = arith.constant 56 : index
    %688 = vector.load %arg5[%c5_765, %c56_766] : memref<32x196xf32, #tpu.memory_space<vmem>>, vector<1x14xf32>
    tpu.vector_store %arg5[%c5_765, %c56_766], %687 {strides = array<i32>} : memref<32x196xf32, #tpu.memory_space<vmem>>, vector<1x14xf32>,
    %c4_i32_767 = arith.constant 4 : i32
    %689 = arith.addi %0, %c4_i32_767 : i32
    %c2_i32_768 = arith.constant 2 : i32
    %690 = arith.addi %689, %c2_i32_768 : i32
    %c0_769 = arith.constant 0 : index
    %c0_770 = arith.constant 0 : index
    %691 = arith.index_cast %690 : i32 to index
    %c0_771 = arith.constant 0 : index
    %692 = vector.load %arg2[%c0_769, %c0_770, %691, %c0_771] : memref<1x3x16x16xf32, #tpu.memory_space<vmem>>, vector<1x1x1x14xf32>
    %693 = vector.shape_cast %692 : vector<1x1x1x14xf32> to vector<1x14xf32>
    %c6_772 = arith.constant 6 : index
    %c56_773 = arith.constant 56 : index
    %694 = vector.load %arg5[%c6_772, %c56_773] : memref<32x196xf32, #tpu.memory_space<vmem>>, vector<1x14xf32>
    tpu.vector_store %arg5[%c6_772, %c56_773], %693 {strides = array<i32>} : memref<32x196xf32, #tpu.memory_space<vmem>>, vector<1x14xf32>,
    %c4_i32_774 = arith.constant 4 : i32
    %695 = arith.addi %0, %c4_i32_774 : i32
    %c2_i32_775 = arith.constant 2 : i32
    %696 = arith.addi %695, %c2_i32_775 : i32
    %c0_776 = arith.constant 0 : index
    %c0_777 = arith.constant 0 : index
    %697 = arith.index_cast %696 : i32 to index
    %c1_778 = arith.constant 1 : index
    %698 = vector.load %arg2[%c0_776, %c0_777, %697, %c1_778] : memref<1x3x16x16xf32, #tpu.memory_space<vmem>>, vector<1x1x1x14xf32>
    %699 = vector.shape_cast %698 : vector<1x1x1x14xf32> to vector<1x14xf32>
    %c7_779 = arith.constant 7 : index
    %c56_780 = arith.constant 56 : index
    %700 = vector.load %arg5[%c7_779, %c56_780] : memref<32x196xf32, #tpu.memory_space<vmem>>, vector<1x14xf32>
    tpu.vector_store %arg5[%c7_779, %c56_780], %699 {strides = array<i32>} : memref<32x196xf32, #tpu.memory_space<vmem>>, vector<1x14xf32>,
    %c4_i32_781 = arith.constant 4 : i32
    %701 = arith.addi %0, %c4_i32_781 : i32
    %c2_i32_782 = arith.constant 2 : i32
    %702 = arith.addi %701, %c2_i32_782 : i32
    %c0_783 = arith.constant 0 : index
    %c0_784 = arith.constant 0 : index
    %703 = arith.index_cast %702 : i32 to index
    %c2_785 = arith.constant 2 : index
    %704 = vector.load %arg2[%c0_783, %c0_784, %703, %c2_785] : memref<1x3x16x16xf32, #tpu.memory_space<vmem>>, vector<1x1x1x14xf32>
    %705 = vector.shape_cast %704 : vector<1x1x1x14xf32> to vector<1x14xf32>
    %c8_786 = arith.constant 8 : index
    %c56_787 = arith.constant 56 : index
    %706 = vector.load %arg5[%c8_786, %c56_787] : memref<32x196xf32, #tpu.memory_space<vmem>>, vector<1x14xf32>
    tpu.vector_store %arg5[%c8_786, %c56_787], %705 {strides = array<i32>} : memref<32x196xf32, #tpu.memory_space<vmem>>, vector<1x14xf32>,
    %c4_i32_788 = arith.constant 4 : i32
    %707 = arith.addi %0, %c4_i32_788 : i32
    %c0_i32_789 = arith.constant 0 : i32
    %708 = arith.addi %707, %c0_i32_789 : i32
    %c0_790 = arith.constant 0 : index
    %c1_791 = arith.constant 1 : index
    %709 = arith.index_cast %708 : i32 to index
    %c0_792 = arith.constant 0 : index
    %710 = vector.load %arg2[%c0_790, %c1_791, %709, %c0_792] : memref<1x3x16x16xf32, #tpu.memory_space<vmem>>, vector<1x1x1x14xf32>
    %711 = vector.shape_cast %710 : vector<1x1x1x14xf32> to vector<1x14xf32>
    %c9_793 = arith.constant 9 : index
    %c56_794 = arith.constant 56 : index
    %712 = vector.load %arg5[%c9_793, %c56_794] : memref<32x196xf32, #tpu.memory_space<vmem>>, vector<1x14xf32>
    tpu.vector_store %arg5[%c9_793, %c56_794], %711 {strides = array<i32>} : memref<32x196xf32, #tpu.memory_space<vmem>>, vector<1x14xf32>,
    %c4_i32_795 = arith.constant 4 : i32
    %713 = arith.addi %0, %c4_i32_795 : i32
    %c0_i32_796 = arith.constant 0 : i32
    %714 = arith.addi %713, %c0_i32_796 : i32
    %c0_797 = arith.constant 0 : index
    %c1_798 = arith.constant 1 : index
    %715 = arith.index_cast %714 : i32 to index
    %c1_799 = arith.constant 1 : index
    %716 = vector.load %arg2[%c0_797, %c1_798, %715, %c1_799] : memref<1x3x16x16xf32, #tpu.memory_space<vmem>>, vector<1x1x1x14xf32>
    %717 = vector.shape_cast %716 : vector<1x1x1x14xf32> to vector<1x14xf32>
    %c10_800 = arith.constant 10 : index
    %c56_801 = arith.constant 56 : index
    %718 = vector.load %arg5[%c10_800, %c56_801] : memref<32x196xf32, #tpu.memory_space<vmem>>, vector<1x14xf32>
    tpu.vector_store %arg5[%c10_800, %c56_801], %717 {strides = array<i32>} : memref<32x196xf32, #tpu.memory_space<vmem>>, vector<1x14xf32>,
    %c4_i32_802 = arith.constant 4 : i32
    %719 = arith.addi %0, %c4_i32_802 : i32
    %c0_i32_803 = arith.constant 0 : i32
    %720 = arith.addi %719, %c0_i32_803 : i32
    %c0_804 = arith.constant 0 : index
    %c1_805 = arith.constant 1 : index
    %721 = arith.index_cast %720 : i32 to index
    %c2_806 = arith.constant 2 : index
    %722 = vector.load %arg2[%c0_804, %c1_805, %721, %c2_806] : memref<1x3x16x16xf32, #tpu.memory_space<vmem>>, vector<1x1x1x14xf32>
    %723 = vector.shape_cast %722 : vector<1x1x1x14xf32> to vector<1x14xf32>
    %c11_807 = arith.constant 11 : index
    %c56_808 = arith.constant 56 : index
    %724 = vector.load %arg5[%c11_807, %c56_808] : memref<32x196xf32, #tpu.memory_space<vmem>>, vector<1x14xf32>
    tpu.vector_store %arg5[%c11_807, %c56_808], %723 {strides = array<i32>} : memref<32x196xf32, #tpu.memory_space<vmem>>, vector<1x14xf32>,
    %c4_i32_809 = arith.constant 4 : i32
    %725 = arith.addi %0, %c4_i32_809 : i32
    %c1_i32_810 = arith.constant 1 : i32
    %726 = arith.addi %725, %c1_i32_810 : i32
    %c0_811 = arith.constant 0 : index
    %c1_812 = arith.constant 1 : index
    %727 = arith.index_cast %726 : i32 to index
    %c0_813 = arith.constant 0 : index
    %728 = vector.load %arg2[%c0_811, %c1_812, %727, %c0_813] : memref<1x3x16x16xf32, #tpu.memory_space<vmem>>, vector<1x1x1x14xf32>
    %729 = vector.shape_cast %728 : vector<1x1x1x14xf32> to vector<1x14xf32>
    %c12_814 = arith.constant 12 : index
    %c56_815 = arith.constant 56 : index
    %730 = vector.load %arg5[%c12_814, %c56_815] : memref<32x196xf32, #tpu.memory_space<vmem>>, vector<1x14xf32>
    tpu.vector_store %arg5[%c12_814, %c56_815], %729 {strides = array<i32>} : memref<32x196xf32, #tpu.memory_space<vmem>>, vector<1x14xf32>,
    %c4_i32_816 = arith.constant 4 : i32
    %731 = arith.addi %0, %c4_i32_816 : i32
    %c1_i32_817 = arith.constant 1 : i32
    %732 = arith.addi %731, %c1_i32_817 : i32
    %c0_818 = arith.constant 0 : index
    %c1_819 = arith.constant 1 : index
    %733 = arith.index_cast %732 : i32 to index
    %c1_820 = arith.constant 1 : index
    %734 = vector.load %arg2[%c0_818, %c1_819, %733, %c1_820] : memref<1x3x16x16xf32, #tpu.memory_space<vmem>>, vector<1x1x1x14xf32>
    %735 = vector.shape_cast %734 : vector<1x1x1x14xf32> to vector<1x14xf32>
    %c13_821 = arith.constant 13 : index
    %c56_822 = arith.constant 56 : index
    %736 = vector.load %arg5[%c13_821, %c56_822] : memref<32x196xf32, #tpu.memory_space<vmem>>, vector<1x14xf32>
    tpu.vector_store %arg5[%c13_821, %c56_822], %735 {strides = array<i32>} : memref<32x196xf32, #tpu.memory_space<vmem>>, vector<1x14xf32>,
    %c4_i32_823 = arith.constant 4 : i32
    %737 = arith.addi %0, %c4_i32_823 : i32
    %c1_i32_824 = arith.constant 1 : i32
    %738 = arith.addi %737, %c1_i32_824 : i32
    %c0_825 = arith.constant 0 : index
    %c1_826 = arith.constant 1 : index
    %739 = arith.index_cast %738 : i32 to index
    %c2_827 = arith.constant 2 : index
    %740 = vector.load %arg2[%c0_825, %c1_826, %739, %c2_827] : memref<1x3x16x16xf32, #tpu.memory_space<vmem>>, vector<1x1x1x14xf32>
    %741 = vector.shape_cast %740 : vector<1x1x1x14xf32> to vector<1x14xf32>
    %c14_828 = arith.constant 14 : index
    %c56_829 = arith.constant 56 : index
    %742 = vector.load %arg5[%c14_828, %c56_829] : memref<32x196xf32, #tpu.memory_space<vmem>>, vector<1x14xf32>
    tpu.vector_store %arg5[%c14_828, %c56_829], %741 {strides = array<i32>} : memref<32x196xf32, #tpu.memory_space<vmem>>, vector<1x14xf32>,
    %c4_i32_830 = arith.constant 4 : i32
    %743 = arith.addi %0, %c4_i32_830 : i32
    %c2_i32_831 = arith.constant 2 : i32
    %744 = arith.addi %743, %c2_i32_831 : i32
    %c0_832 = arith.constant 0 : index
    %c1_833 = arith.constant 1 : index
    %745 = arith.index_cast %744 : i32 to index
    %c0_834 = arith.constant 0 : index
    %746 = vector.load %arg2[%c0_832, %c1_833, %745, %c0_834] : memref<1x3x16x16xf32, #tpu.memory_space<vmem>>, vector<1x1x1x14xf32>
    %747 = vector.shape_cast %746 : vector<1x1x1x14xf32> to vector<1x14xf32>
    %c15_835 = arith.constant 15 : index
    %c56_836 = arith.constant 56 : index
    %748 = vector.load %arg5[%c15_835, %c56_836] : memref<32x196xf32, #tpu.memory_space<vmem>>, vector<1x14xf32>
    tpu.vector_store %arg5[%c15_835, %c56_836], %747 {strides = array<i32>} : memref<32x196xf32, #tpu.memory_space<vmem>>, vector<1x14xf32>,
    %c4_i32_837 = arith.constant 4 : i32
    %749 = arith.addi %0, %c4_i32_837 : i32
    %c2_i32_838 = arith.constant 2 : i32
    %750 = arith.addi %749, %c2_i32_838 : i32
    %c0_839 = arith.constant 0 : index
    %c1_840 = arith.constant 1 : index
    %751 = arith.index_cast %750 : i32 to index
    %c1_841 = arith.constant 1 : index
    %752 = vector.load %arg2[%c0_839, %c1_840, %751, %c1_841] : memref<1x3x16x16xf32, #tpu.memory_space<vmem>>, vector<1x1x1x14xf32>
    %753 = vector.shape_cast %752 : vector<1x1x1x14xf32> to vector<1x14xf32>
    %c16_842 = arith.constant 16 : index
    %c56_843 = arith.constant 56 : index
    %754 = vector.load %arg5[%c16_842, %c56_843] : memref<32x196xf32, #tpu.memory_space<vmem>>, vector<1x14xf32>
    tpu.vector_store %arg5[%c16_842, %c56_843], %753 {strides = array<i32>} : memref<32x196xf32, #tpu.memory_space<vmem>>, vector<1x14xf32>,
    %c4_i32_844 = arith.constant 4 : i32
    %755 = arith.addi %0, %c4_i32_844 : i32
    %c2_i32_845 = arith.constant 2 : i32
    %756 = arith.addi %755, %c2_i32_845 : i32
    %c0_846 = arith.constant 0 : index
    %c1_847 = arith.constant 1 : index
    %757 = arith.index_cast %756 : i32 to index
    %c2_848 = arith.constant 2 : index
    %758 = vector.load %arg2[%c0_846, %c1_847, %757, %c2_848] : memref<1x3x16x16xf32, #tpu.memory_space<vmem>>, vector<1x1x1x14xf32>
    %759 = vector.shape_cast %758 : vector<1x1x1x14xf32> to vector<1x14xf32>
    %c17_849 = arith.constant 17 : index
    %c56_850 = arith.constant 56 : index
    %760 = vector.load %arg5[%c17_849, %c56_850] : memref<32x196xf32, #tpu.memory_space<vmem>>, vector<1x14xf32>
    tpu.vector_store %arg5[%c17_849, %c56_850], %759 {strides = array<i32>} : memref<32x196xf32, #tpu.memory_space<vmem>>, vector<1x14xf32>,
    %c4_i32_851 = arith.constant 4 : i32
    %761 = arith.addi %0, %c4_i32_851 : i32
    %c0_i32_852 = arith.constant 0 : i32
    %762 = arith.addi %761, %c0_i32_852 : i32
    %c0_853 = arith.constant 0 : index
    %c2_854 = arith.constant 2 : index
    %763 = arith.index_cast %762 : i32 to index
    %c0_855 = arith.constant 0 : index
    %764 = vector.load %arg2[%c0_853, %c2_854, %763, %c0_855] : memref<1x3x16x16xf32, #tpu.memory_space<vmem>>, vector<1x1x1x14xf32>
    %765 = vector.shape_cast %764 : vector<1x1x1x14xf32> to vector<1x14xf32>
    %c18_856 = arith.constant 18 : index
    %c56_857 = arith.constant 56 : index
    %766 = vector.load %arg5[%c18_856, %c56_857] : memref<32x196xf32, #tpu.memory_space<vmem>>, vector<1x14xf32>
    tpu.vector_store %arg5[%c18_856, %c56_857], %765 {strides = array<i32>} : memref<32x196xf32, #tpu.memory_space<vmem>>, vector<1x14xf32>,
    %c4_i32_858 = arith.constant 4 : i32
    %767 = arith.addi %0, %c4_i32_858 : i32
    %c0_i32_859 = arith.constant 0 : i32
    %768 = arith.addi %767, %c0_i32_859 : i32
    %c0_860 = arith.constant 0 : index
    %c2_861 = arith.constant 2 : index
    %769 = arith.index_cast %768 : i32 to index
    %c1_862 = arith.constant 1 : index
    %770 = vector.load %arg2[%c0_860, %c2_861, %769, %c1_862] : memref<1x3x16x16xf32, #tpu.memory_space<vmem>>, vector<1x1x1x14xf32>
    %771 = vector.shape_cast %770 : vector<1x1x1x14xf32> to vector<1x14xf32>
    %c19_863 = arith.constant 19 : index
    %c56_864 = arith.constant 56 : index
    %772 = vector.load %arg5[%c19_863, %c56_864] : memref<32x196xf32, #tpu.memory_space<vmem>>, vector<1x14xf32>
    tpu.vector_store %arg5[%c19_863, %c56_864], %771 {strides = array<i32>} : memref<32x196xf32, #tpu.memory_space<vmem>>, vector<1x14xf32>,
    %c4_i32_865 = arith.constant 4 : i32
    %773 = arith.addi %0, %c4_i32_865 : i32
    %c0_i32_866 = arith.constant 0 : i32
    %774 = arith.addi %773, %c0_i32_866 : i32
    %c0_867 = arith.constant 0 : index
    %c2_868 = arith.constant 2 : index
    %775 = arith.index_cast %774 : i32 to index
    %c2_869 = arith.constant 2 : index
    %776 = vector.load %arg2[%c0_867, %c2_868, %775, %c2_869] : memref<1x3x16x16xf32, #tpu.memory_space<vmem>>, vector<1x1x1x14xf32>
    %777 = vector.shape_cast %776 : vector<1x1x1x14xf32> to vector<1x14xf32>
    %c20_870 = arith.constant 20 : index
    %c56_871 = arith.constant 56 : index
    %778 = vector.load %arg5[%c20_870, %c56_871] : memref<32x196xf32, #tpu.memory_space<vmem>>, vector<1x14xf32>
    tpu.vector_store %arg5[%c20_870, %c56_871], %777 {strides = array<i32>} : memref<32x196xf32, #tpu.memory_space<vmem>>, vector<1x14xf32>,
    %c4_i32_872 = arith.constant 4 : i32
    %779 = arith.addi %0, %c4_i32_872 : i32
    %c1_i32_873 = arith.constant 1 : i32
    %780 = arith.addi %779, %c1_i32_873 : i32
    %c0_874 = arith.constant 0 : index
    %c2_875 = arith.constant 2 : index
    %781 = arith.index_cast %780 : i32 to index
    %c0_876 = arith.constant 0 : index
    %782 = vector.load %arg2[%c0_874, %c2_875, %781, %c0_876] : memref<1x3x16x16xf32, #tpu.memory_space<vmem>>, vector<1x1x1x14xf32>
    %783 = vector.shape_cast %782 : vector<1x1x1x14xf32> to vector<1x14xf32>
    %c21_877 = arith.constant 21 : index
    %c56_878 = arith.constant 56 : index
    %784 = vector.load %arg5[%c21_877, %c56_878] : memref<32x196xf32, #tpu.memory_space<vmem>>, vector<1x14xf32>
    tpu.vector_store %arg5[%c21_877, %c56_878], %783 {strides = array<i32>} : memref<32x196xf32, #tpu.memory_space<vmem>>, vector<1x14xf32>,
    %c4_i32_879 = arith.constant 4 : i32
    %785 = arith.addi %0, %c4_i32_879 : i32
    %c1_i32_880 = arith.constant 1 : i32
    %786 = arith.addi %785, %c1_i32_880 : i32
    %c0_881 = arith.constant 0 : index
    %c2_882 = arith.constant 2 : index
    %787 = arith.index_cast %786 : i32 to index
    %c1_883 = arith.constant 1 : index
    %788 = vector.load %arg2[%c0_881, %c2_882, %787, %c1_883] : memref<1x3x16x16xf32, #tpu.memory_space<vmem>>, vector<1x1x1x14xf32>
    %789 = vector.shape_cast %788 : vector<1x1x1x14xf32> to vector<1x14xf32>
    %c22_884 = arith.constant 22 : index
    %c56_885 = arith.constant 56 : index
    %790 = vector.load %arg5[%c22_884, %c56_885] : memref<32x196xf32, #tpu.memory_space<vmem>>, vector<1x14xf32>
    tpu.vector_store %arg5[%c22_884, %c56_885], %789 {strides = array<i32>} : memref<32x196xf32, #tpu.memory_space<vmem>>, vector<1x14xf32>,
    %c4_i32_886 = arith.constant 4 : i32
    %791 = arith.addi %0, %c4_i32_886 : i32
    %c1_i32_887 = arith.constant 1 : i32
    %792 = arith.addi %791, %c1_i32_887 : i32
    %c0_888 = arith.constant 0 : index
    %c2_889 = arith.constant 2 : index
    %793 = arith.index_cast %792 : i32 to index
    %c2_890 = arith.constant 2 : index
    %794 = vector.load %arg2[%c0_888, %c2_889, %793, %c2_890] : memref<1x3x16x16xf32, #tpu.memory_space<vmem>>, vector<1x1x1x14xf32>
    %795 = vector.shape_cast %794 : vector<1x1x1x14xf32> to vector<1x14xf32>
    %c23_891 = arith.constant 23 : index
    %c56_892 = arith.constant 56 : index
    %796 = vector.load %arg5[%c23_891, %c56_892] : memref<32x196xf32, #tpu.memory_space<vmem>>, vector<1x14xf32>
    tpu.vector_store %arg5[%c23_891, %c56_892], %795 {strides = array<i32>} : memref<32x196xf32, #tpu.memory_space<vmem>>, vector<1x14xf32>,
    %c4_i32_893 = arith.constant 4 : i32
    %797 = arith.addi %0, %c4_i32_893 : i32
    %c2_i32_894 = arith.constant 2 : i32
    %798 = arith.addi %797, %c2_i32_894 : i32
    %c0_895 = arith.constant 0 : index
    %c2_896 = arith.constant 2 : index
    %799 = arith.index_cast %798 : i32 to index
    %c0_897 = arith.constant 0 : index
    %800 = vector.load %arg2[%c0_895, %c2_896, %799, %c0_897] : memref<1x3x16x16xf32, #tpu.memory_space<vmem>>, vector<1x1x1x14xf32>
    %801 = vector.shape_cast %800 : vector<1x1x1x14xf32> to vector<1x14xf32>
    %c24_898 = arith.constant 24 : index
    %c56_899 = arith.constant 56 : index
    %802 = vector.load %arg5[%c24_898, %c56_899] : memref<32x196xf32, #tpu.memory_space<vmem>>, vector<1x14xf32>
    tpu.vector_store %arg5[%c24_898, %c56_899], %801 {strides = array<i32>} : memref<32x196xf32, #tpu.memory_space<vmem>>, vector<1x14xf32>,
    %c4_i32_900 = arith.constant 4 : i32
    %803 = arith.addi %0, %c4_i32_900 : i32
    %c2_i32_901 = arith.constant 2 : i32
    %804 = arith.addi %803, %c2_i32_901 : i32
    %c0_902 = arith.constant 0 : index
    %c2_903 = arith.constant 2 : index
    %805 = arith.index_cast %804 : i32 to index
    %c1_904 = arith.constant 1 : index
    %806 = vector.load %arg2[%c0_902, %c2_903, %805, %c1_904] : memref<1x3x16x16xf32, #tpu.memory_space<vmem>>, vector<1x1x1x14xf32>
    %807 = vector.shape_cast %806 : vector<1x1x1x14xf32> to vector<1x14xf32>
    %c25_905 = arith.constant 25 : index
    %c56_906 = arith.constant 56 : index
    %808 = vector.load %arg5[%c25_905, %c56_906] : memref<32x196xf32, #tpu.memory_space<vmem>>, vector<1x14xf32>
    tpu.vector_store %arg5[%c25_905, %c56_906], %807 {strides = array<i32>} : memref<32x196xf32, #tpu.memory_space<vmem>>, vector<1x14xf32>,
    %c4_i32_907 = arith.constant 4 : i32
    %809 = arith.addi %0, %c4_i32_907 : i32
    %c2_i32_908 = arith.constant 2 : i32
    %810 = arith.addi %809, %c2_i32_908 : i32
    %c0_909 = arith.constant 0 : index
    %c2_910 = arith.constant 2 : index
    %811 = arith.index_cast %810 : i32 to index
    %c2_911 = arith.constant 2 : index
    %812 = vector.load %arg2[%c0_909, %c2_910, %811, %c2_911] : memref<1x3x16x16xf32, #tpu.memory_space<vmem>>, vector<1x1x1x14xf32>
    %813 = vector.shape_cast %812 : vector<1x1x1x14xf32> to vector<1x14xf32>
    %c26_912 = arith.constant 26 : index
    %c56_913 = arith.constant 56 : index
    %814 = vector.load %arg5[%c26_912, %c56_913] : memref<32x196xf32, #tpu.memory_space<vmem>>, vector<1x14xf32>
    tpu.vector_store %arg5[%c26_912, %c56_913], %813 {strides = array<i32>} : memref<32x196xf32, #tpu.memory_space<vmem>>, vector<1x14xf32>,
    %c5_i32 = arith.constant 5 : i32
    %815 = arith.addi %0, %c5_i32 : i32
    %c0_i32_914 = arith.constant 0 : i32
    %816 = arith.addi %815, %c0_i32_914 : i32
    %c0_915 = arith.constant 0 : index
    %c0_916 = arith.constant 0 : index
    %817 = arith.index_cast %816 : i32 to index
    %c0_917 = arith.constant 0 : index
    %818 = vector.load %arg2[%c0_915, %c0_916, %817, %c0_917] : memref<1x3x16x16xf32, #tpu.memory_space<vmem>>, vector<1x1x1x14xf32>
    %819 = vector.shape_cast %818 : vector<1x1x1x14xf32> to vector<1x14xf32>
    %c0_918 = arith.constant 0 : index
    %c70 = arith.constant 70 : index
    %820 = vector.load %arg5[%c0_918, %c70] : memref<32x196xf32, #tpu.memory_space<vmem>>, vector<1x14xf32>
    tpu.vector_store %arg5[%c0_918, %c70], %819 {strides = array<i32>} : memref<32x196xf32, #tpu.memory_space<vmem>>, vector<1x14xf32>,
    %c5_i32_919 = arith.constant 5 : i32
    %821 = arith.addi %0, %c5_i32_919 : i32
    %c0_i32_920 = arith.constant 0 : i32
    %822 = arith.addi %821, %c0_i32_920 : i32
    %c0_921 = arith.constant 0 : index
    %c0_922 = arith.constant 0 : index
    %823 = arith.index_cast %822 : i32 to index
    %c1_923 = arith.constant 1 : index
    %824 = vector.load %arg2[%c0_921, %c0_922, %823, %c1_923] : memref<1x3x16x16xf32, #tpu.memory_space<vmem>>, vector<1x1x1x14xf32>
    %825 = vector.shape_cast %824 : vector<1x1x1x14xf32> to vector<1x14xf32>
    %c1_924 = arith.constant 1 : index
    %c70_925 = arith.constant 70 : index
    %826 = vector.load %arg5[%c1_924, %c70_925] : memref<32x196xf32, #tpu.memory_space<vmem>>, vector<1x14xf32>
    tpu.vector_store %arg5[%c1_924, %c70_925], %825 {strides = array<i32>} : memref<32x196xf32, #tpu.memory_space<vmem>>, vector<1x14xf32>,
    %c5_i32_926 = arith.constant 5 : i32
    %827 = arith.addi %0, %c5_i32_926 : i32
    %c0_i32_927 = arith.constant 0 : i32
    %828 = arith.addi %827, %c0_i32_927 : i32
    %c0_928 = arith.constant 0 : index
    %c0_929 = arith.constant 0 : index
    %829 = arith.index_cast %828 : i32 to index
    %c2_930 = arith.constant 2 : index
    %830 = vector.load %arg2[%c0_928, %c0_929, %829, %c2_930] : memref<1x3x16x16xf32, #tpu.memory_space<vmem>>, vector<1x1x1x14xf32>
    %831 = vector.shape_cast %830 : vector<1x1x1x14xf32> to vector<1x14xf32>
    %c2_931 = arith.constant 2 : index
    %c70_932 = arith.constant 70 : index
    %832 = vector.load %arg5[%c2_931, %c70_932] : memref<32x196xf32, #tpu.memory_space<vmem>>, vector<1x14xf32>
    tpu.vector_store %arg5[%c2_931, %c70_932], %831 {strides = array<i32>} : memref<32x196xf32, #tpu.memory_space<vmem>>, vector<1x14xf32>,
    %c5_i32_933 = arith.constant 5 : i32
    %833 = arith.addi %0, %c5_i32_933 : i32
    %c1_i32_934 = arith.constant 1 : i32
    %834 = arith.addi %833, %c1_i32_934 : i32
    %c0_935 = arith.constant 0 : index
    %c0_936 = arith.constant 0 : index
    %835 = arith.index_cast %834 : i32 to index
    %c0_937 = arith.constant 0 : index
    %836 = vector.load %arg2[%c0_935, %c0_936, %835, %c0_937] : memref<1x3x16x16xf32, #tpu.memory_space<vmem>>, vector<1x1x1x14xf32>
    %837 = vector.shape_cast %836 : vector<1x1x1x14xf32> to vector<1x14xf32>
    %c3_938 = arith.constant 3 : index
    %c70_939 = arith.constant 70 : index
    %838 = vector.load %arg5[%c3_938, %c70_939] : memref<32x196xf32, #tpu.memory_space<vmem>>, vector<1x14xf32>
    tpu.vector_store %arg5[%c3_938, %c70_939], %837 {strides = array<i32>} : memref<32x196xf32, #tpu.memory_space<vmem>>, vector<1x14xf32>,
    %c5_i32_940 = arith.constant 5 : i32
    %839 = arith.addi %0, %c5_i32_940 : i32
    %c1_i32_941 = arith.constant 1 : i32
    %840 = arith.addi %839, %c1_i32_941 : i32
    %c0_942 = arith.constant 0 : index
    %c0_943 = arith.constant 0 : index
    %841 = arith.index_cast %840 : i32 to index
    %c1_944 = arith.constant 1 : index
    %842 = vector.load %arg2[%c0_942, %c0_943, %841, %c1_944] : memref<1x3x16x16xf32, #tpu.memory_space<vmem>>, vector<1x1x1x14xf32>
    %843 = vector.shape_cast %842 : vector<1x1x1x14xf32> to vector<1x14xf32>
    %c4_945 = arith.constant 4 : index
    %c70_946 = arith.constant 70 : index
    %844 = vector.load %arg5[%c4_945, %c70_946] : memref<32x196xf32, #tpu.memory_space<vmem>>, vector<1x14xf32>
    tpu.vector_store %arg5[%c4_945, %c70_946], %843 {strides = array<i32>} : memref<32x196xf32, #tpu.memory_space<vmem>>, vector<1x14xf32>,
    %c5_i32_947 = arith.constant 5 : i32
    %845 = arith.addi %0, %c5_i32_947 : i32
    %c1_i32_948 = arith.constant 1 : i32
    %846 = arith.addi %845, %c1_i32_948 : i32
    %c0_949 = arith.constant 0 : index
    %c0_950 = arith.constant 0 : index
    %847 = arith.index_cast %846 : i32 to index
    %c2_951 = arith.constant 2 : index
    %848 = vector.load %arg2[%c0_949, %c0_950, %847, %c2_951] : memref<1x3x16x16xf32, #tpu.memory_space<vmem>>, vector<1x1x1x14xf32>
    %849 = vector.shape_cast %848 : vector<1x1x1x14xf32> to vector<1x14xf32>
    %c5_952 = arith.constant 5 : index
    %c70_953 = arith.constant 70 : index
    %850 = vector.load %arg5[%c5_952, %c70_953] : memref<32x196xf32, #tpu.memory_space<vmem>>, vector<1x14xf32>
    tpu.vector_store %arg5[%c5_952, %c70_953], %849 {strides = array<i32>} : memref<32x196xf32, #tpu.memory_space<vmem>>, vector<1x14xf32>,
    %c5_i32_954 = arith.constant 5 : i32
    %851 = arith.addi %0, %c5_i32_954 : i32
    %c2_i32_955 = arith.constant 2 : i32
    %852 = arith.addi %851, %c2_i32_955 : i32
    %c0_956 = arith.constant 0 : index
    %c0_957 = arith.constant 0 : index
    %853 = arith.index_cast %852 : i32 to index
    %c0_958 = arith.constant 0 : index
    %854 = vector.load %arg2[%c0_956, %c0_957, %853, %c0_958] : memref<1x3x16x16xf32, #tpu.memory_space<vmem>>, vector<1x1x1x14xf32>
    %855 = vector.shape_cast %854 : vector<1x1x1x14xf32> to vector<1x14xf32>
    %c6_959 = arith.constant 6 : index
    %c70_960 = arith.constant 70 : index
    %856 = vector.load %arg5[%c6_959, %c70_960] : memref<32x196xf32, #tpu.memory_space<vmem>>, vector<1x14xf32>
    tpu.vector_store %arg5[%c6_959, %c70_960], %855 {strides = array<i32>} : memref<32x196xf32, #tpu.memory_space<vmem>>, vector<1x14xf32>,
    %c5_i32_961 = arith.constant 5 : i32
    %857 = arith.addi %0, %c5_i32_961 : i32
    %c2_i32_962 = arith.constant 2 : i32
    %858 = arith.addi %857, %c2_i32_962 : i32
    %c0_963 = arith.constant 0 : index
    %c0_964 = arith.constant 0 : index
    %859 = arith.index_cast %858 : i32 to index
    %c1_965 = arith.constant 1 : index
    %860 = vector.load %arg2[%c0_963, %c0_964, %859, %c1_965] : memref<1x3x16x16xf32, #tpu.memory_space<vmem>>, vector<1x1x1x14xf32>
    %861 = vector.shape_cast %860 : vector<1x1x1x14xf32> to vector<1x14xf32>
    %c7_966 = arith.constant 7 : index
    %c70_967 = arith.constant 70 : index
    %862 = vector.load %arg5[%c7_966, %c70_967] : memref<32x196xf32, #tpu.memory_space<vmem>>, vector<1x14xf32>
    tpu.vector_store %arg5[%c7_966, %c70_967], %861 {strides = array<i32>} : memref<32x196xf32, #tpu.memory_space<vmem>>, vector<1x14xf32>,
    %c5_i32_968 = arith.constant 5 : i32
    %863 = arith.addi %0, %c5_i32_968 : i32
    %c2_i32_969 = arith.constant 2 : i32
    %864 = arith.addi %863, %c2_i32_969 : i32
    %c0_970 = arith.constant 0 : index
    %c0_971 = arith.constant 0 : index
    %865 = arith.index_cast %864 : i32 to index
    %c2_972 = arith.constant 2 : index
    %866 = vector.load %arg2[%c0_970, %c0_971, %865, %c2_972] : memref<1x3x16x16xf32, #tpu.memory_space<vmem>>, vector<1x1x1x14xf32>
    %867 = vector.shape_cast %866 : vector<1x1x1x14xf32> to vector<1x14xf32>
    %c8_973 = arith.constant 8 : index
    %c70_974 = arith.constant 70 : index
    %868 = vector.load %arg5[%c8_973, %c70_974] : memref<32x196xf32, #tpu.memory_space<vmem>>, vector<1x14xf32>
    tpu.vector_store %arg5[%c8_973, %c70_974], %867 {strides = array<i32>} : memref<32x196xf32, #tpu.memory_space<vmem>>, vector<1x14xf32>,
    %c5_i32_975 = arith.constant 5 : i32
    %869 = arith.addi %0, %c5_i32_975 : i32
    %c0_i32_976 = arith.constant 0 : i32
    %870 = arith.addi %869, %c0_i32_976 : i32
    %c0_977 = arith.constant 0 : index
    %c1_978 = arith.constant 1 : index
    %871 = arith.index_cast %870 : i32 to index
    %c0_979 = arith.constant 0 : index
    %872 = vector.load %arg2[%c0_977, %c1_978, %871, %c0_979] : memref<1x3x16x16xf32, #tpu.memory_space<vmem>>, vector<1x1x1x14xf32>
    %873 = vector.shape_cast %872 : vector<1x1x1x14xf32> to vector<1x14xf32>
    %c9_980 = arith.constant 9 : index
    %c70_981 = arith.constant 70 : index
    %874 = vector.load %arg5[%c9_980, %c70_981] : memref<32x196xf32, #tpu.memory_space<vmem>>, vector<1x14xf32>
    tpu.vector_store %arg5[%c9_980, %c70_981], %873 {strides = array<i32>} : memref<32x196xf32, #tpu.memory_space<vmem>>, vector<1x14xf32>,
    %c5_i32_982 = arith.constant 5 : i32
    %875 = arith.addi %0, %c5_i32_982 : i32
    %c0_i32_983 = arith.constant 0 : i32
    %876 = arith.addi %875, %c0_i32_983 : i32
    %c0_984 = arith.constant 0 : index
    %c1_985 = arith.constant 1 : index
    %877 = arith.index_cast %876 : i32 to index
    %c1_986 = arith.constant 1 : index
    %878 = vector.load %arg2[%c0_984, %c1_985, %877, %c1_986] : memref<1x3x16x16xf32, #tpu.memory_space<vmem>>, vector<1x1x1x14xf32>
    %879 = vector.shape_cast %878 : vector<1x1x1x14xf32> to vector<1x14xf32>
    %c10_987 = arith.constant 10 : index
    %c70_988 = arith.constant 70 : index
    %880 = vector.load %arg5[%c10_987, %c70_988] : memref<32x196xf32, #tpu.memory_space<vmem>>, vector<1x14xf32>
    tpu.vector_store %arg5[%c10_987, %c70_988], %879 {strides = array<i32>} : memref<32x196xf32, #tpu.memory_space<vmem>>, vector<1x14xf32>,
    %c5_i32_989 = arith.constant 5 : i32
    %881 = arith.addi %0, %c5_i32_989 : i32
    %c0_i32_990 = arith.constant 0 : i32
    %882 = arith.addi %881, %c0_i32_990 : i32
    %c0_991 = arith.constant 0 : index
    %c1_992 = arith.constant 1 : index
    %883 = arith.index_cast %882 : i32 to index
    %c2_993 = arith.constant 2 : index
    %884 = vector.load %arg2[%c0_991, %c1_992, %883, %c2_993] : memref<1x3x16x16xf32, #tpu.memory_space<vmem>>, vector<1x1x1x14xf32>
    %885 = vector.shape_cast %884 : vector<1x1x1x14xf32> to vector<1x14xf32>
    %c11_994 = arith.constant 11 : index
    %c70_995 = arith.constant 70 : index
    %886 = vector.load %arg5[%c11_994, %c70_995] : memref<32x196xf32, #tpu.memory_space<vmem>>, vector<1x14xf32>
    tpu.vector_store %arg5[%c11_994, %c70_995], %885 {strides = array<i32>} : memref<32x196xf32, #tpu.memory_space<vmem>>, vector<1x14xf32>,
    %c5_i32_996 = arith.constant 5 : i32
    %887 = arith.addi %0, %c5_i32_996 : i32
    %c1_i32_997 = arith.constant 1 : i32
    %888 = arith.addi %887, %c1_i32_997 : i32
    %c0_998 = arith.constant 0 : index
    %c1_999 = arith.constant 1 : index
    %889 = arith.index_cast %888 : i32 to index
    %c0_1000 = arith.constant 0 : index
    %890 = vector.load %arg2[%c0_998, %c1_999, %889, %c0_1000] : memref<1x3x16x16xf32, #tpu.memory_space<vmem>>, vector<1x1x1x14xf32>
    %891 = vector.shape_cast %890 : vector<1x1x1x14xf32> to vector<1x14xf32>
    %c12_1001 = arith.constant 12 : index
    %c70_1002 = arith.constant 70 : index
    %892 = vector.load %arg5[%c12_1001, %c70_1002] : memref<32x196xf32, #tpu.memory_space<vmem>>, vector<1x14xf32>
    tpu.vector_store %arg5[%c12_1001, %c70_1002], %891 {strides = array<i32>} : memref<32x196xf32, #tpu.memory_space<vmem>>, vector<1x14xf32>,
    %c5_i32_1003 = arith.constant 5 : i32
    %893 = arith.addi %0, %c5_i32_1003 : i32
    %c1_i32_1004 = arith.constant 1 : i32
    %894 = arith.addi %893, %c1_i32_1004 : i32
    %c0_1005 = arith.constant 0 : index
    %c1_1006 = arith.constant 1 : index
    %895 = arith.index_cast %894 : i32 to index
    %c1_1007 = arith.constant 1 : index
    %896 = vector.load %arg2[%c0_1005, %c1_1006, %895, %c1_1007] : memref<1x3x16x16xf32, #tpu.memory_space<vmem>>, vector<1x1x1x14xf32>
    %897 = vector.shape_cast %896 : vector<1x1x1x14xf32> to vector<1x14xf32>
    %c13_1008 = arith.constant 13 : index
    %c70_1009 = arith.constant 70 : index
    %898 = vector.load %arg5[%c13_1008, %c70_1009] : memref<32x196xf32, #tpu.memory_space<vmem>>, vector<1x14xf32>
    tpu.vector_store %arg5[%c13_1008, %c70_1009], %897 {strides = array<i32>} : memref<32x196xf32, #tpu.memory_space<vmem>>, vector<1x14xf32>,
    %c5_i32_1010 = arith.constant 5 : i32
    %899 = arith.addi %0, %c5_i32_1010 : i32
    %c1_i32_1011 = arith.constant 1 : i32
    %900 = arith.addi %899, %c1_i32_1011 : i32
    %c0_1012 = arith.constant 0 : index
    %c1_1013 = arith.constant 1 : index
    %901 = arith.index_cast %900 : i32 to index
    %c2_1014 = arith.constant 2 : index
    %902 = vector.load %arg2[%c0_1012, %c1_1013, %901, %c2_1014] : memref<1x3x16x16xf32, #tpu.memory_space<vmem>>, vector<1x1x1x14xf32>
    %903 = vector.shape_cast %902 : vector<1x1x1x14xf32> to vector<1x14xf32>
    %c14_1015 = arith.constant 14 : index
    %c70_1016 = arith.constant 70 : index
    %904 = vector.load %arg5[%c14_1015, %c70_1016] : memref<32x196xf32, #tpu.memory_space<vmem>>, vector<1x14xf32>
    tpu.vector_store %arg5[%c14_1015, %c70_1016], %903 {strides = array<i32>} : memref<32x196xf32, #tpu.memory_space<vmem>>, vector<1x14xf32>,
    %c5_i32_1017 = arith.constant 5 : i32
    %905 = arith.addi %0, %c5_i32_1017 : i32
    %c2_i32_1018 = arith.constant 2 : i32
    %906 = arith.addi %905, %c2_i32_1018 : i32
    %c0_1019 = arith.constant 0 : index
    %c1_1020 = arith.constant 1 : index
    %907 = arith.index_cast %906 : i32 to index
    %c0_1021 = arith.constant 0 : index
    %908 = vector.load %arg2[%c0_1019, %c1_1020, %907, %c0_1021] : memref<1x3x16x16xf32, #tpu.memory_space<vmem>>, vector<1x1x1x14xf32>
    %909 = vector.shape_cast %908 : vector<1x1x1x14xf32> to vector<1x14xf32>
    %c15_1022 = arith.constant 15 : index
    %c70_1023 = arith.constant 70 : index
    %910 = vector.load %arg5[%c15_1022, %c70_1023] : memref<32x196xf32, #tpu.memory_space<vmem>>, vector<1x14xf32>
    tpu.vector_store %arg5[%c15_1022, %c70_1023], %909 {strides = array<i32>} : memref<32x196xf32, #tpu.memory_space<vmem>>, vector<1x14xf32>,
    %c5_i32_1024 = arith.constant 5 : i32
    %911 = arith.addi %0, %c5_i32_1024 : i32
    %c2_i32_1025 = arith.constant 2 : i32
    %912 = arith.addi %911, %c2_i32_1025 : i32
    %c0_1026 = arith.constant 0 : index
    %c1_1027 = arith.constant 1 : index
    %913 = arith.index_cast %912 : i32 to index
    %c1_1028 = arith.constant 1 : index
    %914 = vector.load %arg2[%c0_1026, %c1_1027, %913, %c1_1028] : memref<1x3x16x16xf32, #tpu.memory_space<vmem>>, vector<1x1x1x14xf32>
    %915 = vector.shape_cast %914 : vector<1x1x1x14xf32> to vector<1x14xf32>
    %c16_1029 = arith.constant 16 : index
    %c70_1030 = arith.constant 70 : index
    %916 = vector.load %arg5[%c16_1029, %c70_1030] : memref<32x196xf32, #tpu.memory_space<vmem>>, vector<1x14xf32>
    tpu.vector_store %arg5[%c16_1029, %c70_1030], %915 {strides = array<i32>} : memref<32x196xf32, #tpu.memory_space<vmem>>, vector<1x14xf32>,
    %c5_i32_1031 = arith.constant 5 : i32
    %917 = arith.addi %0, %c5_i32_1031 : i32
    %c2_i32_1032 = arith.constant 2 : i32
    %918 = arith.addi %917, %c2_i32_1032 : i32
    %c0_1033 = arith.constant 0 : index
    %c1_1034 = arith.constant 1 : index
    %919 = arith.index_cast %918 : i32 to index
    %c2_1035 = arith.constant 2 : index
    %920 = vector.load %arg2[%c0_1033, %c1_1034, %919, %c2_1035] : memref<1x3x16x16xf32, #tpu.memory_space<vmem>>, vector<1x1x1x14xf32>
    %921 = vector.shape_cast %920 : vector<1x1x1x14xf32> to vector<1x14xf32>
    %c17_1036 = arith.constant 17 : index
    %c70_1037 = arith.constant 70 : index
    %922 = vector.load %arg5[%c17_1036, %c70_1037] : memref<32x196xf32, #tpu.memory_space<vmem>>, vector<1x14xf32>
    tpu.vector_store %arg5[%c17_1036, %c70_1037], %921 {strides = array<i32>} : memref<32x196xf32, #tpu.memory_space<vmem>>, vector<1x14xf32>,
    %c5_i32_1038 = arith.constant 5 : i32
    %923 = arith.addi %0, %c5_i32_1038 : i32
    %c0_i32_1039 = arith.constant 0 : i32
    %924 = arith.addi %923, %c0_i32_1039 : i32
    %c0_1040 = arith.constant 0 : index
    %c2_1041 = arith.constant 2 : index
    %925 = arith.index_cast %924 : i32 to index
    %c0_1042 = arith.constant 0 : index
    %926 = vector.load %arg2[%c0_1040, %c2_1041, %925, %c0_1042] : memref<1x3x16x16xf32, #tpu.memory_space<vmem>>, vector<1x1x1x14xf32>
    %927 = vector.shape_cast %926 : vector<1x1x1x14xf32> to vector<1x14xf32>
    %c18_1043 = arith.constant 18 : index
    %c70_1044 = arith.constant 70 : index
    %928 = vector.load %arg5[%c18_1043, %c70_1044] : memref<32x196xf32, #tpu.memory_space<vmem>>, vector<1x14xf32>
    tpu.vector_store %arg5[%c18_1043, %c70_1044], %927 {strides = array<i32>} : memref<32x196xf32, #tpu.memory_space<vmem>>, vector<1x14xf32>,
    %c5_i32_1045 = arith.constant 5 : i32
    %929 = arith.addi %0, %c5_i32_1045 : i32
    %c0_i32_1046 = arith.constant 0 : i32
    %930 = arith.addi %929, %c0_i32_1046 : i32
    %c0_1047 = arith.constant 0 : index
    %c2_1048 = arith.constant 2 : index
    %931 = arith.index_cast %930 : i32 to index
    %c1_1049 = arith.constant 1 : index
    %932 = vector.load %arg2[%c0_1047, %c2_1048, %931, %c1_1049] : memref<1x3x16x16xf32, #tpu.memory_space<vmem>>, vector<1x1x1x14xf32>
    %933 = vector.shape_cast %932 : vector<1x1x1x14xf32> to vector<1x14xf32>
    %c19_1050 = arith.constant 19 : index
    %c70_1051 = arith.constant 70 : index
    %934 = vector.load %arg5[%c19_1050, %c70_1051] : memref<32x196xf32, #tpu.memory_space<vmem>>, vector<1x14xf32>
    tpu.vector_store %arg5[%c19_1050, %c70_1051], %933 {strides = array<i32>} : memref<32x196xf32, #tpu.memory_space<vmem>>, vector<1x14xf32>,
    %c5_i32_1052 = arith.constant 5 : i32
    %935 = arith.addi %0, %c5_i32_1052 : i32
    %c0_i32_1053 = arith.constant 0 : i32
    %936 = arith.addi %935, %c0_i32_1053 : i32
    %c0_1054 = arith.constant 0 : index
    %c2_1055 = arith.constant 2 : index
    %937 = arith.index_cast %936 : i32 to index
    %c2_1056 = arith.constant 2 : index
    %938 = vector.load %arg2[%c0_1054, %c2_1055, %937, %c2_1056] : memref<1x3x16x16xf32, #tpu.memory_space<vmem>>, vector<1x1x1x14xf32>
    %939 = vector.shape_cast %938 : vector<1x1x1x14xf32> to vector<1x14xf32>
    %c20_1057 = arith.constant 20 : index
    %c70_1058 = arith.constant 70 : index
    %940 = vector.load %arg5[%c20_1057, %c70_1058] : memref<32x196xf32, #tpu.memory_space<vmem>>, vector<1x14xf32>
    tpu.vector_store %arg5[%c20_1057, %c70_1058], %939 {strides = array<i32>} : memref<32x196xf32, #tpu.memory_space<vmem>>, vector<1x14xf32>,
    %c5_i32_1059 = arith.constant 5 : i32
    %941 = arith.addi %0, %c5_i32_1059 : i32
    %c1_i32_1060 = arith.constant 1 : i32
    %942 = arith.addi %941, %c1_i32_1060 : i32
    %c0_1061 = arith.constant 0 : index
    %c2_1062 = arith.constant 2 : index
    %943 = arith.index_cast %942 : i32 to index
    %c0_1063 = arith.constant 0 : index
    %944 = vector.load %arg2[%c0_1061, %c2_1062, %943, %c0_1063] : memref<1x3x16x16xf32, #tpu.memory_space<vmem>>, vector<1x1x1x14xf32>
    %945 = vector.shape_cast %944 : vector<1x1x1x14xf32> to vector<1x14xf32>
    %c21_1064 = arith.constant 21 : index
    %c70_1065 = arith.constant 70 : index
    %946 = vector.load %arg5[%c21_1064, %c70_1065] : memref<32x196xf32, #tpu.memory_space<vmem>>, vector<1x14xf32>
    tpu.vector_store %arg5[%c21_1064, %c70_1065], %945 {strides = array<i32>} : memref<32x196xf32, #tpu.memory_space<vmem>>, vector<1x14xf32>,
    %c5_i32_1066 = arith.constant 5 : i32
    %947 = arith.addi %0, %c5_i32_1066 : i32
    %c1_i32_1067 = arith.constant 1 : i32
    %948 = arith.addi %947, %c1_i32_1067 : i32
    %c0_1068 = arith.constant 0 : index
    %c2_1069 = arith.constant 2 : index
    %949 = arith.index_cast %948 : i32 to index
    %c1_1070 = arith.constant 1 : index
    %950 = vector.load %arg2[%c0_1068, %c2_1069, %949, %c1_1070] : memref<1x3x16x16xf32, #tpu.memory_space<vmem>>, vector<1x1x1x14xf32>
    %951 = vector.shape_cast %950 : vector<1x1x1x14xf32> to vector<1x14xf32>
    %c22_1071 = arith.constant 22 : index
    %c70_1072 = arith.constant 70 : index
    %952 = vector.load %arg5[%c22_1071, %c70_1072] : memref<32x196xf32, #tpu.memory_space<vmem>>, vector<1x14xf32>
    tpu.vector_store %arg5[%c22_1071, %c70_1072], %951 {strides = array<i32>} : memref<32x196xf32, #tpu.memory_space<vmem>>, vector<1x14xf32>,
    %c5_i32_1073 = arith.constant 5 : i32
    %953 = arith.addi %0, %c5_i32_1073 : i32
    %c1_i32_1074 = arith.constant 1 : i32
    %954 = arith.addi %953, %c1_i32_1074 : i32
    %c0_1075 = arith.constant 0 : index
    %c2_1076 = arith.constant 2 : index
    %955 = arith.index_cast %954 : i32 to index
    %c2_1077 = arith.constant 2 : index
    %956 = vector.load %arg2[%c0_1075, %c2_1076, %955, %c2_1077] : memref<1x3x16x16xf32, #tpu.memory_space<vmem>>, vector<1x1x1x14xf32>
    %957 = vector.shape_cast %956 : vector<1x1x1x14xf32> to vector<1x14xf32>
    %c23_1078 = arith.constant 23 : index
    %c70_1079 = arith.constant 70 : index
    %958 = vector.load %arg5[%c23_1078, %c70_1079] : memref<32x196xf32, #tpu.memory_space<vmem>>, vector<1x14xf32>
    tpu.vector_store %arg5[%c23_1078, %c70_1079], %957 {strides = array<i32>} : memref<32x196xf32, #tpu.memory_space<vmem>>, vector<1x14xf32>,
    %c5_i32_1080 = arith.constant 5 : i32
    %959 = arith.addi %0, %c5_i32_1080 : i32
    %c2_i32_1081 = arith.constant 2 : i32
    %960 = arith.addi %959, %c2_i32_1081 : i32
    %c0_1082 = arith.constant 0 : index
    %c2_1083 = arith.constant 2 : index
    %961 = arith.index_cast %960 : i32 to index
    %c0_1084 = arith.constant 0 : index
    %962 = vector.load %arg2[%c0_1082, %c2_1083, %961, %c0_1084] : memref<1x3x16x16xf32, #tpu.memory_space<vmem>>, vector<1x1x1x14xf32>
    %963 = vector.shape_cast %962 : vector<1x1x1x14xf32> to vector<1x14xf32>
    %c24_1085 = arith.constant 24 : index
    %c70_1086 = arith.constant 70 : index
    %964 = vector.load %arg5[%c24_1085, %c70_1086] : memref<32x196xf32, #tpu.memory_space<vmem>>, vector<1x14xf32>
    tpu.vector_store %arg5[%c24_1085, %c70_1086], %963 {strides = array<i32>} : memref<32x196xf32, #tpu.memory_space<vmem>>, vector<1x14xf32>,
    %c5_i32_1087 = arith.constant 5 : i32
    %965 = arith.addi %0, %c5_i32_1087 : i32
    %c2_i32_1088 = arith.constant 2 : i32
    %966 = arith.addi %965, %c2_i32_1088 : i32
    %c0_1089 = arith.constant 0 : index
    %c2_1090 = arith.constant 2 : index
    %967 = arith.index_cast %966 : i32 to index
    %c1_1091 = arith.constant 1 : index
    %968 = vector.load %arg2[%c0_1089, %c2_1090, %967, %c1_1091] : memref<1x3x16x16xf32, #tpu.memory_space<vmem>>, vector<1x1x1x14xf32>
    %969 = vector.shape_cast %968 : vector<1x1x1x14xf32> to vector<1x14xf32>
    %c25_1092 = arith.constant 25 : index
    %c70_1093 = arith.constant 70 : index
    %970 = vector.load %arg5[%c25_1092, %c70_1093] : memref<32x196xf32, #tpu.memory_space<vmem>>, vector<1x14xf32>
    tpu.vector_store %arg5[%c25_1092, %c70_1093], %969 {strides = array<i32>} : memref<32x196xf32, #tpu.memory_space<vmem>>, vector<1x14xf32>,
    %c5_i32_1094 = arith.constant 5 : i32
    %971 = arith.addi %0, %c5_i32_1094 : i32
    %c2_i32_1095 = arith.constant 2 : i32
    %972 = arith.addi %971, %c2_i32_1095 : i32
    %c0_1096 = arith.constant 0 : index
    %c2_1097 = arith.constant 2 : index
    %973 = arith.index_cast %972 : i32 to index
    %c2_1098 = arith.constant 2 : index
    %974 = vector.load %arg2[%c0_1096, %c2_1097, %973, %c2_1098] : memref<1x3x16x16xf32, #tpu.memory_space<vmem>>, vector<1x1x1x14xf32>
    %975 = vector.shape_cast %974 : vector<1x1x1x14xf32> to vector<1x14xf32>
    %c26_1099 = arith.constant 26 : index
    %c70_1100 = arith.constant 70 : index
    %976 = vector.load %arg5[%c26_1099, %c70_1100] : memref<32x196xf32, #tpu.memory_space<vmem>>, vector<1x14xf32>
    tpu.vector_store %arg5[%c26_1099, %c70_1100], %975 {strides = array<i32>} : memref<32x196xf32, #tpu.memory_space<vmem>>, vector<1x14xf32>,
    %c6_i32 = arith.constant 6 : i32
    %977 = arith.addi %0, %c6_i32 : i32
    %c0_i32_1101 = arith.constant 0 : i32
    %978 = arith.addi %977, %c0_i32_1101 : i32
    %c0_1102 = arith.constant 0 : index
    %c0_1103 = arith.constant 0 : index
    %979 = arith.index_cast %978 : i32 to index
    %c0_1104 = arith.constant 0 : index
    %980 = vector.load %arg2[%c0_1102, %c0_1103, %979, %c0_1104] : memref<1x3x16x16xf32, #tpu.memory_space<vmem>>, vector<1x1x1x14xf32>
    %981 = vector.shape_cast %980 : vector<1x1x1x14xf32> to vector<1x14xf32>
    %c0_1105 = arith.constant 0 : index
    %c84 = arith.constant 84 : index
    %982 = vector.load %arg5[%c0_1105, %c84] : memref<32x196xf32, #tpu.memory_space<vmem>>, vector<1x14xf32>
    tpu.vector_store %arg5[%c0_1105, %c84], %981 {strides = array<i32>} : memref<32x196xf32, #tpu.memory_space<vmem>>, vector<1x14xf32>,
    %c6_i32_1106 = arith.constant 6 : i32
    %983 = arith.addi %0, %c6_i32_1106 : i32
    %c0_i32_1107 = arith.constant 0 : i32
    %984 = arith.addi %983, %c0_i32_1107 : i32
    %c0_1108 = arith.constant 0 : index
    %c0_1109 = arith.constant 0 : index
    %985 = arith.index_cast %984 : i32 to index
    %c1_1110 = arith.constant 1 : index
    %986 = vector.load %arg2[%c0_1108, %c0_1109, %985, %c1_1110] : memref<1x3x16x16xf32, #tpu.memory_space<vmem>>, vector<1x1x1x14xf32>
    %987 = vector.shape_cast %986 : vector<1x1x1x14xf32> to vector<1x14xf32>
    %c1_1111 = arith.constant 1 : index
    %c84_1112 = arith.constant 84 : index
    %988 = vector.load %arg5[%c1_1111, %c84_1112] : memref<32x196xf32, #tpu.memory_space<vmem>>, vector<1x14xf32>
    tpu.vector_store %arg5[%c1_1111, %c84_1112], %987 {strides = array<i32>} : memref<32x196xf32, #tpu.memory_space<vmem>>, vector<1x14xf32>,
    %c6_i32_1113 = arith.constant 6 : i32
    %989 = arith.addi %0, %c6_i32_1113 : i32
    %c0_i32_1114 = arith.constant 0 : i32
    %990 = arith.addi %989, %c0_i32_1114 : i32
    %c0_1115 = arith.constant 0 : index
    %c0_1116 = arith.constant 0 : index
    %991 = arith.index_cast %990 : i32 to index
    %c2_1117 = arith.constant 2 : index
    %992 = vector.load %arg2[%c0_1115, %c0_1116, %991, %c2_1117] : memref<1x3x16x16xf32, #tpu.memory_space<vmem>>, vector<1x1x1x14xf32>
    %993 = vector.shape_cast %992 : vector<1x1x1x14xf32> to vector<1x14xf32>
    %c2_1118 = arith.constant 2 : index
    %c84_1119 = arith.constant 84 : index
    %994 = vector.load %arg5[%c2_1118, %c84_1119] : memref<32x196xf32, #tpu.memory_space<vmem>>, vector<1x14xf32>
    tpu.vector_store %arg5[%c2_1118, %c84_1119], %993 {strides = array<i32>} : memref<32x196xf32, #tpu.memory_space<vmem>>, vector<1x14xf32>,
    %c6_i32_1120 = arith.constant 6 : i32
    %995 = arith.addi %0, %c6_i32_1120 : i32
    %c1_i32_1121 = arith.constant 1 : i32
    %996 = arith.addi %995, %c1_i32_1121 : i32
    %c0_1122 = arith.constant 0 : index
    %c0_1123 = arith.constant 0 : index
    %997 = arith.index_cast %996 : i32 to index
    %c0_1124 = arith.constant 0 : index
    %998 = vector.load %arg2[%c0_1122, %c0_1123, %997, %c0_1124] : memref<1x3x16x16xf32, #tpu.memory_space<vmem>>, vector<1x1x1x14xf32>
    %999 = vector.shape_cast %998 : vector<1x1x1x14xf32> to vector<1x14xf32>
    %c3_1125 = arith.constant 3 : index
    %c84_1126 = arith.constant 84 : index
    %1000 = vector.load %arg5[%c3_1125, %c84_1126] : memref<32x196xf32, #tpu.memory_space<vmem>>, vector<1x14xf32>
    tpu.vector_store %arg5[%c3_1125, %c84_1126], %999 {strides = array<i32>} : memref<32x196xf32, #tpu.memory_space<vmem>>, vector<1x14xf32>,
    %c6_i32_1127 = arith.constant 6 : i32
    %1001 = arith.addi %0, %c6_i32_1127 : i32
    %c1_i32_1128 = arith.constant 1 : i32
    %1002 = arith.addi %1001, %c1_i32_1128 : i32
    %c0_1129 = arith.constant 0 : index
    %c0_1130 = arith.constant 0 : index
    %1003 = arith.index_cast %1002 : i32 to index
    %c1_1131 = arith.constant 1 : index
    %1004 = vector.load %arg2[%c0_1129, %c0_1130, %1003, %c1_1131] : memref<1x3x16x16xf32, #tpu.memory_space<vmem>>, vector<1x1x1x14xf32>
    %1005 = vector.shape_cast %1004 : vector<1x1x1x14xf32> to vector<1x14xf32>
    %c4_1132 = arith.constant 4 : index
    %c84_1133 = arith.constant 84 : index
    %1006 = vector.load %arg5[%c4_1132, %c84_1133] : memref<32x196xf32, #tpu.memory_space<vmem>>, vector<1x14xf32>
    tpu.vector_store %arg5[%c4_1132, %c84_1133], %1005 {strides = array<i32>} : memref<32x196xf32, #tpu.memory_space<vmem>>, vector<1x14xf32>,
    %c6_i32_1134 = arith.constant 6 : i32
    %1007 = arith.addi %0, %c6_i32_1134 : i32
    %c1_i32_1135 = arith.constant 1 : i32
    %1008 = arith.addi %1007, %c1_i32_1135 : i32
    %c0_1136 = arith.constant 0 : index
    %c0_1137 = arith.constant 0 : index
    %1009 = arith.index_cast %1008 : i32 to index
    %c2_1138 = arith.constant 2 : index
    %1010 = vector.load %arg2[%c0_1136, %c0_1137, %1009, %c2_1138] : memref<1x3x16x16xf32, #tpu.memory_space<vmem>>, vector<1x1x1x14xf32>
    %1011 = vector.shape_cast %1010 : vector<1x1x1x14xf32> to vector<1x14xf32>
    %c5_1139 = arith.constant 5 : index
    %c84_1140 = arith.constant 84 : index
    %1012 = vector.load %arg5[%c5_1139, %c84_1140] : memref<32x196xf32, #tpu.memory_space<vmem>>, vector<1x14xf32>
    tpu.vector_store %arg5[%c5_1139, %c84_1140], %1011 {strides = array<i32>} : memref<32x196xf32, #tpu.memory_space<vmem>>, vector<1x14xf32>,
    %c6_i32_1141 = arith.constant 6 : i32
    %1013 = arith.addi %0, %c6_i32_1141 : i32
    %c2_i32_1142 = arith.constant 2 : i32
    %1014 = arith.addi %1013, %c2_i32_1142 : i32
    %c0_1143 = arith.constant 0 : index
    %c0_1144 = arith.constant 0 : index
    %1015 = arith.index_cast %1014 : i32 to index
    %c0_1145 = arith.constant 0 : index
    %1016 = vector.load %arg2[%c0_1143, %c0_1144, %1015, %c0_1145] : memref<1x3x16x16xf32, #tpu.memory_space<vmem>>, vector<1x1x1x14xf32>
    %1017 = vector.shape_cast %1016 : vector<1x1x1x14xf32> to vector<1x14xf32>
    %c6_1146 = arith.constant 6 : index
    %c84_1147 = arith.constant 84 : index
    %1018 = vector.load %arg5[%c6_1146, %c84_1147] : memref<32x196xf32, #tpu.memory_space<vmem>>, vector<1x14xf32>
    tpu.vector_store %arg5[%c6_1146, %c84_1147], %1017 {strides = array<i32>} : memref<32x196xf32, #tpu.memory_space<vmem>>, vector<1x14xf32>,
    %c6_i32_1148 = arith.constant 6 : i32
    %1019 = arith.addi %0, %c6_i32_1148 : i32
    %c2_i32_1149 = arith.constant 2 : i32
    %1020 = arith.addi %1019, %c2_i32_1149 : i32
    %c0_1150 = arith.constant 0 : index
    %c0_1151 = arith.constant 0 : index
    %1021 = arith.index_cast %1020 : i32 to index
    %c1_1152 = arith.constant 1 : index
    %1022 = vector.load %arg2[%c0_1150, %c0_1151, %1021, %c1_1152] : memref<1x3x16x16xf32, #tpu.memory_space<vmem>>, vector<1x1x1x14xf32>
    %1023 = vector.shape_cast %1022 : vector<1x1x1x14xf32> to vector<1x14xf32>
    %c7_1153 = arith.constant 7 : index
    %c84_1154 = arith.constant 84 : index
    %1024 = vector.load %arg5[%c7_1153, %c84_1154] : memref<32x196xf32, #tpu.memory_space<vmem>>, vector<1x14xf32>
    tpu.vector_store %arg5[%c7_1153, %c84_1154], %1023 {strides = array<i32>} : memref<32x196xf32, #tpu.memory_space<vmem>>, vector<1x14xf32>,
    %c6_i32_1155 = arith.constant 6 : i32
    %1025 = arith.addi %0, %c6_i32_1155 : i32
    %c2_i32_1156 = arith.constant 2 : i32
    %1026 = arith.addi %1025, %c2_i32_1156 : i32
    %c0_1157 = arith.constant 0 : index
    %c0_1158 = arith.constant 0 : index
    %1027 = arith.index_cast %1026 : i32 to index
    %c2_1159 = arith.constant 2 : index
    %1028 = vector.load %arg2[%c0_1157, %c0_1158, %1027, %c2_1159] : memref<1x3x16x16xf32, #tpu.memory_space<vmem>>, vector<1x1x1x14xf32>
    %1029 = vector.shape_cast %1028 : vector<1x1x1x14xf32> to vector<1x14xf32>
    %c8_1160 = arith.constant 8 : index
    %c84_1161 = arith.constant 84 : index
    %1030 = vector.load %arg5[%c8_1160, %c84_1161] : memref<32x196xf32, #tpu.memory_space<vmem>>, vector<1x14xf32>
    tpu.vector_store %arg5[%c8_1160, %c84_1161], %1029 {strides = array<i32>} : memref<32x196xf32, #tpu.memory_space<vmem>>, vector<1x14xf32>,
    %c6_i32_1162 = arith.constant 6 : i32
    %1031 = arith.addi %0, %c6_i32_1162 : i32
    %c0_i32_1163 = arith.constant 0 : i32
    %1032 = arith.addi %1031, %c0_i32_1163 : i32
    %c0_1164 = arith.constant 0 : index
    %c1_1165 = arith.constant 1 : index
    %1033 = arith.index_cast %1032 : i32 to index
    %c0_1166 = arith.constant 0 : index
    %1034 = vector.load %arg2[%c0_1164, %c1_1165, %1033, %c0_1166] : memref<1x3x16x16xf32, #tpu.memory_space<vmem>>, vector<1x1x1x14xf32>
    %1035 = vector.shape_cast %1034 : vector<1x1x1x14xf32> to vector<1x14xf32>
    %c9_1167 = arith.constant 9 : index
    %c84_1168 = arith.constant 84 : index
    %1036 = vector.load %arg5[%c9_1167, %c84_1168] : memref<32x196xf32, #tpu.memory_space<vmem>>, vector<1x14xf32>
    tpu.vector_store %arg5[%c9_1167, %c84_1168], %1035 {strides = array<i32>} : memref<32x196xf32, #tpu.memory_space<vmem>>, vector<1x14xf32>,
    %c6_i32_1169 = arith.constant 6 : i32
    %1037 = arith.addi %0, %c6_i32_1169 : i32
    %c0_i32_1170 = arith.constant 0 : i32
    %1038 = arith.addi %1037, %c0_i32_1170 : i32
    %c0_1171 = arith.constant 0 : index
    %c1_1172 = arith.constant 1 : index
    %1039 = arith.index_cast %1038 : i32 to index
    %c1_1173 = arith.constant 1 : index
    %1040 = vector.load %arg2[%c0_1171, %c1_1172, %1039, %c1_1173] : memref<1x3x16x16xf32, #tpu.memory_space<vmem>>, vector<1x1x1x14xf32>
    %1041 = vector.shape_cast %1040 : vector<1x1x1x14xf32> to vector<1x14xf32>
    %c10_1174 = arith.constant 10 : index
    %c84_1175 = arith.constant 84 : index
    %1042 = vector.load %arg5[%c10_1174, %c84_1175] : memref<32x196xf32, #tpu.memory_space<vmem>>, vector<1x14xf32>
    tpu.vector_store %arg5[%c10_1174, %c84_1175], %1041 {strides = array<i32>} : memref<32x196xf32, #tpu.memory_space<vmem>>, vector<1x14xf32>,
    %c6_i32_1176 = arith.constant 6 : i32
    %1043 = arith.addi %0, %c6_i32_1176 : i32
    %c0_i32_1177 = arith.constant 0 : i32
    %1044 = arith.addi %1043, %c0_i32_1177 : i32
    %c0_1178 = arith.constant 0 : index
    %c1_1179 = arith.constant 1 : index
    %1045 = arith.index_cast %1044 : i32 to index
    %c2_1180 = arith.constant 2 : index
    %1046 = vector.load %arg2[%c0_1178, %c1_1179, %1045, %c2_1180] : memref<1x3x16x16xf32, #tpu.memory_space<vmem>>, vector<1x1x1x14xf32>
    %1047 = vector.shape_cast %1046 : vector<1x1x1x14xf32> to vector<1x14xf32>
    %c11_1181 = arith.constant 11 : index
    %c84_1182 = arith.constant 84 : index
    %1048 = vector.load %arg5[%c11_1181, %c84_1182] : memref<32x196xf32, #tpu.memory_space<vmem>>, vector<1x14xf32>
    tpu.vector_store %arg5[%c11_1181, %c84_1182], %1047 {strides = array<i32>} : memref<32x196xf32, #tpu.memory_space<vmem>>, vector<1x14xf32>,
    %c6_i32_1183 = arith.constant 6 : i32
    %1049 = arith.addi %0, %c6_i32_1183 : i32
    %c1_i32_1184 = arith.constant 1 : i32
    %1050 = arith.addi %1049, %c1_i32_1184 : i32
    %c0_1185 = arith.constant 0 : index
    %c1_1186 = arith.constant 1 : index
    %1051 = arith.index_cast %1050 : i32 to index
    %c0_1187 = arith.constant 0 : index
    %1052 = vector.load %arg2[%c0_1185, %c1_1186, %1051, %c0_1187] : memref<1x3x16x16xf32, #tpu.memory_space<vmem>>, vector<1x1x1x14xf32>
    %1053 = vector.shape_cast %1052 : vector<1x1x1x14xf32> to vector<1x14xf32>
    %c12_1188 = arith.constant 12 : index
    %c84_1189 = arith.constant 84 : index
    %1054 = vector.load %arg5[%c12_1188, %c84_1189] : memref<32x196xf32, #tpu.memory_space<vmem>>, vector<1x14xf32>
    tpu.vector_store %arg5[%c12_1188, %c84_1189], %1053 {strides = array<i32>} : memref<32x196xf32, #tpu.memory_space<vmem>>, vector<1x14xf32>,
    %c6_i32_1190 = arith.constant 6 : i32
    %1055 = arith.addi %0, %c6_i32_1190 : i32
    %c1_i32_1191 = arith.constant 1 : i32
    %1056 = arith.addi %1055, %c1_i32_1191 : i32
    %c0_1192 = arith.constant 0 : index
    %c1_1193 = arith.constant 1 : index
    %1057 = arith.index_cast %1056 : i32 to index
    %c1_1194 = arith.constant 1 : index
    %1058 = vector.load %arg2[%c0_1192, %c1_1193, %1057, %c1_1194] : memref<1x3x16x16xf32, #tpu.memory_space<vmem>>, vector<1x1x1x14xf32>
    %1059 = vector.shape_cast %1058 : vector<1x1x1x14xf32> to vector<1x14xf32>
    %c13_1195 = arith.constant 13 : index
    %c84_1196 = arith.constant 84 : index
    %1060 = vector.load %arg5[%c13_1195, %c84_1196] : memref<32x196xf32, #tpu.memory_space<vmem>>, vector<1x14xf32>
    tpu.vector_store %arg5[%c13_1195, %c84_1196], %1059 {strides = array<i32>} : memref<32x196xf32, #tpu.memory_space<vmem>>, vector<1x14xf32>,
    %c6_i32_1197 = arith.constant 6 : i32
    %1061 = arith.addi %0, %c6_i32_1197 : i32
    %c1_i32_1198 = arith.constant 1 : i32
    %1062 = arith.addi %1061, %c1_i32_1198 : i32
    %c0_1199 = arith.constant 0 : index
    %c1_1200 = arith.constant 1 : index
    %1063 = arith.index_cast %1062 : i32 to index
    %c2_1201 = arith.constant 2 : index
    %1064 = vector.load %arg2[%c0_1199, %c1_1200, %1063, %c2_1201] : memref<1x3x16x16xf32, #tpu.memory_space<vmem>>, vector<1x1x1x14xf32>
    %1065 = vector.shape_cast %1064 : vector<1x1x1x14xf32> to vector<1x14xf32>
    %c14_1202 = arith.constant 14 : index
    %c84_1203 = arith.constant 84 : index
    %1066 = vector.load %arg5[%c14_1202, %c84_1203] : memref<32x196xf32, #tpu.memory_space<vmem>>, vector<1x14xf32>
    tpu.vector_store %arg5[%c14_1202, %c84_1203], %1065 {strides = array<i32>} : memref<32x196xf32, #tpu.memory_space<vmem>>, vector<1x14xf32>,
    %c6_i32_1204 = arith.constant 6 : i32
    %1067 = arith.addi %0, %c6_i32_1204 : i32
    %c2_i32_1205 = arith.constant 2 : i32
    %1068 = arith.addi %1067, %c2_i32_1205 : i32
    %c0_1206 = arith.constant 0 : index
    %c1_1207 = arith.constant 1 : index
    %1069 = arith.index_cast %1068 : i32 to index
    %c0_1208 = arith.constant 0 : index
    %1070 = vector.load %arg2[%c0_1206, %c1_1207, %1069, %c0_1208] : memref<1x3x16x16xf32, #tpu.memory_space<vmem>>, vector<1x1x1x14xf32>
    %1071 = vector.shape_cast %1070 : vector<1x1x1x14xf32> to vector<1x14xf32>
    %c15_1209 = arith.constant 15 : index
    %c84_1210 = arith.constant 84 : index
    %1072 = vector.load %arg5[%c15_1209, %c84_1210] : memref<32x196xf32, #tpu.memory_space<vmem>>, vector<1x14xf32>
    tpu.vector_store %arg5[%c15_1209, %c84_1210], %1071 {strides = array<i32>} : memref<32x196xf32, #tpu.memory_space<vmem>>, vector<1x14xf32>,
    %c6_i32_1211 = arith.constant 6 : i32
    %1073 = arith.addi %0, %c6_i32_1211 : i32
    %c2_i32_1212 = arith.constant 2 : i32
    %1074 = arith.addi %1073, %c2_i32_1212 : i32
    %c0_1213 = arith.constant 0 : index
    %c1_1214 = arith.constant 1 : index
    %1075 = arith.index_cast %1074 : i32 to index
    %c1_1215 = arith.constant 1 : index
    %1076 = vector.load %arg2[%c0_1213, %c1_1214, %1075, %c1_1215] : memref<1x3x16x16xf32, #tpu.memory_space<vmem>>, vector<1x1x1x14xf32>
    %1077 = vector.shape_cast %1076 : vector<1x1x1x14xf32> to vector<1x14xf32>
    %c16_1216 = arith.constant 16 : index
    %c84_1217 = arith.constant 84 : index
    %1078 = vector.load %arg5[%c16_1216, %c84_1217] : memref<32x196xf32, #tpu.memory_space<vmem>>, vector<1x14xf32>
    tpu.vector_store %arg5[%c16_1216, %c84_1217], %1077 {strides = array<i32>} : memref<32x196xf32, #tpu.memory_space<vmem>>, vector<1x14xf32>,
    %c6_i32_1218 = arith.constant 6 : i32
    %1079 = arith.addi %0, %c6_i32_1218 : i32
    %c2_i32_1219 = arith.constant 2 : i32
    %1080 = arith.addi %1079, %c2_i32_1219 : i32
    %c0_1220 = arith.constant 0 : index
    %c1_1221 = arith.constant 1 : index
    %1081 = arith.index_cast %1080 : i32 to index
    %c2_1222 = arith.constant 2 : index
    %1082 = vector.load %arg2[%c0_1220, %c1_1221, %1081, %c2_1222] : memref<1x3x16x16xf32, #tpu.memory_space<vmem>>, vector<1x1x1x14xf32>
    %1083 = vector.shape_cast %1082 : vector<1x1x1x14xf32> to vector<1x14xf32>
    %c17_1223 = arith.constant 17 : index
    %c84_1224 = arith.constant 84 : index
    %1084 = vector.load %arg5[%c17_1223, %c84_1224] : memref<32x196xf32, #tpu.memory_space<vmem>>, vector<1x14xf32>
    tpu.vector_store %arg5[%c17_1223, %c84_1224], %1083 {strides = array<i32>} : memref<32x196xf32, #tpu.memory_space<vmem>>, vector<1x14xf32>,
    %c6_i32_1225 = arith.constant 6 : i32
    %1085 = arith.addi %0, %c6_i32_1225 : i32
    %c0_i32_1226 = arith.constant 0 : i32
    %1086 = arith.addi %1085, %c0_i32_1226 : i32
    %c0_1227 = arith.constant 0 : index
    %c2_1228 = arith.constant 2 : index
    %1087 = arith.index_cast %1086 : i32 to index
    %c0_1229 = arith.constant 0 : index
    %1088 = vector.load %arg2[%c0_1227, %c2_1228, %1087, %c0_1229] : memref<1x3x16x16xf32, #tpu.memory_space<vmem>>, vector<1x1x1x14xf32>
    %1089 = vector.shape_cast %1088 : vector<1x1x1x14xf32> to vector<1x14xf32>
    %c18_1230 = arith.constant 18 : index
    %c84_1231 = arith.constant 84 : index
    %1090 = vector.load %arg5[%c18_1230, %c84_1231] : memref<32x196xf32, #tpu.memory_space<vmem>>, vector<1x14xf32>
    tpu.vector_store %arg5[%c18_1230, %c84_1231], %1089 {strides = array<i32>} : memref<32x196xf32, #tpu.memory_space<vmem>>, vector<1x14xf32>,
    %c6_i32_1232 = arith.constant 6 : i32
    %1091 = arith.addi %0, %c6_i32_1232 : i32
    %c0_i32_1233 = arith.constant 0 : i32
    %1092 = arith.addi %1091, %c0_i32_1233 : i32
    %c0_1234 = arith.constant 0 : index
    %c2_1235 = arith.constant 2 : index
    %1093 = arith.index_cast %1092 : i32 to index
    %c1_1236 = arith.constant 1 : index
    %1094 = vector.load %arg2[%c0_1234, %c2_1235, %1093, %c1_1236] : memref<1x3x16x16xf32, #tpu.memory_space<vmem>>, vector<1x1x1x14xf32>
    %1095 = vector.shape_cast %1094 : vector<1x1x1x14xf32> to vector<1x14xf32>
    %c19_1237 = arith.constant 19 : index
    %c84_1238 = arith.constant 84 : index
    %1096 = vector.load %arg5[%c19_1237, %c84_1238] : memref<32x196xf32, #tpu.memory_space<vmem>>, vector<1x14xf32>
    tpu.vector_store %arg5[%c19_1237, %c84_1238], %1095 {strides = array<i32>} : memref<32x196xf32, #tpu.memory_space<vmem>>, vector<1x14xf32>,
    %c6_i32_1239 = arith.constant 6 : i32
    %1097 = arith.addi %0, %c6_i32_1239 : i32
    %c0_i32_1240 = arith.constant 0 : i32
    %1098 = arith.addi %1097, %c0_i32_1240 : i32
    %c0_1241 = arith.constant 0 : index
    %c2_1242 = arith.constant 2 : index
    %1099 = arith.index_cast %1098 : i32 to index
    %c2_1243 = arith.constant 2 : index
    %1100 = vector.load %arg2[%c0_1241, %c2_1242, %1099, %c2_1243] : memref<1x3x16x16xf32, #tpu.memory_space<vmem>>, vector<1x1x1x14xf32>
    %1101 = vector.shape_cast %1100 : vector<1x1x1x14xf32> to vector<1x14xf32>
    %c20_1244 = arith.constant 20 : index
    %c84_1245 = arith.constant 84 : index
    %1102 = vector.load %arg5[%c20_1244, %c84_1245] : memref<32x196xf32, #tpu.memory_space<vmem>>, vector<1x14xf32>
    tpu.vector_store %arg5[%c20_1244, %c84_1245], %1101 {strides = array<i32>} : memref<32x196xf32, #tpu.memory_space<vmem>>, vector<1x14xf32>,
    %c6_i32_1246 = arith.constant 6 : i32
    %1103 = arith.addi %0, %c6_i32_1246 : i32
    %c1_i32_1247 = arith.constant 1 : i32
    %1104 = arith.addi %1103, %c1_i32_1247 : i32
    %c0_1248 = arith.constant 0 : index
    %c2_1249 = arith.constant 2 : index
    %1105 = arith.index_cast %1104 : i32 to index
    %c0_1250 = arith.constant 0 : index
    %1106 = vector.load %arg2[%c0_1248, %c2_1249, %1105, %c0_1250] : memref<1x3x16x16xf32, #tpu.memory_space<vmem>>, vector<1x1x1x14xf32>
    %1107 = vector.shape_cast %1106 : vector<1x1x1x14xf32> to vector<1x14xf32>
    %c21_1251 = arith.constant 21 : index
    %c84_1252 = arith.constant 84 : index
    %1108 = vector.load %arg5[%c21_1251, %c84_1252] : memref<32x196xf32, #tpu.memory_space<vmem>>, vector<1x14xf32>
    tpu.vector_store %arg5[%c21_1251, %c84_1252], %1107 {strides = array<i32>} : memref<32x196xf32, #tpu.memory_space<vmem>>, vector<1x14xf32>,
    %c6_i32_1253 = arith.constant 6 : i32
    %1109 = arith.addi %0, %c6_i32_1253 : i32
    %c1_i32_1254 = arith.constant 1 : i32
    %1110 = arith.addi %1109, %c1_i32_1254 : i32
    %c0_1255 = arith.constant 0 : index
    %c2_1256 = arith.constant 2 : index
    %1111 = arith.index_cast %1110 : i32 to index
    %c1_1257 = arith.constant 1 : index
    %1112 = vector.load %arg2[%c0_1255, %c2_1256, %1111, %c1_1257] : memref<1x3x16x16xf32, #tpu.memory_space<vmem>>, vector<1x1x1x14xf32>
    %1113 = vector.shape_cast %1112 : vector<1x1x1x14xf32> to vector<1x14xf32>
    %c22_1258 = arith.constant 22 : index
    %c84_1259 = arith.constant 84 : index
    %1114 = vector.load %arg5[%c22_1258, %c84_1259] : memref<32x196xf32, #tpu.memory_space<vmem>>, vector<1x14xf32>
    tpu.vector_store %arg5[%c22_1258, %c84_1259], %1113 {strides = array<i32>} : memref<32x196xf32, #tpu.memory_space<vmem>>, vector<1x14xf32>,
    %c6_i32_1260 = arith.constant 6 : i32
    %1115 = arith.addi %0, %c6_i32_1260 : i32
    %c1_i32_1261 = arith.constant 1 : i32
    %1116 = arith.addi %1115, %c1_i32_1261 : i32
    %c0_1262 = arith.constant 0 : index
    %c2_1263 = arith.constant 2 : index
    %1117 = arith.index_cast %1116 : i32 to index
    %c2_1264 = arith.constant 2 : index
    %1118 = vector.load %arg2[%c0_1262, %c2_1263, %1117, %c2_1264] : memref<1x3x16x16xf32, #tpu.memory_space<vmem>>, vector<1x1x1x14xf32>
    %1119 = vector.shape_cast %1118 : vector<1x1x1x14xf32> to vector<1x14xf32>
    %c23_1265 = arith.constant 23 : index
    %c84_1266 = arith.constant 84 : index
    %1120 = vector.load %arg5[%c23_1265, %c84_1266] : memref<32x196xf32, #tpu.memory_space<vmem>>, vector<1x14xf32>
    tpu.vector_store %arg5[%c23_1265, %c84_1266], %1119 {strides = array<i32>} : memref<32x196xf32, #tpu.memory_space<vmem>>, vector<1x14xf32>,
    %c6_i32_1267 = arith.constant 6 : i32
    %1121 = arith.addi %0, %c6_i32_1267 : i32
    %c2_i32_1268 = arith.constant 2 : i32
    %1122 = arith.addi %1121, %c2_i32_1268 : i32
    %c0_1269 = arith.constant 0 : index
    %c2_1270 = arith.constant 2 : index
    %1123 = arith.index_cast %1122 : i32 to index
    %c0_1271 = arith.constant 0 : index
    %1124 = vector.load %arg2[%c0_1269, %c2_1270, %1123, %c0_1271] : memref<1x3x16x16xf32, #tpu.memory_space<vmem>>, vector<1x1x1x14xf32>
    %1125 = vector.shape_cast %1124 : vector<1x1x1x14xf32> to vector<1x14xf32>
    %c24_1272 = arith.constant 24 : index
    %c84_1273 = arith.constant 84 : index
    %1126 = vector.load %arg5[%c24_1272, %c84_1273] : memref<32x196xf32, #tpu.memory_space<vmem>>, vector<1x14xf32>
    tpu.vector_store %arg5[%c24_1272, %c84_1273], %1125 {strides = array<i32>} : memref<32x196xf32, #tpu.memory_space<vmem>>, vector<1x14xf32>,
    %c6_i32_1274 = arith.constant 6 : i32
    %1127 = arith.addi %0, %c6_i32_1274 : i32
    %c2_i32_1275 = arith.constant 2 : i32
    %1128 = arith.addi %1127, %c2_i32_1275 : i32
    %c0_1276 = arith.constant 0 : index
    %c2_1277 = arith.constant 2 : index
    %1129 = arith.index_cast %1128 : i32 to index
    %c1_1278 = arith.constant 1 : index
    %1130 = vector.load %arg2[%c0_1276, %c2_1277, %1129, %c1_1278] : memref<1x3x16x16xf32, #tpu.memory_space<vmem>>, vector<1x1x1x14xf32>
    %1131 = vector.shape_cast %1130 : vector<1x1x1x14xf32> to vector<1x14xf32>
    %c25_1279 = arith.constant 25 : index
    %c84_1280 = arith.constant 84 : index
    %1132 = vector.load %arg5[%c25_1279, %c84_1280] : memref<32x196xf32, #tpu.memory_space<vmem>>, vector<1x14xf32>
    tpu.vector_store %arg5[%c25_1279, %c84_1280], %1131 {strides = array<i32>} : memref<32x196xf32, #tpu.memory_space<vmem>>, vector<1x14xf32>,
    %c6_i32_1281 = arith.constant 6 : i32
    %1133 = arith.addi %0, %c6_i32_1281 : i32
    %c2_i32_1282 = arith.constant 2 : i32
    %1134 = arith.addi %1133, %c2_i32_1282 : i32
    %c0_1283 = arith.constant 0 : index
    %c2_1284 = arith.constant 2 : index
    %1135 = arith.index_cast %1134 : i32 to index
    %c2_1285 = arith.constant 2 : index
    %1136 = vector.load %arg2[%c0_1283, %c2_1284, %1135, %c2_1285] : memref<1x3x16x16xf32, #tpu.memory_space<vmem>>, vector<1x1x1x14xf32>
    %1137 = vector.shape_cast %1136 : vector<1x1x1x14xf32> to vector<1x14xf32>
    %c26_1286 = arith.constant 26 : index
    %c84_1287 = arith.constant 84 : index
    %1138 = vector.load %arg5[%c26_1286, %c84_1287] : memref<32x196xf32, #tpu.memory_space<vmem>>, vector<1x14xf32>
    tpu.vector_store %arg5[%c26_1286, %c84_1287], %1137 {strides = array<i32>} : memref<32x196xf32, #tpu.memory_space<vmem>>, vector<1x14xf32>,
    %c7_i32 = arith.constant 7 : i32
    %1139 = arith.addi %0, %c7_i32 : i32
    %c0_i32_1288 = arith.constant 0 : i32
    %1140 = arith.addi %1139, %c0_i32_1288 : i32
    %c0_1289 = arith.constant 0 : index
    %c0_1290 = arith.constant 0 : index
    %1141 = arith.index_cast %1140 : i32 to index
    %c0_1291 = arith.constant 0 : index
    %1142 = vector.load %arg2[%c0_1289, %c0_1290, %1141, %c0_1291] : memref<1x3x16x16xf32, #tpu.memory_space<vmem>>, vector<1x1x1x14xf32>
    %1143 = vector.shape_cast %1142 : vector<1x1x1x14xf32> to vector<1x14xf32>
    %c0_1292 = arith.constant 0 : index
    %c98 = arith.constant 98 : index
    %1144 = vector.load %arg5[%c0_1292, %c98] : memref<32x196xf32, #tpu.memory_space<vmem>>, vector<1x14xf32>
    tpu.vector_store %arg5[%c0_1292, %c98], %1143 {strides = array<i32>} : memref<32x196xf32, #tpu.memory_space<vmem>>, vector<1x14xf32>,
    %c7_i32_1293 = arith.constant 7 : i32
    %1145 = arith.addi %0, %c7_i32_1293 : i32
    %c0_i32_1294 = arith.constant 0 : i32
    %1146 = arith.addi %1145, %c0_i32_1294 : i32
    %c0_1295 = arith.constant 0 : index
    %c0_1296 = arith.constant 0 : index
    %1147 = arith.index_cast %1146 : i32 to index
    %c1_1297 = arith.constant 1 : index
    %1148 = vector.load %arg2[%c0_1295, %c0_1296, %1147, %c1_1297] : memref<1x3x16x16xf32, #tpu.memory_space<vmem>>, vector<1x1x1x14xf32>
    %1149 = vector.shape_cast %1148 : vector<1x1x1x14xf32> to vector<1x14xf32>
    %c1_1298 = arith.constant 1 : index
    %c98_1299 = arith.constant 98 : index
    %1150 = vector.load %arg5[%c1_1298, %c98_1299] : memref<32x196xf32, #tpu.memory_space<vmem>>, vector<1x14xf32>
    tpu.vector_store %arg5[%c1_1298, %c98_1299], %1149 {strides = array<i32>} : memref<32x196xf32, #tpu.memory_space<vmem>>, vector<1x14xf32>,
    %c7_i32_1300 = arith.constant 7 : i32
    %1151 = arith.addi %0, %c7_i32_1300 : i32
    %c0_i32_1301 = arith.constant 0 : i32
    %1152 = arith.addi %1151, %c0_i32_1301 : i32
    %c0_1302 = arith.constant 0 : index
    %c0_1303 = arith.constant 0 : index
    %1153 = arith.index_cast %1152 : i32 to index
    %c2_1304 = arith.constant 2 : index
    %1154 = vector.load %arg2[%c0_1302, %c0_1303, %1153, %c2_1304] : memref<1x3x16x16xf32, #tpu.memory_space<vmem>>, vector<1x1x1x14xf32>
    %1155 = vector.shape_cast %1154 : vector<1x1x1x14xf32> to vector<1x14xf32>
    %c2_1305 = arith.constant 2 : index
    %c98_1306 = arith.constant 98 : index
    %1156 = vector.load %arg5[%c2_1305, %c98_1306] : memref<32x196xf32, #tpu.memory_space<vmem>>, vector<1x14xf32>
    tpu.vector_store %arg5[%c2_1305, %c98_1306], %1155 {strides = array<i32>} : memref<32x196xf32, #tpu.memory_space<vmem>>, vector<1x14xf32>,
    %c7_i32_1307 = arith.constant 7 : i32
    %1157 = arith.addi %0, %c7_i32_1307 : i32
    %c1_i32_1308 = arith.constant 1 : i32
    %1158 = arith.addi %1157, %c1_i32_1308 : i32
    %c0_1309 = arith.constant 0 : index
    %c0_1310 = arith.constant 0 : index
    %1159 = arith.index_cast %1158 : i32 to index
    %c0_1311 = arith.constant 0 : index
    %1160 = vector.load %arg2[%c0_1309, %c0_1310, %1159, %c0_1311] : memref<1x3x16x16xf32, #tpu.memory_space<vmem>>, vector<1x1x1x14xf32>
    %1161 = vector.shape_cast %1160 : vector<1x1x1x14xf32> to vector<1x14xf32>
    %c3_1312 = arith.constant 3 : index
    %c98_1313 = arith.constant 98 : index
    %1162 = vector.load %arg5[%c3_1312, %c98_1313] : memref<32x196xf32, #tpu.memory_space<vmem>>, vector<1x14xf32>
    tpu.vector_store %arg5[%c3_1312, %c98_1313], %1161 {strides = array<i32>} : memref<32x196xf32, #tpu.memory_space<vmem>>, vector<1x14xf32>,
    %c7_i32_1314 = arith.constant 7 : i32
    %1163 = arith.addi %0, %c7_i32_1314 : i32
    %c1_i32_1315 = arith.constant 1 : i32
    %1164 = arith.addi %1163, %c1_i32_1315 : i32
    %c0_1316 = arith.constant 0 : index
    %c0_1317 = arith.constant 0 : index
    %1165 = arith.index_cast %1164 : i32 to index
    %c1_1318 = arith.constant 1 : index
    %1166 = vector.load %arg2[%c0_1316, %c0_1317, %1165, %c1_1318] : memref<1x3x16x16xf32, #tpu.memory_space<vmem>>, vector<1x1x1x14xf32>
    %1167 = vector.shape_cast %1166 : vector<1x1x1x14xf32> to vector<1x14xf32>
    %c4_1319 = arith.constant 4 : index
    %c98_1320 = arith.constant 98 : index
    %1168 = vector.load %arg5[%c4_1319, %c98_1320] : memref<32x196xf32, #tpu.memory_space<vmem>>, vector<1x14xf32>
    tpu.vector_store %arg5[%c4_1319, %c98_1320], %1167 {strides = array<i32>} : memref<32x196xf32, #tpu.memory_space<vmem>>, vector<1x14xf32>,
    %c7_i32_1321 = arith.constant 7 : i32
    %1169 = arith.addi %0, %c7_i32_1321 : i32
    %c1_i32_1322 = arith.constant 1 : i32
    %1170 = arith.addi %1169, %c1_i32_1322 : i32
    %c0_1323 = arith.constant 0 : index
    %c0_1324 = arith.constant 0 : index
    %1171 = arith.index_cast %1170 : i32 to index
    %c2_1325 = arith.constant 2 : index
    %1172 = vector.load %arg2[%c0_1323, %c0_1324, %1171, %c2_1325] : memref<1x3x16x16xf32, #tpu.memory_space<vmem>>, vector<1x1x1x14xf32>
    %1173 = vector.shape_cast %1172 : vector<1x1x1x14xf32> to vector<1x14xf32>
    %c5_1326 = arith.constant 5 : index
    %c98_1327 = arith.constant 98 : index
    %1174 = vector.load %arg5[%c5_1326, %c98_1327] : memref<32x196xf32, #tpu.memory_space<vmem>>, vector<1x14xf32>
    tpu.vector_store %arg5[%c5_1326, %c98_1327], %1173 {strides = array<i32>} : memref<32x196xf32, #tpu.memory_space<vmem>>, vector<1x14xf32>,
    %c7_i32_1328 = arith.constant 7 : i32
    %1175 = arith.addi %0, %c7_i32_1328 : i32
    %c2_i32_1329 = arith.constant 2 : i32
    %1176 = arith.addi %1175, %c2_i32_1329 : i32
    %c0_1330 = arith.constant 0 : index
    %c0_1331 = arith.constant 0 : index
    %1177 = arith.index_cast %1176 : i32 to index
    %c0_1332 = arith.constant 0 : index
    %1178 = vector.load %arg2[%c0_1330, %c0_1331, %1177, %c0_1332] : memref<1x3x16x16xf32, #tpu.memory_space<vmem>>, vector<1x1x1x14xf32>
    %1179 = vector.shape_cast %1178 : vector<1x1x1x14xf32> to vector<1x14xf32>
    %c6_1333 = arith.constant 6 : index
    %c98_1334 = arith.constant 98 : index
    %1180 = vector.load %arg5[%c6_1333, %c98_1334] : memref<32x196xf32, #tpu.memory_space<vmem>>, vector<1x14xf32>
    tpu.vector_store %arg5[%c6_1333, %c98_1334], %1179 {strides = array<i32>} : memref<32x196xf32, #tpu.memory_space<vmem>>, vector<1x14xf32>,
    %c7_i32_1335 = arith.constant 7 : i32
    %1181 = arith.addi %0, %c7_i32_1335 : i32
    %c2_i32_1336 = arith.constant 2 : i32
    %1182 = arith.addi %1181, %c2_i32_1336 : i32
    %c0_1337 = arith.constant 0 : index
    %c0_1338 = arith.constant 0 : index
    %1183 = arith.index_cast %1182 : i32 to index
    %c1_1339 = arith.constant 1 : index
    %1184 = vector.load %arg2[%c0_1337, %c0_1338, %1183, %c1_1339] : memref<1x3x16x16xf32, #tpu.memory_space<vmem>>, vector<1x1x1x14xf32>
    %1185 = vector.shape_cast %1184 : vector<1x1x1x14xf32> to vector<1x14xf32>
    %c7_1340 = arith.constant 7 : index
    %c98_1341 = arith.constant 98 : index
    %1186 = vector.load %arg5[%c7_1340, %c98_1341] : memref<32x196xf32, #tpu.memory_space<vmem>>, vector<1x14xf32>
    tpu.vector_store %arg5[%c7_1340, %c98_1341], %1185 {strides = array<i32>} : memref<32x196xf32, #tpu.memory_space<vmem>>, vector<1x14xf32>,
    %c7_i32_1342 = arith.constant 7 : i32
    %1187 = arith.addi %0, %c7_i32_1342 : i32
    %c2_i32_1343 = arith.constant 2 : i32
    %1188 = arith.addi %1187, %c2_i32_1343 : i32
    %c0_1344 = arith.constant 0 : index
    %c0_1345 = arith.constant 0 : index
    %1189 = arith.index_cast %1188 : i32 to index
    %c2_1346 = arith.constant 2 : index
    %1190 = vector.load %arg2[%c0_1344, %c0_1345, %1189, %c2_1346] : memref<1x3x16x16xf32, #tpu.memory_space<vmem>>, vector<1x1x1x14xf32>
    %1191 = vector.shape_cast %1190 : vector<1x1x1x14xf32> to vector<1x14xf32>
    %c8_1347 = arith.constant 8 : index
    %c98_1348 = arith.constant 98 : index
    %1192 = vector.load %arg5[%c8_1347, %c98_1348] : memref<32x196xf32, #tpu.memory_space<vmem>>, vector<1x14xf32>
    tpu.vector_store %arg5[%c8_1347, %c98_1348], %1191 {strides = array<i32>} : memref<32x196xf32, #tpu.memory_space<vmem>>, vector<1x14xf32>,
    %c7_i32_1349 = arith.constant 7 : i32
    %1193 = arith.addi %0, %c7_i32_1349 : i32
    %c0_i32_1350 = arith.constant 0 : i32
    %1194 = arith.addi %1193, %c0_i32_1350 : i32
    %c0_1351 = arith.constant 0 : index
    %c1_1352 = arith.constant 1 : index
    %1195 = arith.index_cast %1194 : i32 to index
    %c0_1353 = arith.constant 0 : index
    %1196 = vector.load %arg2[%c0_1351, %c1_1352, %1195, %c0_1353] : memref<1x3x16x16xf32, #tpu.memory_space<vmem>>, vector<1x1x1x14xf32>
    %1197 = vector.shape_cast %1196 : vector<1x1x1x14xf32> to vector<1x14xf32>
    %c9_1354 = arith.constant 9 : index
    %c98_1355 = arith.constant 98 : index
    %1198 = vector.load %arg5[%c9_1354, %c98_1355] : memref<32x196xf32, #tpu.memory_space<vmem>>, vector<1x14xf32>
    tpu.vector_store %arg5[%c9_1354, %c98_1355], %1197 {strides = array<i32>} : memref<32x196xf32, #tpu.memory_space<vmem>>, vector<1x14xf32>,
    %c7_i32_1356 = arith.constant 7 : i32
    %1199 = arith.addi %0, %c7_i32_1356 : i32
    %c0_i32_1357 = arith.constant 0 : i32
    %1200 = arith.addi %1199, %c0_i32_1357 : i32
    %c0_1358 = arith.constant 0 : index
    %c1_1359 = arith.constant 1 : index
    %1201 = arith.index_cast %1200 : i32 to index
    %c1_1360 = arith.constant 1 : index
    %1202 = vector.load %arg2[%c0_1358, %c1_1359, %1201, %c1_1360] : memref<1x3x16x16xf32, #tpu.memory_space<vmem>>, vector<1x1x1x14xf32>
    %1203 = vector.shape_cast %1202 : vector<1x1x1x14xf32> to vector<1x14xf32>
    %c10_1361 = arith.constant 10 : index
    %c98_1362 = arith.constant 98 : index
    %1204 = vector.load %arg5[%c10_1361, %c98_1362] : memref<32x196xf32, #tpu.memory_space<vmem>>, vector<1x14xf32>
    tpu.vector_store %arg5[%c10_1361, %c98_1362], %1203 {strides = array<i32>} : memref<32x196xf32, #tpu.memory_space<vmem>>, vector<1x14xf32>,
    %c7_i32_1363 = arith.constant 7 : i32
    %1205 = arith.addi %0, %c7_i32_1363 : i32
    %c0_i32_1364 = arith.constant 0 : i32
    %1206 = arith.addi %1205, %c0_i32_1364 : i32
    %c0_1365 = arith.constant 0 : index
    %c1_1366 = arith.constant 1 : index
    %1207 = arith.index_cast %1206 : i32 to index
    %c2_1367 = arith.constant 2 : index
    %1208 = vector.load %arg2[%c0_1365, %c1_1366, %1207, %c2_1367] : memref<1x3x16x16xf32, #tpu.memory_space<vmem>>, vector<1x1x1x14xf32>
    %1209 = vector.shape_cast %1208 : vector<1x1x1x14xf32> to vector<1x14xf32>
    %c11_1368 = arith.constant 11 : index
    %c98_1369 = arith.constant 98 : index
    %1210 = vector.load %arg5[%c11_1368, %c98_1369] : memref<32x196xf32, #tpu.memory_space<vmem>>, vector<1x14xf32>
    tpu.vector_store %arg5[%c11_1368, %c98_1369], %1209 {strides = array<i32>} : memref<32x196xf32, #tpu.memory_space<vmem>>, vector<1x14xf32>,
    %c7_i32_1370 = arith.constant 7 : i32
    %1211 = arith.addi %0, %c7_i32_1370 : i32
    %c1_i32_1371 = arith.constant 1 : i32
    %1212 = arith.addi %1211, %c1_i32_1371 : i32
    %c0_1372 = arith.constant 0 : index
    %c1_1373 = arith.constant 1 : index
    %1213 = arith.index_cast %1212 : i32 to index
    %c0_1374 = arith.constant 0 : index
    %1214 = vector.load %arg2[%c0_1372, %c1_1373, %1213, %c0_1374] : memref<1x3x16x16xf32, #tpu.memory_space<vmem>>, vector<1x1x1x14xf32>
    %1215 = vector.shape_cast %1214 : vector<1x1x1x14xf32> to vector<1x14xf32>
    %c12_1375 = arith.constant 12 : index
    %c98_1376 = arith.constant 98 : index
    %1216 = vector.load %arg5[%c12_1375, %c98_1376] : memref<32x196xf32, #tpu.memory_space<vmem>>, vector<1x14xf32>
    tpu.vector_store %arg5[%c12_1375, %c98_1376], %1215 {strides = array<i32>} : memref<32x196xf32, #tpu.memory_space<vmem>>, vector<1x14xf32>,
    %c7_i32_1377 = arith.constant 7 : i32
    %1217 = arith.addi %0, %c7_i32_1377 : i32
    %c1_i32_1378 = arith.constant 1 : i32
    %1218 = arith.addi %1217, %c1_i32_1378 : i32
    %c0_1379 = arith.constant 0 : index
    %c1_1380 = arith.constant 1 : index
    %1219 = arith.index_cast %1218 : i32 to index
    %c1_1381 = arith.constant 1 : index
    %1220 = vector.load %arg2[%c0_1379, %c1_1380, %1219, %c1_1381] : memref<1x3x16x16xf32, #tpu.memory_space<vmem>>, vector<1x1x1x14xf32>
    %1221 = vector.shape_cast %1220 : vector<1x1x1x14xf32> to vector<1x14xf32>
    %c13_1382 = arith.constant 13 : index
    %c98_1383 = arith.constant 98 : index
    %1222 = vector.load %arg5[%c13_1382, %c98_1383] : memref<32x196xf32, #tpu.memory_space<vmem>>, vector<1x14xf32>
    tpu.vector_store %arg5[%c13_1382, %c98_1383], %1221 {strides = array<i32>} : memref<32x196xf32, #tpu.memory_space<vmem>>, vector<1x14xf32>,
    %c7_i32_1384 = arith.constant 7 : i32
    %1223 = arith.addi %0, %c7_i32_1384 : i32
    %c1_i32_1385 = arith.constant 1 : i32
    %1224 = arith.addi %1223, %c1_i32_1385 : i32
    %c0_1386 = arith.constant 0 : index
    %c1_1387 = arith.constant 1 : index
    %1225 = arith.index_cast %1224 : i32 to index
    %c2_1388 = arith.constant 2 : index
    %1226 = vector.load %arg2[%c0_1386, %c1_1387, %1225, %c2_1388] : memref<1x3x16x16xf32, #tpu.memory_space<vmem>>, vector<1x1x1x14xf32>
    %1227 = vector.shape_cast %1226 : vector<1x1x1x14xf32> to vector<1x14xf32>
    %c14_1389 = arith.constant 14 : index
    %c98_1390 = arith.constant 98 : index
    %1228 = vector.load %arg5[%c14_1389, %c98_1390] : memref<32x196xf32, #tpu.memory_space<vmem>>, vector<1x14xf32>
    tpu.vector_store %arg5[%c14_1389, %c98_1390], %1227 {strides = array<i32>} : memref<32x196xf32, #tpu.memory_space<vmem>>, vector<1x14xf32>,
    %c7_i32_1391 = arith.constant 7 : i32
    %1229 = arith.addi %0, %c7_i32_1391 : i32
    %c2_i32_1392 = arith.constant 2 : i32
    %1230 = arith.addi %1229, %c2_i32_1392 : i32
    %c0_1393 = arith.constant 0 : index
    %c1_1394 = arith.constant 1 : index
    %1231 = arith.index_cast %1230 : i32 to index
    %c0_1395 = arith.constant 0 : index
    %1232 = vector.load %arg2[%c0_1393, %c1_1394, %1231, %c0_1395] : memref<1x3x16x16xf32, #tpu.memory_space<vmem>>, vector<1x1x1x14xf32>
    %1233 = vector.shape_cast %1232 : vector<1x1x1x14xf32> to vector<1x14xf32>
    %c15_1396 = arith.constant 15 : index
    %c98_1397 = arith.constant 98 : index
    %1234 = vector.load %arg5[%c15_1396, %c98_1397] : memref<32x196xf32, #tpu.memory_space<vmem>>, vector<1x14xf32>
    tpu.vector_store %arg5[%c15_1396, %c98_1397], %1233 {strides = array<i32>} : memref<32x196xf32, #tpu.memory_space<vmem>>, vector<1x14xf32>,
    %c7_i32_1398 = arith.constant 7 : i32
    %1235 = arith.addi %0, %c7_i32_1398 : i32
    %c2_i32_1399 = arith.constant 2 : i32
    %1236 = arith.addi %1235, %c2_i32_1399 : i32
    %c0_1400 = arith.constant 0 : index
    %c1_1401 = arith.constant 1 : index
    %1237 = arith.index_cast %1236 : i32 to index
    %c1_1402 = arith.constant 1 : index
    %1238 = vector.load %arg2[%c0_1400, %c1_1401, %1237, %c1_1402] : memref<1x3x16x16xf32, #tpu.memory_space<vmem>>, vector<1x1x1x14xf32>
    %1239 = vector.shape_cast %1238 : vector<1x1x1x14xf32> to vector<1x14xf32>
    %c16_1403 = arith.constant 16 : index
    %c98_1404 = arith.constant 98 : index
    %1240 = vector.load %arg5[%c16_1403, %c98_1404] : memref<32x196xf32, #tpu.memory_space<vmem>>, vector<1x14xf32>
    tpu.vector_store %arg5[%c16_1403, %c98_1404], %1239 {strides = array<i32>} : memref<32x196xf32, #tpu.memory_space<vmem>>, vector<1x14xf32>,
    %c7_i32_1405 = arith.constant 7 : i32
    %1241 = arith.addi %0, %c7_i32_1405 : i32
    %c2_i32_1406 = arith.constant 2 : i32
    %1242 = arith.addi %1241, %c2_i32_1406 : i32
    %c0_1407 = arith.constant 0 : index
    %c1_1408 = arith.constant 1 : index
    %1243 = arith.index_cast %1242 : i32 to index
    %c2_1409 = arith.constant 2 : index
    %1244 = vector.load %arg2[%c0_1407, %c1_1408, %1243, %c2_1409] : memref<1x3x16x16xf32, #tpu.memory_space<vmem>>, vector<1x1x1x14xf32>
    %1245 = vector.shape_cast %1244 : vector<1x1x1x14xf32> to vector<1x14xf32>
    %c17_1410 = arith.constant 17 : index
    %c98_1411 = arith.constant 98 : index
    %1246 = vector.load %arg5[%c17_1410, %c98_1411] : memref<32x196xf32, #tpu.memory_space<vmem>>, vector<1x14xf32>
    tpu.vector_store %arg5[%c17_1410, %c98_1411], %1245 {strides = array<i32>} : memref<32x196xf32, #tpu.memory_space<vmem>>, vector<1x14xf32>,
    %c7_i32_1412 = arith.constant 7 : i32
    %1247 = arith.addi %0, %c7_i32_1412 : i32
    %c0_i32_1413 = arith.constant 0 : i32
    %1248 = arith.addi %1247, %c0_i32_1413 : i32
    %c0_1414 = arith.constant 0 : index
    %c2_1415 = arith.constant 2 : index
    %1249 = arith.index_cast %1248 : i32 to index
    %c0_1416 = arith.constant 0 : index
    %1250 = vector.load %arg2[%c0_1414, %c2_1415, %1249, %c0_1416] : memref<1x3x16x16xf32, #tpu.memory_space<vmem>>, vector<1x1x1x14xf32>
    %1251 = vector.shape_cast %1250 : vector<1x1x1x14xf32> to vector<1x14xf32>
    %c18_1417 = arith.constant 18 : index
    %c98_1418 = arith.constant 98 : index
    %1252 = vector.load %arg5[%c18_1417, %c98_1418] : memref<32x196xf32, #tpu.memory_space<vmem>>, vector<1x14xf32>
    tpu.vector_store %arg5[%c18_1417, %c98_1418], %1251 {strides = array<i32>} : memref<32x196xf32, #tpu.memory_space<vmem>>, vector<1x14xf32>,
    %c7_i32_1419 = arith.constant 7 : i32
    %1253 = arith.addi %0, %c7_i32_1419 : i32
    %c0_i32_1420 = arith.constant 0 : i32
    %1254 = arith.addi %1253, %c0_i32_1420 : i32
    %c0_1421 = arith.constant 0 : index
    %c2_1422 = arith.constant 2 : index
    %1255 = arith.index_cast %1254 : i32 to index
    %c1_1423 = arith.constant 1 : index
    %1256 = vector.load %arg2[%c0_1421, %c2_1422, %1255, %c1_1423] : memref<1x3x16x16xf32, #tpu.memory_space<vmem>>, vector<1x1x1x14xf32>
    %1257 = vector.shape_cast %1256 : vector<1x1x1x14xf32> to vector<1x14xf32>
    %c19_1424 = arith.constant 19 : index
    %c98_1425 = arith.constant 98 : index
    %1258 = vector.load %arg5[%c19_1424, %c98_1425] : memref<32x196xf32, #tpu.memory_space<vmem>>, vector<1x14xf32>
    tpu.vector_store %arg5[%c19_1424, %c98_1425], %1257 {strides = array<i32>} : memref<32x196xf32, #tpu.memory_space<vmem>>, vector<1x14xf32>,
    %c7_i32_1426 = arith.constant 7 : i32
    %1259 = arith.addi %0, %c7_i32_1426 : i32
    %c0_i32_1427 = arith.constant 0 : i32
    %1260 = arith.addi %1259, %c0_i32_1427 : i32
    %c0_1428 = arith.constant 0 : index
    %c2_1429 = arith.constant 2 : index
    %1261 = arith.index_cast %1260 : i32 to index
    %c2_1430 = arith.constant 2 : index
    %1262 = vector.load %arg2[%c0_1428, %c2_1429, %1261, %c2_1430] : memref<1x3x16x16xf32, #tpu.memory_space<vmem>>, vector<1x1x1x14xf32>
    %1263 = vector.shape_cast %1262 : vector<1x1x1x14xf32> to vector<1x14xf32>
    %c20_1431 = arith.constant 20 : index
    %c98_1432 = arith.constant 98 : index
    %1264 = vector.load %arg5[%c20_1431, %c98_1432] : memref<32x196xf32, #tpu.memory_space<vmem>>, vector<1x14xf32>
    tpu.vector_store %arg5[%c20_1431, %c98_1432], %1263 {strides = array<i32>} : memref<32x196xf32, #tpu.memory_space<vmem>>, vector<1x14xf32>,
    %c7_i32_1433 = arith.constant 7 : i32
    %1265 = arith.addi %0, %c7_i32_1433 : i32
    %c1_i32_1434 = arith.constant 1 : i32
    %1266 = arith.addi %1265, %c1_i32_1434 : i32
    %c0_1435 = arith.constant 0 : index
    %c2_1436 = arith.constant 2 : index
    %1267 = arith.index_cast %1266 : i32 to index
    %c0_1437 = arith.constant 0 : index
    %1268 = vector.load %arg2[%c0_1435, %c2_1436, %1267, %c0_1437] : memref<1x3x16x16xf32, #tpu.memory_space<vmem>>, vector<1x1x1x14xf32>
    %1269 = vector.shape_cast %1268 : vector<1x1x1x14xf32> to vector<1x14xf32>
    %c21_1438 = arith.constant 21 : index
    %c98_1439 = arith.constant 98 : index
    %1270 = vector.load %arg5[%c21_1438, %c98_1439] : memref<32x196xf32, #tpu.memory_space<vmem>>, vector<1x14xf32>
    tpu.vector_store %arg5[%c21_1438, %c98_1439], %1269 {strides = array<i32>} : memref<32x196xf32, #tpu.memory_space<vmem>>, vector<1x14xf32>,
    %c7_i32_1440 = arith.constant 7 : i32
    %1271 = arith.addi %0, %c7_i32_1440 : i32
    %c1_i32_1441 = arith.constant 1 : i32
    %1272 = arith.addi %1271, %c1_i32_1441 : i32
    %c0_1442 = arith.constant 0 : index
    %c2_1443 = arith.constant 2 : index
    %1273 = arith.index_cast %1272 : i32 to index
    %c1_1444 = arith.constant 1 : index
    %1274 = vector.load %arg2[%c0_1442, %c2_1443, %1273, %c1_1444] : memref<1x3x16x16xf32, #tpu.memory_space<vmem>>, vector<1x1x1x14xf32>
    %1275 = vector.shape_cast %1274 : vector<1x1x1x14xf32> to vector<1x14xf32>
    %c22_1445 = arith.constant 22 : index
    %c98_1446 = arith.constant 98 : index
    %1276 = vector.load %arg5[%c22_1445, %c98_1446] : memref<32x196xf32, #tpu.memory_space<vmem>>, vector<1x14xf32>
    tpu.vector_store %arg5[%c22_1445, %c98_1446], %1275 {strides = array<i32>} : memref<32x196xf32, #tpu.memory_space<vmem>>, vector<1x14xf32>,
    %c7_i32_1447 = arith.constant 7 : i32
    %1277 = arith.addi %0, %c7_i32_1447 : i32
    %c1_i32_1448 = arith.constant 1 : i32
    %1278 = arith.addi %1277, %c1_i32_1448 : i32
    %c0_1449 = arith.constant 0 : index
    %c2_1450 = arith.constant 2 : index
    %1279 = arith.index_cast %1278 : i32 to index
    %c2_1451 = arith.constant 2 : index
    %1280 = vector.load %arg2[%c0_1449, %c2_1450, %1279, %c2_1451] : memref<1x3x16x16xf32, #tpu.memory_space<vmem>>, vector<1x1x1x14xf32>
    %1281 = vector.shape_cast %1280 : vector<1x1x1x14xf32> to vector<1x14xf32>
    %c23_1452 = arith.constant 23 : index
    %c98_1453 = arith.constant 98 : index
    %1282 = vector.load %arg5[%c23_1452, %c98_1453] : memref<32x196xf32, #tpu.memory_space<vmem>>, vector<1x14xf32>
    tpu.vector_store %arg5[%c23_1452, %c98_1453], %1281 {strides = array<i32>} : memref<32x196xf32, #tpu.memory_space<vmem>>, vector<1x14xf32>,
    %c7_i32_1454 = arith.constant 7 : i32
    %1283 = arith.addi %0, %c7_i32_1454 : i32
    %c2_i32_1455 = arith.constant 2 : i32
    %1284 = arith.addi %1283, %c2_i32_1455 : i32
    %c0_1456 = arith.constant 0 : index
    %c2_1457 = arith.constant 2 : index
    %1285 = arith.index_cast %1284 : i32 to index
    %c0_1458 = arith.constant 0 : index
    %1286 = vector.load %arg2[%c0_1456, %c2_1457, %1285, %c0_1458] : memref<1x3x16x16xf32, #tpu.memory_space<vmem>>, vector<1x1x1x14xf32>
    %1287 = vector.shape_cast %1286 : vector<1x1x1x14xf32> to vector<1x14xf32>
    %c24_1459 = arith.constant 24 : index
    %c98_1460 = arith.constant 98 : index
    %1288 = vector.load %arg5[%c24_1459, %c98_1460] : memref<32x196xf32, #tpu.memory_space<vmem>>, vector<1x14xf32>
    tpu.vector_store %arg5[%c24_1459, %c98_1460], %1287 {strides = array<i32>} : memref<32x196xf32, #tpu.memory_space<vmem>>, vector<1x14xf32>,
    %c7_i32_1461 = arith.constant 7 : i32
    %1289 = arith.addi %0, %c7_i32_1461 : i32
    %c2_i32_1462 = arith.constant 2 : i32
    %1290 = arith.addi %1289, %c2_i32_1462 : i32
    %c0_1463 = arith.constant 0 : index
    %c2_1464 = arith.constant 2 : index
    %1291 = arith.index_cast %1290 : i32 to index
    %c1_1465 = arith.constant 1 : index
    %1292 = vector.load %arg2[%c0_1463, %c2_1464, %1291, %c1_1465] : memref<1x3x16x16xf32, #tpu.memory_space<vmem>>, vector<1x1x1x14xf32>
    %1293 = vector.shape_cast %1292 : vector<1x1x1x14xf32> to vector<1x14xf32>
    %c25_1466 = arith.constant 25 : index
    %c98_1467 = arith.constant 98 : index
    %1294 = vector.load %arg5[%c25_1466, %c98_1467] : memref<32x196xf32, #tpu.memory_space<vmem>>, vector<1x14xf32>
    tpu.vector_store %arg5[%c25_1466, %c98_1467], %1293 {strides = array<i32>} : memref<32x196xf32, #tpu.memory_space<vmem>>, vector<1x14xf32>,
    %c7_i32_1468 = arith.constant 7 : i32
    %1295 = arith.addi %0, %c7_i32_1468 : i32
    %c2_i32_1469 = arith.constant 2 : i32
    %1296 = arith.addi %1295, %c2_i32_1469 : i32
    %c0_1470 = arith.constant 0 : index
    %c2_1471 = arith.constant 2 : index
    %1297 = arith.index_cast %1296 : i32 to index
    %c2_1472 = arith.constant 2 : index
    %1298 = vector.load %arg2[%c0_1470, %c2_1471, %1297, %c2_1472] : memref<1x3x16x16xf32, #tpu.memory_space<vmem>>, vector<1x1x1x14xf32>
    %1299 = vector.shape_cast %1298 : vector<1x1x1x14xf32> to vector<1x14xf32>
    %c26_1473 = arith.constant 26 : index
    %c98_1474 = arith.constant 98 : index
    %1300 = vector.load %arg5[%c26_1473, %c98_1474] : memref<32x196xf32, #tpu.memory_space<vmem>>, vector<1x14xf32>
    tpu.vector_store %arg5[%c26_1473, %c98_1474], %1299 {strides = array<i32>} : memref<32x196xf32, #tpu.memory_space<vmem>>, vector<1x14xf32>,
    %c8_i32 = arith.constant 8 : i32
    %1301 = arith.addi %0, %c8_i32 : i32
    %c0_i32_1475 = arith.constant 0 : i32
    %1302 = arith.addi %1301, %c0_i32_1475 : i32
    %c0_1476 = arith.constant 0 : index
    %c0_1477 = arith.constant 0 : index
    %1303 = arith.index_cast %1302 : i32 to index
    %c0_1478 = arith.constant 0 : index
    %1304 = vector.load %arg2[%c0_1476, %c0_1477, %1303, %c0_1478] : memref<1x3x16x16xf32, #tpu.memory_space<vmem>>, vector<1x1x1x14xf32>
    %1305 = vector.shape_cast %1304 : vector<1x1x1x14xf32> to vector<1x14xf32>
    %c0_1479 = arith.constant 0 : index
    %c112 = arith.constant 112 : index
    %1306 = vector.load %arg5[%c0_1479, %c112] : memref<32x196xf32, #tpu.memory_space<vmem>>, vector<1x14xf32>
    tpu.vector_store %arg5[%c0_1479, %c112], %1305 {strides = array<i32>} : memref<32x196xf32, #tpu.memory_space<vmem>>, vector<1x14xf32>,
    %c8_i32_1480 = arith.constant 8 : i32
    %1307 = arith.addi %0, %c8_i32_1480 : i32
    %c0_i32_1481 = arith.constant 0 : i32
    %1308 = arith.addi %1307, %c0_i32_1481 : i32
    %c0_1482 = arith.constant 0 : index
    %c0_1483 = arith.constant 0 : index
    %1309 = arith.index_cast %1308 : i32 to index
    %c1_1484 = arith.constant 1 : index
    %1310 = vector.load %arg2[%c0_1482, %c0_1483, %1309, %c1_1484] : memref<1x3x16x16xf32, #tpu.memory_space<vmem>>, vector<1x1x1x14xf32>
    %1311 = vector.shape_cast %1310 : vector<1x1x1x14xf32> to vector<1x14xf32>
    %c1_1485 = arith.constant 1 : index
    %c112_1486 = arith.constant 112 : index
    %1312 = vector.load %arg5[%c1_1485, %c112_1486] : memref<32x196xf32, #tpu.memory_space<vmem>>, vector<1x14xf32>
    tpu.vector_store %arg5[%c1_1485, %c112_1486], %1311 {strides = array<i32>} : memref<32x196xf32, #tpu.memory_space<vmem>>, vector<1x14xf32>,
    %c8_i32_1487 = arith.constant 8 : i32
    %1313 = arith.addi %0, %c8_i32_1487 : i32
    %c0_i32_1488 = arith.constant 0 : i32
    %1314 = arith.addi %1313, %c0_i32_1488 : i32
    %c0_1489 = arith.constant 0 : index
    %c0_1490 = arith.constant 0 : index
    %1315 = arith.index_cast %1314 : i32 to index
    %c2_1491 = arith.constant 2 : index
    %1316 = vector.load %arg2[%c0_1489, %c0_1490, %1315, %c2_1491] : memref<1x3x16x16xf32, #tpu.memory_space<vmem>>, vector<1x1x1x14xf32>
    %1317 = vector.shape_cast %1316 : vector<1x1x1x14xf32> to vector<1x14xf32>
    %c2_1492 = arith.constant 2 : index
    %c112_1493 = arith.constant 112 : index
    %1318 = vector.load %arg5[%c2_1492, %c112_1493] : memref<32x196xf32, #tpu.memory_space<vmem>>, vector<1x14xf32>
    tpu.vector_store %arg5[%c2_1492, %c112_1493], %1317 {strides = array<i32>} : memref<32x196xf32, #tpu.memory_space<vmem>>, vector<1x14xf32>,
    %c8_i32_1494 = arith.constant 8 : i32
    %1319 = arith.addi %0, %c8_i32_1494 : i32
    %c1_i32_1495 = arith.constant 1 : i32
    %1320 = arith.addi %1319, %c1_i32_1495 : i32
    %c0_1496 = arith.constant 0 : index
    %c0_1497 = arith.constant 0 : index
    %1321 = arith.index_cast %1320 : i32 to index
    %c0_1498 = arith.constant 0 : index
    %1322 = vector.load %arg2[%c0_1496, %c0_1497, %1321, %c0_1498] : memref<1x3x16x16xf32, #tpu.memory_space<vmem>>, vector<1x1x1x14xf32>
    %1323 = vector.shape_cast %1322 : vector<1x1x1x14xf32> to vector<1x14xf32>
    %c3_1499 = arith.constant 3 : index
    %c112_1500 = arith.constant 112 : index
    %1324 = vector.load %arg5[%c3_1499, %c112_1500] : memref<32x196xf32, #tpu.memory_space<vmem>>, vector<1x14xf32>
    tpu.vector_store %arg5[%c3_1499, %c112_1500], %1323 {strides = array<i32>} : memref<32x196xf32, #tpu.memory_space<vmem>>, vector<1x14xf32>,
    %c8_i32_1501 = arith.constant 8 : i32
    %1325 = arith.addi %0, %c8_i32_1501 : i32
    %c1_i32_1502 = arith.constant 1 : i32
    %1326 = arith.addi %1325, %c1_i32_1502 : i32
    %c0_1503 = arith.constant 0 : index
    %c0_1504 = arith.constant 0 : index
    %1327 = arith.index_cast %1326 : i32 to index
    %c1_1505 = arith.constant 1 : index
    %1328 = vector.load %arg2[%c0_1503, %c0_1504, %1327, %c1_1505] : memref<1x3x16x16xf32, #tpu.memory_space<vmem>>, vector<1x1x1x14xf32>
    %1329 = vector.shape_cast %1328 : vector<1x1x1x14xf32> to vector<1x14xf32>
    %c4_1506 = arith.constant 4 : index
    %c112_1507 = arith.constant 112 : index
    %1330 = vector.load %arg5[%c4_1506, %c112_1507] : memref<32x196xf32, #tpu.memory_space<vmem>>, vector<1x14xf32>
    tpu.vector_store %arg5[%c4_1506, %c112_1507], %1329 {strides = array<i32>} : memref<32x196xf32, #tpu.memory_space<vmem>>, vector<1x14xf32>,
    %c8_i32_1508 = arith.constant 8 : i32
    %1331 = arith.addi %0, %c8_i32_1508 : i32
    %c1_i32_1509 = arith.constant 1 : i32
    %1332 = arith.addi %1331, %c1_i32_1509 : i32
    %c0_1510 = arith.constant 0 : index
    %c0_1511 = arith.constant 0 : index
    %1333 = arith.index_cast %1332 : i32 to index
    %c2_1512 = arith.constant 2 : index
    %1334 = vector.load %arg2[%c0_1510, %c0_1511, %1333, %c2_1512] : memref<1x3x16x16xf32, #tpu.memory_space<vmem>>, vector<1x1x1x14xf32>
    %1335 = vector.shape_cast %1334 : vector<1x1x1x14xf32> to vector<1x14xf32>
    %c5_1513 = arith.constant 5 : index
    %c112_1514 = arith.constant 112 : index
    %1336 = vector.load %arg5[%c5_1513, %c112_1514] : memref<32x196xf32, #tpu.memory_space<vmem>>, vector<1x14xf32>
    tpu.vector_store %arg5[%c5_1513, %c112_1514], %1335 {strides = array<i32>} : memref<32x196xf32, #tpu.memory_space<vmem>>, vector<1x14xf32>,
    %c8_i32_1515 = arith.constant 8 : i32
    %1337 = arith.addi %0, %c8_i32_1515 : i32
    %c2_i32_1516 = arith.constant 2 : i32
    %1338 = arith.addi %1337, %c2_i32_1516 : i32
    %c0_1517 = arith.constant 0 : index
    %c0_1518 = arith.constant 0 : index
    %1339 = arith.index_cast %1338 : i32 to index
    %c0_1519 = arith.constant 0 : index
    %1340 = vector.load %arg2[%c0_1517, %c0_1518, %1339, %c0_1519] : memref<1x3x16x16xf32, #tpu.memory_space<vmem>>, vector<1x1x1x14xf32>
    %1341 = vector.shape_cast %1340 : vector<1x1x1x14xf32> to vector<1x14xf32>
    %c6_1520 = arith.constant 6 : index
    %c112_1521 = arith.constant 112 : index
    %1342 = vector.load %arg5[%c6_1520, %c112_1521] : memref<32x196xf32, #tpu.memory_space<vmem>>, vector<1x14xf32>
    tpu.vector_store %arg5[%c6_1520, %c112_1521], %1341 {strides = array<i32>} : memref<32x196xf32, #tpu.memory_space<vmem>>, vector<1x14xf32>,
    %c8_i32_1522 = arith.constant 8 : i32
    %1343 = arith.addi %0, %c8_i32_1522 : i32
    %c2_i32_1523 = arith.constant 2 : i32
    %1344 = arith.addi %1343, %c2_i32_1523 : i32
    %c0_1524 = arith.constant 0 : index
    %c0_1525 = arith.constant 0 : index
    %1345 = arith.index_cast %1344 : i32 to index
    %c1_1526 = arith.constant 1 : index
    %1346 = vector.load %arg2[%c0_1524, %c0_1525, %1345, %c1_1526] : memref<1x3x16x16xf32, #tpu.memory_space<vmem>>, vector<1x1x1x14xf32>
    %1347 = vector.shape_cast %1346 : vector<1x1x1x14xf32> to vector<1x14xf32>
    %c7_1527 = arith.constant 7 : index
    %c112_1528 = arith.constant 112 : index
    %1348 = vector.load %arg5[%c7_1527, %c112_1528] : memref<32x196xf32, #tpu.memory_space<vmem>>, vector<1x14xf32>
    tpu.vector_store %arg5[%c7_1527, %c112_1528], %1347 {strides = array<i32>} : memref<32x196xf32, #tpu.memory_space<vmem>>, vector<1x14xf32>,
    %c8_i32_1529 = arith.constant 8 : i32
    %1349 = arith.addi %0, %c8_i32_1529 : i32
    %c2_i32_1530 = arith.constant 2 : i32
    %1350 = arith.addi %1349, %c2_i32_1530 : i32
    %c0_1531 = arith.constant 0 : index
    %c0_1532 = arith.constant 0 : index
    %1351 = arith.index_cast %1350 : i32 to index
    %c2_1533 = arith.constant 2 : index
    %1352 = vector.load %arg2[%c0_1531, %c0_1532, %1351, %c2_1533] : memref<1x3x16x16xf32, #tpu.memory_space<vmem>>, vector<1x1x1x14xf32>
    %1353 = vector.shape_cast %1352 : vector<1x1x1x14xf32> to vector<1x14xf32>
    %c8_1534 = arith.constant 8 : index
    %c112_1535 = arith.constant 112 : index
    %1354 = vector.load %arg5[%c8_1534, %c112_1535] : memref<32x196xf32, #tpu.memory_space<vmem>>, vector<1x14xf32>
    tpu.vector_store %arg5[%c8_1534, %c112_1535], %1353 {strides = array<i32>} : memref<32x196xf32, #tpu.memory_space<vmem>>, vector<1x14xf32>,
    %c8_i32_1536 = arith.constant 8 : i32
    %1355 = arith.addi %0, %c8_i32_1536 : i32
    %c0_i32_1537 = arith.constant 0 : i32
    %1356 = arith.addi %1355, %c0_i32_1537 : i32
    %c0_1538 = arith.constant 0 : index
    %c1_1539 = arith.constant 1 : index
    %1357 = arith.index_cast %1356 : i32 to index
    %c0_1540 = arith.constant 0 : index
    %1358 = vector.load %arg2[%c0_1538, %c1_1539, %1357, %c0_1540] : memref<1x3x16x16xf32, #tpu.memory_space<vmem>>, vector<1x1x1x14xf32>
    %1359 = vector.shape_cast %1358 : vector<1x1x1x14xf32> to vector<1x14xf32>
    %c9_1541 = arith.constant 9 : index
    %c112_1542 = arith.constant 112 : index
    %1360 = vector.load %arg5[%c9_1541, %c112_1542] : memref<32x196xf32, #tpu.memory_space<vmem>>, vector<1x14xf32>
    tpu.vector_store %arg5[%c9_1541, %c112_1542], %1359 {strides = array<i32>} : memref<32x196xf32, #tpu.memory_space<vmem>>, vector<1x14xf32>,
    %c8_i32_1543 = arith.constant 8 : i32
    %1361 = arith.addi %0, %c8_i32_1543 : i32
    %c0_i32_1544 = arith.constant 0 : i32
    %1362 = arith.addi %1361, %c0_i32_1544 : i32
    %c0_1545 = arith.constant 0 : index
    %c1_1546 = arith.constant 1 : index
    %1363 = arith.index_cast %1362 : i32 to index
    %c1_1547 = arith.constant 1 : index
    %1364 = vector.load %arg2[%c0_1545, %c1_1546, %1363, %c1_1547] : memref<1x3x16x16xf32, #tpu.memory_space<vmem>>, vector<1x1x1x14xf32>
    %1365 = vector.shape_cast %1364 : vector<1x1x1x14xf32> to vector<1x14xf32>
    %c10_1548 = arith.constant 10 : index
    %c112_1549 = arith.constant 112 : index
    %1366 = vector.load %arg5[%c10_1548, %c112_1549] : memref<32x196xf32, #tpu.memory_space<vmem>>, vector<1x14xf32>
    tpu.vector_store %arg5[%c10_1548, %c112_1549], %1365 {strides = array<i32>} : memref<32x196xf32, #tpu.memory_space<vmem>>, vector<1x14xf32>,
    %c8_i32_1550 = arith.constant 8 : i32
    %1367 = arith.addi %0, %c8_i32_1550 : i32
    %c0_i32_1551 = arith.constant 0 : i32
    %1368 = arith.addi %1367, %c0_i32_1551 : i32
    %c0_1552 = arith.constant 0 : index
    %c1_1553 = arith.constant 1 : index
    %1369 = arith.index_cast %1368 : i32 to index
    %c2_1554 = arith.constant 2 : index
    %1370 = vector.load %arg2[%c0_1552, %c1_1553, %1369, %c2_1554] : memref<1x3x16x16xf32, #tpu.memory_space<vmem>>, vector<1x1x1x14xf32>
    %1371 = vector.shape_cast %1370 : vector<1x1x1x14xf32> to vector<1x14xf32>
    %c11_1555 = arith.constant 11 : index
    %c112_1556 = arith.constant 112 : index
    %1372 = vector.load %arg5[%c11_1555, %c112_1556] : memref<32x196xf32, #tpu.memory_space<vmem>>, vector<1x14xf32>
    tpu.vector_store %arg5[%c11_1555, %c112_1556], %1371 {strides = array<i32>} : memref<32x196xf32, #tpu.memory_space<vmem>>, vector<1x14xf32>,
    %c8_i32_1557 = arith.constant 8 : i32
    %1373 = arith.addi %0, %c8_i32_1557 : i32
    %c1_i32_1558 = arith.constant 1 : i32
    %1374 = arith.addi %1373, %c1_i32_1558 : i32
    %c0_1559 = arith.constant 0 : index
    %c1_1560 = arith.constant 1 : index
    %1375 = arith.index_cast %1374 : i32 to index
    %c0_1561 = arith.constant 0 : index
    %1376 = vector.load %arg2[%c0_1559, %c1_1560, %1375, %c0_1561] : memref<1x3x16x16xf32, #tpu.memory_space<vmem>>, vector<1x1x1x14xf32>
    %1377 = vector.shape_cast %1376 : vector<1x1x1x14xf32> to vector<1x14xf32>
    %c12_1562 = arith.constant 12 : index
    %c112_1563 = arith.constant 112 : index
    %1378 = vector.load %arg5[%c12_1562, %c112_1563] : memref<32x196xf32, #tpu.memory_space<vmem>>, vector<1x14xf32>
    tpu.vector_store %arg5[%c12_1562, %c112_1563], %1377 {strides = array<i32>} : memref<32x196xf32, #tpu.memory_space<vmem>>, vector<1x14xf32>,
    %c8_i32_1564 = arith.constant 8 : i32
    %1379 = arith.addi %0, %c8_i32_1564 : i32
    %c1_i32_1565 = arith.constant 1 : i32
    %1380 = arith.addi %1379, %c1_i32_1565 : i32
    %c0_1566 = arith.constant 0 : index
    %c1_1567 = arith.constant 1 : index
    %1381 = arith.index_cast %1380 : i32 to index
    %c1_1568 = arith.constant 1 : index
    %1382 = vector.load %arg2[%c0_1566, %c1_1567, %1381, %c1_1568] : memref<1x3x16x16xf32, #tpu.memory_space<vmem>>, vector<1x1x1x14xf32>
    %1383 = vector.shape_cast %1382 : vector<1x1x1x14xf32> to vector<1x14xf32>
    %c13_1569 = arith.constant 13 : index
    %c112_1570 = arith.constant 112 : index
    %1384 = vector.load %arg5[%c13_1569, %c112_1570] : memref<32x196xf32, #tpu.memory_space<vmem>>, vector<1x14xf32>
    tpu.vector_store %arg5[%c13_1569, %c112_1570], %1383 {strides = array<i32>} : memref<32x196xf32, #tpu.memory_space<vmem>>, vector<1x14xf32>,
    %c8_i32_1571 = arith.constant 8 : i32
    %1385 = arith.addi %0, %c8_i32_1571 : i32
    %c1_i32_1572 = arith.constant 1 : i32
    %1386 = arith.addi %1385, %c1_i32_1572 : i32
    %c0_1573 = arith.constant 0 : index
    %c1_1574 = arith.constant 1 : index
    %1387 = arith.index_cast %1386 : i32 to index
    %c2_1575 = arith.constant 2 : index
    %1388 = vector.load %arg2[%c0_1573, %c1_1574, %1387, %c2_1575] : memref<1x3x16x16xf32, #tpu.memory_space<vmem>>, vector<1x1x1x14xf32>
    %1389 = vector.shape_cast %1388 : vector<1x1x1x14xf32> to vector<1x14xf32>
    %c14_1576 = arith.constant 14 : index
    %c112_1577 = arith.constant 112 : index
    %1390 = vector.load %arg5[%c14_1576, %c112_1577] : memref<32x196xf32, #tpu.memory_space<vmem>>, vector<1x14xf32>
    tpu.vector_store %arg5[%c14_1576, %c112_1577], %1389 {strides = array<i32>} : memref<32x196xf32, #tpu.memory_space<vmem>>, vector<1x14xf32>,
    %c8_i32_1578 = arith.constant 8 : i32
    %1391 = arith.addi %0, %c8_i32_1578 : i32
    %c2_i32_1579 = arith.constant 2 : i32
    %1392 = arith.addi %1391, %c2_i32_1579 : i32
    %c0_1580 = arith.constant 0 : index
    %c1_1581 = arith.constant 1 : index
    %1393 = arith.index_cast %1392 : i32 to index
    %c0_1582 = arith.constant 0 : index
    %1394 = vector.load %arg2[%c0_1580, %c1_1581, %1393, %c0_1582] : memref<1x3x16x16xf32, #tpu.memory_space<vmem>>, vector<1x1x1x14xf32>
    %1395 = vector.shape_cast %1394 : vector<1x1x1x14xf32> to vector<1x14xf32>
    %c15_1583 = arith.constant 15 : index
    %c112_1584 = arith.constant 112 : index
    %1396 = vector.load %arg5[%c15_1583, %c112_1584] : memref<32x196xf32, #tpu.memory_space<vmem>>, vector<1x14xf32>
    tpu.vector_store %arg5[%c15_1583, %c112_1584], %1395 {strides = array<i32>} : memref<32x196xf32, #tpu.memory_space<vmem>>, vector<1x14xf32>,
    %c8_i32_1585 = arith.constant 8 : i32
    %1397 = arith.addi %0, %c8_i32_1585 : i32
    %c2_i32_1586 = arith.constant 2 : i32
    %1398 = arith.addi %1397, %c2_i32_1586 : i32
    %c0_1587 = arith.constant 0 : index
    %c1_1588 = arith.constant 1 : index
    %1399 = arith.index_cast %1398 : i32 to index
    %c1_1589 = arith.constant 1 : index
    %1400 = vector.load %arg2[%c0_1587, %c1_1588, %1399, %c1_1589] : memref<1x3x16x16xf32, #tpu.memory_space<vmem>>, vector<1x1x1x14xf32>
    %1401 = vector.shape_cast %1400 : vector<1x1x1x14xf32> to vector<1x14xf32>
    %c16_1590 = arith.constant 16 : index
    %c112_1591 = arith.constant 112 : index
    %1402 = vector.load %arg5[%c16_1590, %c112_1591] : memref<32x196xf32, #tpu.memory_space<vmem>>, vector<1x14xf32>
    tpu.vector_store %arg5[%c16_1590, %c112_1591], %1401 {strides = array<i32>} : memref<32x196xf32, #tpu.memory_space<vmem>>, vector<1x14xf32>,
    %c8_i32_1592 = arith.constant 8 : i32
    %1403 = arith.addi %0, %c8_i32_1592 : i32
    %c2_i32_1593 = arith.constant 2 : i32
    %1404 = arith.addi %1403, %c2_i32_1593 : i32
    %c0_1594 = arith.constant 0 : index
    %c1_1595 = arith.constant 1 : index
    %1405 = arith.index_cast %1404 : i32 to index
    %c2_1596 = arith.constant 2 : index
    %1406 = vector.load %arg2[%c0_1594, %c1_1595, %1405, %c2_1596] : memref<1x3x16x16xf32, #tpu.memory_space<vmem>>, vector<1x1x1x14xf32>
    %1407 = vector.shape_cast %1406 : vector<1x1x1x14xf32> to vector<1x14xf32>
    %c17_1597 = arith.constant 17 : index
    %c112_1598 = arith.constant 112 : index
    %1408 = vector.load %arg5[%c17_1597, %c112_1598] : memref<32x196xf32, #tpu.memory_space<vmem>>, vector<1x14xf32>
    tpu.vector_store %arg5[%c17_1597, %c112_1598], %1407 {strides = array<i32>} : memref<32x196xf32, #tpu.memory_space<vmem>>, vector<1x14xf32>,
    %c8_i32_1599 = arith.constant 8 : i32
    %1409 = arith.addi %0, %c8_i32_1599 : i32
    %c0_i32_1600 = arith.constant 0 : i32
    %1410 = arith.addi %1409, %c0_i32_1600 : i32
    %c0_1601 = arith.constant 0 : index
    %c2_1602 = arith.constant 2 : index
    %1411 = arith.index_cast %1410 : i32 to index
    %c0_1603 = arith.constant 0 : index
    %1412 = vector.load %arg2[%c0_1601, %c2_1602, %1411, %c0_1603] : memref<1x3x16x16xf32, #tpu.memory_space<vmem>>, vector<1x1x1x14xf32>
    %1413 = vector.shape_cast %1412 : vector<1x1x1x14xf32> to vector<1x14xf32>
    %c18_1604 = arith.constant 18 : index
    %c112_1605 = arith.constant 112 : index
    %1414 = vector.load %arg5[%c18_1604, %c112_1605] : memref<32x196xf32, #tpu.memory_space<vmem>>, vector<1x14xf32>
    tpu.vector_store %arg5[%c18_1604, %c112_1605], %1413 {strides = array<i32>} : memref<32x196xf32, #tpu.memory_space<vmem>>, vector<1x14xf32>,
    %c8_i32_1606 = arith.constant 8 : i32
    %1415 = arith.addi %0, %c8_i32_1606 : i32
    %c0_i32_1607 = arith.constant 0 : i32
    %1416 = arith.addi %1415, %c0_i32_1607 : i32
    %c0_1608 = arith.constant 0 : index
    %c2_1609 = arith.constant 2 : index
    %1417 = arith.index_cast %1416 : i32 to index
    %c1_1610 = arith.constant 1 : index
    %1418 = vector.load %arg2[%c0_1608, %c2_1609, %1417, %c1_1610] : memref<1x3x16x16xf32, #tpu.memory_space<vmem>>, vector<1x1x1x14xf32>
    %1419 = vector.shape_cast %1418 : vector<1x1x1x14xf32> to vector<1x14xf32>
    %c19_1611 = arith.constant 19 : index
    %c112_1612 = arith.constant 112 : index
    %1420 = vector.load %arg5[%c19_1611, %c112_1612] : memref<32x196xf32, #tpu.memory_space<vmem>>, vector<1x14xf32>
    tpu.vector_store %arg5[%c19_1611, %c112_1612], %1419 {strides = array<i32>} : memref<32x196xf32, #tpu.memory_space<vmem>>, vector<1x14xf32>,
    %c8_i32_1613 = arith.constant 8 : i32
    %1421 = arith.addi %0, %c8_i32_1613 : i32
    %c0_i32_1614 = arith.constant 0 : i32
    %1422 = arith.addi %1421, %c0_i32_1614 : i32
    %c0_1615 = arith.constant 0 : index
    %c2_1616 = arith.constant 2 : index
    %1423 = arith.index_cast %1422 : i32 to index
    %c2_1617 = arith.constant 2 : index
    %1424 = vector.load %arg2[%c0_1615, %c2_1616, %1423, %c2_1617] : memref<1x3x16x16xf32, #tpu.memory_space<vmem>>, vector<1x1x1x14xf32>
    %1425 = vector.shape_cast %1424 : vector<1x1x1x14xf32> to vector<1x14xf32>
    %c20_1618 = arith.constant 20 : index
    %c112_1619 = arith.constant 112 : index
    %1426 = vector.load %arg5[%c20_1618, %c112_1619] : memref<32x196xf32, #tpu.memory_space<vmem>>, vector<1x14xf32>
    tpu.vector_store %arg5[%c20_1618, %c112_1619], %1425 {strides = array<i32>} : memref<32x196xf32, #tpu.memory_space<vmem>>, vector<1x14xf32>,
    %c8_i32_1620 = arith.constant 8 : i32
    %1427 = arith.addi %0, %c8_i32_1620 : i32
    %c1_i32_1621 = arith.constant 1 : i32
    %1428 = arith.addi %1427, %c1_i32_1621 : i32
    %c0_1622 = arith.constant 0 : index
    %c2_1623 = arith.constant 2 : index
    %1429 = arith.index_cast %1428 : i32 to index
    %c0_1624 = arith.constant 0 : index
    %1430 = vector.load %arg2[%c0_1622, %c2_1623, %1429, %c0_1624] : memref<1x3x16x16xf32, #tpu.memory_space<vmem>>, vector<1x1x1x14xf32>
    %1431 = vector.shape_cast %1430 : vector<1x1x1x14xf32> to vector<1x14xf32>
    %c21_1625 = arith.constant 21 : index
    %c112_1626 = arith.constant 112 : index
    %1432 = vector.load %arg5[%c21_1625, %c112_1626] : memref<32x196xf32, #tpu.memory_space<vmem>>, vector<1x14xf32>
    tpu.vector_store %arg5[%c21_1625, %c112_1626], %1431 {strides = array<i32>} : memref<32x196xf32, #tpu.memory_space<vmem>>, vector<1x14xf32>,
    %c8_i32_1627 = arith.constant 8 : i32
    %1433 = arith.addi %0, %c8_i32_1627 : i32
    %c1_i32_1628 = arith.constant 1 : i32
    %1434 = arith.addi %1433, %c1_i32_1628 : i32
    %c0_1629 = arith.constant 0 : index
    %c2_1630 = arith.constant 2 : index
    %1435 = arith.index_cast %1434 : i32 to index
    %c1_1631 = arith.constant 1 : index
    %1436 = vector.load %arg2[%c0_1629, %c2_1630, %1435, %c1_1631] : memref<1x3x16x16xf32, #tpu.memory_space<vmem>>, vector<1x1x1x14xf32>
    %1437 = vector.shape_cast %1436 : vector<1x1x1x14xf32> to vector<1x14xf32>
    %c22_1632 = arith.constant 22 : index
    %c112_1633 = arith.constant 112 : index
    %1438 = vector.load %arg5[%c22_1632, %c112_1633] : memref<32x196xf32, #tpu.memory_space<vmem>>, vector<1x14xf32>
    tpu.vector_store %arg5[%c22_1632, %c112_1633], %1437 {strides = array<i32>} : memref<32x196xf32, #tpu.memory_space<vmem>>, vector<1x14xf32>,
    %c8_i32_1634 = arith.constant 8 : i32
    %1439 = arith.addi %0, %c8_i32_1634 : i32
    %c1_i32_1635 = arith.constant 1 : i32
    %1440 = arith.addi %1439, %c1_i32_1635 : i32
    %c0_1636 = arith.constant 0 : index
    %c2_1637 = arith.constant 2 : index
    %1441 = arith.index_cast %1440 : i32 to index
    %c2_1638 = arith.constant 2 : index
    %1442 = vector.load %arg2[%c0_1636, %c2_1637, %1441, %c2_1638] : memref<1x3x16x16xf32, #tpu.memory_space<vmem>>, vector<1x1x1x14xf32>
    %1443 = vector.shape_cast %1442 : vector<1x1x1x14xf32> to vector<1x14xf32>
    %c23_1639 = arith.constant 23 : index
    %c112_1640 = arith.constant 112 : index
    %1444 = vector.load %arg5[%c23_1639, %c112_1640] : memref<32x196xf32, #tpu.memory_space<vmem>>, vector<1x14xf32>
    tpu.vector_store %arg5[%c23_1639, %c112_1640], %1443 {strides = array<i32>} : memref<32x196xf32, #tpu.memory_space<vmem>>, vector<1x14xf32>,
    %c8_i32_1641 = arith.constant 8 : i32
    %1445 = arith.addi %0, %c8_i32_1641 : i32
    %c2_i32_1642 = arith.constant 2 : i32
    %1446 = arith.addi %1445, %c2_i32_1642 : i32
    %c0_1643 = arith.constant 0 : index
    %c2_1644 = arith.constant 2 : index
    %1447 = arith.index_cast %1446 : i32 to index
    %c0_1645 = arith.constant 0 : index
    %1448 = vector.load %arg2[%c0_1643, %c2_1644, %1447, %c0_1645] : memref<1x3x16x16xf32, #tpu.memory_space<vmem>>, vector<1x1x1x14xf32>
    %1449 = vector.shape_cast %1448 : vector<1x1x1x14xf32> to vector<1x14xf32>
    %c24_1646 = arith.constant 24 : index
    %c112_1647 = arith.constant 112 : index
    %1450 = vector.load %arg5[%c24_1646, %c112_1647] : memref<32x196xf32, #tpu.memory_space<vmem>>, vector<1x14xf32>
    tpu.vector_store %arg5[%c24_1646, %c112_1647], %1449 {strides = array<i32>} : memref<32x196xf32, #tpu.memory_space<vmem>>, vector<1x14xf32>,
    %c8_i32_1648 = arith.constant 8 : i32
    %1451 = arith.addi %0, %c8_i32_1648 : i32
    %c2_i32_1649 = arith.constant 2 : i32
    %1452 = arith.addi %1451, %c2_i32_1649 : i32
    %c0_1650 = arith.constant 0 : index
    %c2_1651 = arith.constant 2 : index
    %1453 = arith.index_cast %1452 : i32 to index
    %c1_1652 = arith.constant 1 : index
    %1454 = vector.load %arg2[%c0_1650, %c2_1651, %1453, %c1_1652] : memref<1x3x16x16xf32, #tpu.memory_space<vmem>>, vector<1x1x1x14xf32>
    %1455 = vector.shape_cast %1454 : vector<1x1x1x14xf32> to vector<1x14xf32>
    %c25_1653 = arith.constant 25 : index
    %c112_1654 = arith.constant 112 : index
    %1456 = vector.load %arg5[%c25_1653, %c112_1654] : memref<32x196xf32, #tpu.memory_space<vmem>>, vector<1x14xf32>
    tpu.vector_store %arg5[%c25_1653, %c112_1654], %1455 {strides = array<i32>} : memref<32x196xf32, #tpu.memory_space<vmem>>, vector<1x14xf32>,
    %c8_i32_1655 = arith.constant 8 : i32
    %1457 = arith.addi %0, %c8_i32_1655 : i32
    %c2_i32_1656 = arith.constant 2 : i32
    %1458 = arith.addi %1457, %c2_i32_1656 : i32
    %c0_1657 = arith.constant 0 : index
    %c2_1658 = arith.constant 2 : index
    %1459 = arith.index_cast %1458 : i32 to index
    %c2_1659 = arith.constant 2 : index
    %1460 = vector.load %arg2[%c0_1657, %c2_1658, %1459, %c2_1659] : memref<1x3x16x16xf32, #tpu.memory_space<vmem>>, vector<1x1x1x14xf32>
    %1461 = vector.shape_cast %1460 : vector<1x1x1x14xf32> to vector<1x14xf32>
    %c26_1660 = arith.constant 26 : index
    %c112_1661 = arith.constant 112 : index
    %1462 = vector.load %arg5[%c26_1660, %c112_1661] : memref<32x196xf32, #tpu.memory_space<vmem>>, vector<1x14xf32>
    tpu.vector_store %arg5[%c26_1660, %c112_1661], %1461 {strides = array<i32>} : memref<32x196xf32, #tpu.memory_space<vmem>>, vector<1x14xf32>,
    %c9_i32 = arith.constant 9 : i32
    %1463 = arith.addi %0, %c9_i32 : i32
    %c0_i32_1662 = arith.constant 0 : i32
    %1464 = arith.addi %1463, %c0_i32_1662 : i32
    %c0_1663 = arith.constant 0 : index
    %c0_1664 = arith.constant 0 : index
    %1465 = arith.index_cast %1464 : i32 to index
    %c0_1665 = arith.constant 0 : index
    %1466 = vector.load %arg2[%c0_1663, %c0_1664, %1465, %c0_1665] : memref<1x3x16x16xf32, #tpu.memory_space<vmem>>, vector<1x1x1x14xf32>
    %1467 = vector.shape_cast %1466 : vector<1x1x1x14xf32> to vector<1x14xf32>
    %c0_1666 = arith.constant 0 : index
    %c126 = arith.constant 126 : index
    %1468 = vector.load %arg5[%c0_1666, %c126] : memref<32x196xf32, #tpu.memory_space<vmem>>, vector<1x14xf32>
    tpu.vector_store %arg5[%c0_1666, %c126], %1467 {strides = array<i32>} : memref<32x196xf32, #tpu.memory_space<vmem>>, vector<1x14xf32>,
    %c9_i32_1667 = arith.constant 9 : i32
    %1469 = arith.addi %0, %c9_i32_1667 : i32
    %c0_i32_1668 = arith.constant 0 : i32
    %1470 = arith.addi %1469, %c0_i32_1668 : i32
    %c0_1669 = arith.constant 0 : index
    %c0_1670 = arith.constant 0 : index
    %1471 = arith.index_cast %1470 : i32 to index
    %c1_1671 = arith.constant 1 : index
    %1472 = vector.load %arg2[%c0_1669, %c0_1670, %1471, %c1_1671] : memref<1x3x16x16xf32, #tpu.memory_space<vmem>>, vector<1x1x1x14xf32>
    %1473 = vector.shape_cast %1472 : vector<1x1x1x14xf32> to vector<1x14xf32>
    %c1_1672 = arith.constant 1 : index
    %c126_1673 = arith.constant 126 : index
    %1474 = vector.load %arg5[%c1_1672, %c126_1673] : memref<32x196xf32, #tpu.memory_space<vmem>>, vector<1x14xf32>
    tpu.vector_store %arg5[%c1_1672, %c126_1673], %1473 {strides = array<i32>} : memref<32x196xf32, #tpu.memory_space<vmem>>, vector<1x14xf32>,
    %c9_i32_1674 = arith.constant 9 : i32
    %1475 = arith.addi %0, %c9_i32_1674 : i32
    %c0_i32_1675 = arith.constant 0 : i32
    %1476 = arith.addi %1475, %c0_i32_1675 : i32
    %c0_1676 = arith.constant 0 : index
    %c0_1677 = arith.constant 0 : index
    %1477 = arith.index_cast %1476 : i32 to index
    %c2_1678 = arith.constant 2 : index
    %1478 = vector.load %arg2[%c0_1676, %c0_1677, %1477, %c2_1678] : memref<1x3x16x16xf32, #tpu.memory_space<vmem>>, vector<1x1x1x14xf32>
    %1479 = vector.shape_cast %1478 : vector<1x1x1x14xf32> to vector<1x14xf32>
    %c2_1679 = arith.constant 2 : index
    %c126_1680 = arith.constant 126 : index
    %1480 = vector.load %arg5[%c2_1679, %c126_1680] : memref<32x196xf32, #tpu.memory_space<vmem>>, vector<1x14xf32>
    tpu.vector_store %arg5[%c2_1679, %c126_1680], %1479 {strides = array<i32>} : memref<32x196xf32, #tpu.memory_space<vmem>>, vector<1x14xf32>,
    %c9_i32_1681 = arith.constant 9 : i32
    %1481 = arith.addi %0, %c9_i32_1681 : i32
    %c1_i32_1682 = arith.constant 1 : i32
    %1482 = arith.addi %1481, %c1_i32_1682 : i32
    %c0_1683 = arith.constant 0 : index
    %c0_1684 = arith.constant 0 : index
    %1483 = arith.index_cast %1482 : i32 to index
    %c0_1685 = arith.constant 0 : index
    %1484 = vector.load %arg2[%c0_1683, %c0_1684, %1483, %c0_1685] : memref<1x3x16x16xf32, #tpu.memory_space<vmem>>, vector<1x1x1x14xf32>
    %1485 = vector.shape_cast %1484 : vector<1x1x1x14xf32> to vector<1x14xf32>
    %c3_1686 = arith.constant 3 : index
    %c126_1687 = arith.constant 126 : index
    %1486 = vector.load %arg5[%c3_1686, %c126_1687] : memref<32x196xf32, #tpu.memory_space<vmem>>, vector<1x14xf32>
    tpu.vector_store %arg5[%c3_1686, %c126_1687], %1485 {strides = array<i32>} : memref<32x196xf32, #tpu.memory_space<vmem>>, vector<1x14xf32>,
    %c9_i32_1688 = arith.constant 9 : i32
    %1487 = arith.addi %0, %c9_i32_1688 : i32
    %c1_i32_1689 = arith.constant 1 : i32
    %1488 = arith.addi %1487, %c1_i32_1689 : i32
    %c0_1690 = arith.constant 0 : index
    %c0_1691 = arith.constant 0 : index
    %1489 = arith.index_cast %1488 : i32 to index
    %c1_1692 = arith.constant 1 : index
    %1490 = vector.load %arg2[%c0_1690, %c0_1691, %1489, %c1_1692] : memref<1x3x16x16xf32, #tpu.memory_space<vmem>>, vector<1x1x1x14xf32>
    %1491 = vector.shape_cast %1490 : vector<1x1x1x14xf32> to vector<1x14xf32>
    %c4_1693 = arith.constant 4 : index
    %c126_1694 = arith.constant 126 : index
    %1492 = vector.load %arg5[%c4_1693, %c126_1694] : memref<32x196xf32, #tpu.memory_space<vmem>>, vector<1x14xf32>
    tpu.vector_store %arg5[%c4_1693, %c126_1694], %1491 {strides = array<i32>} : memref<32x196xf32, #tpu.memory_space<vmem>>, vector<1x14xf32>,
    %c9_i32_1695 = arith.constant 9 : i32
    %1493 = arith.addi %0, %c9_i32_1695 : i32
    %c1_i32_1696 = arith.constant 1 : i32
    %1494 = arith.addi %1493, %c1_i32_1696 : i32
    %c0_1697 = arith.constant 0 : index
    %c0_1698 = arith.constant 0 : index
    %1495 = arith.index_cast %1494 : i32 to index
    %c2_1699 = arith.constant 2 : index
    %1496 = vector.load %arg2[%c0_1697, %c0_1698, %1495, %c2_1699] : memref<1x3x16x16xf32, #tpu.memory_space<vmem>>, vector<1x1x1x14xf32>
    %1497 = vector.shape_cast %1496 : vector<1x1x1x14xf32> to vector<1x14xf32>
    %c5_1700 = arith.constant 5 : index
    %c126_1701 = arith.constant 126 : index
    %1498 = vector.load %arg5[%c5_1700, %c126_1701] : memref<32x196xf32, #tpu.memory_space<vmem>>, vector<1x14xf32>
    tpu.vector_store %arg5[%c5_1700, %c126_1701], %1497 {strides = array<i32>} : memref<32x196xf32, #tpu.memory_space<vmem>>, vector<1x14xf32>,
    %c9_i32_1702 = arith.constant 9 : i32
    %1499 = arith.addi %0, %c9_i32_1702 : i32
    %c2_i32_1703 = arith.constant 2 : i32
    %1500 = arith.addi %1499, %c2_i32_1703 : i32
    %c0_1704 = arith.constant 0 : index
    %c0_1705 = arith.constant 0 : index
    %1501 = arith.index_cast %1500 : i32 to index
    %c0_1706 = arith.constant 0 : index
    %1502 = vector.load %arg2[%c0_1704, %c0_1705, %1501, %c0_1706] : memref<1x3x16x16xf32, #tpu.memory_space<vmem>>, vector<1x1x1x14xf32>
    %1503 = vector.shape_cast %1502 : vector<1x1x1x14xf32> to vector<1x14xf32>
    %c6_1707 = arith.constant 6 : index
    %c126_1708 = arith.constant 126 : index
    %1504 = vector.load %arg5[%c6_1707, %c126_1708] : memref<32x196xf32, #tpu.memory_space<vmem>>, vector<1x14xf32>
    tpu.vector_store %arg5[%c6_1707, %c126_1708], %1503 {strides = array<i32>} : memref<32x196xf32, #tpu.memory_space<vmem>>, vector<1x14xf32>,
    %c9_i32_1709 = arith.constant 9 : i32
    %1505 = arith.addi %0, %c9_i32_1709 : i32
    %c2_i32_1710 = arith.constant 2 : i32
    %1506 = arith.addi %1505, %c2_i32_1710 : i32
    %c0_1711 = arith.constant 0 : index
    %c0_1712 = arith.constant 0 : index
    %1507 = arith.index_cast %1506 : i32 to index
    %c1_1713 = arith.constant 1 : index
    %1508 = vector.load %arg2[%c0_1711, %c0_1712, %1507, %c1_1713] : memref<1x3x16x16xf32, #tpu.memory_space<vmem>>, vector<1x1x1x14xf32>
    %1509 = vector.shape_cast %1508 : vector<1x1x1x14xf32> to vector<1x14xf32>
    %c7_1714 = arith.constant 7 : index
    %c126_1715 = arith.constant 126 : index
    %1510 = vector.load %arg5[%c7_1714, %c126_1715] : memref<32x196xf32, #tpu.memory_space<vmem>>, vector<1x14xf32>
    tpu.vector_store %arg5[%c7_1714, %c126_1715], %1509 {strides = array<i32>} : memref<32x196xf32, #tpu.memory_space<vmem>>, vector<1x14xf32>,
    %c9_i32_1716 = arith.constant 9 : i32
    %1511 = arith.addi %0, %c9_i32_1716 : i32
    %c2_i32_1717 = arith.constant 2 : i32
    %1512 = arith.addi %1511, %c2_i32_1717 : i32
    %c0_1718 = arith.constant 0 : index
    %c0_1719 = arith.constant 0 : index
    %1513 = arith.index_cast %1512 : i32 to index
    %c2_1720 = arith.constant 2 : index
    %1514 = vector.load %arg2[%c0_1718, %c0_1719, %1513, %c2_1720] : memref<1x3x16x16xf32, #tpu.memory_space<vmem>>, vector<1x1x1x14xf32>
    %1515 = vector.shape_cast %1514 : vector<1x1x1x14xf32> to vector<1x14xf32>
    %c8_1721 = arith.constant 8 : index
    %c126_1722 = arith.constant 126 : index
    %1516 = vector.load %arg5[%c8_1721, %c126_1722] : memref<32x196xf32, #tpu.memory_space<vmem>>, vector<1x14xf32>
    tpu.vector_store %arg5[%c8_1721, %c126_1722], %1515 {strides = array<i32>} : memref<32x196xf32, #tpu.memory_space<vmem>>, vector<1x14xf32>,
    %c9_i32_1723 = arith.constant 9 : i32
    %1517 = arith.addi %0, %c9_i32_1723 : i32
    %c0_i32_1724 = arith.constant 0 : i32
    %1518 = arith.addi %1517, %c0_i32_1724 : i32
    %c0_1725 = arith.constant 0 : index
    %c1_1726 = arith.constant 1 : index
    %1519 = arith.index_cast %1518 : i32 to index
    %c0_1727 = arith.constant 0 : index
    %1520 = vector.load %arg2[%c0_1725, %c1_1726, %1519, %c0_1727] : memref<1x3x16x16xf32, #tpu.memory_space<vmem>>, vector<1x1x1x14xf32>
    %1521 = vector.shape_cast %1520 : vector<1x1x1x14xf32> to vector<1x14xf32>
    %c9_1728 = arith.constant 9 : index
    %c126_1729 = arith.constant 126 : index
    %1522 = vector.load %arg5[%c9_1728, %c126_1729] : memref<32x196xf32, #tpu.memory_space<vmem>>, vector<1x14xf32>
    tpu.vector_store %arg5[%c9_1728, %c126_1729], %1521 {strides = array<i32>} : memref<32x196xf32, #tpu.memory_space<vmem>>, vector<1x14xf32>,
    %c9_i32_1730 = arith.constant 9 : i32
    %1523 = arith.addi %0, %c9_i32_1730 : i32
    %c0_i32_1731 = arith.constant 0 : i32
    %1524 = arith.addi %1523, %c0_i32_1731 : i32
    %c0_1732 = arith.constant 0 : index
    %c1_1733 = arith.constant 1 : index
    %1525 = arith.index_cast %1524 : i32 to index
    %c1_1734 = arith.constant 1 : index
    %1526 = vector.load %arg2[%c0_1732, %c1_1733, %1525, %c1_1734] : memref<1x3x16x16xf32, #tpu.memory_space<vmem>>, vector<1x1x1x14xf32>
    %1527 = vector.shape_cast %1526 : vector<1x1x1x14xf32> to vector<1x14xf32>
    %c10_1735 = arith.constant 10 : index
    %c126_1736 = arith.constant 126 : index
    %1528 = vector.load %arg5[%c10_1735, %c126_1736] : memref<32x196xf32, #tpu.memory_space<vmem>>, vector<1x14xf32>
    tpu.vector_store %arg5[%c10_1735, %c126_1736], %1527 {strides = array<i32>} : memref<32x196xf32, #tpu.memory_space<vmem>>, vector<1x14xf32>,
    %c9_i32_1737 = arith.constant 9 : i32
    %1529 = arith.addi %0, %c9_i32_1737 : i32
    %c0_i32_1738 = arith.constant 0 : i32
    %1530 = arith.addi %1529, %c0_i32_1738 : i32
    %c0_1739 = arith.constant 0 : index
    %c1_1740 = arith.constant 1 : index
    %1531 = arith.index_cast %1530 : i32 to index
    %c2_1741 = arith.constant 2 : index
    %1532 = vector.load %arg2[%c0_1739, %c1_1740, %1531, %c2_1741] : memref<1x3x16x16xf32, #tpu.memory_space<vmem>>, vector<1x1x1x14xf32>
    %1533 = vector.shape_cast %1532 : vector<1x1x1x14xf32> to vector<1x14xf32>
    %c11_1742 = arith.constant 11 : index
    %c126_1743 = arith.constant 126 : index
    %1534 = vector.load %arg5[%c11_1742, %c126_1743] : memref<32x196xf32, #tpu.memory_space<vmem>>, vector<1x14xf32>
    tpu.vector_store %arg5[%c11_1742, %c126_1743], %1533 {strides = array<i32>} : memref<32x196xf32, #tpu.memory_space<vmem>>, vector<1x14xf32>,
    %c9_i32_1744 = arith.constant 9 : i32
    %1535 = arith.addi %0, %c9_i32_1744 : i32
    %c1_i32_1745 = arith.constant 1 : i32
    %1536 = arith.addi %1535, %c1_i32_1745 : i32
    %c0_1746 = arith.constant 0 : index
    %c1_1747 = arith.constant 1 : index
    %1537 = arith.index_cast %1536 : i32 to index
    %c0_1748 = arith.constant 0 : index
    %1538 = vector.load %arg2[%c0_1746, %c1_1747, %1537, %c0_1748] : memref<1x3x16x16xf32, #tpu.memory_space<vmem>>, vector<1x1x1x14xf32>
    %1539 = vector.shape_cast %1538 : vector<1x1x1x14xf32> to vector<1x14xf32>
    %c12_1749 = arith.constant 12 : index
    %c126_1750 = arith.constant 126 : index
    %1540 = vector.load %arg5[%c12_1749, %c126_1750] : memref<32x196xf32, #tpu.memory_space<vmem>>, vector<1x14xf32>
    tpu.vector_store %arg5[%c12_1749, %c126_1750], %1539 {strides = array<i32>} : memref<32x196xf32, #tpu.memory_space<vmem>>, vector<1x14xf32>,
    %c9_i32_1751 = arith.constant 9 : i32
    %1541 = arith.addi %0, %c9_i32_1751 : i32
    %c1_i32_1752 = arith.constant 1 : i32
    %1542 = arith.addi %1541, %c1_i32_1752 : i32
    %c0_1753 = arith.constant 0 : index
    %c1_1754 = arith.constant 1 : index
    %1543 = arith.index_cast %1542 : i32 to index
    %c1_1755 = arith.constant 1 : index
    %1544 = vector.load %arg2[%c0_1753, %c1_1754, %1543, %c1_1755] : memref<1x3x16x16xf32, #tpu.memory_space<vmem>>, vector<1x1x1x14xf32>
    %1545 = vector.shape_cast %1544 : vector<1x1x1x14xf32> to vector<1x14xf32>
    %c13_1756 = arith.constant 13 : index
    %c126_1757 = arith.constant 126 : index
    %1546 = vector.load %arg5[%c13_1756, %c126_1757] : memref<32x196xf32, #tpu.memory_space<vmem>>, vector<1x14xf32>
    tpu.vector_store %arg5[%c13_1756, %c126_1757], %1545 {strides = array<i32>} : memref<32x196xf32, #tpu.memory_space<vmem>>, vector<1x14xf32>,
    %c9_i32_1758 = arith.constant 9 : i32
    %1547 = arith.addi %0, %c9_i32_1758 : i32
    %c1_i32_1759 = arith.constant 1 : i32
    %1548 = arith.addi %1547, %c1_i32_1759 : i32
    %c0_1760 = arith.constant 0 : index
    %c1_1761 = arith.constant 1 : index
    %1549 = arith.index_cast %1548 : i32 to index
    %c2_1762 = arith.constant 2 : index
    %1550 = vector.load %arg2[%c0_1760, %c1_1761, %1549, %c2_1762] : memref<1x3x16x16xf32, #tpu.memory_space<vmem>>, vector<1x1x1x14xf32>
    %1551 = vector.shape_cast %1550 : vector<1x1x1x14xf32> to vector<1x14xf32>
    %c14_1763 = arith.constant 14 : index
    %c126_1764 = arith.constant 126 : index
    %1552 = vector.load %arg5[%c14_1763, %c126_1764] : memref<32x196xf32, #tpu.memory_space<vmem>>, vector<1x14xf32>
    tpu.vector_store %arg5[%c14_1763, %c126_1764], %1551 {strides = array<i32>} : memref<32x196xf32, #tpu.memory_space<vmem>>, vector<1x14xf32>,
    %c9_i32_1765 = arith.constant 9 : i32
    %1553 = arith.addi %0, %c9_i32_1765 : i32
    %c2_i32_1766 = arith.constant 2 : i32
    %1554 = arith.addi %1553, %c2_i32_1766 : i32
    %c0_1767 = arith.constant 0 : index
    %c1_1768 = arith.constant 1 : index
    %1555 = arith.index_cast %1554 : i32 to index
    %c0_1769 = arith.constant 0 : index
    %1556 = vector.load %arg2[%c0_1767, %c1_1768, %1555, %c0_1769] : memref<1x3x16x16xf32, #tpu.memory_space<vmem>>, vector<1x1x1x14xf32>
    %1557 = vector.shape_cast %1556 : vector<1x1x1x14xf32> to vector<1x14xf32>
    %c15_1770 = arith.constant 15 : index
    %c126_1771 = arith.constant 126 : index
    %1558 = vector.load %arg5[%c15_1770, %c126_1771] : memref<32x196xf32, #tpu.memory_space<vmem>>, vector<1x14xf32>
    tpu.vector_store %arg5[%c15_1770, %c126_1771], %1557 {strides = array<i32>} : memref<32x196xf32, #tpu.memory_space<vmem>>, vector<1x14xf32>,
    %c9_i32_1772 = arith.constant 9 : i32
    %1559 = arith.addi %0, %c9_i32_1772 : i32
    %c2_i32_1773 = arith.constant 2 : i32
    %1560 = arith.addi %1559, %c2_i32_1773 : i32
    %c0_1774 = arith.constant 0 : index
    %c1_1775 = arith.constant 1 : index
    %1561 = arith.index_cast %1560 : i32 to index
    %c1_1776 = arith.constant 1 : index
    %1562 = vector.load %arg2[%c0_1774, %c1_1775, %1561, %c1_1776] : memref<1x3x16x16xf32, #tpu.memory_space<vmem>>, vector<1x1x1x14xf32>
    %1563 = vector.shape_cast %1562 : vector<1x1x1x14xf32> to vector<1x14xf32>
    %c16_1777 = arith.constant 16 : index
    %c126_1778 = arith.constant 126 : index
    %1564 = vector.load %arg5[%c16_1777, %c126_1778] : memref<32x196xf32, #tpu.memory_space<vmem>>, vector<1x14xf32>
    tpu.vector_store %arg5[%c16_1777, %c126_1778], %1563 {strides = array<i32>} : memref<32x196xf32, #tpu.memory_space<vmem>>, vector<1x14xf32>,
    %c9_i32_1779 = arith.constant 9 : i32
    %1565 = arith.addi %0, %c9_i32_1779 : i32
    %c2_i32_1780 = arith.constant 2 : i32
    %1566 = arith.addi %1565, %c2_i32_1780 : i32
    %c0_1781 = arith.constant 0 : index
    %c1_1782 = arith.constant 1 : index
    %1567 = arith.index_cast %1566 : i32 to index
    %c2_1783 = arith.constant 2 : index
    %1568 = vector.load %arg2[%c0_1781, %c1_1782, %1567, %c2_1783] : memref<1x3x16x16xf32, #tpu.memory_space<vmem>>, vector<1x1x1x14xf32>
    %1569 = vector.shape_cast %1568 : vector<1x1x1x14xf32> to vector<1x14xf32>
    %c17_1784 = arith.constant 17 : index
    %c126_1785 = arith.constant 126 : index
    %1570 = vector.load %arg5[%c17_1784, %c126_1785] : memref<32x196xf32, #tpu.memory_space<vmem>>, vector<1x14xf32>
    tpu.vector_store %arg5[%c17_1784, %c126_1785], %1569 {strides = array<i32>} : memref<32x196xf32, #tpu.memory_space<vmem>>, vector<1x14xf32>,
    %c9_i32_1786 = arith.constant 9 : i32
    %1571 = arith.addi %0, %c9_i32_1786 : i32
    %c0_i32_1787 = arith.constant 0 : i32
    %1572 = arith.addi %1571, %c0_i32_1787 : i32
    %c0_1788 = arith.constant 0 : index
    %c2_1789 = arith.constant 2 : index
    %1573 = arith.index_cast %1572 : i32 to index
    %c0_1790 = arith.constant 0 : index
    %1574 = vector.load %arg2[%c0_1788, %c2_1789, %1573, %c0_1790] : memref<1x3x16x16xf32, #tpu.memory_space<vmem>>, vector<1x1x1x14xf32>
    %1575 = vector.shape_cast %1574 : vector<1x1x1x14xf32> to vector<1x14xf32>
    %c18_1791 = arith.constant 18 : index
    %c126_1792 = arith.constant 126 : index
    %1576 = vector.load %arg5[%c18_1791, %c126_1792] : memref<32x196xf32, #tpu.memory_space<vmem>>, vector<1x14xf32>
    tpu.vector_store %arg5[%c18_1791, %c126_1792], %1575 {strides = array<i32>} : memref<32x196xf32, #tpu.memory_space<vmem>>, vector<1x14xf32>,
    %c9_i32_1793 = arith.constant 9 : i32
    %1577 = arith.addi %0, %c9_i32_1793 : i32
    %c0_i32_1794 = arith.constant 0 : i32
    %1578 = arith.addi %1577, %c0_i32_1794 : i32
    %c0_1795 = arith.constant 0 : index
    %c2_1796 = arith.constant 2 : index
    %1579 = arith.index_cast %1578 : i32 to index
    %c1_1797 = arith.constant 1 : index
    %1580 = vector.load %arg2[%c0_1795, %c2_1796, %1579, %c1_1797] : memref<1x3x16x16xf32, #tpu.memory_space<vmem>>, vector<1x1x1x14xf32>
    %1581 = vector.shape_cast %1580 : vector<1x1x1x14xf32> to vector<1x14xf32>
    %c19_1798 = arith.constant 19 : index
    %c126_1799 = arith.constant 126 : index
    %1582 = vector.load %arg5[%c19_1798, %c126_1799] : memref<32x196xf32, #tpu.memory_space<vmem>>, vector<1x14xf32>
    tpu.vector_store %arg5[%c19_1798, %c126_1799], %1581 {strides = array<i32>} : memref<32x196xf32, #tpu.memory_space<vmem>>, vector<1x14xf32>,
    %c9_i32_1800 = arith.constant 9 : i32
    %1583 = arith.addi %0, %c9_i32_1800 : i32
    %c0_i32_1801 = arith.constant 0 : i32
    %1584 = arith.addi %1583, %c0_i32_1801 : i32
    %c0_1802 = arith.constant 0 : index
    %c2_1803 = arith.constant 2 : index
    %1585 = arith.index_cast %1584 : i32 to index
    %c2_1804 = arith.constant 2 : index
    %1586 = vector.load %arg2[%c0_1802, %c2_1803, %1585, %c2_1804] : memref<1x3x16x16xf32, #tpu.memory_space<vmem>>, vector<1x1x1x14xf32>
    %1587 = vector.shape_cast %1586 : vector<1x1x1x14xf32> to vector<1x14xf32>
    %c20_1805 = arith.constant 20 : index
    %c126_1806 = arith.constant 126 : index
    %1588 = vector.load %arg5[%c20_1805, %c126_1806] : memref<32x196xf32, #tpu.memory_space<vmem>>, vector<1x14xf32>
    tpu.vector_store %arg5[%c20_1805, %c126_1806], %1587 {strides = array<i32>} : memref<32x196xf32, #tpu.memory_space<vmem>>, vector<1x14xf32>,
    %c9_i32_1807 = arith.constant 9 : i32
    %1589 = arith.addi %0, %c9_i32_1807 : i32
    %c1_i32_1808 = arith.constant 1 : i32
    %1590 = arith.addi %1589, %c1_i32_1808 : i32
    %c0_1809 = arith.constant 0 : index
    %c2_1810 = arith.constant 2 : index
    %1591 = arith.index_cast %1590 : i32 to index
    %c0_1811 = arith.constant 0 : index
    %1592 = vector.load %arg2[%c0_1809, %c2_1810, %1591, %c0_1811] : memref<1x3x16x16xf32, #tpu.memory_space<vmem>>, vector<1x1x1x14xf32>
    %1593 = vector.shape_cast %1592 : vector<1x1x1x14xf32> to vector<1x14xf32>
    %c21_1812 = arith.constant 21 : index
    %c126_1813 = arith.constant 126 : index
    %1594 = vector.load %arg5[%c21_1812, %c126_1813] : memref<32x196xf32, #tpu.memory_space<vmem>>, vector<1x14xf32>
    tpu.vector_store %arg5[%c21_1812, %c126_1813], %1593 {strides = array<i32>} : memref<32x196xf32, #tpu.memory_space<vmem>>, vector<1x14xf32>,
    %c9_i32_1814 = arith.constant 9 : i32
    %1595 = arith.addi %0, %c9_i32_1814 : i32
    %c1_i32_1815 = arith.constant 1 : i32
    %1596 = arith.addi %1595, %c1_i32_1815 : i32
    %c0_1816 = arith.constant 0 : index
    %c2_1817 = arith.constant 2 : index
    %1597 = arith.index_cast %1596 : i32 to index
    %c1_1818 = arith.constant 1 : index
    %1598 = vector.load %arg2[%c0_1816, %c2_1817, %1597, %c1_1818] : memref<1x3x16x16xf32, #tpu.memory_space<vmem>>, vector<1x1x1x14xf32>
    %1599 = vector.shape_cast %1598 : vector<1x1x1x14xf32> to vector<1x14xf32>
    %c22_1819 = arith.constant 22 : index
    %c126_1820 = arith.constant 126 : index
    %1600 = vector.load %arg5[%c22_1819, %c126_1820] : memref<32x196xf32, #tpu.memory_space<vmem>>, vector<1x14xf32>
    tpu.vector_store %arg5[%c22_1819, %c126_1820], %1599 {strides = array<i32>} : memref<32x196xf32, #tpu.memory_space<vmem>>, vector<1x14xf32>,
    %c9_i32_1821 = arith.constant 9 : i32
    %1601 = arith.addi %0, %c9_i32_1821 : i32
    %c1_i32_1822 = arith.constant 1 : i32
    %1602 = arith.addi %1601, %c1_i32_1822 : i32
    %c0_1823 = arith.constant 0 : index
    %c2_1824 = arith.constant 2 : index
    %1603 = arith.index_cast %1602 : i32 to index
    %c2_1825 = arith.constant 2 : index
    %1604 = vector.load %arg2[%c0_1823, %c2_1824, %1603, %c2_1825] : memref<1x3x16x16xf32, #tpu.memory_space<vmem>>, vector<1x1x1x14xf32>
    %1605 = vector.shape_cast %1604 : vector<1x1x1x14xf32> to vector<1x14xf32>
    %c23_1826 = arith.constant 23 : index
    %c126_1827 = arith.constant 126 : index
    %1606 = vector.load %arg5[%c23_1826, %c126_1827] : memref<32x196xf32, #tpu.memory_space<vmem>>, vector<1x14xf32>
    tpu.vector_store %arg5[%c23_1826, %c126_1827], %1605 {strides = array<i32>} : memref<32x196xf32, #tpu.memory_space<vmem>>, vector<1x14xf32>,
    %c9_i32_1828 = arith.constant 9 : i32
    %1607 = arith.addi %0, %c9_i32_1828 : i32
    %c2_i32_1829 = arith.constant 2 : i32
    %1608 = arith.addi %1607, %c2_i32_1829 : i32
    %c0_1830 = arith.constant 0 : index
    %c2_1831 = arith.constant 2 : index
    %1609 = arith.index_cast %1608 : i32 to index
    %c0_1832 = arith.constant 0 : index
    %1610 = vector.load %arg2[%c0_1830, %c2_1831, %1609, %c0_1832] : memref<1x3x16x16xf32, #tpu.memory_space<vmem>>, vector<1x1x1x14xf32>
    %1611 = vector.shape_cast %1610 : vector<1x1x1x14xf32> to vector<1x14xf32>
    %c24_1833 = arith.constant 24 : index
    %c126_1834 = arith.constant 126 : index
    %1612 = vector.load %arg5[%c24_1833, %c126_1834] : memref<32x196xf32, #tpu.memory_space<vmem>>, vector<1x14xf32>
    tpu.vector_store %arg5[%c24_1833, %c126_1834], %1611 {strides = array<i32>} : memref<32x196xf32, #tpu.memory_space<vmem>>, vector<1x14xf32>,
    %c9_i32_1835 = arith.constant 9 : i32
    %1613 = arith.addi %0, %c9_i32_1835 : i32
    %c2_i32_1836 = arith.constant 2 : i32
    %1614 = arith.addi %1613, %c2_i32_1836 : i32
    %c0_1837 = arith.constant 0 : index
    %c2_1838 = arith.constant 2 : index
    %1615 = arith.index_cast %1614 : i32 to index
    %c1_1839 = arith.constant 1 : index
    %1616 = vector.load %arg2[%c0_1837, %c2_1838, %1615, %c1_1839] : memref<1x3x16x16xf32, #tpu.memory_space<vmem>>, vector<1x1x1x14xf32>
    %1617 = vector.shape_cast %1616 : vector<1x1x1x14xf32> to vector<1x14xf32>
    %c25_1840 = arith.constant 25 : index
    %c126_1841 = arith.constant 126 : index
    %1618 = vector.load %arg5[%c25_1840, %c126_1841] : memref<32x196xf32, #tpu.memory_space<vmem>>, vector<1x14xf32>
    tpu.vector_store %arg5[%c25_1840, %c126_1841], %1617 {strides = array<i32>} : memref<32x196xf32, #tpu.memory_space<vmem>>, vector<1x14xf32>,
    %c9_i32_1842 = arith.constant 9 : i32
    %1619 = arith.addi %0, %c9_i32_1842 : i32
    %c2_i32_1843 = arith.constant 2 : i32
    %1620 = arith.addi %1619, %c2_i32_1843 : i32
    %c0_1844 = arith.constant 0 : index
    %c2_1845 = arith.constant 2 : index
    %1621 = arith.index_cast %1620 : i32 to index
    %c2_1846 = arith.constant 2 : index
    %1622 = vector.load %arg2[%c0_1844, %c2_1845, %1621, %c2_1846] : memref<1x3x16x16xf32, #tpu.memory_space<vmem>>, vector<1x1x1x14xf32>
    %1623 = vector.shape_cast %1622 : vector<1x1x1x14xf32> to vector<1x14xf32>
    %c26_1847 = arith.constant 26 : index
    %c126_1848 = arith.constant 126 : index
    %1624 = vector.load %arg5[%c26_1847, %c126_1848] : memref<32x196xf32, #tpu.memory_space<vmem>>, vector<1x14xf32>
    tpu.vector_store %arg5[%c26_1847, %c126_1848], %1623 {strides = array<i32>} : memref<32x196xf32, #tpu.memory_space<vmem>>, vector<1x14xf32>,
    %c10_i32 = arith.constant 10 : i32
    %1625 = arith.addi %0, %c10_i32 : i32
    %c0_i32_1849 = arith.constant 0 : i32
    %1626 = arith.addi %1625, %c0_i32_1849 : i32
    %c0_1850 = arith.constant 0 : index
    %c0_1851 = arith.constant 0 : index
    %1627 = arith.index_cast %1626 : i32 to index
    %c0_1852 = arith.constant 0 : index
    %1628 = vector.load %arg2[%c0_1850, %c0_1851, %1627, %c0_1852] : memref<1x3x16x16xf32, #tpu.memory_space<vmem>>, vector<1x1x1x14xf32>
    %1629 = vector.shape_cast %1628 : vector<1x1x1x14xf32> to vector<1x14xf32>
    %c0_1853 = arith.constant 0 : index
    %c140 = arith.constant 140 : index
    %1630 = vector.load %arg5[%c0_1853, %c140] : memref<32x196xf32, #tpu.memory_space<vmem>>, vector<1x14xf32>
    tpu.vector_store %arg5[%c0_1853, %c140], %1629 {strides = array<i32>} : memref<32x196xf32, #tpu.memory_space<vmem>>, vector<1x14xf32>,
    %c10_i32_1854 = arith.constant 10 : i32
    %1631 = arith.addi %0, %c10_i32_1854 : i32
    %c0_i32_1855 = arith.constant 0 : i32
    %1632 = arith.addi %1631, %c0_i32_1855 : i32
    %c0_1856 = arith.constant 0 : index
    %c0_1857 = arith.constant 0 : index
    %1633 = arith.index_cast %1632 : i32 to index
    %c1_1858 = arith.constant 1 : index
    %1634 = vector.load %arg2[%c0_1856, %c0_1857, %1633, %c1_1858] : memref<1x3x16x16xf32, #tpu.memory_space<vmem>>, vector<1x1x1x14xf32>
    %1635 = vector.shape_cast %1634 : vector<1x1x1x14xf32> to vector<1x14xf32>
    %c1_1859 = arith.constant 1 : index
    %c140_1860 = arith.constant 140 : index
    %1636 = vector.load %arg5[%c1_1859, %c140_1860] : memref<32x196xf32, #tpu.memory_space<vmem>>, vector<1x14xf32>
    tpu.vector_store %arg5[%c1_1859, %c140_1860], %1635 {strides = array<i32>} : memref<32x196xf32, #tpu.memory_space<vmem>>, vector<1x14xf32>,
    %c10_i32_1861 = arith.constant 10 : i32
    %1637 = arith.addi %0, %c10_i32_1861 : i32
    %c0_i32_1862 = arith.constant 0 : i32
    %1638 = arith.addi %1637, %c0_i32_1862 : i32
    %c0_1863 = arith.constant 0 : index
    %c0_1864 = arith.constant 0 : index
    %1639 = arith.index_cast %1638 : i32 to index
    %c2_1865 = arith.constant 2 : index
    %1640 = vector.load %arg2[%c0_1863, %c0_1864, %1639, %c2_1865] : memref<1x3x16x16xf32, #tpu.memory_space<vmem>>, vector<1x1x1x14xf32>
    %1641 = vector.shape_cast %1640 : vector<1x1x1x14xf32> to vector<1x14xf32>
    %c2_1866 = arith.constant 2 : index
    %c140_1867 = arith.constant 140 : index
    %1642 = vector.load %arg5[%c2_1866, %c140_1867] : memref<32x196xf32, #tpu.memory_space<vmem>>, vector<1x14xf32>
    tpu.vector_store %arg5[%c2_1866, %c140_1867], %1641 {strides = array<i32>} : memref<32x196xf32, #tpu.memory_space<vmem>>, vector<1x14xf32>,
    %c10_i32_1868 = arith.constant 10 : i32
    %1643 = arith.addi %0, %c10_i32_1868 : i32
    %c1_i32_1869 = arith.constant 1 : i32
    %1644 = arith.addi %1643, %c1_i32_1869 : i32
    %c0_1870 = arith.constant 0 : index
    %c0_1871 = arith.constant 0 : index
    %1645 = arith.index_cast %1644 : i32 to index
    %c0_1872 = arith.constant 0 : index
    %1646 = vector.load %arg2[%c0_1870, %c0_1871, %1645, %c0_1872] : memref<1x3x16x16xf32, #tpu.memory_space<vmem>>, vector<1x1x1x14xf32>
    %1647 = vector.shape_cast %1646 : vector<1x1x1x14xf32> to vector<1x14xf32>
    %c3_1873 = arith.constant 3 : index
    %c140_1874 = arith.constant 140 : index
    %1648 = vector.load %arg5[%c3_1873, %c140_1874] : memref<32x196xf32, #tpu.memory_space<vmem>>, vector<1x14xf32>
    tpu.vector_store %arg5[%c3_1873, %c140_1874], %1647 {strides = array<i32>} : memref<32x196xf32, #tpu.memory_space<vmem>>, vector<1x14xf32>,
    %c10_i32_1875 = arith.constant 10 : i32
    %1649 = arith.addi %0, %c10_i32_1875 : i32
    %c1_i32_1876 = arith.constant 1 : i32
    %1650 = arith.addi %1649, %c1_i32_1876 : i32
    %c0_1877 = arith.constant 0 : index
    %c0_1878 = arith.constant 0 : index
    %1651 = arith.index_cast %1650 : i32 to index
    %c1_1879 = arith.constant 1 : index
    %1652 = vector.load %arg2[%c0_1877, %c0_1878, %1651, %c1_1879] : memref<1x3x16x16xf32, #tpu.memory_space<vmem>>, vector<1x1x1x14xf32>
    %1653 = vector.shape_cast %1652 : vector<1x1x1x14xf32> to vector<1x14xf32>
    %c4_1880 = arith.constant 4 : index
    %c140_1881 = arith.constant 140 : index
    %1654 = vector.load %arg5[%c4_1880, %c140_1881] : memref<32x196xf32, #tpu.memory_space<vmem>>, vector<1x14xf32>
    tpu.vector_store %arg5[%c4_1880, %c140_1881], %1653 {strides = array<i32>} : memref<32x196xf32, #tpu.memory_space<vmem>>, vector<1x14xf32>,
    %c10_i32_1882 = arith.constant 10 : i32
    %1655 = arith.addi %0, %c10_i32_1882 : i32
    %c1_i32_1883 = arith.constant 1 : i32
    %1656 = arith.addi %1655, %c1_i32_1883 : i32
    %c0_1884 = arith.constant 0 : index
    %c0_1885 = arith.constant 0 : index
    %1657 = arith.index_cast %1656 : i32 to index
    %c2_1886 = arith.constant 2 : index
    %1658 = vector.load %arg2[%c0_1884, %c0_1885, %1657, %c2_1886] : memref<1x3x16x16xf32, #tpu.memory_space<vmem>>, vector<1x1x1x14xf32>
    %1659 = vector.shape_cast %1658 : vector<1x1x1x14xf32> to vector<1x14xf32>
    %c5_1887 = arith.constant 5 : index
    %c140_1888 = arith.constant 140 : index
    %1660 = vector.load %arg5[%c5_1887, %c140_1888] : memref<32x196xf32, #tpu.memory_space<vmem>>, vector<1x14xf32>
    tpu.vector_store %arg5[%c5_1887, %c140_1888], %1659 {strides = array<i32>} : memref<32x196xf32, #tpu.memory_space<vmem>>, vector<1x14xf32>,
    %c10_i32_1889 = arith.constant 10 : i32
    %1661 = arith.addi %0, %c10_i32_1889 : i32
    %c2_i32_1890 = arith.constant 2 : i32
    %1662 = arith.addi %1661, %c2_i32_1890 : i32
    %c0_1891 = arith.constant 0 : index
    %c0_1892 = arith.constant 0 : index
    %1663 = arith.index_cast %1662 : i32 to index
    %c0_1893 = arith.constant 0 : index
    %1664 = vector.load %arg2[%c0_1891, %c0_1892, %1663, %c0_1893] : memref<1x3x16x16xf32, #tpu.memory_space<vmem>>, vector<1x1x1x14xf32>
    %1665 = vector.shape_cast %1664 : vector<1x1x1x14xf32> to vector<1x14xf32>
    %c6_1894 = arith.constant 6 : index
    %c140_1895 = arith.constant 140 : index
    %1666 = vector.load %arg5[%c6_1894, %c140_1895] : memref<32x196xf32, #tpu.memory_space<vmem>>, vector<1x14xf32>
    tpu.vector_store %arg5[%c6_1894, %c140_1895], %1665 {strides = array<i32>} : memref<32x196xf32, #tpu.memory_space<vmem>>, vector<1x14xf32>,
    %c10_i32_1896 = arith.constant 10 : i32
    %1667 = arith.addi %0, %c10_i32_1896 : i32
    %c2_i32_1897 = arith.constant 2 : i32
    %1668 = arith.addi %1667, %c2_i32_1897 : i32
    %c0_1898 = arith.constant 0 : index
    %c0_1899 = arith.constant 0 : index
    %1669 = arith.index_cast %1668 : i32 to index
    %c1_1900 = arith.constant 1 : index
    %1670 = vector.load %arg2[%c0_1898, %c0_1899, %1669, %c1_1900] : memref<1x3x16x16xf32, #tpu.memory_space<vmem>>, vector<1x1x1x14xf32>
    %1671 = vector.shape_cast %1670 : vector<1x1x1x14xf32> to vector<1x14xf32>
    %c7_1901 = arith.constant 7 : index
    %c140_1902 = arith.constant 140 : index
    %1672 = vector.load %arg5[%c7_1901, %c140_1902] : memref<32x196xf32, #tpu.memory_space<vmem>>, vector<1x14xf32>
    tpu.vector_store %arg5[%c7_1901, %c140_1902], %1671 {strides = array<i32>} : memref<32x196xf32, #tpu.memory_space<vmem>>, vector<1x14xf32>,
    %c10_i32_1903 = arith.constant 10 : i32
    %1673 = arith.addi %0, %c10_i32_1903 : i32
    %c2_i32_1904 = arith.constant 2 : i32
    %1674 = arith.addi %1673, %c2_i32_1904 : i32
    %c0_1905 = arith.constant 0 : index
    %c0_1906 = arith.constant 0 : index
    %1675 = arith.index_cast %1674 : i32 to index
    %c2_1907 = arith.constant 2 : index
    %1676 = vector.load %arg2[%c0_1905, %c0_1906, %1675, %c2_1907] : memref<1x3x16x16xf32, #tpu.memory_space<vmem>>, vector<1x1x1x14xf32>
    %1677 = vector.shape_cast %1676 : vector<1x1x1x14xf32> to vector<1x14xf32>
    %c8_1908 = arith.constant 8 : index
    %c140_1909 = arith.constant 140 : index
    %1678 = vector.load %arg5[%c8_1908, %c140_1909] : memref<32x196xf32, #tpu.memory_space<vmem>>, vector<1x14xf32>
    tpu.vector_store %arg5[%c8_1908, %c140_1909], %1677 {strides = array<i32>} : memref<32x196xf32, #tpu.memory_space<vmem>>, vector<1x14xf32>,
    %c10_i32_1910 = arith.constant 10 : i32
    %1679 = arith.addi %0, %c10_i32_1910 : i32
    %c0_i32_1911 = arith.constant 0 : i32
    %1680 = arith.addi %1679, %c0_i32_1911 : i32
    %c0_1912 = arith.constant 0 : index
    %c1_1913 = arith.constant 1 : index
    %1681 = arith.index_cast %1680 : i32 to index
    %c0_1914 = arith.constant 0 : index
    %1682 = vector.load %arg2[%c0_1912, %c1_1913, %1681, %c0_1914] : memref<1x3x16x16xf32, #tpu.memory_space<vmem>>, vector<1x1x1x14xf32>
    %1683 = vector.shape_cast %1682 : vector<1x1x1x14xf32> to vector<1x14xf32>
    %c9_1915 = arith.constant 9 : index
    %c140_1916 = arith.constant 140 : index
    %1684 = vector.load %arg5[%c9_1915, %c140_1916] : memref<32x196xf32, #tpu.memory_space<vmem>>, vector<1x14xf32>
    tpu.vector_store %arg5[%c9_1915, %c140_1916], %1683 {strides = array<i32>} : memref<32x196xf32, #tpu.memory_space<vmem>>, vector<1x14xf32>,
    %c10_i32_1917 = arith.constant 10 : i32
    %1685 = arith.addi %0, %c10_i32_1917 : i32
    %c0_i32_1918 = arith.constant 0 : i32
    %1686 = arith.addi %1685, %c0_i32_1918 : i32
    %c0_1919 = arith.constant 0 : index
    %c1_1920 = arith.constant 1 : index
    %1687 = arith.index_cast %1686 : i32 to index
    %c1_1921 = arith.constant 1 : index
    %1688 = vector.load %arg2[%c0_1919, %c1_1920, %1687, %c1_1921] : memref<1x3x16x16xf32, #tpu.memory_space<vmem>>, vector<1x1x1x14xf32>
    %1689 = vector.shape_cast %1688 : vector<1x1x1x14xf32> to vector<1x14xf32>
    %c10_1922 = arith.constant 10 : index
    %c140_1923 = arith.constant 140 : index
    %1690 = vector.load %arg5[%c10_1922, %c140_1923] : memref<32x196xf32, #tpu.memory_space<vmem>>, vector<1x14xf32>
    tpu.vector_store %arg5[%c10_1922, %c140_1923], %1689 {strides = array<i32>} : memref<32x196xf32, #tpu.memory_space<vmem>>, vector<1x14xf32>,
    %c10_i32_1924 = arith.constant 10 : i32
    %1691 = arith.addi %0, %c10_i32_1924 : i32
    %c0_i32_1925 = arith.constant 0 : i32
    %1692 = arith.addi %1691, %c0_i32_1925 : i32
    %c0_1926 = arith.constant 0 : index
    %c1_1927 = arith.constant 1 : index
    %1693 = arith.index_cast %1692 : i32 to index
    %c2_1928 = arith.constant 2 : index
    %1694 = vector.load %arg2[%c0_1926, %c1_1927, %1693, %c2_1928] : memref<1x3x16x16xf32, #tpu.memory_space<vmem>>, vector<1x1x1x14xf32>
    %1695 = vector.shape_cast %1694 : vector<1x1x1x14xf32> to vector<1x14xf32>
    %c11_1929 = arith.constant 11 : index
    %c140_1930 = arith.constant 140 : index
    %1696 = vector.load %arg5[%c11_1929, %c140_1930] : memref<32x196xf32, #tpu.memory_space<vmem>>, vector<1x14xf32>
    tpu.vector_store %arg5[%c11_1929, %c140_1930], %1695 {strides = array<i32>} : memref<32x196xf32, #tpu.memory_space<vmem>>, vector<1x14xf32>,
    %c10_i32_1931 = arith.constant 10 : i32
    %1697 = arith.addi %0, %c10_i32_1931 : i32
    %c1_i32_1932 = arith.constant 1 : i32
    %1698 = arith.addi %1697, %c1_i32_1932 : i32
    %c0_1933 = arith.constant 0 : index
    %c1_1934 = arith.constant 1 : index
    %1699 = arith.index_cast %1698 : i32 to index
    %c0_1935 = arith.constant 0 : index
    %1700 = vector.load %arg2[%c0_1933, %c1_1934, %1699, %c0_1935] : memref<1x3x16x16xf32, #tpu.memory_space<vmem>>, vector<1x1x1x14xf32>
    %1701 = vector.shape_cast %1700 : vector<1x1x1x14xf32> to vector<1x14xf32>
    %c12_1936 = arith.constant 12 : index
    %c140_1937 = arith.constant 140 : index
    %1702 = vector.load %arg5[%c12_1936, %c140_1937] : memref<32x196xf32, #tpu.memory_space<vmem>>, vector<1x14xf32>
    tpu.vector_store %arg5[%c12_1936, %c140_1937], %1701 {strides = array<i32>} : memref<32x196xf32, #tpu.memory_space<vmem>>, vector<1x14xf32>,
    %c10_i32_1938 = arith.constant 10 : i32
    %1703 = arith.addi %0, %c10_i32_1938 : i32
    %c1_i32_1939 = arith.constant 1 : i32
    %1704 = arith.addi %1703, %c1_i32_1939 : i32
    %c0_1940 = arith.constant 0 : index
    %c1_1941 = arith.constant 1 : index
    %1705 = arith.index_cast %1704 : i32 to index
    %c1_1942 = arith.constant 1 : index
    %1706 = vector.load %arg2[%c0_1940, %c1_1941, %1705, %c1_1942] : memref<1x3x16x16xf32, #tpu.memory_space<vmem>>, vector<1x1x1x14xf32>
    %1707 = vector.shape_cast %1706 : vector<1x1x1x14xf32> to vector<1x14xf32>
    %c13_1943 = arith.constant 13 : index
    %c140_1944 = arith.constant 140 : index
    %1708 = vector.load %arg5[%c13_1943, %c140_1944] : memref<32x196xf32, #tpu.memory_space<vmem>>, vector<1x14xf32>
    tpu.vector_store %arg5[%c13_1943, %c140_1944], %1707 {strides = array<i32>} : memref<32x196xf32, #tpu.memory_space<vmem>>, vector<1x14xf32>,
    %c10_i32_1945 = arith.constant 10 : i32
    %1709 = arith.addi %0, %c10_i32_1945 : i32
    %c1_i32_1946 = arith.constant 1 : i32
    %1710 = arith.addi %1709, %c1_i32_1946 : i32
    %c0_1947 = arith.constant 0 : index
    %c1_1948 = arith.constant 1 : index
    %1711 = arith.index_cast %1710 : i32 to index
    %c2_1949 = arith.constant 2 : index
    %1712 = vector.load %arg2[%c0_1947, %c1_1948, %1711, %c2_1949] : memref<1x3x16x16xf32, #tpu.memory_space<vmem>>, vector<1x1x1x14xf32>
    %1713 = vector.shape_cast %1712 : vector<1x1x1x14xf32> to vector<1x14xf32>
    %c14_1950 = arith.constant 14 : index
    %c140_1951 = arith.constant 140 : index
    %1714 = vector.load %arg5[%c14_1950, %c140_1951] : memref<32x196xf32, #tpu.memory_space<vmem>>, vector<1x14xf32>
    tpu.vector_store %arg5[%c14_1950, %c140_1951], %1713 {strides = array<i32>} : memref<32x196xf32, #tpu.memory_space<vmem>>, vector<1x14xf32>,
    %c10_i32_1952 = arith.constant 10 : i32
    %1715 = arith.addi %0, %c10_i32_1952 : i32
    %c2_i32_1953 = arith.constant 2 : i32
    %1716 = arith.addi %1715, %c2_i32_1953 : i32
    %c0_1954 = arith.constant 0 : index
    %c1_1955 = arith.constant 1 : index
    %1717 = arith.index_cast %1716 : i32 to index
    %c0_1956 = arith.constant 0 : index
    %1718 = vector.load %arg2[%c0_1954, %c1_1955, %1717, %c0_1956] : memref<1x3x16x16xf32, #tpu.memory_space<vmem>>, vector<1x1x1x14xf32>
    %1719 = vector.shape_cast %1718 : vector<1x1x1x14xf32> to vector<1x14xf32>
    %c15_1957 = arith.constant 15 : index
    %c140_1958 = arith.constant 140 : index
    %1720 = vector.load %arg5[%c15_1957, %c140_1958] : memref<32x196xf32, #tpu.memory_space<vmem>>, vector<1x14xf32>
    tpu.vector_store %arg5[%c15_1957, %c140_1958], %1719 {strides = array<i32>} : memref<32x196xf32, #tpu.memory_space<vmem>>, vector<1x14xf32>,
    %c10_i32_1959 = arith.constant 10 : i32
    %1721 = arith.addi %0, %c10_i32_1959 : i32
    %c2_i32_1960 = arith.constant 2 : i32
    %1722 = arith.addi %1721, %c2_i32_1960 : i32
    %c0_1961 = arith.constant 0 : index
    %c1_1962 = arith.constant 1 : index
    %1723 = arith.index_cast %1722 : i32 to index
    %c1_1963 = arith.constant 1 : index
    %1724 = vector.load %arg2[%c0_1961, %c1_1962, %1723, %c1_1963] : memref<1x3x16x16xf32, #tpu.memory_space<vmem>>, vector<1x1x1x14xf32>
    %1725 = vector.shape_cast %1724 : vector<1x1x1x14xf32> to vector<1x14xf32>
    %c16_1964 = arith.constant 16 : index
    %c140_1965 = arith.constant 140 : index
    %1726 = vector.load %arg5[%c16_1964, %c140_1965] : memref<32x196xf32, #tpu.memory_space<vmem>>, vector<1x14xf32>
    tpu.vector_store %arg5[%c16_1964, %c140_1965], %1725 {strides = array<i32>} : memref<32x196xf32, #tpu.memory_space<vmem>>, vector<1x14xf32>,
    %c10_i32_1966 = arith.constant 10 : i32
    %1727 = arith.addi %0, %c10_i32_1966 : i32
    %c2_i32_1967 = arith.constant 2 : i32
    %1728 = arith.addi %1727, %c2_i32_1967 : i32
    %c0_1968 = arith.constant 0 : index
    %c1_1969 = arith.constant 1 : index
    %1729 = arith.index_cast %1728 : i32 to index
    %c2_1970 = arith.constant 2 : index
    %1730 = vector.load %arg2[%c0_1968, %c1_1969, %1729, %c2_1970] : memref<1x3x16x16xf32, #tpu.memory_space<vmem>>, vector<1x1x1x14xf32>
    %1731 = vector.shape_cast %1730 : vector<1x1x1x14xf32> to vector<1x14xf32>
    %c17_1971 = arith.constant 17 : index
    %c140_1972 = arith.constant 140 : index
    %1732 = vector.load %arg5[%c17_1971, %c140_1972] : memref<32x196xf32, #tpu.memory_space<vmem>>, vector<1x14xf32>
    tpu.vector_store %arg5[%c17_1971, %c140_1972], %1731 {strides = array<i32>} : memref<32x196xf32, #tpu.memory_space<vmem>>, vector<1x14xf32>,
    %c10_i32_1973 = arith.constant 10 : i32
    %1733 = arith.addi %0, %c10_i32_1973 : i32
    %c0_i32_1974 = arith.constant 0 : i32
    %1734 = arith.addi %1733, %c0_i32_1974 : i32
    %c0_1975 = arith.constant 0 : index
    %c2_1976 = arith.constant 2 : index
    %1735 = arith.index_cast %1734 : i32 to index
    %c0_1977 = arith.constant 0 : index
    %1736 = vector.load %arg2[%c0_1975, %c2_1976, %1735, %c0_1977] : memref<1x3x16x16xf32, #tpu.memory_space<vmem>>, vector<1x1x1x14xf32>
    %1737 = vector.shape_cast %1736 : vector<1x1x1x14xf32> to vector<1x14xf32>
    %c18_1978 = arith.constant 18 : index
    %c140_1979 = arith.constant 140 : index
    %1738 = vector.load %arg5[%c18_1978, %c140_1979] : memref<32x196xf32, #tpu.memory_space<vmem>>, vector<1x14xf32>
    tpu.vector_store %arg5[%c18_1978, %c140_1979], %1737 {strides = array<i32>} : memref<32x196xf32, #tpu.memory_space<vmem>>, vector<1x14xf32>,
    %c10_i32_1980 = arith.constant 10 : i32
    %1739 = arith.addi %0, %c10_i32_1980 : i32
    %c0_i32_1981 = arith.constant 0 : i32
    %1740 = arith.addi %1739, %c0_i32_1981 : i32
    %c0_1982 = arith.constant 0 : index
    %c2_1983 = arith.constant 2 : index
    %1741 = arith.index_cast %1740 : i32 to index
    %c1_1984 = arith.constant 1 : index
    %1742 = vector.load %arg2[%c0_1982, %c2_1983, %1741, %c1_1984] : memref<1x3x16x16xf32, #tpu.memory_space<vmem>>, vector<1x1x1x14xf32>
    %1743 = vector.shape_cast %1742 : vector<1x1x1x14xf32> to vector<1x14xf32>
    %c19_1985 = arith.constant 19 : index
    %c140_1986 = arith.constant 140 : index
    %1744 = vector.load %arg5[%c19_1985, %c140_1986] : memref<32x196xf32, #tpu.memory_space<vmem>>, vector<1x14xf32>
    tpu.vector_store %arg5[%c19_1985, %c140_1986], %1743 {strides = array<i32>} : memref<32x196xf32, #tpu.memory_space<vmem>>, vector<1x14xf32>,
    %c10_i32_1987 = arith.constant 10 : i32
    %1745 = arith.addi %0, %c10_i32_1987 : i32
    %c0_i32_1988 = arith.constant 0 : i32
    %1746 = arith.addi %1745, %c0_i32_1988 : i32
    %c0_1989 = arith.constant 0 : index
    %c2_1990 = arith.constant 2 : index
    %1747 = arith.index_cast %1746 : i32 to index
    %c2_1991 = arith.constant 2 : index
    %1748 = vector.load %arg2[%c0_1989, %c2_1990, %1747, %c2_1991] : memref<1x3x16x16xf32, #tpu.memory_space<vmem>>, vector<1x1x1x14xf32>
    %1749 = vector.shape_cast %1748 : vector<1x1x1x14xf32> to vector<1x14xf32>
    %c20_1992 = arith.constant 20 : index
    %c140_1993 = arith.constant 140 : index
    %1750 = vector.load %arg5[%c20_1992, %c140_1993] : memref<32x196xf32, #tpu.memory_space<vmem>>, vector<1x14xf32>
    tpu.vector_store %arg5[%c20_1992, %c140_1993], %1749 {strides = array<i32>} : memref<32x196xf32, #tpu.memory_space<vmem>>, vector<1x14xf32>,
    %c10_i32_1994 = arith.constant 10 : i32
    %1751 = arith.addi %0, %c10_i32_1994 : i32
    %c1_i32_1995 = arith.constant 1 : i32
    %1752 = arith.addi %1751, %c1_i32_1995 : i32
    %c0_1996 = arith.constant 0 : index
    %c2_1997 = arith.constant 2 : index
    %1753 = arith.index_cast %1752 : i32 to index
    %c0_1998 = arith.constant 0 : index
    %1754 = vector.load %arg2[%c0_1996, %c2_1997, %1753, %c0_1998] : memref<1x3x16x16xf32, #tpu.memory_space<vmem>>, vector<1x1x1x14xf32>
    %1755 = vector.shape_cast %1754 : vector<1x1x1x14xf32> to vector<1x14xf32>
    %c21_1999 = arith.constant 21 : index
    %c140_2000 = arith.constant 140 : index
    %1756 = vector.load %arg5[%c21_1999, %c140_2000] : memref<32x196xf32, #tpu.memory_space<vmem>>, vector<1x14xf32>
    tpu.vector_store %arg5[%c21_1999, %c140_2000], %1755 {strides = array<i32>} : memref<32x196xf32, #tpu.memory_space<vmem>>, vector<1x14xf32>,
    %c10_i32_2001 = arith.constant 10 : i32
    %1757 = arith.addi %0, %c10_i32_2001 : i32
    %c1_i32_2002 = arith.constant 1 : i32
    %1758 = arith.addi %1757, %c1_i32_2002 : i32
    %c0_2003 = arith.constant 0 : index
    %c2_2004 = arith.constant 2 : index
    %1759 = arith.index_cast %1758 : i32 to index
    %c1_2005 = arith.constant 1 : index
    %1760 = vector.load %arg2[%c0_2003, %c2_2004, %1759, %c1_2005] : memref<1x3x16x16xf32, #tpu.memory_space<vmem>>, vector<1x1x1x14xf32>
    %1761 = vector.shape_cast %1760 : vector<1x1x1x14xf32> to vector<1x14xf32>
    %c22_2006 = arith.constant 22 : index
    %c140_2007 = arith.constant 140 : index
    %1762 = vector.load %arg5[%c22_2006, %c140_2007] : memref<32x196xf32, #tpu.memory_space<vmem>>, vector<1x14xf32>
    tpu.vector_store %arg5[%c22_2006, %c140_2007], %1761 {strides = array<i32>} : memref<32x196xf32, #tpu.memory_space<vmem>>, vector<1x14xf32>,
    %c10_i32_2008 = arith.constant 10 : i32
    %1763 = arith.addi %0, %c10_i32_2008 : i32
    %c1_i32_2009 = arith.constant 1 : i32
    %1764 = arith.addi %1763, %c1_i32_2009 : i32
    %c0_2010 = arith.constant 0 : index
    %c2_2011 = arith.constant 2 : index
    %1765 = arith.index_cast %1764 : i32 to index
    %c2_2012 = arith.constant 2 : index
    %1766 = vector.load %arg2[%c0_2010, %c2_2011, %1765, %c2_2012] : memref<1x3x16x16xf32, #tpu.memory_space<vmem>>, vector<1x1x1x14xf32>
    %1767 = vector.shape_cast %1766 : vector<1x1x1x14xf32> to vector<1x14xf32>
    %c23_2013 = arith.constant 23 : index
    %c140_2014 = arith.constant 140 : index
    %1768 = vector.load %arg5[%c23_2013, %c140_2014] : memref<32x196xf32, #tpu.memory_space<vmem>>, vector<1x14xf32>
    tpu.vector_store %arg5[%c23_2013, %c140_2014], %1767 {strides = array<i32>} : memref<32x196xf32, #tpu.memory_space<vmem>>, vector<1x14xf32>,
    %c10_i32_2015 = arith.constant 10 : i32
    %1769 = arith.addi %0, %c10_i32_2015 : i32
    %c2_i32_2016 = arith.constant 2 : i32
    %1770 = arith.addi %1769, %c2_i32_2016 : i32
    %c0_2017 = arith.constant 0 : index
    %c2_2018 = arith.constant 2 : index
    %1771 = arith.index_cast %1770 : i32 to index
    %c0_2019 = arith.constant 0 : index
    %1772 = vector.load %arg2[%c0_2017, %c2_2018, %1771, %c0_2019] : memref<1x3x16x16xf32, #tpu.memory_space<vmem>>, vector<1x1x1x14xf32>
    %1773 = vector.shape_cast %1772 : vector<1x1x1x14xf32> to vector<1x14xf32>
    %c24_2020 = arith.constant 24 : index
    %c140_2021 = arith.constant 140 : index
    %1774 = vector.load %arg5[%c24_2020, %c140_2021] : memref<32x196xf32, #tpu.memory_space<vmem>>, vector<1x14xf32>
    tpu.vector_store %arg5[%c24_2020, %c140_2021], %1773 {strides = array<i32>} : memref<32x196xf32, #tpu.memory_space<vmem>>, vector<1x14xf32>,
    %c10_i32_2022 = arith.constant 10 : i32
    %1775 = arith.addi %0, %c10_i32_2022 : i32
    %c2_i32_2023 = arith.constant 2 : i32
    %1776 = arith.addi %1775, %c2_i32_2023 : i32
    %c0_2024 = arith.constant 0 : index
    %c2_2025 = arith.constant 2 : index
    %1777 = arith.index_cast %1776 : i32 to index
    %c1_2026 = arith.constant 1 : index
    %1778 = vector.load %arg2[%c0_2024, %c2_2025, %1777, %c1_2026] : memref<1x3x16x16xf32, #tpu.memory_space<vmem>>, vector<1x1x1x14xf32>
    %1779 = vector.shape_cast %1778 : vector<1x1x1x14xf32> to vector<1x14xf32>
    %c25_2027 = arith.constant 25 : index
    %c140_2028 = arith.constant 140 : index
    %1780 = vector.load %arg5[%c25_2027, %c140_2028] : memref<32x196xf32, #tpu.memory_space<vmem>>, vector<1x14xf32>
    tpu.vector_store %arg5[%c25_2027, %c140_2028], %1779 {strides = array<i32>} : memref<32x196xf32, #tpu.memory_space<vmem>>, vector<1x14xf32>,
    %c10_i32_2029 = arith.constant 10 : i32
    %1781 = arith.addi %0, %c10_i32_2029 : i32
    %c2_i32_2030 = arith.constant 2 : i32
    %1782 = arith.addi %1781, %c2_i32_2030 : i32
    %c0_2031 = arith.constant 0 : index
    %c2_2032 = arith.constant 2 : index
    %1783 = arith.index_cast %1782 : i32 to index
    %c2_2033 = arith.constant 2 : index
    %1784 = vector.load %arg2[%c0_2031, %c2_2032, %1783, %c2_2033] : memref<1x3x16x16xf32, #tpu.memory_space<vmem>>, vector<1x1x1x14xf32>
    %1785 = vector.shape_cast %1784 : vector<1x1x1x14xf32> to vector<1x14xf32>
    %c26_2034 = arith.constant 26 : index
    %c140_2035 = arith.constant 140 : index
    %1786 = vector.load %arg5[%c26_2034, %c140_2035] : memref<32x196xf32, #tpu.memory_space<vmem>>, vector<1x14xf32>
    tpu.vector_store %arg5[%c26_2034, %c140_2035], %1785 {strides = array<i32>} : memref<32x196xf32, #tpu.memory_space<vmem>>, vector<1x14xf32>,
    %c11_i32 = arith.constant 11 : i32
    %1787 = arith.addi %0, %c11_i32 : i32
    %c0_i32_2036 = arith.constant 0 : i32
    %1788 = arith.addi %1787, %c0_i32_2036 : i32
    %c0_2037 = arith.constant 0 : index
    %c0_2038 = arith.constant 0 : index
    %1789 = arith.index_cast %1788 : i32 to index
    %c0_2039 = arith.constant 0 : index
    %1790 = vector.load %arg2[%c0_2037, %c0_2038, %1789, %c0_2039] : memref<1x3x16x16xf32, #tpu.memory_space<vmem>>, vector<1x1x1x14xf32>
    %1791 = vector.shape_cast %1790 : vector<1x1x1x14xf32> to vector<1x14xf32>
    %c0_2040 = arith.constant 0 : index
    %c154 = arith.constant 154 : index
    %1792 = vector.load %arg5[%c0_2040, %c154] : memref<32x196xf32, #tpu.memory_space<vmem>>, vector<1x14xf32>
    tpu.vector_store %arg5[%c0_2040, %c154], %1791 {strides = array<i32>} : memref<32x196xf32, #tpu.memory_space<vmem>>, vector<1x14xf32>,
    %c11_i32_2041 = arith.constant 11 : i32
    %1793 = arith.addi %0, %c11_i32_2041 : i32
    %c0_i32_2042 = arith.constant 0 : i32
    %1794 = arith.addi %1793, %c0_i32_2042 : i32
    %c0_2043 = arith.constant 0 : index
    %c0_2044 = arith.constant 0 : index
    %1795 = arith.index_cast %1794 : i32 to index
    %c1_2045 = arith.constant 1 : index
    %1796 = vector.load %arg2[%c0_2043, %c0_2044, %1795, %c1_2045] : memref<1x3x16x16xf32, #tpu.memory_space<vmem>>, vector<1x1x1x14xf32>
    %1797 = vector.shape_cast %1796 : vector<1x1x1x14xf32> to vector<1x14xf32>
    %c1_2046 = arith.constant 1 : index
    %c154_2047 = arith.constant 154 : index
    %1798 = vector.load %arg5[%c1_2046, %c154_2047] : memref<32x196xf32, #tpu.memory_space<vmem>>, vector<1x14xf32>
    tpu.vector_store %arg5[%c1_2046, %c154_2047], %1797 {strides = array<i32>} : memref<32x196xf32, #tpu.memory_space<vmem>>, vector<1x14xf32>,
    %c11_i32_2048 = arith.constant 11 : i32
    %1799 = arith.addi %0, %c11_i32_2048 : i32
    %c0_i32_2049 = arith.constant 0 : i32
    %1800 = arith.addi %1799, %c0_i32_2049 : i32
    %c0_2050 = arith.constant 0 : index
    %c0_2051 = arith.constant 0 : index
    %1801 = arith.index_cast %1800 : i32 to index
    %c2_2052 = arith.constant 2 : index
    %1802 = vector.load %arg2[%c0_2050, %c0_2051, %1801, %c2_2052] : memref<1x3x16x16xf32, #tpu.memory_space<vmem>>, vector<1x1x1x14xf32>
    %1803 = vector.shape_cast %1802 : vector<1x1x1x14xf32> to vector<1x14xf32>
    %c2_2053 = arith.constant 2 : index
    %c154_2054 = arith.constant 154 : index
    %1804 = vector.load %arg5[%c2_2053, %c154_2054] : memref<32x196xf32, #tpu.memory_space<vmem>>, vector<1x14xf32>
    tpu.vector_store %arg5[%c2_2053, %c154_2054], %1803 {strides = array<i32>} : memref<32x196xf32, #tpu.memory_space<vmem>>, vector<1x14xf32>,
    %c11_i32_2055 = arith.constant 11 : i32
    %1805 = arith.addi %0, %c11_i32_2055 : i32
    %c1_i32_2056 = arith.constant 1 : i32
    %1806 = arith.addi %1805, %c1_i32_2056 : i32
    %c0_2057 = arith.constant 0 : index
    %c0_2058 = arith.constant 0 : index
    %1807 = arith.index_cast %1806 : i32 to index
    %c0_2059 = arith.constant 0 : index
    %1808 = vector.load %arg2[%c0_2057, %c0_2058, %1807, %c0_2059] : memref<1x3x16x16xf32, #tpu.memory_space<vmem>>, vector<1x1x1x14xf32>
    %1809 = vector.shape_cast %1808 : vector<1x1x1x14xf32> to vector<1x14xf32>
    %c3_2060 = arith.constant 3 : index
    %c154_2061 = arith.constant 154 : index
    %1810 = vector.load %arg5[%c3_2060, %c154_2061] : memref<32x196xf32, #tpu.memory_space<vmem>>, vector<1x14xf32>
    tpu.vector_store %arg5[%c3_2060, %c154_2061], %1809 {strides = array<i32>} : memref<32x196xf32, #tpu.memory_space<vmem>>, vector<1x14xf32>,
    %c11_i32_2062 = arith.constant 11 : i32
    %1811 = arith.addi %0, %c11_i32_2062 : i32
    %c1_i32_2063 = arith.constant 1 : i32
    %1812 = arith.addi %1811, %c1_i32_2063 : i32
    %c0_2064 = arith.constant 0 : index
    %c0_2065 = arith.constant 0 : index
    %1813 = arith.index_cast %1812 : i32 to index
    %c1_2066 = arith.constant 1 : index
    %1814 = vector.load %arg2[%c0_2064, %c0_2065, %1813, %c1_2066] : memref<1x3x16x16xf32, #tpu.memory_space<vmem>>, vector<1x1x1x14xf32>
    %1815 = vector.shape_cast %1814 : vector<1x1x1x14xf32> to vector<1x14xf32>
    %c4_2067 = arith.constant 4 : index
    %c154_2068 = arith.constant 154 : index
    %1816 = vector.load %arg5[%c4_2067, %c154_2068] : memref<32x196xf32, #tpu.memory_space<vmem>>, vector<1x14xf32>
    tpu.vector_store %arg5[%c4_2067, %c154_2068], %1815 {strides = array<i32>} : memref<32x196xf32, #tpu.memory_space<vmem>>, vector<1x14xf32>,
    %c11_i32_2069 = arith.constant 11 : i32
    %1817 = arith.addi %0, %c11_i32_2069 : i32
    %c1_i32_2070 = arith.constant 1 : i32
    %1818 = arith.addi %1817, %c1_i32_2070 : i32
    %c0_2071 = arith.constant 0 : index
    %c0_2072 = arith.constant 0 : index
    %1819 = arith.index_cast %1818 : i32 to index
    %c2_2073 = arith.constant 2 : index
    %1820 = vector.load %arg2[%c0_2071, %c0_2072, %1819, %c2_2073] : memref<1x3x16x16xf32, #tpu.memory_space<vmem>>, vector<1x1x1x14xf32>
    %1821 = vector.shape_cast %1820 : vector<1x1x1x14xf32> to vector<1x14xf32>
    %c5_2074 = arith.constant 5 : index
    %c154_2075 = arith.constant 154 : index
    %1822 = vector.load %arg5[%c5_2074, %c154_2075] : memref<32x196xf32, #tpu.memory_space<vmem>>, vector<1x14xf32>
    tpu.vector_store %arg5[%c5_2074, %c154_2075], %1821 {strides = array<i32>} : memref<32x196xf32, #tpu.memory_space<vmem>>, vector<1x14xf32>,
    %c11_i32_2076 = arith.constant 11 : i32
    %1823 = arith.addi %0, %c11_i32_2076 : i32
    %c2_i32_2077 = arith.constant 2 : i32
    %1824 = arith.addi %1823, %c2_i32_2077 : i32
    %c0_2078 = arith.constant 0 : index
    %c0_2079 = arith.constant 0 : index
    %1825 = arith.index_cast %1824 : i32 to index
    %c0_2080 = arith.constant 0 : index
    %1826 = vector.load %arg2[%c0_2078, %c0_2079, %1825, %c0_2080] : memref<1x3x16x16xf32, #tpu.memory_space<vmem>>, vector<1x1x1x14xf32>
    %1827 = vector.shape_cast %1826 : vector<1x1x1x14xf32> to vector<1x14xf32>
    %c6_2081 = arith.constant 6 : index
    %c154_2082 = arith.constant 154 : index
    %1828 = vector.load %arg5[%c6_2081, %c154_2082] : memref<32x196xf32, #tpu.memory_space<vmem>>, vector<1x14xf32>
    tpu.vector_store %arg5[%c6_2081, %c154_2082], %1827 {strides = array<i32>} : memref<32x196xf32, #tpu.memory_space<vmem>>, vector<1x14xf32>,
    %c11_i32_2083 = arith.constant 11 : i32
    %1829 = arith.addi %0, %c11_i32_2083 : i32
    %c2_i32_2084 = arith.constant 2 : i32
    %1830 = arith.addi %1829, %c2_i32_2084 : i32
    %c0_2085 = arith.constant 0 : index
    %c0_2086 = arith.constant 0 : index
    %1831 = arith.index_cast %1830 : i32 to index
    %c1_2087 = arith.constant 1 : index
    %1832 = vector.load %arg2[%c0_2085, %c0_2086, %1831, %c1_2087] : memref<1x3x16x16xf32, #tpu.memory_space<vmem>>, vector<1x1x1x14xf32>
    %1833 = vector.shape_cast %1832 : vector<1x1x1x14xf32> to vector<1x14xf32>
    %c7_2088 = arith.constant 7 : index
    %c154_2089 = arith.constant 154 : index
    %1834 = vector.load %arg5[%c7_2088, %c154_2089] : memref<32x196xf32, #tpu.memory_space<vmem>>, vector<1x14xf32>
    tpu.vector_store %arg5[%c7_2088, %c154_2089], %1833 {strides = array<i32>} : memref<32x196xf32, #tpu.memory_space<vmem>>, vector<1x14xf32>,
    %c11_i32_2090 = arith.constant 11 : i32
    %1835 = arith.addi %0, %c11_i32_2090 : i32
    %c2_i32_2091 = arith.constant 2 : i32
    %1836 = arith.addi %1835, %c2_i32_2091 : i32
    %c0_2092 = arith.constant 0 : index
    %c0_2093 = arith.constant 0 : index
    %1837 = arith.index_cast %1836 : i32 to index
    %c2_2094 = arith.constant 2 : index
    %1838 = vector.load %arg2[%c0_2092, %c0_2093, %1837, %c2_2094] : memref<1x3x16x16xf32, #tpu.memory_space<vmem>>, vector<1x1x1x14xf32>
    %1839 = vector.shape_cast %1838 : vector<1x1x1x14xf32> to vector<1x14xf32>
    %c8_2095 = arith.constant 8 : index
    %c154_2096 = arith.constant 154 : index
    %1840 = vector.load %arg5[%c8_2095, %c154_2096] : memref<32x196xf32, #tpu.memory_space<vmem>>, vector<1x14xf32>
    tpu.vector_store %arg5[%c8_2095, %c154_2096], %1839 {strides = array<i32>} : memref<32x196xf32, #tpu.memory_space<vmem>>, vector<1x14xf32>,
    %c11_i32_2097 = arith.constant 11 : i32
    %1841 = arith.addi %0, %c11_i32_2097 : i32
    %c0_i32_2098 = arith.constant 0 : i32
    %1842 = arith.addi %1841, %c0_i32_2098 : i32
    %c0_2099 = arith.constant 0 : index
    %c1_2100 = arith.constant 1 : index
    %1843 = arith.index_cast %1842 : i32 to index
    %c0_2101 = arith.constant 0 : index
    %1844 = vector.load %arg2[%c0_2099, %c1_2100, %1843, %c0_2101] : memref<1x3x16x16xf32, #tpu.memory_space<vmem>>, vector<1x1x1x14xf32>
    %1845 = vector.shape_cast %1844 : vector<1x1x1x14xf32> to vector<1x14xf32>
    %c9_2102 = arith.constant 9 : index
    %c154_2103 = arith.constant 154 : index
    %1846 = vector.load %arg5[%c9_2102, %c154_2103] : memref<32x196xf32, #tpu.memory_space<vmem>>, vector<1x14xf32>
    tpu.vector_store %arg5[%c9_2102, %c154_2103], %1845 {strides = array<i32>} : memref<32x196xf32, #tpu.memory_space<vmem>>, vector<1x14xf32>,
    %c11_i32_2104 = arith.constant 11 : i32
    %1847 = arith.addi %0, %c11_i32_2104 : i32
    %c0_i32_2105 = arith.constant 0 : i32
    %1848 = arith.addi %1847, %c0_i32_2105 : i32
    %c0_2106 = arith.constant 0 : index
    %c1_2107 = arith.constant 1 : index
    %1849 = arith.index_cast %1848 : i32 to index
    %c1_2108 = arith.constant 1 : index
    %1850 = vector.load %arg2[%c0_2106, %c1_2107, %1849, %c1_2108] : memref<1x3x16x16xf32, #tpu.memory_space<vmem>>, vector<1x1x1x14xf32>
    %1851 = vector.shape_cast %1850 : vector<1x1x1x14xf32> to vector<1x14xf32>
    %c10_2109 = arith.constant 10 : index
    %c154_2110 = arith.constant 154 : index
    %1852 = vector.load %arg5[%c10_2109, %c154_2110] : memref<32x196xf32, #tpu.memory_space<vmem>>, vector<1x14xf32>
    tpu.vector_store %arg5[%c10_2109, %c154_2110], %1851 {strides = array<i32>} : memref<32x196xf32, #tpu.memory_space<vmem>>, vector<1x14xf32>,
    %c11_i32_2111 = arith.constant 11 : i32
    %1853 = arith.addi %0, %c11_i32_2111 : i32
    %c0_i32_2112 = arith.constant 0 : i32
    %1854 = arith.addi %1853, %c0_i32_2112 : i32
    %c0_2113 = arith.constant 0 : index
    %c1_2114 = arith.constant 1 : index
    %1855 = arith.index_cast %1854 : i32 to index
    %c2_2115 = arith.constant 2 : index
    %1856 = vector.load %arg2[%c0_2113, %c1_2114, %1855, %c2_2115] : memref<1x3x16x16xf32, #tpu.memory_space<vmem>>, vector<1x1x1x14xf32>
    %1857 = vector.shape_cast %1856 : vector<1x1x1x14xf32> to vector<1x14xf32>
    %c11_2116 = arith.constant 11 : index
    %c154_2117 = arith.constant 154 : index
    %1858 = vector.load %arg5[%c11_2116, %c154_2117] : memref<32x196xf32, #tpu.memory_space<vmem>>, vector<1x14xf32>
    tpu.vector_store %arg5[%c11_2116, %c154_2117], %1857 {strides = array<i32>} : memref<32x196xf32, #tpu.memory_space<vmem>>, vector<1x14xf32>,
    %c11_i32_2118 = arith.constant 11 : i32
    %1859 = arith.addi %0, %c11_i32_2118 : i32
    %c1_i32_2119 = arith.constant 1 : i32
    %1860 = arith.addi %1859, %c1_i32_2119 : i32
    %c0_2120 = arith.constant 0 : index
    %c1_2121 = arith.constant 1 : index
    %1861 = arith.index_cast %1860 : i32 to index
    %c0_2122 = arith.constant 0 : index
    %1862 = vector.load %arg2[%c0_2120, %c1_2121, %1861, %c0_2122] : memref<1x3x16x16xf32, #tpu.memory_space<vmem>>, vector<1x1x1x14xf32>
    %1863 = vector.shape_cast %1862 : vector<1x1x1x14xf32> to vector<1x14xf32>
    %c12_2123 = arith.constant 12 : index
    %c154_2124 = arith.constant 154 : index
    %1864 = vector.load %arg5[%c12_2123, %c154_2124] : memref<32x196xf32, #tpu.memory_space<vmem>>, vector<1x14xf32>
    tpu.vector_store %arg5[%c12_2123, %c154_2124], %1863 {strides = array<i32>} : memref<32x196xf32, #tpu.memory_space<vmem>>, vector<1x14xf32>,
    %c11_i32_2125 = arith.constant 11 : i32
    %1865 = arith.addi %0, %c11_i32_2125 : i32
    %c1_i32_2126 = arith.constant 1 : i32
    %1866 = arith.addi %1865, %c1_i32_2126 : i32
    %c0_2127 = arith.constant 0 : index
    %c1_2128 = arith.constant 1 : index
    %1867 = arith.index_cast %1866 : i32 to index
    %c1_2129 = arith.constant 1 : index
    %1868 = vector.load %arg2[%c0_2127, %c1_2128, %1867, %c1_2129] : memref<1x3x16x16xf32, #tpu.memory_space<vmem>>, vector<1x1x1x14xf32>
    %1869 = vector.shape_cast %1868 : vector<1x1x1x14xf32> to vector<1x14xf32>
    %c13_2130 = arith.constant 13 : index
    %c154_2131 = arith.constant 154 : index
    %1870 = vector.load %arg5[%c13_2130, %c154_2131] : memref<32x196xf32, #tpu.memory_space<vmem>>, vector<1x14xf32>
    tpu.vector_store %arg5[%c13_2130, %c154_2131], %1869 {strides = array<i32>} : memref<32x196xf32, #tpu.memory_space<vmem>>, vector<1x14xf32>,
    %c11_i32_2132 = arith.constant 11 : i32
    %1871 = arith.addi %0, %c11_i32_2132 : i32
    %c1_i32_2133 = arith.constant 1 : i32
    %1872 = arith.addi %1871, %c1_i32_2133 : i32
    %c0_2134 = arith.constant 0 : index
    %c1_2135 = arith.constant 1 : index
    %1873 = arith.index_cast %1872 : i32 to index
    %c2_2136 = arith.constant 2 : index
    %1874 = vector.load %arg2[%c0_2134, %c1_2135, %1873, %c2_2136] : memref<1x3x16x16xf32, #tpu.memory_space<vmem>>, vector<1x1x1x14xf32>
    %1875 = vector.shape_cast %1874 : vector<1x1x1x14xf32> to vector<1x14xf32>
    %c14_2137 = arith.constant 14 : index
    %c154_2138 = arith.constant 154 : index
    %1876 = vector.load %arg5[%c14_2137, %c154_2138] : memref<32x196xf32, #tpu.memory_space<vmem>>, vector<1x14xf32>
    tpu.vector_store %arg5[%c14_2137, %c154_2138], %1875 {strides = array<i32>} : memref<32x196xf32, #tpu.memory_space<vmem>>, vector<1x14xf32>,
    %c11_i32_2139 = arith.constant 11 : i32
    %1877 = arith.addi %0, %c11_i32_2139 : i32
    %c2_i32_2140 = arith.constant 2 : i32
    %1878 = arith.addi %1877, %c2_i32_2140 : i32
    %c0_2141 = arith.constant 0 : index
    %c1_2142 = arith.constant 1 : index
    %1879 = arith.index_cast %1878 : i32 to index
    %c0_2143 = arith.constant 0 : index
    %1880 = vector.load %arg2[%c0_2141, %c1_2142, %1879, %c0_2143] : memref<1x3x16x16xf32, #tpu.memory_space<vmem>>, vector<1x1x1x14xf32>
    %1881 = vector.shape_cast %1880 : vector<1x1x1x14xf32> to vector<1x14xf32>
    %c15_2144 = arith.constant 15 : index
    %c154_2145 = arith.constant 154 : index
    %1882 = vector.load %arg5[%c15_2144, %c154_2145] : memref<32x196xf32, #tpu.memory_space<vmem>>, vector<1x14xf32>
    tpu.vector_store %arg5[%c15_2144, %c154_2145], %1881 {strides = array<i32>} : memref<32x196xf32, #tpu.memory_space<vmem>>, vector<1x14xf32>,
    %c11_i32_2146 = arith.constant 11 : i32
    %1883 = arith.addi %0, %c11_i32_2146 : i32
    %c2_i32_2147 = arith.constant 2 : i32
    %1884 = arith.addi %1883, %c2_i32_2147 : i32
    %c0_2148 = arith.constant 0 : index
    %c1_2149 = arith.constant 1 : index
    %1885 = arith.index_cast %1884 : i32 to index
    %c1_2150 = arith.constant 1 : index
    %1886 = vector.load %arg2[%c0_2148, %c1_2149, %1885, %c1_2150] : memref<1x3x16x16xf32, #tpu.memory_space<vmem>>, vector<1x1x1x14xf32>
    %1887 = vector.shape_cast %1886 : vector<1x1x1x14xf32> to vector<1x14xf32>
    %c16_2151 = arith.constant 16 : index
    %c154_2152 = arith.constant 154 : index
    %1888 = vector.load %arg5[%c16_2151, %c154_2152] : memref<32x196xf32, #tpu.memory_space<vmem>>, vector<1x14xf32>
    tpu.vector_store %arg5[%c16_2151, %c154_2152], %1887 {strides = array<i32>} : memref<32x196xf32, #tpu.memory_space<vmem>>, vector<1x14xf32>,
    %c11_i32_2153 = arith.constant 11 : i32
    %1889 = arith.addi %0, %c11_i32_2153 : i32
    %c2_i32_2154 = arith.constant 2 : i32
    %1890 = arith.addi %1889, %c2_i32_2154 : i32
    %c0_2155 = arith.constant 0 : index
    %c1_2156 = arith.constant 1 : index
    %1891 = arith.index_cast %1890 : i32 to index
    %c2_2157 = arith.constant 2 : index
    %1892 = vector.load %arg2[%c0_2155, %c1_2156, %1891, %c2_2157] : memref<1x3x16x16xf32, #tpu.memory_space<vmem>>, vector<1x1x1x14xf32>
    %1893 = vector.shape_cast %1892 : vector<1x1x1x14xf32> to vector<1x14xf32>
    %c17_2158 = arith.constant 17 : index
    %c154_2159 = arith.constant 154 : index
    %1894 = vector.load %arg5[%c17_2158, %c154_2159] : memref<32x196xf32, #tpu.memory_space<vmem>>, vector<1x14xf32>
    tpu.vector_store %arg5[%c17_2158, %c154_2159], %1893 {strides = array<i32>} : memref<32x196xf32, #tpu.memory_space<vmem>>, vector<1x14xf32>,
    %c11_i32_2160 = arith.constant 11 : i32
    %1895 = arith.addi %0, %c11_i32_2160 : i32
    %c0_i32_2161 = arith.constant 0 : i32
    %1896 = arith.addi %1895, %c0_i32_2161 : i32
    %c0_2162 = arith.constant 0 : index
    %c2_2163 = arith.constant 2 : index
    %1897 = arith.index_cast %1896 : i32 to index
    %c0_2164 = arith.constant 0 : index
    %1898 = vector.load %arg2[%c0_2162, %c2_2163, %1897, %c0_2164] : memref<1x3x16x16xf32, #tpu.memory_space<vmem>>, vector<1x1x1x14xf32>
    %1899 = vector.shape_cast %1898 : vector<1x1x1x14xf32> to vector<1x14xf32>
    %c18_2165 = arith.constant 18 : index
    %c154_2166 = arith.constant 154 : index
    %1900 = vector.load %arg5[%c18_2165, %c154_2166] : memref<32x196xf32, #tpu.memory_space<vmem>>, vector<1x14xf32>
    tpu.vector_store %arg5[%c18_2165, %c154_2166], %1899 {strides = array<i32>} : memref<32x196xf32, #tpu.memory_space<vmem>>, vector<1x14xf32>,
    %c11_i32_2167 = arith.constant 11 : i32
    %1901 = arith.addi %0, %c11_i32_2167 : i32
    %c0_i32_2168 = arith.constant 0 : i32
    %1902 = arith.addi %1901, %c0_i32_2168 : i32
    %c0_2169 = arith.constant 0 : index
    %c2_2170 = arith.constant 2 : index
    %1903 = arith.index_cast %1902 : i32 to index
    %c1_2171 = arith.constant 1 : index
    %1904 = vector.load %arg2[%c0_2169, %c2_2170, %1903, %c1_2171] : memref<1x3x16x16xf32, #tpu.memory_space<vmem>>, vector<1x1x1x14xf32>
    %1905 = vector.shape_cast %1904 : vector<1x1x1x14xf32> to vector<1x14xf32>
    %c19_2172 = arith.constant 19 : index
    %c154_2173 = arith.constant 154 : index
    %1906 = vector.load %arg5[%c19_2172, %c154_2173] : memref<32x196xf32, #tpu.memory_space<vmem>>, vector<1x14xf32>
    tpu.vector_store %arg5[%c19_2172, %c154_2173], %1905 {strides = array<i32>} : memref<32x196xf32, #tpu.memory_space<vmem>>, vector<1x14xf32>,
    %c11_i32_2174 = arith.constant 11 : i32
    %1907 = arith.addi %0, %c11_i32_2174 : i32
    %c0_i32_2175 = arith.constant 0 : i32
    %1908 = arith.addi %1907, %c0_i32_2175 : i32
    %c0_2176 = arith.constant 0 : index
    %c2_2177 = arith.constant 2 : index
    %1909 = arith.index_cast %1908 : i32 to index
    %c2_2178 = arith.constant 2 : index
    %1910 = vector.load %arg2[%c0_2176, %c2_2177, %1909, %c2_2178] : memref<1x3x16x16xf32, #tpu.memory_space<vmem>>, vector<1x1x1x14xf32>
    %1911 = vector.shape_cast %1910 : vector<1x1x1x14xf32> to vector<1x14xf32>
    %c20_2179 = arith.constant 20 : index
    %c154_2180 = arith.constant 154 : index
    %1912 = vector.load %arg5[%c20_2179, %c154_2180] : memref<32x196xf32, #tpu.memory_space<vmem>>, vector<1x14xf32>
    tpu.vector_store %arg5[%c20_2179, %c154_2180], %1911 {strides = array<i32>} : memref<32x196xf32, #tpu.memory_space<vmem>>, vector<1x14xf32>,
    %c11_i32_2181 = arith.constant 11 : i32
    %1913 = arith.addi %0, %c11_i32_2181 : i32
    %c1_i32_2182 = arith.constant 1 : i32
    %1914 = arith.addi %1913, %c1_i32_2182 : i32
    %c0_2183 = arith.constant 0 : index
    %c2_2184 = arith.constant 2 : index
    %1915 = arith.index_cast %1914 : i32 to index
    %c0_2185 = arith.constant 0 : index
    %1916 = vector.load %arg2[%c0_2183, %c2_2184, %1915, %c0_2185] : memref<1x3x16x16xf32, #tpu.memory_space<vmem>>, vector<1x1x1x14xf32>
    %1917 = vector.shape_cast %1916 : vector<1x1x1x14xf32> to vector<1x14xf32>
    %c21_2186 = arith.constant 21 : index
    %c154_2187 = arith.constant 154 : index
    %1918 = vector.load %arg5[%c21_2186, %c154_2187] : memref<32x196xf32, #tpu.memory_space<vmem>>, vector<1x14xf32>
    tpu.vector_store %arg5[%c21_2186, %c154_2187], %1917 {strides = array<i32>} : memref<32x196xf32, #tpu.memory_space<vmem>>, vector<1x14xf32>,
    %c11_i32_2188 = arith.constant 11 : i32
    %1919 = arith.addi %0, %c11_i32_2188 : i32
    %c1_i32_2189 = arith.constant 1 : i32
    %1920 = arith.addi %1919, %c1_i32_2189 : i32
    %c0_2190 = arith.constant 0 : index
    %c2_2191 = arith.constant 2 : index
    %1921 = arith.index_cast %1920 : i32 to index
    %c1_2192 = arith.constant 1 : index
    %1922 = vector.load %arg2[%c0_2190, %c2_2191, %1921, %c1_2192] : memref<1x3x16x16xf32, #tpu.memory_space<vmem>>, vector<1x1x1x14xf32>
    %1923 = vector.shape_cast %1922 : vector<1x1x1x14xf32> to vector<1x14xf32>
    %c22_2193 = arith.constant 22 : index
    %c154_2194 = arith.constant 154 : index
    %1924 = vector.load %arg5[%c22_2193, %c154_2194] : memref<32x196xf32, #tpu.memory_space<vmem>>, vector<1x14xf32>
    tpu.vector_store %arg5[%c22_2193, %c154_2194], %1923 {strides = array<i32>} : memref<32x196xf32, #tpu.memory_space<vmem>>, vector<1x14xf32>,
    %c11_i32_2195 = arith.constant 11 : i32
    %1925 = arith.addi %0, %c11_i32_2195 : i32
    %c1_i32_2196 = arith.constant 1 : i32
    %1926 = arith.addi %1925, %c1_i32_2196 : i32
    %c0_2197 = arith.constant 0 : index
    %c2_2198 = arith.constant 2 : index
    %1927 = arith.index_cast %1926 : i32 to index
    %c2_2199 = arith.constant 2 : index
    %1928 = vector.load %arg2[%c0_2197, %c2_2198, %1927, %c2_2199] : memref<1x3x16x16xf32, #tpu.memory_space<vmem>>, vector<1x1x1x14xf32>
    %1929 = vector.shape_cast %1928 : vector<1x1x1x14xf32> to vector<1x14xf32>
    %c23_2200 = arith.constant 23 : index
    %c154_2201 = arith.constant 154 : index
    %1930 = vector.load %arg5[%c23_2200, %c154_2201] : memref<32x196xf32, #tpu.memory_space<vmem>>, vector<1x14xf32>
    tpu.vector_store %arg5[%c23_2200, %c154_2201], %1929 {strides = array<i32>} : memref<32x196xf32, #tpu.memory_space<vmem>>, vector<1x14xf32>,
    %c11_i32_2202 = arith.constant 11 : i32
    %1931 = arith.addi %0, %c11_i32_2202 : i32
    %c2_i32_2203 = arith.constant 2 : i32
    %1932 = arith.addi %1931, %c2_i32_2203 : i32
    %c0_2204 = arith.constant 0 : index
    %c2_2205 = arith.constant 2 : index
    %1933 = arith.index_cast %1932 : i32 to index
    %c0_2206 = arith.constant 0 : index
    %1934 = vector.load %arg2[%c0_2204, %c2_2205, %1933, %c0_2206] : memref<1x3x16x16xf32, #tpu.memory_space<vmem>>, vector<1x1x1x14xf32>
    %1935 = vector.shape_cast %1934 : vector<1x1x1x14xf32> to vector<1x14xf32>
    %c24_2207 = arith.constant 24 : index
    %c154_2208 = arith.constant 154 : index
    %1936 = vector.load %arg5[%c24_2207, %c154_2208] : memref<32x196xf32, #tpu.memory_space<vmem>>, vector<1x14xf32>
    tpu.vector_store %arg5[%c24_2207, %c154_2208], %1935 {strides = array<i32>} : memref<32x196xf32, #tpu.memory_space<vmem>>, vector<1x14xf32>,
    %c11_i32_2209 = arith.constant 11 : i32
    %1937 = arith.addi %0, %c11_i32_2209 : i32
    %c2_i32_2210 = arith.constant 2 : i32
    %1938 = arith.addi %1937, %c2_i32_2210 : i32
    %c0_2211 = arith.constant 0 : index
    %c2_2212 = arith.constant 2 : index
    %1939 = arith.index_cast %1938 : i32 to index
    %c1_2213 = arith.constant 1 : index
    %1940 = vector.load %arg2[%c0_2211, %c2_2212, %1939, %c1_2213] : memref<1x3x16x16xf32, #tpu.memory_space<vmem>>, vector<1x1x1x14xf32>
    %1941 = vector.shape_cast %1940 : vector<1x1x1x14xf32> to vector<1x14xf32>
    %c25_2214 = arith.constant 25 : index
    %c154_2215 = arith.constant 154 : index
    %1942 = vector.load %arg5[%c25_2214, %c154_2215] : memref<32x196xf32, #tpu.memory_space<vmem>>, vector<1x14xf32>
    tpu.vector_store %arg5[%c25_2214, %c154_2215], %1941 {strides = array<i32>} : memref<32x196xf32, #tpu.memory_space<vmem>>, vector<1x14xf32>,
    %c11_i32_2216 = arith.constant 11 : i32
    %1943 = arith.addi %0, %c11_i32_2216 : i32
    %c2_i32_2217 = arith.constant 2 : i32
    %1944 = arith.addi %1943, %c2_i32_2217 : i32
    %c0_2218 = arith.constant 0 : index
    %c2_2219 = arith.constant 2 : index
    %1945 = arith.index_cast %1944 : i32 to index
    %c2_2220 = arith.constant 2 : index
    %1946 = vector.load %arg2[%c0_2218, %c2_2219, %1945, %c2_2220] : memref<1x3x16x16xf32, #tpu.memory_space<vmem>>, vector<1x1x1x14xf32>
    %1947 = vector.shape_cast %1946 : vector<1x1x1x14xf32> to vector<1x14xf32>
    %c26_2221 = arith.constant 26 : index
    %c154_2222 = arith.constant 154 : index
    %1948 = vector.load %arg5[%c26_2221, %c154_2222] : memref<32x196xf32, #tpu.memory_space<vmem>>, vector<1x14xf32>
    tpu.vector_store %arg5[%c26_2221, %c154_2222], %1947 {strides = array<i32>} : memref<32x196xf32, #tpu.memory_space<vmem>>, vector<1x14xf32>,
    %c12_i32 = arith.constant 12 : i32
    %1949 = arith.addi %0, %c12_i32 : i32
    %c0_i32_2223 = arith.constant 0 : i32
    %1950 = arith.addi %1949, %c0_i32_2223 : i32
    %c0_2224 = arith.constant 0 : index
    %c0_2225 = arith.constant 0 : index
    %1951 = arith.index_cast %1950 : i32 to index
    %c0_2226 = arith.constant 0 : index
    %1952 = vector.load %arg2[%c0_2224, %c0_2225, %1951, %c0_2226] : memref<1x3x16x16xf32, #tpu.memory_space<vmem>>, vector<1x1x1x14xf32>
    %1953 = vector.shape_cast %1952 : vector<1x1x1x14xf32> to vector<1x14xf32>
    %c0_2227 = arith.constant 0 : index
    %c168 = arith.constant 168 : index
    %1954 = vector.load %arg5[%c0_2227, %c168] : memref<32x196xf32, #tpu.memory_space<vmem>>, vector<1x14xf32>
    tpu.vector_store %arg5[%c0_2227, %c168], %1953 {strides = array<i32>} : memref<32x196xf32, #tpu.memory_space<vmem>>, vector<1x14xf32>,
    %c12_i32_2228 = arith.constant 12 : i32
    %1955 = arith.addi %0, %c12_i32_2228 : i32
    %c0_i32_2229 = arith.constant 0 : i32
    %1956 = arith.addi %1955, %c0_i32_2229 : i32
    %c0_2230 = arith.constant 0 : index
    %c0_2231 = arith.constant 0 : index
    %1957 = arith.index_cast %1956 : i32 to index
    %c1_2232 = arith.constant 1 : index
    %1958 = vector.load %arg2[%c0_2230, %c0_2231, %1957, %c1_2232] : memref<1x3x16x16xf32, #tpu.memory_space<vmem>>, vector<1x1x1x14xf32>
    %1959 = vector.shape_cast %1958 : vector<1x1x1x14xf32> to vector<1x14xf32>
    %c1_2233 = arith.constant 1 : index
    %c168_2234 = arith.constant 168 : index
    %1960 = vector.load %arg5[%c1_2233, %c168_2234] : memref<32x196xf32, #tpu.memory_space<vmem>>, vector<1x14xf32>
    tpu.vector_store %arg5[%c1_2233, %c168_2234], %1959 {strides = array<i32>} : memref<32x196xf32, #tpu.memory_space<vmem>>, vector<1x14xf32>,
    %c12_i32_2235 = arith.constant 12 : i32
    %1961 = arith.addi %0, %c12_i32_2235 : i32
    %c0_i32_2236 = arith.constant 0 : i32
    %1962 = arith.addi %1961, %c0_i32_2236 : i32
    %c0_2237 = arith.constant 0 : index
    %c0_2238 = arith.constant 0 : index
    %1963 = arith.index_cast %1962 : i32 to index
    %c2_2239 = arith.constant 2 : index
    %1964 = vector.load %arg2[%c0_2237, %c0_2238, %1963, %c2_2239] : memref<1x3x16x16xf32, #tpu.memory_space<vmem>>, vector<1x1x1x14xf32>
    %1965 = vector.shape_cast %1964 : vector<1x1x1x14xf32> to vector<1x14xf32>
    %c2_2240 = arith.constant 2 : index
    %c168_2241 = arith.constant 168 : index
    %1966 = vector.load %arg5[%c2_2240, %c168_2241] : memref<32x196xf32, #tpu.memory_space<vmem>>, vector<1x14xf32>
    tpu.vector_store %arg5[%c2_2240, %c168_2241], %1965 {strides = array<i32>} : memref<32x196xf32, #tpu.memory_space<vmem>>, vector<1x14xf32>,
    %c12_i32_2242 = arith.constant 12 : i32
    %1967 = arith.addi %0, %c12_i32_2242 : i32
    %c1_i32_2243 = arith.constant 1 : i32
    %1968 = arith.addi %1967, %c1_i32_2243 : i32
    %c0_2244 = arith.constant 0 : index
    %c0_2245 = arith.constant 0 : index
    %1969 = arith.index_cast %1968 : i32 to index
    %c0_2246 = arith.constant 0 : index
    %1970 = vector.load %arg2[%c0_2244, %c0_2245, %1969, %c0_2246] : memref<1x3x16x16xf32, #tpu.memory_space<vmem>>, vector<1x1x1x14xf32>
    %1971 = vector.shape_cast %1970 : vector<1x1x1x14xf32> to vector<1x14xf32>
    %c3_2247 = arith.constant 3 : index
    %c168_2248 = arith.constant 168 : index
    %1972 = vector.load %arg5[%c3_2247, %c168_2248] : memref<32x196xf32, #tpu.memory_space<vmem>>, vector<1x14xf32>
    tpu.vector_store %arg5[%c3_2247, %c168_2248], %1971 {strides = array<i32>} : memref<32x196xf32, #tpu.memory_space<vmem>>, vector<1x14xf32>,
    %c12_i32_2249 = arith.constant 12 : i32
    %1973 = arith.addi %0, %c12_i32_2249 : i32
    %c1_i32_2250 = arith.constant 1 : i32
    %1974 = arith.addi %1973, %c1_i32_2250 : i32
    %c0_2251 = arith.constant 0 : index
    %c0_2252 = arith.constant 0 : index
    %1975 = arith.index_cast %1974 : i32 to index
    %c1_2253 = arith.constant 1 : index
    %1976 = vector.load %arg2[%c0_2251, %c0_2252, %1975, %c1_2253] : memref<1x3x16x16xf32, #tpu.memory_space<vmem>>, vector<1x1x1x14xf32>
    %1977 = vector.shape_cast %1976 : vector<1x1x1x14xf32> to vector<1x14xf32>
    %c4_2254 = arith.constant 4 : index
    %c168_2255 = arith.constant 168 : index
    %1978 = vector.load %arg5[%c4_2254, %c168_2255] : memref<32x196xf32, #tpu.memory_space<vmem>>, vector<1x14xf32>
    tpu.vector_store %arg5[%c4_2254, %c168_2255], %1977 {strides = array<i32>} : memref<32x196xf32, #tpu.memory_space<vmem>>, vector<1x14xf32>,
    %c12_i32_2256 = arith.constant 12 : i32
    %1979 = arith.addi %0, %c12_i32_2256 : i32
    %c1_i32_2257 = arith.constant 1 : i32
    %1980 = arith.addi %1979, %c1_i32_2257 : i32
    %c0_2258 = arith.constant 0 : index
    %c0_2259 = arith.constant 0 : index
    %1981 = arith.index_cast %1980 : i32 to index
    %c2_2260 = arith.constant 2 : index
    %1982 = vector.load %arg2[%c0_2258, %c0_2259, %1981, %c2_2260] : memref<1x3x16x16xf32, #tpu.memory_space<vmem>>, vector<1x1x1x14xf32>
    %1983 = vector.shape_cast %1982 : vector<1x1x1x14xf32> to vector<1x14xf32>
    %c5_2261 = arith.constant 5 : index
    %c168_2262 = arith.constant 168 : index
    %1984 = vector.load %arg5[%c5_2261, %c168_2262] : memref<32x196xf32, #tpu.memory_space<vmem>>, vector<1x14xf32>
    tpu.vector_store %arg5[%c5_2261, %c168_2262], %1983 {strides = array<i32>} : memref<32x196xf32, #tpu.memory_space<vmem>>, vector<1x14xf32>,
    %c12_i32_2263 = arith.constant 12 : i32
    %1985 = arith.addi %0, %c12_i32_2263 : i32
    %c2_i32_2264 = arith.constant 2 : i32
    %1986 = arith.addi %1985, %c2_i32_2264 : i32
    %c0_2265 = arith.constant 0 : index
    %c0_2266 = arith.constant 0 : index
    %1987 = arith.index_cast %1986 : i32 to index
    %c0_2267 = arith.constant 0 : index
    %1988 = vector.load %arg2[%c0_2265, %c0_2266, %1987, %c0_2267] : memref<1x3x16x16xf32, #tpu.memory_space<vmem>>, vector<1x1x1x14xf32>
    %1989 = vector.shape_cast %1988 : vector<1x1x1x14xf32> to vector<1x14xf32>
    %c6_2268 = arith.constant 6 : index
    %c168_2269 = arith.constant 168 : index
    %1990 = vector.load %arg5[%c6_2268, %c168_2269] : memref<32x196xf32, #tpu.memory_space<vmem>>, vector<1x14xf32>
    tpu.vector_store %arg5[%c6_2268, %c168_2269], %1989 {strides = array<i32>} : memref<32x196xf32, #tpu.memory_space<vmem>>, vector<1x14xf32>,
    %c12_i32_2270 = arith.constant 12 : i32
    %1991 = arith.addi %0, %c12_i32_2270 : i32
    %c2_i32_2271 = arith.constant 2 : i32
    %1992 = arith.addi %1991, %c2_i32_2271 : i32
    %c0_2272 = arith.constant 0 : index
    %c0_2273 = arith.constant 0 : index
    %1993 = arith.index_cast %1992 : i32 to index
    %c1_2274 = arith.constant 1 : index
    %1994 = vector.load %arg2[%c0_2272, %c0_2273, %1993, %c1_2274] : memref<1x3x16x16xf32, #tpu.memory_space<vmem>>, vector<1x1x1x14xf32>
    %1995 = vector.shape_cast %1994 : vector<1x1x1x14xf32> to vector<1x14xf32>
    %c7_2275 = arith.constant 7 : index
    %c168_2276 = arith.constant 168 : index
    %1996 = vector.load %arg5[%c7_2275, %c168_2276] : memref<32x196xf32, #tpu.memory_space<vmem>>, vector<1x14xf32>
    tpu.vector_store %arg5[%c7_2275, %c168_2276], %1995 {strides = array<i32>} : memref<32x196xf32, #tpu.memory_space<vmem>>, vector<1x14xf32>,
    %c12_i32_2277 = arith.constant 12 : i32
    %1997 = arith.addi %0, %c12_i32_2277 : i32
    %c2_i32_2278 = arith.constant 2 : i32
    %1998 = arith.addi %1997, %c2_i32_2278 : i32
    %c0_2279 = arith.constant 0 : index
    %c0_2280 = arith.constant 0 : index
    %1999 = arith.index_cast %1998 : i32 to index
    %c2_2281 = arith.constant 2 : index
    %2000 = vector.load %arg2[%c0_2279, %c0_2280, %1999, %c2_2281] : memref<1x3x16x16xf32, #tpu.memory_space<vmem>>, vector<1x1x1x14xf32>
    %2001 = vector.shape_cast %2000 : vector<1x1x1x14xf32> to vector<1x14xf32>
    %c8_2282 = arith.constant 8 : index
    %c168_2283 = arith.constant 168 : index
    %2002 = vector.load %arg5[%c8_2282, %c168_2283] : memref<32x196xf32, #tpu.memory_space<vmem>>, vector<1x14xf32>
    tpu.vector_store %arg5[%c8_2282, %c168_2283], %2001 {strides = array<i32>} : memref<32x196xf32, #tpu.memory_space<vmem>>, vector<1x14xf32>,
    %c12_i32_2284 = arith.constant 12 : i32
    %2003 = arith.addi %0, %c12_i32_2284 : i32
    %c0_i32_2285 = arith.constant 0 : i32
    %2004 = arith.addi %2003, %c0_i32_2285 : i32
    %c0_2286 = arith.constant 0 : index
    %c1_2287 = arith.constant 1 : index
    %2005 = arith.index_cast %2004 : i32 to index
    %c0_2288 = arith.constant 0 : index
    %2006 = vector.load %arg2[%c0_2286, %c1_2287, %2005, %c0_2288] : memref<1x3x16x16xf32, #tpu.memory_space<vmem>>, vector<1x1x1x14xf32>
    %2007 = vector.shape_cast %2006 : vector<1x1x1x14xf32> to vector<1x14xf32>
    %c9_2289 = arith.constant 9 : index
    %c168_2290 = arith.constant 168 : index
    %2008 = vector.load %arg5[%c9_2289, %c168_2290] : memref<32x196xf32, #tpu.memory_space<vmem>>, vector<1x14xf32>
    tpu.vector_store %arg5[%c9_2289, %c168_2290], %2007 {strides = array<i32>} : memref<32x196xf32, #tpu.memory_space<vmem>>, vector<1x14xf32>,
    %c12_i32_2291 = arith.constant 12 : i32
    %2009 = arith.addi %0, %c12_i32_2291 : i32
    %c0_i32_2292 = arith.constant 0 : i32
    %2010 = arith.addi %2009, %c0_i32_2292 : i32
    %c0_2293 = arith.constant 0 : index
    %c1_2294 = arith.constant 1 : index
    %2011 = arith.index_cast %2010 : i32 to index
    %c1_2295 = arith.constant 1 : index
    %2012 = vector.load %arg2[%c0_2293, %c1_2294, %2011, %c1_2295] : memref<1x3x16x16xf32, #tpu.memory_space<vmem>>, vector<1x1x1x14xf32>
    %2013 = vector.shape_cast %2012 : vector<1x1x1x14xf32> to vector<1x14xf32>
    %c10_2296 = arith.constant 10 : index
    %c168_2297 = arith.constant 168 : index
    %2014 = vector.load %arg5[%c10_2296, %c168_2297] : memref<32x196xf32, #tpu.memory_space<vmem>>, vector<1x14xf32>
    tpu.vector_store %arg5[%c10_2296, %c168_2297], %2013 {strides = array<i32>} : memref<32x196xf32, #tpu.memory_space<vmem>>, vector<1x14xf32>,
    %c12_i32_2298 = arith.constant 12 : i32
    %2015 = arith.addi %0, %c12_i32_2298 : i32
    %c0_i32_2299 = arith.constant 0 : i32
    %2016 = arith.addi %2015, %c0_i32_2299 : i32
    %c0_2300 = arith.constant 0 : index
    %c1_2301 = arith.constant 1 : index
    %2017 = arith.index_cast %2016 : i32 to index
    %c2_2302 = arith.constant 2 : index
    %2018 = vector.load %arg2[%c0_2300, %c1_2301, %2017, %c2_2302] : memref<1x3x16x16xf32, #tpu.memory_space<vmem>>, vector<1x1x1x14xf32>
    %2019 = vector.shape_cast %2018 : vector<1x1x1x14xf32> to vector<1x14xf32>
    %c11_2303 = arith.constant 11 : index
    %c168_2304 = arith.constant 168 : index
    %2020 = vector.load %arg5[%c11_2303, %c168_2304] : memref<32x196xf32, #tpu.memory_space<vmem>>, vector<1x14xf32>
    tpu.vector_store %arg5[%c11_2303, %c168_2304], %2019 {strides = array<i32>} : memref<32x196xf32, #tpu.memory_space<vmem>>, vector<1x14xf32>,
    %c12_i32_2305 = arith.constant 12 : i32
    %2021 = arith.addi %0, %c12_i32_2305 : i32
    %c1_i32_2306 = arith.constant 1 : i32
    %2022 = arith.addi %2021, %c1_i32_2306 : i32
    %c0_2307 = arith.constant 0 : index
    %c1_2308 = arith.constant 1 : index
    %2023 = arith.index_cast %2022 : i32 to index
    %c0_2309 = arith.constant 0 : index
    %2024 = vector.load %arg2[%c0_2307, %c1_2308, %2023, %c0_2309] : memref<1x3x16x16xf32, #tpu.memory_space<vmem>>, vector<1x1x1x14xf32>
    %2025 = vector.shape_cast %2024 : vector<1x1x1x14xf32> to vector<1x14xf32>
    %c12_2310 = arith.constant 12 : index
    %c168_2311 = arith.constant 168 : index
    %2026 = vector.load %arg5[%c12_2310, %c168_2311] : memref<32x196xf32, #tpu.memory_space<vmem>>, vector<1x14xf32>
    tpu.vector_store %arg5[%c12_2310, %c168_2311], %2025 {strides = array<i32>} : memref<32x196xf32, #tpu.memory_space<vmem>>, vector<1x14xf32>,
    %c12_i32_2312 = arith.constant 12 : i32
    %2027 = arith.addi %0, %c12_i32_2312 : i32
    %c1_i32_2313 = arith.constant 1 : i32
    %2028 = arith.addi %2027, %c1_i32_2313 : i32
    %c0_2314 = arith.constant 0 : index
    %c1_2315 = arith.constant 1 : index
    %2029 = arith.index_cast %2028 : i32 to index
    %c1_2316 = arith.constant 1 : index
    %2030 = vector.load %arg2[%c0_2314, %c1_2315, %2029, %c1_2316] : memref<1x3x16x16xf32, #tpu.memory_space<vmem>>, vector<1x1x1x14xf32>
    %2031 = vector.shape_cast %2030 : vector<1x1x1x14xf32> to vector<1x14xf32>
    %c13_2317 = arith.constant 13 : index
    %c168_2318 = arith.constant 168 : index
    %2032 = vector.load %arg5[%c13_2317, %c168_2318] : memref<32x196xf32, #tpu.memory_space<vmem>>, vector<1x14xf32>
    tpu.vector_store %arg5[%c13_2317, %c168_2318], %2031 {strides = array<i32>} : memref<32x196xf32, #tpu.memory_space<vmem>>, vector<1x14xf32>,
    %c12_i32_2319 = arith.constant 12 : i32
    %2033 = arith.addi %0, %c12_i32_2319 : i32
    %c1_i32_2320 = arith.constant 1 : i32
    %2034 = arith.addi %2033, %c1_i32_2320 : i32
    %c0_2321 = arith.constant 0 : index
    %c1_2322 = arith.constant 1 : index
    %2035 = arith.index_cast %2034 : i32 to index
    %c2_2323 = arith.constant 2 : index
    %2036 = vector.load %arg2[%c0_2321, %c1_2322, %2035, %c2_2323] : memref<1x3x16x16xf32, #tpu.memory_space<vmem>>, vector<1x1x1x14xf32>
    %2037 = vector.shape_cast %2036 : vector<1x1x1x14xf32> to vector<1x14xf32>
    %c14_2324 = arith.constant 14 : index
    %c168_2325 = arith.constant 168 : index
    %2038 = vector.load %arg5[%c14_2324, %c168_2325] : memref<32x196xf32, #tpu.memory_space<vmem>>, vector<1x14xf32>
    tpu.vector_store %arg5[%c14_2324, %c168_2325], %2037 {strides = array<i32>} : memref<32x196xf32, #tpu.memory_space<vmem>>, vector<1x14xf32>,
    %c12_i32_2326 = arith.constant 12 : i32
    %2039 = arith.addi %0, %c12_i32_2326 : i32
    %c2_i32_2327 = arith.constant 2 : i32
    %2040 = arith.addi %2039, %c2_i32_2327 : i32
    %c0_2328 = arith.constant 0 : index
    %c1_2329 = arith.constant 1 : index
    %2041 = arith.index_cast %2040 : i32 to index
    %c0_2330 = arith.constant 0 : index
    %2042 = vector.load %arg2[%c0_2328, %c1_2329, %2041, %c0_2330] : memref<1x3x16x16xf32, #tpu.memory_space<vmem>>, vector<1x1x1x14xf32>
    %2043 = vector.shape_cast %2042 : vector<1x1x1x14xf32> to vector<1x14xf32>
    %c15_2331 = arith.constant 15 : index
    %c168_2332 = arith.constant 168 : index
    %2044 = vector.load %arg5[%c15_2331, %c168_2332] : memref<32x196xf32, #tpu.memory_space<vmem>>, vector<1x14xf32>
    tpu.vector_store %arg5[%c15_2331, %c168_2332], %2043 {strides = array<i32>} : memref<32x196xf32, #tpu.memory_space<vmem>>, vector<1x14xf32>,
    %c12_i32_2333 = arith.constant 12 : i32
    %2045 = arith.addi %0, %c12_i32_2333 : i32
    %c2_i32_2334 = arith.constant 2 : i32
    %2046 = arith.addi %2045, %c2_i32_2334 : i32
    %c0_2335 = arith.constant 0 : index
    %c1_2336 = arith.constant 1 : index
    %2047 = arith.index_cast %2046 : i32 to index
    %c1_2337 = arith.constant 1 : index
    %2048 = vector.load %arg2[%c0_2335, %c1_2336, %2047, %c1_2337] : memref<1x3x16x16xf32, #tpu.memory_space<vmem>>, vector<1x1x1x14xf32>
    %2049 = vector.shape_cast %2048 : vector<1x1x1x14xf32> to vector<1x14xf32>
    %c16_2338 = arith.constant 16 : index
    %c168_2339 = arith.constant 168 : index
    %2050 = vector.load %arg5[%c16_2338, %c168_2339] : memref<32x196xf32, #tpu.memory_space<vmem>>, vector<1x14xf32>
    tpu.vector_store %arg5[%c16_2338, %c168_2339], %2049 {strides = array<i32>} : memref<32x196xf32, #tpu.memory_space<vmem>>, vector<1x14xf32>,
    %c12_i32_2340 = arith.constant 12 : i32
    %2051 = arith.addi %0, %c12_i32_2340 : i32
    %c2_i32_2341 = arith.constant 2 : i32
    %2052 = arith.addi %2051, %c2_i32_2341 : i32
    %c0_2342 = arith.constant 0 : index
    %c1_2343 = arith.constant 1 : index
    %2053 = arith.index_cast %2052 : i32 to index
    %c2_2344 = arith.constant 2 : index
    %2054 = vector.load %arg2[%c0_2342, %c1_2343, %2053, %c2_2344] : memref<1x3x16x16xf32, #tpu.memory_space<vmem>>, vector<1x1x1x14xf32>
    %2055 = vector.shape_cast %2054 : vector<1x1x1x14xf32> to vector<1x14xf32>
    %c17_2345 = arith.constant 17 : index
    %c168_2346 = arith.constant 168 : index
    %2056 = vector.load %arg5[%c17_2345, %c168_2346] : memref<32x196xf32, #tpu.memory_space<vmem>>, vector<1x14xf32>
    tpu.vector_store %arg5[%c17_2345, %c168_2346], %2055 {strides = array<i32>} : memref<32x196xf32, #tpu.memory_space<vmem>>, vector<1x14xf32>,
    %c12_i32_2347 = arith.constant 12 : i32
    %2057 = arith.addi %0, %c12_i32_2347 : i32
    %c0_i32_2348 = arith.constant 0 : i32
    %2058 = arith.addi %2057, %c0_i32_2348 : i32
    %c0_2349 = arith.constant 0 : index
    %c2_2350 = arith.constant 2 : index
    %2059 = arith.index_cast %2058 : i32 to index
    %c0_2351 = arith.constant 0 : index
    %2060 = vector.load %arg2[%c0_2349, %c2_2350, %2059, %c0_2351] : memref<1x3x16x16xf32, #tpu.memory_space<vmem>>, vector<1x1x1x14xf32>
    %2061 = vector.shape_cast %2060 : vector<1x1x1x14xf32> to vector<1x14xf32>
    %c18_2352 = arith.constant 18 : index
    %c168_2353 = arith.constant 168 : index
    %2062 = vector.load %arg5[%c18_2352, %c168_2353] : memref<32x196xf32, #tpu.memory_space<vmem>>, vector<1x14xf32>
    tpu.vector_store %arg5[%c18_2352, %c168_2353], %2061 {strides = array<i32>} : memref<32x196xf32, #tpu.memory_space<vmem>>, vector<1x14xf32>,
    %c12_i32_2354 = arith.constant 12 : i32
    %2063 = arith.addi %0, %c12_i32_2354 : i32
    %c0_i32_2355 = arith.constant 0 : i32
    %2064 = arith.addi %2063, %c0_i32_2355 : i32
    %c0_2356 = arith.constant 0 : index
    %c2_2357 = arith.constant 2 : index
    %2065 = arith.index_cast %2064 : i32 to index
    %c1_2358 = arith.constant 1 : index
    %2066 = vector.load %arg2[%c0_2356, %c2_2357, %2065, %c1_2358] : memref<1x3x16x16xf32, #tpu.memory_space<vmem>>, vector<1x1x1x14xf32>
    %2067 = vector.shape_cast %2066 : vector<1x1x1x14xf32> to vector<1x14xf32>
    %c19_2359 = arith.constant 19 : index
    %c168_2360 = arith.constant 168 : index
    %2068 = vector.load %arg5[%c19_2359, %c168_2360] : memref<32x196xf32, #tpu.memory_space<vmem>>, vector<1x14xf32>
    tpu.vector_store %arg5[%c19_2359, %c168_2360], %2067 {strides = array<i32>} : memref<32x196xf32, #tpu.memory_space<vmem>>, vector<1x14xf32>,
    %c12_i32_2361 = arith.constant 12 : i32
    %2069 = arith.addi %0, %c12_i32_2361 : i32
    %c0_i32_2362 = arith.constant 0 : i32
    %2070 = arith.addi %2069, %c0_i32_2362 : i32
    %c0_2363 = arith.constant 0 : index
    %c2_2364 = arith.constant 2 : index
    %2071 = arith.index_cast %2070 : i32 to index
    %c2_2365 = arith.constant 2 : index
    %2072 = vector.load %arg2[%c0_2363, %c2_2364, %2071, %c2_2365] : memref<1x3x16x16xf32, #tpu.memory_space<vmem>>, vector<1x1x1x14xf32>
    %2073 = vector.shape_cast %2072 : vector<1x1x1x14xf32> to vector<1x14xf32>
    %c20_2366 = arith.constant 20 : index
    %c168_2367 = arith.constant 168 : index
    %2074 = vector.load %arg5[%c20_2366, %c168_2367] : memref<32x196xf32, #tpu.memory_space<vmem>>, vector<1x14xf32>
    tpu.vector_store %arg5[%c20_2366, %c168_2367], %2073 {strides = array<i32>} : memref<32x196xf32, #tpu.memory_space<vmem>>, vector<1x14xf32>,
    %c12_i32_2368 = arith.constant 12 : i32
    %2075 = arith.addi %0, %c12_i32_2368 : i32
    %c1_i32_2369 = arith.constant 1 : i32
    %2076 = arith.addi %2075, %c1_i32_2369 : i32
    %c0_2370 = arith.constant 0 : index
    %c2_2371 = arith.constant 2 : index
    %2077 = arith.index_cast %2076 : i32 to index
    %c0_2372 = arith.constant 0 : index
    %2078 = vector.load %arg2[%c0_2370, %c2_2371, %2077, %c0_2372] : memref<1x3x16x16xf32, #tpu.memory_space<vmem>>, vector<1x1x1x14xf32>
    %2079 = vector.shape_cast %2078 : vector<1x1x1x14xf32> to vector<1x14xf32>
    %c21_2373 = arith.constant 21 : index
    %c168_2374 = arith.constant 168 : index
    %2080 = vector.load %arg5[%c21_2373, %c168_2374] : memref<32x196xf32, #tpu.memory_space<vmem>>, vector<1x14xf32>
    tpu.vector_store %arg5[%c21_2373, %c168_2374], %2079 {strides = array<i32>} : memref<32x196xf32, #tpu.memory_space<vmem>>, vector<1x14xf32>,
    %c12_i32_2375 = arith.constant 12 : i32
    %2081 = arith.addi %0, %c12_i32_2375 : i32
    %c1_i32_2376 = arith.constant 1 : i32
    %2082 = arith.addi %2081, %c1_i32_2376 : i32
    %c0_2377 = arith.constant 0 : index
    %c2_2378 = arith.constant 2 : index
    %2083 = arith.index_cast %2082 : i32 to index
    %c1_2379 = arith.constant 1 : index
    %2084 = vector.load %arg2[%c0_2377, %c2_2378, %2083, %c1_2379] : memref<1x3x16x16xf32, #tpu.memory_space<vmem>>, vector<1x1x1x14xf32>
    %2085 = vector.shape_cast %2084 : vector<1x1x1x14xf32> to vector<1x14xf32>
    %c22_2380 = arith.constant 22 : index
    %c168_2381 = arith.constant 168 : index
    %2086 = vector.load %arg5[%c22_2380, %c168_2381] : memref<32x196xf32, #tpu.memory_space<vmem>>, vector<1x14xf32>
    tpu.vector_store %arg5[%c22_2380, %c168_2381], %2085 {strides = array<i32>} : memref<32x196xf32, #tpu.memory_space<vmem>>, vector<1x14xf32>,
    %c12_i32_2382 = arith.constant 12 : i32
    %2087 = arith.addi %0, %c12_i32_2382 : i32
    %c1_i32_2383 = arith.constant 1 : i32
    %2088 = arith.addi %2087, %c1_i32_2383 : i32
    %c0_2384 = arith.constant 0 : index
    %c2_2385 = arith.constant 2 : index
    %2089 = arith.index_cast %2088 : i32 to index
    %c2_2386 = arith.constant 2 : index
    %2090 = vector.load %arg2[%c0_2384, %c2_2385, %2089, %c2_2386] : memref<1x3x16x16xf32, #tpu.memory_space<vmem>>, vector<1x1x1x14xf32>
    %2091 = vector.shape_cast %2090 : vector<1x1x1x14xf32> to vector<1x14xf32>
    %c23_2387 = arith.constant 23 : index
    %c168_2388 = arith.constant 168 : index
    %2092 = vector.load %arg5[%c23_2387, %c168_2388] : memref<32x196xf32, #tpu.memory_space<vmem>>, vector<1x14xf32>
    tpu.vector_store %arg5[%c23_2387, %c168_2388], %2091 {strides = array<i32>} : memref<32x196xf32, #tpu.memory_space<vmem>>, vector<1x14xf32>,
    %c12_i32_2389 = arith.constant 12 : i32
    %2093 = arith.addi %0, %c12_i32_2389 : i32
    %c2_i32_2390 = arith.constant 2 : i32
    %2094 = arith.addi %2093, %c2_i32_2390 : i32
    %c0_2391 = arith.constant 0 : index
    %c2_2392 = arith.constant 2 : index
    %2095 = arith.index_cast %2094 : i32 to index
    %c0_2393 = arith.constant 0 : index
    %2096 = vector.load %arg2[%c0_2391, %c2_2392, %2095, %c0_2393] : memref<1x3x16x16xf32, #tpu.memory_space<vmem>>, vector<1x1x1x14xf32>
    %2097 = vector.shape_cast %2096 : vector<1x1x1x14xf32> to vector<1x14xf32>
    %c24_2394 = arith.constant 24 : index
    %c168_2395 = arith.constant 168 : index
    %2098 = vector.load %arg5[%c24_2394, %c168_2395] : memref<32x196xf32, #tpu.memory_space<vmem>>, vector<1x14xf32>
    tpu.vector_store %arg5[%c24_2394, %c168_2395], %2097 {strides = array<i32>} : memref<32x196xf32, #tpu.memory_space<vmem>>, vector<1x14xf32>,
    %c12_i32_2396 = arith.constant 12 : i32
    %2099 = arith.addi %0, %c12_i32_2396 : i32
    %c2_i32_2397 = arith.constant 2 : i32
    %2100 = arith.addi %2099, %c2_i32_2397 : i32
    %c0_2398 = arith.constant 0 : index
    %c2_2399 = arith.constant 2 : index
    %2101 = arith.index_cast %2100 : i32 to index
    %c1_2400 = arith.constant 1 : index
    %2102 = vector.load %arg2[%c0_2398, %c2_2399, %2101, %c1_2400] : memref<1x3x16x16xf32, #tpu.memory_space<vmem>>, vector<1x1x1x14xf32>
    %2103 = vector.shape_cast %2102 : vector<1x1x1x14xf32> to vector<1x14xf32>
    %c25_2401 = arith.constant 25 : index
    %c168_2402 = arith.constant 168 : index
    %2104 = vector.load %arg5[%c25_2401, %c168_2402] : memref<32x196xf32, #tpu.memory_space<vmem>>, vector<1x14xf32>
    tpu.vector_store %arg5[%c25_2401, %c168_2402], %2103 {strides = array<i32>} : memref<32x196xf32, #tpu.memory_space<vmem>>, vector<1x14xf32>,
    %c12_i32_2403 = arith.constant 12 : i32
    %2105 = arith.addi %0, %c12_i32_2403 : i32
    %c2_i32_2404 = arith.constant 2 : i32
    %2106 = arith.addi %2105, %c2_i32_2404 : i32
    %c0_2405 = arith.constant 0 : index
    %c2_2406 = arith.constant 2 : index
    %2107 = arith.index_cast %2106 : i32 to index
    %c2_2407 = arith.constant 2 : index
    %2108 = vector.load %arg2[%c0_2405, %c2_2406, %2107, %c2_2407] : memref<1x3x16x16xf32, #tpu.memory_space<vmem>>, vector<1x1x1x14xf32>
    %2109 = vector.shape_cast %2108 : vector<1x1x1x14xf32> to vector<1x14xf32>
    %c26_2408 = arith.constant 26 : index
    %c168_2409 = arith.constant 168 : index
    %2110 = vector.load %arg5[%c26_2408, %c168_2409] : memref<32x196xf32, #tpu.memory_space<vmem>>, vector<1x14xf32>
    tpu.vector_store %arg5[%c26_2408, %c168_2409], %2109 {strides = array<i32>} : memref<32x196xf32, #tpu.memory_space<vmem>>, vector<1x14xf32>,
    %c13_i32 = arith.constant 13 : i32
    %2111 = arith.addi %0, %c13_i32 : i32
    %c0_i32_2410 = arith.constant 0 : i32
    %2112 = arith.addi %2111, %c0_i32_2410 : i32
    %c0_2411 = arith.constant 0 : index
    %c0_2412 = arith.constant 0 : index
    %2113 = arith.index_cast %2112 : i32 to index
    %c0_2413 = arith.constant 0 : index
    %2114 = vector.load %arg2[%c0_2411, %c0_2412, %2113, %c0_2413] : memref<1x3x16x16xf32, #tpu.memory_space<vmem>>, vector<1x1x1x14xf32>
    %2115 = vector.shape_cast %2114 : vector<1x1x1x14xf32> to vector<1x14xf32>
    %c0_2414 = arith.constant 0 : index
    %c182 = arith.constant 182 : index
    %2116 = vector.load %arg5[%c0_2414, %c182] : memref<32x196xf32, #tpu.memory_space<vmem>>, vector<1x14xf32>
    tpu.vector_store %arg5[%c0_2414, %c182], %2115 {strides = array<i32>} : memref<32x196xf32, #tpu.memory_space<vmem>>, vector<1x14xf32>,
    %c13_i32_2415 = arith.constant 13 : i32
    %2117 = arith.addi %0, %c13_i32_2415 : i32
    %c0_i32_2416 = arith.constant 0 : i32
    %2118 = arith.addi %2117, %c0_i32_2416 : i32
    %c0_2417 = arith.constant 0 : index
    %c0_2418 = arith.constant 0 : index
    %2119 = arith.index_cast %2118 : i32 to index
    %c1_2419 = arith.constant 1 : index
    %2120 = vector.load %arg2[%c0_2417, %c0_2418, %2119, %c1_2419] : memref<1x3x16x16xf32, #tpu.memory_space<vmem>>, vector<1x1x1x14xf32>
    %2121 = vector.shape_cast %2120 : vector<1x1x1x14xf32> to vector<1x14xf32>
    %c1_2420 = arith.constant 1 : index
    %c182_2421 = arith.constant 182 : index
    %2122 = vector.load %arg5[%c1_2420, %c182_2421] : memref<32x196xf32, #tpu.memory_space<vmem>>, vector<1x14xf32>
    tpu.vector_store %arg5[%c1_2420, %c182_2421], %2121 {strides = array<i32>} : memref<32x196xf32, #tpu.memory_space<vmem>>, vector<1x14xf32>,
    %c13_i32_2422 = arith.constant 13 : i32
    %2123 = arith.addi %0, %c13_i32_2422 : i32
    %c0_i32_2423 = arith.constant 0 : i32
    %2124 = arith.addi %2123, %c0_i32_2423 : i32
    %c0_2424 = arith.constant 0 : index
    %c0_2425 = arith.constant 0 : index
    %2125 = arith.index_cast %2124 : i32 to index
    %c2_2426 = arith.constant 2 : index
    %2126 = vector.load %arg2[%c0_2424, %c0_2425, %2125, %c2_2426] : memref<1x3x16x16xf32, #tpu.memory_space<vmem>>, vector<1x1x1x14xf32>
    %2127 = vector.shape_cast %2126 : vector<1x1x1x14xf32> to vector<1x14xf32>
    %c2_2427 = arith.constant 2 : index
    %c182_2428 = arith.constant 182 : index
    %2128 = vector.load %arg5[%c2_2427, %c182_2428] : memref<32x196xf32, #tpu.memory_space<vmem>>, vector<1x14xf32>
    tpu.vector_store %arg5[%c2_2427, %c182_2428], %2127 {strides = array<i32>} : memref<32x196xf32, #tpu.memory_space<vmem>>, vector<1x14xf32>,
    %c13_i32_2429 = arith.constant 13 : i32
    %2129 = arith.addi %0, %c13_i32_2429 : i32
    %c1_i32_2430 = arith.constant 1 : i32
    %2130 = arith.addi %2129, %c1_i32_2430 : i32
    %c0_2431 = arith.constant 0 : index
    %c0_2432 = arith.constant 0 : index
    %2131 = arith.index_cast %2130 : i32 to index
    %c0_2433 = arith.constant 0 : index
    %2132 = vector.load %arg2[%c0_2431, %c0_2432, %2131, %c0_2433] : memref<1x3x16x16xf32, #tpu.memory_space<vmem>>, vector<1x1x1x14xf32>
    %2133 = vector.shape_cast %2132 : vector<1x1x1x14xf32> to vector<1x14xf32>
    %c3_2434 = arith.constant 3 : index
    %c182_2435 = arith.constant 182 : index
    %2134 = vector.load %arg5[%c3_2434, %c182_2435] : memref<32x196xf32, #tpu.memory_space<vmem>>, vector<1x14xf32>
    tpu.vector_store %arg5[%c3_2434, %c182_2435], %2133 {strides = array<i32>} : memref<32x196xf32, #tpu.memory_space<vmem>>, vector<1x14xf32>,
    %c13_i32_2436 = arith.constant 13 : i32
    %2135 = arith.addi %0, %c13_i32_2436 : i32
    %c1_i32_2437 = arith.constant 1 : i32
    %2136 = arith.addi %2135, %c1_i32_2437 : i32
    %c0_2438 = arith.constant 0 : index
    %c0_2439 = arith.constant 0 : index
    %2137 = arith.index_cast %2136 : i32 to index
    %c1_2440 = arith.constant 1 : index
    %2138 = vector.load %arg2[%c0_2438, %c0_2439, %2137, %c1_2440] : memref<1x3x16x16xf32, #tpu.memory_space<vmem>>, vector<1x1x1x14xf32>
    %2139 = vector.shape_cast %2138 : vector<1x1x1x14xf32> to vector<1x14xf32>
    %c4_2441 = arith.constant 4 : index
    %c182_2442 = arith.constant 182 : index
    %2140 = vector.load %arg5[%c4_2441, %c182_2442] : memref<32x196xf32, #tpu.memory_space<vmem>>, vector<1x14xf32>
    tpu.vector_store %arg5[%c4_2441, %c182_2442], %2139 {strides = array<i32>} : memref<32x196xf32, #tpu.memory_space<vmem>>, vector<1x14xf32>,
    %c13_i32_2443 = arith.constant 13 : i32
    %2141 = arith.addi %0, %c13_i32_2443 : i32
    %c1_i32_2444 = arith.constant 1 : i32
    %2142 = arith.addi %2141, %c1_i32_2444 : i32
    %c0_2445 = arith.constant 0 : index
    %c0_2446 = arith.constant 0 : index
    %2143 = arith.index_cast %2142 : i32 to index
    %c2_2447 = arith.constant 2 : index
    %2144 = vector.load %arg2[%c0_2445, %c0_2446, %2143, %c2_2447] : memref<1x3x16x16xf32, #tpu.memory_space<vmem>>, vector<1x1x1x14xf32>
    %2145 = vector.shape_cast %2144 : vector<1x1x1x14xf32> to vector<1x14xf32>
    %c5_2448 = arith.constant 5 : index
    %c182_2449 = arith.constant 182 : index
    %2146 = vector.load %arg5[%c5_2448, %c182_2449] : memref<32x196xf32, #tpu.memory_space<vmem>>, vector<1x14xf32>
    tpu.vector_store %arg5[%c5_2448, %c182_2449], %2145 {strides = array<i32>} : memref<32x196xf32, #tpu.memory_space<vmem>>, vector<1x14xf32>,
    %c13_i32_2450 = arith.constant 13 : i32
    %2147 = arith.addi %0, %c13_i32_2450 : i32
    %c2_i32_2451 = arith.constant 2 : i32
    %2148 = arith.addi %2147, %c2_i32_2451 : i32
    %c0_2452 = arith.constant 0 : index
    %c0_2453 = arith.constant 0 : index
    %2149 = arith.index_cast %2148 : i32 to index
    %c0_2454 = arith.constant 0 : index
    %2150 = vector.load %arg2[%c0_2452, %c0_2453, %2149, %c0_2454] : memref<1x3x16x16xf32, #tpu.memory_space<vmem>>, vector<1x1x1x14xf32>
    %2151 = vector.shape_cast %2150 : vector<1x1x1x14xf32> to vector<1x14xf32>
    %c6_2455 = arith.constant 6 : index
    %c182_2456 = arith.constant 182 : index
    %2152 = vector.load %arg5[%c6_2455, %c182_2456] : memref<32x196xf32, #tpu.memory_space<vmem>>, vector<1x14xf32>
    tpu.vector_store %arg5[%c6_2455, %c182_2456], %2151 {strides = array<i32>} : memref<32x196xf32, #tpu.memory_space<vmem>>, vector<1x14xf32>,
    %c13_i32_2457 = arith.constant 13 : i32
    %2153 = arith.addi %0, %c13_i32_2457 : i32
    %c2_i32_2458 = arith.constant 2 : i32
    %2154 = arith.addi %2153, %c2_i32_2458 : i32
    %c0_2459 = arith.constant 0 : index
    %c0_2460 = arith.constant 0 : index
    %2155 = arith.index_cast %2154 : i32 to index
    %c1_2461 = arith.constant 1 : index
    %2156 = vector.load %arg2[%c0_2459, %c0_2460, %2155, %c1_2461] : memref<1x3x16x16xf32, #tpu.memory_space<vmem>>, vector<1x1x1x14xf32>
    %2157 = vector.shape_cast %2156 : vector<1x1x1x14xf32> to vector<1x14xf32>
    %c7_2462 = arith.constant 7 : index
    %c182_2463 = arith.constant 182 : index
    %2158 = vector.load %arg5[%c7_2462, %c182_2463] : memref<32x196xf32, #tpu.memory_space<vmem>>, vector<1x14xf32>
    tpu.vector_store %arg5[%c7_2462, %c182_2463], %2157 {strides = array<i32>} : memref<32x196xf32, #tpu.memory_space<vmem>>, vector<1x14xf32>,
    %c13_i32_2464 = arith.constant 13 : i32
    %2159 = arith.addi %0, %c13_i32_2464 : i32
    %c2_i32_2465 = arith.constant 2 : i32
    %2160 = arith.addi %2159, %c2_i32_2465 : i32
    %c0_2466 = arith.constant 0 : index
    %c0_2467 = arith.constant 0 : index
    %2161 = arith.index_cast %2160 : i32 to index
    %c2_2468 = arith.constant 2 : index
    %2162 = vector.load %arg2[%c0_2466, %c0_2467, %2161, %c2_2468] : memref<1x3x16x16xf32, #tpu.memory_space<vmem>>, vector<1x1x1x14xf32>
    %2163 = vector.shape_cast %2162 : vector<1x1x1x14xf32> to vector<1x14xf32>
    %c8_2469 = arith.constant 8 : index
    %c182_2470 = arith.constant 182 : index
    %2164 = vector.load %arg5[%c8_2469, %c182_2470] : memref<32x196xf32, #tpu.memory_space<vmem>>, vector<1x14xf32>
    tpu.vector_store %arg5[%c8_2469, %c182_2470], %2163 {strides = array<i32>} : memref<32x196xf32, #tpu.memory_space<vmem>>, vector<1x14xf32>,
    %c13_i32_2471 = arith.constant 13 : i32
    %2165 = arith.addi %0, %c13_i32_2471 : i32
    %c0_i32_2472 = arith.constant 0 : i32
    %2166 = arith.addi %2165, %c0_i32_2472 : i32
    %c0_2473 = arith.constant 0 : index
    %c1_2474 = arith.constant 1 : index
    %2167 = arith.index_cast %2166 : i32 to index
    %c0_2475 = arith.constant 0 : index
    %2168 = vector.load %arg2[%c0_2473, %c1_2474, %2167, %c0_2475] : memref<1x3x16x16xf32, #tpu.memory_space<vmem>>, vector<1x1x1x14xf32>
    %2169 = vector.shape_cast %2168 : vector<1x1x1x14xf32> to vector<1x14xf32>
    %c9_2476 = arith.constant 9 : index
    %c182_2477 = arith.constant 182 : index
    %2170 = vector.load %arg5[%c9_2476, %c182_2477] : memref<32x196xf32, #tpu.memory_space<vmem>>, vector<1x14xf32>
    tpu.vector_store %arg5[%c9_2476, %c182_2477], %2169 {strides = array<i32>} : memref<32x196xf32, #tpu.memory_space<vmem>>, vector<1x14xf32>,
    %c13_i32_2478 = arith.constant 13 : i32
    %2171 = arith.addi %0, %c13_i32_2478 : i32
    %c0_i32_2479 = arith.constant 0 : i32
    %2172 = arith.addi %2171, %c0_i32_2479 : i32
    %c0_2480 = arith.constant 0 : index
    %c1_2481 = arith.constant 1 : index
    %2173 = arith.index_cast %2172 : i32 to index
    %c1_2482 = arith.constant 1 : index
    %2174 = vector.load %arg2[%c0_2480, %c1_2481, %2173, %c1_2482] : memref<1x3x16x16xf32, #tpu.memory_space<vmem>>, vector<1x1x1x14xf32>
    %2175 = vector.shape_cast %2174 : vector<1x1x1x14xf32> to vector<1x14xf32>
    %c10_2483 = arith.constant 10 : index
    %c182_2484 = arith.constant 182 : index
    %2176 = vector.load %arg5[%c10_2483, %c182_2484] : memref<32x196xf32, #tpu.memory_space<vmem>>, vector<1x14xf32>
    tpu.vector_store %arg5[%c10_2483, %c182_2484], %2175 {strides = array<i32>} : memref<32x196xf32, #tpu.memory_space<vmem>>, vector<1x14xf32>,
    %c13_i32_2485 = arith.constant 13 : i32
    %2177 = arith.addi %0, %c13_i32_2485 : i32
    %c0_i32_2486 = arith.constant 0 : i32
    %2178 = arith.addi %2177, %c0_i32_2486 : i32
    %c0_2487 = arith.constant 0 : index
    %c1_2488 = arith.constant 1 : index
    %2179 = arith.index_cast %2178 : i32 to index
    %c2_2489 = arith.constant 2 : index
    %2180 = vector.load %arg2[%c0_2487, %c1_2488, %2179, %c2_2489] : memref<1x3x16x16xf32, #tpu.memory_space<vmem>>, vector<1x1x1x14xf32>
    %2181 = vector.shape_cast %2180 : vector<1x1x1x14xf32> to vector<1x14xf32>
    %c11_2490 = arith.constant 11 : index
    %c182_2491 = arith.constant 182 : index
    %2182 = vector.load %arg5[%c11_2490, %c182_2491] : memref<32x196xf32, #tpu.memory_space<vmem>>, vector<1x14xf32>
    tpu.vector_store %arg5[%c11_2490, %c182_2491], %2181 {strides = array<i32>} : memref<32x196xf32, #tpu.memory_space<vmem>>, vector<1x14xf32>,
    %c13_i32_2492 = arith.constant 13 : i32
    %2183 = arith.addi %0, %c13_i32_2492 : i32
    %c1_i32_2493 = arith.constant 1 : i32
    %2184 = arith.addi %2183, %c1_i32_2493 : i32
    %c0_2494 = arith.constant 0 : index
    %c1_2495 = arith.constant 1 : index
    %2185 = arith.index_cast %2184 : i32 to index
    %c0_2496 = arith.constant 0 : index
    %2186 = vector.load %arg2[%c0_2494, %c1_2495, %2185, %c0_2496] : memref<1x3x16x16xf32, #tpu.memory_space<vmem>>, vector<1x1x1x14xf32>
    %2187 = vector.shape_cast %2186 : vector<1x1x1x14xf32> to vector<1x14xf32>
    %c12_2497 = arith.constant 12 : index
    %c182_2498 = arith.constant 182 : index
    %2188 = vector.load %arg5[%c12_2497, %c182_2498] : memref<32x196xf32, #tpu.memory_space<vmem>>, vector<1x14xf32>
    tpu.vector_store %arg5[%c12_2497, %c182_2498], %2187 {strides = array<i32>} : memref<32x196xf32, #tpu.memory_space<vmem>>, vector<1x14xf32>,
    %c13_i32_2499 = arith.constant 13 : i32
    %2189 = arith.addi %0, %c13_i32_2499 : i32
    %c1_i32_2500 = arith.constant 1 : i32
    %2190 = arith.addi %2189, %c1_i32_2500 : i32
    %c0_2501 = arith.constant 0 : index
    %c1_2502 = arith.constant 1 : index
    %2191 = arith.index_cast %2190 : i32 to index
    %c1_2503 = arith.constant 1 : index
    %2192 = vector.load %arg2[%c0_2501, %c1_2502, %2191, %c1_2503] : memref<1x3x16x16xf32, #tpu.memory_space<vmem>>, vector<1x1x1x14xf32>
    %2193 = vector.shape_cast %2192 : vector<1x1x1x14xf32> to vector<1x14xf32>
    %c13_2504 = arith.constant 13 : index
    %c182_2505 = arith.constant 182 : index
    %2194 = vector.load %arg5[%c13_2504, %c182_2505] : memref<32x196xf32, #tpu.memory_space<vmem>>, vector<1x14xf32>
    tpu.vector_store %arg5[%c13_2504, %c182_2505], %2193 {strides = array<i32>} : memref<32x196xf32, #tpu.memory_space<vmem>>, vector<1x14xf32>,
    %c13_i32_2506 = arith.constant 13 : i32
    %2195 = arith.addi %0, %c13_i32_2506 : i32
    %c1_i32_2507 = arith.constant 1 : i32
    %2196 = arith.addi %2195, %c1_i32_2507 : i32
    %c0_2508 = arith.constant 0 : index
    %c1_2509 = arith.constant 1 : index
    %2197 = arith.index_cast %2196 : i32 to index
    %c2_2510 = arith.constant 2 : index
    %2198 = vector.load %arg2[%c0_2508, %c1_2509, %2197, %c2_2510] : memref<1x3x16x16xf32, #tpu.memory_space<vmem>>, vector<1x1x1x14xf32>
    %2199 = vector.shape_cast %2198 : vector<1x1x1x14xf32> to vector<1x14xf32>
    %c14_2511 = arith.constant 14 : index
    %c182_2512 = arith.constant 182 : index
    %2200 = vector.load %arg5[%c14_2511, %c182_2512] : memref<32x196xf32, #tpu.memory_space<vmem>>, vector<1x14xf32>
    tpu.vector_store %arg5[%c14_2511, %c182_2512], %2199 {strides = array<i32>} : memref<32x196xf32, #tpu.memory_space<vmem>>, vector<1x14xf32>,
    %c13_i32_2513 = arith.constant 13 : i32
    %2201 = arith.addi %0, %c13_i32_2513 : i32
    %c2_i32_2514 = arith.constant 2 : i32
    %2202 = arith.addi %2201, %c2_i32_2514 : i32
    %c0_2515 = arith.constant 0 : index
    %c1_2516 = arith.constant 1 : index
    %2203 = arith.index_cast %2202 : i32 to index
    %c0_2517 = arith.constant 0 : index
    %2204 = vector.load %arg2[%c0_2515, %c1_2516, %2203, %c0_2517] : memref<1x3x16x16xf32, #tpu.memory_space<vmem>>, vector<1x1x1x14xf32>
    %2205 = vector.shape_cast %2204 : vector<1x1x1x14xf32> to vector<1x14xf32>
    %c15_2518 = arith.constant 15 : index
    %c182_2519 = arith.constant 182 : index
    %2206 = vector.load %arg5[%c15_2518, %c182_2519] : memref<32x196xf32, #tpu.memory_space<vmem>>, vector<1x14xf32>
    tpu.vector_store %arg5[%c15_2518, %c182_2519], %2205 {strides = array<i32>} : memref<32x196xf32, #tpu.memory_space<vmem>>, vector<1x14xf32>,
    %c13_i32_2520 = arith.constant 13 : i32
    %2207 = arith.addi %0, %c13_i32_2520 : i32
    %c2_i32_2521 = arith.constant 2 : i32
    %2208 = arith.addi %2207, %c2_i32_2521 : i32
    %c0_2522 = arith.constant 0 : index
    %c1_2523 = arith.constant 1 : index
    %2209 = arith.index_cast %2208 : i32 to index
    %c1_2524 = arith.constant 1 : index
    %2210 = vector.load %arg2[%c0_2522, %c1_2523, %2209, %c1_2524] : memref<1x3x16x16xf32, #tpu.memory_space<vmem>>, vector<1x1x1x14xf32>
    %2211 = vector.shape_cast %2210 : vector<1x1x1x14xf32> to vector<1x14xf32>
    %c16_2525 = arith.constant 16 : index
    %c182_2526 = arith.constant 182 : index
    %2212 = vector.load %arg5[%c16_2525, %c182_2526] : memref<32x196xf32, #tpu.memory_space<vmem>>, vector<1x14xf32>
    tpu.vector_store %arg5[%c16_2525, %c182_2526], %2211 {strides = array<i32>} : memref<32x196xf32, #tpu.memory_space<vmem>>, vector<1x14xf32>,
    %c13_i32_2527 = arith.constant 13 : i32
    %2213 = arith.addi %0, %c13_i32_2527 : i32
    %c2_i32_2528 = arith.constant 2 : i32
    %2214 = arith.addi %2213, %c2_i32_2528 : i32
    %c0_2529 = arith.constant 0 : index
    %c1_2530 = arith.constant 1 : index
    %2215 = arith.index_cast %2214 : i32 to index
    %c2_2531 = arith.constant 2 : index
    %2216 = vector.load %arg2[%c0_2529, %c1_2530, %2215, %c2_2531] : memref<1x3x16x16xf32, #tpu.memory_space<vmem>>, vector<1x1x1x14xf32>
    %2217 = vector.shape_cast %2216 : vector<1x1x1x14xf32> to vector<1x14xf32>
    %c17_2532 = arith.constant 17 : index
    %c182_2533 = arith.constant 182 : index
    %2218 = vector.load %arg5[%c17_2532, %c182_2533] : memref<32x196xf32, #tpu.memory_space<vmem>>, vector<1x14xf32>
    tpu.vector_store %arg5[%c17_2532, %c182_2533], %2217 {strides = array<i32>} : memref<32x196xf32, #tpu.memory_space<vmem>>, vector<1x14xf32>,
    %c13_i32_2534 = arith.constant 13 : i32
    %2219 = arith.addi %0, %c13_i32_2534 : i32
    %c0_i32_2535 = arith.constant 0 : i32
    %2220 = arith.addi %2219, %c0_i32_2535 : i32
    %c0_2536 = arith.constant 0 : index
    %c2_2537 = arith.constant 2 : index
    %2221 = arith.index_cast %2220 : i32 to index
    %c0_2538 = arith.constant 0 : index
    %2222 = vector.load %arg2[%c0_2536, %c2_2537, %2221, %c0_2538] : memref<1x3x16x16xf32, #tpu.memory_space<vmem>>, vector<1x1x1x14xf32>
    %2223 = vector.shape_cast %2222 : vector<1x1x1x14xf32> to vector<1x14xf32>
    %c18_2539 = arith.constant 18 : index
    %c182_2540 = arith.constant 182 : index
    %2224 = vector.load %arg5[%c18_2539, %c182_2540] : memref<32x196xf32, #tpu.memory_space<vmem>>, vector<1x14xf32>
    tpu.vector_store %arg5[%c18_2539, %c182_2540], %2223 {strides = array<i32>} : memref<32x196xf32, #tpu.memory_space<vmem>>, vector<1x14xf32>,
    %c13_i32_2541 = arith.constant 13 : i32
    %2225 = arith.addi %0, %c13_i32_2541 : i32
    %c0_i32_2542 = arith.constant 0 : i32
    %2226 = arith.addi %2225, %c0_i32_2542 : i32
    %c0_2543 = arith.constant 0 : index
    %c2_2544 = arith.constant 2 : index
    %2227 = arith.index_cast %2226 : i32 to index
    %c1_2545 = arith.constant 1 : index
    %2228 = vector.load %arg2[%c0_2543, %c2_2544, %2227, %c1_2545] : memref<1x3x16x16xf32, #tpu.memory_space<vmem>>, vector<1x1x1x14xf32>
    %2229 = vector.shape_cast %2228 : vector<1x1x1x14xf32> to vector<1x14xf32>
    %c19_2546 = arith.constant 19 : index
    %c182_2547 = arith.constant 182 : index
    %2230 = vector.load %arg5[%c19_2546, %c182_2547] : memref<32x196xf32, #tpu.memory_space<vmem>>, vector<1x14xf32>
    tpu.vector_store %arg5[%c19_2546, %c182_2547], %2229 {strides = array<i32>} : memref<32x196xf32, #tpu.memory_space<vmem>>, vector<1x14xf32>,
    %c13_i32_2548 = arith.constant 13 : i32
    %2231 = arith.addi %0, %c13_i32_2548 : i32
    %c0_i32_2549 = arith.constant 0 : i32
    %2232 = arith.addi %2231, %c0_i32_2549 : i32
    %c0_2550 = arith.constant 0 : index
    %c2_2551 = arith.constant 2 : index
    %2233 = arith.index_cast %2232 : i32 to index
    %c2_2552 = arith.constant 2 : index
    %2234 = vector.load %arg2[%c0_2550, %c2_2551, %2233, %c2_2552] : memref<1x3x16x16xf32, #tpu.memory_space<vmem>>, vector<1x1x1x14xf32>
    %2235 = vector.shape_cast %2234 : vector<1x1x1x14xf32> to vector<1x14xf32>
    %c20_2553 = arith.constant 20 : index
    %c182_2554 = arith.constant 182 : index
    %2236 = vector.load %arg5[%c20_2553, %c182_2554] : memref<32x196xf32, #tpu.memory_space<vmem>>, vector<1x14xf32>
    tpu.vector_store %arg5[%c20_2553, %c182_2554], %2235 {strides = array<i32>} : memref<32x196xf32, #tpu.memory_space<vmem>>, vector<1x14xf32>,
    %c13_i32_2555 = arith.constant 13 : i32
    %2237 = arith.addi %0, %c13_i32_2555 : i32
    %c1_i32_2556 = arith.constant 1 : i32
    %2238 = arith.addi %2237, %c1_i32_2556 : i32
    %c0_2557 = arith.constant 0 : index
    %c2_2558 = arith.constant 2 : index
    %2239 = arith.index_cast %2238 : i32 to index
    %c0_2559 = arith.constant 0 : index
    %2240 = vector.load %arg2[%c0_2557, %c2_2558, %2239, %c0_2559] : memref<1x3x16x16xf32, #tpu.memory_space<vmem>>, vector<1x1x1x14xf32>
    %2241 = vector.shape_cast %2240 : vector<1x1x1x14xf32> to vector<1x14xf32>
    %c21_2560 = arith.constant 21 : index
    %c182_2561 = arith.constant 182 : index
    %2242 = vector.load %arg5[%c21_2560, %c182_2561] : memref<32x196xf32, #tpu.memory_space<vmem>>, vector<1x14xf32>
    tpu.vector_store %arg5[%c21_2560, %c182_2561], %2241 {strides = array<i32>} : memref<32x196xf32, #tpu.memory_space<vmem>>, vector<1x14xf32>,
    %c13_i32_2562 = arith.constant 13 : i32
    %2243 = arith.addi %0, %c13_i32_2562 : i32
    %c1_i32_2563 = arith.constant 1 : i32
    %2244 = arith.addi %2243, %c1_i32_2563 : i32
    %c0_2564 = arith.constant 0 : index
    %c2_2565 = arith.constant 2 : index
    %2245 = arith.index_cast %2244 : i32 to index
    %c1_2566 = arith.constant 1 : index
    %2246 = vector.load %arg2[%c0_2564, %c2_2565, %2245, %c1_2566] : memref<1x3x16x16xf32, #tpu.memory_space<vmem>>, vector<1x1x1x14xf32>
    %2247 = vector.shape_cast %2246 : vector<1x1x1x14xf32> to vector<1x14xf32>
    %c22_2567 = arith.constant 22 : index
    %c182_2568 = arith.constant 182 : index
    %2248 = vector.load %arg5[%c22_2567, %c182_2568] : memref<32x196xf32, #tpu.memory_space<vmem>>, vector<1x14xf32>
    tpu.vector_store %arg5[%c22_2567, %c182_2568], %2247 {strides = array<i32>} : memref<32x196xf32, #tpu.memory_space<vmem>>, vector<1x14xf32>,
    %c13_i32_2569 = arith.constant 13 : i32
    %2249 = arith.addi %0, %c13_i32_2569 : i32
    %c1_i32_2570 = arith.constant 1 : i32
    %2250 = arith.addi %2249, %c1_i32_2570 : i32
    %c0_2571 = arith.constant 0 : index
    %c2_2572 = arith.constant 2 : index
    %2251 = arith.index_cast %2250 : i32 to index
    %c2_2573 = arith.constant 2 : index
    %2252 = vector.load %arg2[%c0_2571, %c2_2572, %2251, %c2_2573] : memref<1x3x16x16xf32, #tpu.memory_space<vmem>>, vector<1x1x1x14xf32>
    %2253 = vector.shape_cast %2252 : vector<1x1x1x14xf32> to vector<1x14xf32>
    %c23_2574 = arith.constant 23 : index
    %c182_2575 = arith.constant 182 : index
    %2254 = vector.load %arg5[%c23_2574, %c182_2575] : memref<32x196xf32, #tpu.memory_space<vmem>>, vector<1x14xf32>
    tpu.vector_store %arg5[%c23_2574, %c182_2575], %2253 {strides = array<i32>} : memref<32x196xf32, #tpu.memory_space<vmem>>, vector<1x14xf32>,
    %c13_i32_2576 = arith.constant 13 : i32
    %2255 = arith.addi %0, %c13_i32_2576 : i32
    %c2_i32_2577 = arith.constant 2 : i32
    %2256 = arith.addi %2255, %c2_i32_2577 : i32
    %c0_2578 = arith.constant 0 : index
    %c2_2579 = arith.constant 2 : index
    %2257 = arith.index_cast %2256 : i32 to index
    %c0_2580 = arith.constant 0 : index
    %2258 = vector.load %arg2[%c0_2578, %c2_2579, %2257, %c0_2580] : memref<1x3x16x16xf32, #tpu.memory_space<vmem>>, vector<1x1x1x14xf32>
    %2259 = vector.shape_cast %2258 : vector<1x1x1x14xf32> to vector<1x14xf32>
    %c24_2581 = arith.constant 24 : index
    %c182_2582 = arith.constant 182 : index
    %2260 = vector.load %arg5[%c24_2581, %c182_2582] : memref<32x196xf32, #tpu.memory_space<vmem>>, vector<1x14xf32>
    tpu.vector_store %arg5[%c24_2581, %c182_2582], %2259 {strides = array<i32>} : memref<32x196xf32, #tpu.memory_space<vmem>>, vector<1x14xf32>,
    %c13_i32_2583 = arith.constant 13 : i32
    %2261 = arith.addi %0, %c13_i32_2583 : i32
    %c2_i32_2584 = arith.constant 2 : i32
    %2262 = arith.addi %2261, %c2_i32_2584 : i32
    %c0_2585 = arith.constant 0 : index
    %c2_2586 = arith.constant 2 : index
    %2263 = arith.index_cast %2262 : i32 to index
    %c1_2587 = arith.constant 1 : index
    %2264 = vector.load %arg2[%c0_2585, %c2_2586, %2263, %c1_2587] : memref<1x3x16x16xf32, #tpu.memory_space<vmem>>, vector<1x1x1x14xf32>
    %2265 = vector.shape_cast %2264 : vector<1x1x1x14xf32> to vector<1x14xf32>
    %c25_2588 = arith.constant 25 : index
    %c182_2589 = arith.constant 182 : index
    %2266 = vector.load %arg5[%c25_2588, %c182_2589] : memref<32x196xf32, #tpu.memory_space<vmem>>, vector<1x14xf32>
    tpu.vector_store %arg5[%c25_2588, %c182_2589], %2265 {strides = array<i32>} : memref<32x196xf32, #tpu.memory_space<vmem>>, vector<1x14xf32>,
    %c13_i32_2590 = arith.constant 13 : i32
    %2267 = arith.addi %0, %c13_i32_2590 : i32
    %c2_i32_2591 = arith.constant 2 : i32
    %2268 = arith.addi %2267, %c2_i32_2591 : i32
    %c0_2592 = arith.constant 0 : index
    %c2_2593 = arith.constant 2 : index
    %2269 = arith.index_cast %2268 : i32 to index
    %c2_2594 = arith.constant 2 : index
    %2270 = vector.load %arg2[%c0_2592, %c2_2593, %2269, %c2_2594] : memref<1x3x16x16xf32, #tpu.memory_space<vmem>>, vector<1x1x1x14xf32>
    %2271 = vector.shape_cast %2270 : vector<1x1x1x14xf32> to vector<1x14xf32>
    %c26_2595 = arith.constant 26 : index
    %c182_2596 = arith.constant 182 : index
    %2272 = vector.load %arg5[%c26_2595, %c182_2596] : memref<32x196xf32, #tpu.memory_space<vmem>>, vector<1x14xf32>
    tpu.vector_store %arg5[%c26_2595, %c182_2596], %2271 {strides = array<i32>} : memref<32x196xf32, #tpu.memory_space<vmem>>, vector<1x14xf32>,
    %c0_2597 = arith.constant 0 : index
    %c0_2598 = arith.constant 0 : index
    %2273 = vector.load %arg3[%c0_2597, %c0_2598] : memref<64x32xf32, #tpu.memory_space<vmem>>, vector<64x32xf32>
    %c0_2599 = arith.constant 0 : index
    %c0_2600 = arith.constant 0 : index
    %2274 = vector.load %arg5[%c0_2599, %c0_2600] : memref<32x196xf32, #tpu.memory_space<vmem>>, vector<32x196xf32>
    %cst_2601 = arith.constant dense<0.000000e+00> : vector<64x196xf32>
    %2275 = tpu.matmul %2273, %2274, %cst_2601 {dimension_numbers = #tpu.dot_dimension_numbers<[1], [0], [0], [1], [0, 0, 1, 1], [], []>} : vector<64x32xf32>, vector<32x196xf32>, vector<64x196xf32> -> vector<64x196xf32>
    %c0_2602 = arith.constant 0 : index
    %c0_2603 = arith.constant 0 : index
    %c0_2604 = arith.constant 0 : index
    %2276 = vector.load %arg4[%c0_2602, %c0_2603, %c0_2604] : memref<1x64x196xf32, #tpu.memory_space<vmem>>, vector<1x64x196xf32>
    %2277 = vector.shape_cast %2276 : vector<1x64x196xf32> to vector<64x196xf32>
    %2278 = vector.shape_cast %2275 : vector<64x196xf32> to vector<1x64x196xf32>
    tpu.vector_store %arg4[%c0_2602, %c0_2603, %c0_2604], %2278 {strides = array<i32>} : memref<1x64x196xf32, #tpu.memory_space<vmem>>, vector<1x64x196xf32>,
    return
  }
  func.func @transform_0(%arg0: i32, %arg1: i32) -> (i32, i32, i32, i32) {
    %c0_i32 = arith.constant 0 : i32
    %c0_i32_0 = arith.constant 0 : i32
    %c0_i32_1 = arith.constant 0 : i32
    %c0_i32_2 = arith.constant 0 : i32
    return %arg0, %c0_i32, %c0_i32_0, %c0_i32_1 : i32, i32, i32, i32
  }
  func.func @transform_1(%arg0: i32, %arg1: i32) -> (i32, i32) {
    %c0_i32 = arith.constant 0 : i32
    %c0_i32_0 = arith.constant 0 : i32
    %c0_i32_1 = arith.constant 0 : i32
    return %c0_i32, %c0_i32_0 : i32, i32
  }
  func.func @transform_2(%arg0: i32, %arg1: i32) -> (i32, i32, i32) {
    %c0_i32 = arith.constant 0 : i32
    %c0_i32_0 = arith.constant 0 : i32
    return %arg0, %c0_i32, %arg1 : i32, i32, i32
  }
}

</mosaic_0001>

<llo_original>
// kernel: tpu_custom_call.1
$region0: #{tpu_custom_call.1}
  #allocation0 [shape = 'u32[]', space=smem, size = 0x4, offset = 0x4, fixed_abs, tag = 'smem constant byte address 0x4 - core index']
  #allocation1 [shape = 'u32[144,128]{1,0:T(1,128)}', space=vmem, size = 0x12000, scoped, tag = 'internal scratch']
  #allocation2 [shape = 'f32[32,196]{1,0:T(8,128)}', space=vmem, size = 0x8000, scoped, tag = 'scratch operand']
  %s0 = inlined_call_operand.vmem [shape: f32[2,3,16,16], index: 0, kind: input, shape index: {}]
  %s1 = inlined_call_operand.vmem [shape: f32[64,32], index: 1, kind: input, shape index: {}]
  %s2 = inlined_call_operand.hbm [shape: f32[2,64,196], index: 2, kind: output, shape index: {}]
  %s3 = sld [smem:[#allocation0]]
  $region41: #{tpu_custom_call.1} parent=0
    _
  %s5 = ssub.s32 1, %s3
  %s6 = scalar_select 0, %s5, %s3
  $region1: #{tpu_custom_call.1} parent=0
    #allocation3 [shape = 'u8[131072]{0}', space=vmem, size = 0x20000, scoped, tag = 'output window, operand 0']
    #allocation4 [shape = 's32[2]{0}', space=sflag, size = 0x8, scoped, tag = 'scoped memory for tpu_custom_call.1']
    %7 = vsyncpa [#allocation4], 0
    %s8 = scalar_lea.sflag [#allocation4], 1
    %9 = vsyncpa %s8, 0
    loop: start=0, step=1, limit=4
    $region2: #{tpu_custom_call.1} parent=1 // loop_pre_header
      _
    $region3: #{tpu_custom_call.1} parent=1 // loop_header
      %s11 = sphi 0, %s15
      %p12 = scmp.ge.s32.totalorder %s11, 4
      %s18 = sphi 0, %s30
      %s19 = sphi 0, %s26
      %s20 = sphi 0, %s18
      %s21 = sphi 0, %s19
      %s22 = sphi 0, %s20
      %s23 = sphi 0, %s21
      %s33 = sphi 0, %s35
      %s36 = sphi 0, %s33
      %s37 = sphi 0, %s36
      %s53 = sphi 0, %s37
      %s57 = sphi 0, %s57
      %s59 = sphi 0, %s57
      %s60 = sphi 0, %s59
      %s74 = sphi 0, %s60
      %s82 = sphi 0, %s84
      %s85 = sphi 0, %s82
      %s86 = sphi 0, %s85
      %s102 = sphi 0, %s86
    $region4: #{tpu_custom_call.1} parent=1 // loop_header_branch
      %14 = sbr.rel (%p12) target = $region8
    $region5: #{tpu_custom_call.1} parent=1 // loop_body
      %s16 = ssub.s32 %s11, 1
      %s17 = ssub.s32 %s11, 2
      %s24 = sadd.s32 1, %s19
      %p25 = scmp.ge.s32.totalorder %s24, 1
      %s26 = scalar_select %p25, 0, %s24
      %s27 = sadd.s32 1, %s18
      %s28 = scalar_select %p25, %s27, %s18
      %p29 = scmp.ge.s32.totalorder %s28, 2
      %s30 = scalar_select %p29, 0, %s28
      %s31 = ssub.s32 %s18, %s30
      %p32 = scmp.eq.s32.totalorder %s31, 0
      %s34 = sadd.s32 %s33, 1
      %s35 = scalar_select %p32, %s33, %s34
      %p38 = pneg %p32
      %p39 = scmp.eq.s32.totalorder %s11, 1
      %p40 = por %p38, %p39
      %p41 = scmp.ne.s32.totalorder %s33, %s36
      %p42 = scmp.eq.s32.totalorder %s11, 0
      %p43 = por %p41, %p42
      %p44 = scmp.ne.s32.totalorder %s33, %s36
      %p45 = scmp.eq.s32.totalorder %s16, 1
      %p46 = por %p44, %p45
      %p47 = scmp.ne.s32.totalorder %s36, %s37
      %p48 = scmp.eq.s32.totalorder %s16, 0
      %p49 = por %p47, %p48
      %p50 = scmp.ne.s32.totalorder %s36, %s37
      %p51 = scmp.eq.s32.totalorder %s17, 1
      %p52 = por %p50, %p51
      %p54 = scmp.ne.s32.totalorder %s37, %s53
      %p55 = scmp.eq.s32.totalorder %s17, 0
      %p56 = por %p54, %p55
      %s58 = sadd.s32 %s57, 1
      %p61 = scmp.eq.s32.totalorder %s11, 1
      %p62 = scmp.ne.s32.totalorder %s57, %s59
      %p63 = scmp.eq.s32.totalorder %s11, 0
      %p64 = por %p62, %p63
      %p65 = scmp.ne.s32.totalorder %s57, %s59
      %p66 = scmp.eq.s32.totalorder %s16, 1
      %p67 = por %p65, %p66
      %p68 = scmp.ne.s32.totalorder %s59, %s60
      %p69 = scmp.eq.s32.totalorder %s16, 0
      %p70 = por %p68, %p69
      %p71 = scmp.ne.s32.totalorder %s59, %s60
      %p72 = scmp.eq.s32.totalorder %s17, 1
      %p73 = por %p71, %p72
      %p75 = scmp.ne.s32.totalorder %s60, %s74
      %p76 = scmp.eq.s32.totalorder %s17, 0
      %p77 = por %p75, %p76
      %s78 = ssub.s32 %s18, %s30
      %s79 = ssub.s32 %s19, %s26
      %s80 = sor.u32 %s78, %s79
      %p81 = scmp.eq.s32.totalorder %s80, 0
      %s83 = sadd.s32 %s82, 1
      %s84 = scalar_select %p81, %s82, %s83
      %p87 = pneg %p81
      %p88 = scmp.eq.s32.totalorder %s11, 1
      %p89 = por %p87, %p88
      %p90 = scmp.ne.s32.totalorder %s82, %s85
      %p91 = scmp.eq.s32.totalorder %s11, 0
      %p92 = por %p90, %p91
      %p93 = scmp.ne.s32.totalorder %s82, %s85
      %p94 = scmp.eq.s32.totalorder %s16, 1
      %p95 = por %p93, %p94
      %p96 = scmp.ne.s32.totalorder %s85, %s86
      %p97 = scmp.eq.s32.totalorder %s16, 0
      %p98 = por %p96, %p97
      %p99 = scmp.ne.s32.totalorder %s85, %s86
      %p100 = scmp.eq.s32.totalorder %s17, 1
      %p101 = por %p99, %p100
      %p103 = scmp.ne.s32.totalorder %s86, %s102
      %p104 = scmp.eq.s32.totalorder %s17, 0
      %p105 = por %p103, %p104
      %p106 = scmp.le.s32.totalorder 1, %s11
      %p107 = scmp.lt.s32.totalorder %s11, 3
      %p108 = pnand %p106, %p107
      %p109 = pneg %p108
      // Predicated region
      $region9: #{tpu_custom_call.1} parent=5 // pred_check
        _
      $region10: #{tpu_custom_call.1} parent=5 // pred_check_branch
        %111 = sbr.rel (%p108) target = $region12
      $region11: #{tpu_custom_call.1} parent=5 // pred_region
        %s112 = ssub.s32 %s11, 1
        // Predicated region
        $region13: #{tpu_custom_call.1} parent=11 // pred_check
          %p113 = pneg %p70
        $region14: #{tpu_custom_call.1} parent=11 // pred_check_branch
          %115 = sbr.rel (%p113) target = $region16
        $region15: #{tpu_custom_call.1} parent=11 // pred_region
          _
        $region16: #{tpu_custom_call.1} parent=11 // pred_fallthru
          _
      $region12: #{tpu_custom_call.1} parent=5 // pred_fallthru
        _
      %p116 = scmp.lt.s32.totalorder %s11, 2
      // Predicated region
      $region17: #{tpu_custom_call.1} parent=5 // pred_check
        %p117 = pneg %p116
      $region18: #{tpu_custom_call.1} parent=5 // pred_check_branch
        %119 = sbr.rel (%p117) target = $region20
      $region19: #{tpu_custom_call.1} parent=5 // pred_region
        // Predicated region
        $region21: #{tpu_custom_call.1} parent=19 // pred_check
          %p120 = pneg %p43
        $region22: #{tpu_custom_call.1} parent=19 // pred_check_branch
          %122 = sbr.rel (%p120) target = $region24
        $region23: #{tpu_custom_call.1} parent=19 // pred_region
          %p123 = scmp.lt.s32.totalorder %s18, 1
          %s124 = scalar_select %p123, %s18, 1
          %s125 = smul.addr %s124, 6
          %s126 = smul.addr %s125, 8
          %s127 = scalar_lea.vmem %s0, %s126
        $region24: #{tpu_custom_call.1} parent=19 // pred_fallthru
          _
      $region20: #{tpu_custom_call.1} parent=5 // pred_fallthru
        _
      %p128 = scmp.le.s32.totalorder 1, %s11
      %p129 = scmp.lt.s32.totalorder %s11, 3
      %p130 = pnand %p128, %p129
      %p131 = pneg %p130
      // Predicated region
      $region25: #{tpu_custom_call.1} parent=5 // pred_check
        _
      $region26: #{tpu_custom_call.1} parent=5 // pred_check_branch
        %133 = sbr.rel (%p130) target = $region28
      $region27: #{tpu_custom_call.1} parent=5 // pred_region
        %s134 = ssub.s32 %s11, 1
        %p135 = scmp.lt.s32.totalorder %s20, 1
        %s136 = scalar_select %p135, %s20, 1
        %s137 = smul.addr %s136, 6
        %s138 = smul.addr %s137, 8
        %s139 = scalar_lea.vmem %s0, %s138
        %p140 = pneg %p49
        %p141 = pneg %p46
        %p142 = pneg %p70
        %p143 = pneg %p67
        %p144 = pneg %p98
        %p145 = pneg %p95
        %s146 = sand.u32 %s85, 1
        %s147 = scalar_lea.sflag [#allocation4], %s146
        %s148 = sand.u32 %s85, 1
        %s149 = smul.addr %s148, 128
        %s150 = scalar_lea.vmem [#allocation3], %s149
        %p151 = scmp.lt.s32.totalorder %s20, 1
        %s152 = scalar_select %p151, %s20, 1
        %s153 = smul.addr %s152, 6
        %s154 = smul.addr %s153, 8
        %s155 = scalar_lea.vmem %s0, %s154
        %s156 = smul.u32 2, %s21
        %s157 = smul.u32 %s21, 14
        %v158 = vlaneseq
        %vm159 = vcmp.ge.s32.totalorder %v158, 0
        %vm160 = vcmp.lt.s32.totalorder %v158, 196
        %vm161 = vmand %vm159, %vm160
        %s162 = scalar_lea.vmem [#allocation2], 51
        %163 = vst.msk [vmem:[%s162] ss:$8 sm:$0x3] %vm161, 1.0
        %164 = vst.msk [vmem:[%s162] ss:$8 sm:$0x0] %vm161, 1.0
        %165 = vst [vmem:[#allocation2 + $0x30] sm:$0xf0] 0.0
        %vm166 = vcmask 556036
        %167 = vst.msk [vmem:[#allocation2 + $0x38] sm:$0xf0] %vm166, 0.0
        %s168 = scalar_lea.vmem %s155, %s157
        %v169 = vld [vmem:[%s168] sm:$0x1]
        %vm170 = vcmask 106496
        %171 = vst.msk [vmem:[#allocation2] sm:$0x1] %vm170, %v169
        %v172 = vld [vmem:[%s168] sm:$0x1]
        %174 = vrot.lane.b32.xlu0 %v172, 127
        %v175 = vpop.permute.xlu0 %174
        %177 = vst.msk [vmem:[#allocation2 + $0x1] sm:$0x1] %vm170, %v175
        %v178 = vld [vmem:[%s168] sm:$0x1]
        %180 = vrot.lane.b32.xlu0 %v178, 126
        %v181 = vpop.permute.xlu0 %180
        %183 = vst.msk [vmem:[#allocation2 + $0x2] sm:$0x1] %vm170, %v181
        %s184 = sadd.s32 %s157, 1
        %s185 = scalar_lea.vmem %s155, %s184
        %v186 = vld [vmem:[%s185] sm:$0x1]
        %187 = vst.msk [vmem:[#allocation2 + $0x3] sm:$0x1] %vm170, %v186
        %v188 = vld [vmem:[%s185] sm:$0x1]
        %190 = vrot.lane.b32.xlu0 %v188, 127
        %v191 = vpop.permute.xlu0 %190
        %193 = vst.msk [vmem:[#allocation2 + $0x4] sm:$0x1] %vm170, %v191
        %v194 = vld [vmem:[%s185] sm:$0x1]
        %196 = vrot.lane.b32.xlu0 %v194, 126
        %v197 = vpop.permute.xlu0 %196
        %199 = vst.msk [vmem:[#allocation2 + $0x5] sm:$0x1] %vm170, %v197
        %s200 = sadd.s32 %s157, 2
        %s201 = scalar_lea.vmem %s155, %s200
        %v202 = vld [vmem:[%s201] sm:$0x1]
        %203 = vst.msk [vmem:[#allocation2 + $0x6] sm:$0x1] %vm170, %v202
        %v204 = vld [vmem:[%s201] sm:$0x1]
        %206 = vrot.lane.b32.xlu0 %v204, 127
        %v207 = vpop.permute.xlu0 %206
        %209 = vst.msk [vmem:[#allocation2 + $0x7] sm:$0x1] %vm170, %v207
        %v210 = vld [vmem:[%s201] sm:$0x1]
        %212 = vrot.lane.b32.xlu0 %v210, 126
        %v213 = vpop.permute.xlu0 %212
        %215 = vst.msk [vmem:[#allocation2 + $0x10] sm:$0x1] %vm170, %v213
        %s216 = sadd.s32 %s157, 16
        %s217 = scalar_lea.vmem %s155, %s216
        %v218 = vld [vmem:[%s217] sm:$0x1]
        %219 = vst.msk [vmem:[#allocation2 + $0x11] sm:$0x1] %vm170, %v218
        %v220 = vld [vmem:[%s217] sm:$0x1]
        %222 = vrot.lane.b32.xlu0 %v220, 127
        %v223 = vpop.permute.xlu0 %222
        %225 = vst.msk [vmem:[#allocation2 + $0x12] sm:$0x1] %vm170, %v223
        %v226 = vld [vmem:[%s217] sm:$0x1]
        %228 = vrot.lane.b32.xlu0 %v226, 126
        %v229 = vpop.permute.xlu0 %228
        %231 = vst.msk [vmem:[#allocation2 + $0x13] sm:$0x1] %vm170, %v229
        %s232 = sadd.s32 %s184, 16
        %s233 = scalar_lea.vmem %s155, %s232
        %v234 = vld [vmem:[%s233] sm:$0x1]
        %235 = vst.msk [vmem:[#allocation2 + $0x14] sm:$0x1] %vm170, %v234
        %v236 = vld [vmem:[%s233] sm:$0x1]
        %238 = vrot.lane.b32.xlu0 %v236, 127
        %v239 = vpop.permute.xlu0 %238
        %241 = vst.msk [vmem:[#allocation2 + $0x15] sm:$0x1] %vm170, %v239
        %v242 = vld [vmem:[%s233] sm:$0x1]
        %244 = vrot.lane.b32.xlu0 %v242, 126
        %v245 = vpop.permute.xlu0 %244
        %247 = vst.msk [vmem:[#allocation2 + $0x16] sm:$0x1] %vm170, %v245
        %s248 = sadd.s32 %s200, 16
        %s249 = scalar_lea.vmem %s155, %s248
        %v250 = vld [vmem:[%s249] sm:$0x1]
        %251 = vst.msk [vmem:[#allocation2 + $0x17] sm:$0x1] %vm170, %v250
        %v252 = vld [vmem:[%s249] sm:$0x1]
        %254 = vrot.lane.b32.xlu0 %v252, 127
        %v255 = vpop.permute.xlu0 %254
        %257 = vst.msk [vmem:[#allocation2 + $0x20] sm:$0x1] %vm170, %v255
        %v258 = vld [vmem:[%s249] sm:$0x1]
        %260 = vrot.lane.b32.xlu0 %v258, 126
        %v261 = vpop.permute.xlu0 %260
        %263 = vst.msk [vmem:[#allocation2 + $0x21] sm:$0x1] %vm170, %v261
        %s264 = sadd.s32 %s157, 32
        %s265 = scalar_lea.vmem %s155, %s264
        %v266 = vld [vmem:[%s265] sm:$0x1]
        %267 = vst.msk [vmem:[#allocation2 + $0x22] sm:$0x1] %vm170, %v266
        %v268 = vld [vmem:[%s265] sm:$0x1]
        %270 = vrot.lane.b32.xlu0 %v268, 127
        %v271 = vpop.permute.xlu0 %270
        %273 = vst.msk [vmem:[#allocation2 + $0x23] sm:$0x1] %vm170, %v271
        %v274 = vld [vmem:[%s265] sm:$0x1]
        %276 = vrot.lane.b32.xlu0 %v274, 126
        %v277 = vpop.permute.xlu0 %276
        %279 = vst.msk [vmem:[#allocation2 + $0x24] sm:$0x1] %vm170, %v277
        %s280 = sadd.s32 %s184, 32
        %s281 = scalar_lea.vmem %s155, %s280
        %v282 = vld [vmem:[%s281] sm:$0x1]
        %283 = vst.msk [vmem:[#allocation2 + $0x25] sm:$0x1] %vm170, %v282
        %v284 = vld [vmem:[%s281] sm:$0x1]
        %286 = vrot.lane.b32.xlu0 %v284, 127
        %v287 = vpop.permute.xlu0 %286
        %289 = vst.msk [vmem:[#allocation2 + $0x26] sm:$0x1] %vm170, %v287
        %v290 = vld [vmem:[%s281] sm:$0x1]
        %292 = vrot.lane.b32.xlu0 %v290, 126
        %v293 = vpop.permute.xlu0 %292
        %295 = vst.msk [vmem:[#allocation2 + $0x27] sm:$0x1] %vm170, %v293
        %s296 = sadd.s32 %s200, 32
        %s297 = scalar_lea.vmem %s155, %s296
        %v298 = vld [vmem:[%s297] sm:$0x1]
        %299 = vst.msk [vmem:[#allocation2 + $0x30] sm:$0x1] %vm170, %v298
        %v300 = vld [vmem:[%s297] sm:$0x1]
        %302 = vrot.lane.b32.xlu0 %v300, 127
        %v303 = vpop.permute.xlu0 %302
        %305 = vst.msk [vmem:[#allocation2 + $0x31] sm:$0x1] %vm170, %v303
        %v306 = vld [vmem:[%s297] sm:$0x1]
        %308 = vrot.lane.b32.xlu0 %v306, 126
        %v309 = vpop.permute.xlu0 %308
        %311 = vst.msk [vmem:[#allocation2 + $0x32] sm:$0x1] %vm170, %v309
        %v312 = vld [vmem:[%s185] sm:$0x1]
        %314 = vrot.lane.b32.xlu0 %v312, 14
        %v315 = vpop.permute.xlu0 %314
        %vm317 = vcmask 221296
        %318 = vst.msk [vmem:[#allocation2] sm:$0x1] %vm317, %v315
        %v319 = vld [vmem:[%s185] sm:$0x1]
        %321 = vrot.lane.b32.xlu0 %v319, 13
        %v322 = vpop.permute.xlu0 %321
        %324 = vst.msk [vmem:[#allocation2 + $0x1] sm:$0x1] %vm317, %v322
        %v325 = vld [vmem:[%s185] sm:$0x1]
        %327 = vrot.lane.b32.xlu0 %v325, 12
        %v328 = vpop.permute.xlu0 %327
        %330 = vst.msk [vmem:[#allocation2 + $0x2] sm:$0x1] %vm317, %v328
        %v331 = vld [vmem:[%s201] sm:$0x1]
        %333 = vrot.lane.b32.xlu0 %v331, 14
        %v334 = vpop.permute.xlu0 %333
        %336 = vst.msk [vmem:[#allocation2 + $0x3] sm:$0x1] %vm317, %v334
        %v337 = vld [vmem:[%s201] sm:$0x1]
        %339 = vrot.lane.b32.xlu0 %v337, 13
        %v340 = vpop.permute.xlu0 %339
        %342 = vst.msk [vmem:[#allocation2 + $0x4] sm:$0x1] %vm317, %v340
        %v343 = vld [vmem:[%s201] sm:$0x1]
        %345 = vrot.lane.b32.xlu0 %v343, 12
        %v346 = vpop.permute.xlu0 %345
        %348 = vst.msk [vmem:[#allocation2 + $0x5] sm:$0x1] %vm317, %v346
        %s349 = sadd.s32 %s157, 3
        %s350 = scalar_lea.vmem %s155, %s349
        %v351 = vld [vmem:[%s350] sm:$0x1]
        %353 = vrot.lane.b32.xlu0 %v351, 14
        %v354 = vpop.permute.xlu0 %353
        %356 = vst.msk [vmem:[#allocation2 + $0x6] sm:$0x1] %vm317, %v354
        %v357 = vld [vmem:[%s350] sm:$0x1]
        %359 = vrot.lane.b32.xlu0 %v357, 13
        %v360 = vpop.permute.xlu0 %359
        %362 = vst.msk [vmem:[#allocation2 + $0x7] sm:$0x1] %vm317, %v360
        %v363 = vld [vmem:[%s350] sm:$0x1]
        %365 = vrot.lane.b32.xlu0 %v363, 12
        %v366 = vpop.permute.xlu0 %365
        %368 = vst.msk [vmem:[#allocation2 + $0x10] sm:$0x1] %vm317, %v366
        %v369 = vld [vmem:[%s233] sm:$0x1]
        %371 = vrot.lane.b32.xlu0 %v369, 14
        %v372 = vpop.permute.xlu0 %371
        %374 = vst.msk [vmem:[#allocation2 + $0x11] sm:$0x1] %vm317, %v372
        %v375 = vld [vmem:[%s233] sm:$0x1]
        %377 = vrot.lane.b32.xlu0 %v375, 13
        %v378 = vpop.permute.xlu0 %377
        %380 = vst.msk [vmem:[#allocation2 + $0x12] sm:$0x1] %vm317, %v378
        %v381 = vld [vmem:[%s233] sm:$0x1]
        %383 = vrot.lane.b32.xlu0 %v381, 12
        %v384 = vpop.permute.xlu0 %383
        %386 = vst.msk [vmem:[#allocation2 + $0x13] sm:$0x1] %vm317, %v384
        %v387 = vld [vmem:[%s249] sm:$0x1]
        %389 = vrot.lane.b32.xlu0 %v387, 14
        %v390 = vpop.permute.xlu0 %389
        %392 = vst.msk [vmem:[#allocation2 + $0x14] sm:$0x1] %vm317, %v390
        %v393 = vld [vmem:[%s249] sm:$0x1]
        %395 = vrot.lane.b32.xlu0 %v393, 13
        %v396 = vpop.permute.xlu0 %395
        %398 = vst.msk [vmem:[#allocation2 + $0x15] sm:$0x1] %vm317, %v396
        %v399 = vld [vmem:[%s249] sm:$0x1]
        %401 = vrot.lane.b32.xlu0 %v399, 12
        %v402 = vpop.permute.xlu0 %401
        %404 = vst.msk [vmem:[#allocation2 + $0x16] sm:$0x1] %vm317, %v402
        %s405 = sadd.s32 %s349, 16
        %s406 = scalar_lea.vmem %s155, %s405
        %v407 = vld [vmem:[%s406] sm:$0x1]
        %409 = vrot.lane.b32.xlu0 %v407, 14
        %v410 = vpop.permute.xlu0 %409
        %412 = vst.msk [vmem:[#allocation2 + $0x17] sm:$0x1] %vm317, %v410
        %v413 = vld [vmem:[%s406] sm:$0x1]
        %415 = vrot.lane.b32.xlu0 %v413, 13
        %v416 = vpop.permute.xlu0 %415
        %418 = vst.msk [vmem:[#allocation2 + $0x20] sm:$0x1] %vm317, %v416
        %v419 = vld [vmem:[%s406] sm:$0x1]
        %421 = vrot.lane.b32.xlu0 %v419, 12
        %v422 = vpop.permute.xlu0 %421
        %424 = vst.msk [vmem:[#allocation2 + $0x21] sm:$0x1] %vm317, %v422
        %v425 = vld [vmem:[%s281] sm:$0x1]
        %427 = vrot.lane.b32.xlu0 %v425, 14
        %v428 = vpop.permute.xlu0 %427
        %430 = vst.msk [vmem:[#allocation2 + $0x22] sm:$0x1] %vm317, %v428
        %v431 = vld [vmem:[%s281] sm:$0x1]
        %433 = vrot.lane.b32.xlu0 %v431, 13
        %v434 = vpop.permute.xlu0 %433
        %436 = vst.msk [vmem:[#allocation2 + $0x23] sm:$0x1] %vm317, %v434
        %v437 = vld [vmem:[%s281] sm:$0x1]
        %439 = vrot.lane.b32.xlu0 %v437, 12
        %v440 = vpop.permute.xlu0 %439
        %442 = vst.msk [vmem:[#allocation2 + $0x24] sm:$0x1] %vm317, %v440
        %v443 = vld [vmem:[%s297] sm:$0x1]
        %445 = vrot.lane.b32.xlu0 %v443, 14
        %v446 = vpop.permute.xlu0 %445
        %448 = vst.msk [vmem:[#allocation2 + $0x25] sm:$0x1] %vm317, %v446
        %v449 = vld [vmem:[%s297] sm:$0x1]
        %451 = vrot.lane.b32.xlu0 %v449, 13
        %v452 = vpop.permute.xlu0 %451
        %454 = vst.msk [vmem:[#allocation2 + $0x26] sm:$0x1] %vm317, %v452
        %v455 = vld [vmem:[%s297] sm:$0x1]
        %457 = vrot.lane.b32.xlu0 %v455, 12
        %v458 = vpop.permute.xlu0 %457
        %460 = vst.msk [vmem:[#allocation2 + $0x27] sm:$0x1] %vm317, %v458
        %s461 = sadd.s32 %s349, 32
        %s462 = scalar_lea.vmem %s155, %s461
        %v463 = vld [vmem:[%s462] sm:$0x1]
        %465 = vrot.lane.b32.xlu0 %v463, 14
        %v466 = vpop.permute.xlu0 %465
        %468 = vst.msk [vmem:[#allocation2 + $0x30] sm:$0x1] %vm317, %v466
        %v469 = vld [vmem:[%s462] sm:$0x1]
        %471 = vrot.lane.b32.xlu0 %v469, 13
        %v472 = vpop.permute.xlu0 %471
        %474 = vst.msk [vmem:[#allocation2 + $0x31] sm:$0x1] %vm317, %v472
        %v475 = vld [vmem:[%s462] sm:$0x1]
        %477 = vrot.lane.b32.xlu0 %v475, 12
        %v478 = vpop.permute.xlu0 %477
        %480 = vst.msk [vmem:[#allocation2 + $0x32] sm:$0x1] %vm317, %v478
        %v481 = vld [vmem:[%s201] sm:$0x1]
        %483 = vrot.lane.b32.xlu0 %v481, 28
        %v484 = vpop.permute.xlu0 %483
        %vm486 = vcmask 336096
        %487 = vst.msk [vmem:[#allocation2] sm:$0x1] %vm486, %v484
        %v488 = vld [vmem:[%s201] sm:$0x1]
        %490 = vrot.lane.b32.xlu0 %v488, 27
        %v491 = vpop.permute.xlu0 %490
        %493 = vst.msk [vmem:[#allocation2 + $0x1] sm:$0x1] %vm486, %v491
        %v494 = vld [vmem:[%s201] sm:$0x1]
        %496 = vrot.lane.b32.xlu0 %v494, 26
        %v497 = vpop.permute.xlu0 %496
        %499 = vst.msk [vmem:[#allocation2 + $0x2] sm:$0x1] %vm486, %v497
        %v500 = vld [vmem:[%s350] sm:$0x1]
        %502 = vrot.lane.b32.xlu0 %v500, 28
        %v503 = vpop.permute.xlu0 %502
        %505 = vst.msk [vmem:[#allocation2 + $0x3] sm:$0x1] %vm486, %v503
        %v506 = vld [vmem:[%s350] sm:$0x1]
        %508 = vrot.lane.b32.xlu0 %v506, 27
        %v509 = vpop.permute.xlu0 %508
        %511 = vst.msk [vmem:[#allocation2 + $0x4] sm:$0x1] %vm486, %v509
        %v512 = vld [vmem:[%s350] sm:$0x1]
        %514 = vrot.lane.b32.xlu0 %v512, 26
        %v515 = vpop.permute.xlu0 %514
        %517 = vst.msk [vmem:[#allocation2 + $0x5] sm:$0x1] %vm486, %v515
        %s518 = sadd.s32 %s157, 4
        %s519 = scalar_lea.vmem %s155, %s518
        %v520 = vld [vmem:[%s519] sm:$0x1]
        %522 = vrot.lane.b32.xlu0 %v520, 28
        %v523 = vpop.permute.xlu0 %522
        %525 = vst.msk [vmem:[#allocation2 + $0x6] sm:$0x1] %vm486, %v523
        %v526 = vld [vmem:[%s519] sm:$0x1]
        %528 = vrot.lane.b32.xlu0 %v526, 27
        %v529 = vpop.permute.xlu0 %528
        %531 = vst.msk [vmem:[#allocation2 + $0x7] sm:$0x1] %vm486, %v529
        %v532 = vld [vmem:[%s519] sm:$0x1]
        %534 = vrot.lane.b32.xlu0 %v532, 26
        %v535 = vpop.permute.xlu0 %534
        %537 = vst.msk [vmem:[#allocation2 + $0x10] sm:$0x1] %vm486, %v535
        %v538 = vld [vmem:[%s249] sm:$0x1]
        %540 = vrot.lane.b32.xlu0 %v538, 28
        %v541 = vpop.permute.xlu0 %540
        %543 = vst.msk [vmem:[#allocation2 + $0x11] sm:$0x1] %vm486, %v541
        %v544 = vld [vmem:[%s249] sm:$0x1]
        %546 = vrot.lane.b32.xlu0 %v544, 27
        %v547 = vpop.permute.xlu0 %546
        %549 = vst.msk [vmem:[#allocation2 + $0x12] sm:$0x1] %vm486, %v547
        %v550 = vld [vmem:[%s249] sm:$0x1]
        %552 = vrot.lane.b32.xlu0 %v550, 26
        %v553 = vpop.permute.xlu0 %552
        %555 = vst.msk [vmem:[#allocation2 + $0x13] sm:$0x1] %vm486, %v553
        %v556 = vld [vmem:[%s406] sm:$0x1]
        %558 = vrot.lane.b32.xlu0 %v556, 28
        %v559 = vpop.permute.xlu0 %558
        %561 = vst.msk [vmem:[#allocation2 + $0x14] sm:$0x1] %vm486, %v559
        %v562 = vld [vmem:[%s406] sm:$0x1]
        %564 = vrot.lane.b32.xlu0 %v562, 27
        %v565 = vpop.permute.xlu0 %564
        %567 = vst.msk [vmem:[#allocation2 + $0x15] sm:$0x1] %vm486, %v565
        %v568 = vld [vmem:[%s406] sm:$0x1]
        %570 = vrot.lane.b32.xlu0 %v568, 26
        %v571 = vpop.permute.xlu0 %570
        %573 = vst.msk [vmem:[#allocation2 + $0x16] sm:$0x1] %vm486, %v571
        %s574 = sadd.s32 %s518, 16
        %s575 = scalar_lea.vmem %s155, %s574
        %v576 = vld [vmem:[%s575] sm:$0x1]
        %578 = vrot.lane.b32.xlu0 %v576, 28
        %v579 = vpop.permute.xlu0 %578
        %581 = vst.msk [vmem:[#allocation2 + $0x17] sm:$0x1] %vm486, %v579
        %v582 = vld [vmem:[%s575] sm:$0x1]
        %584 = vrot.lane.b32.xlu0 %v582, 27
        %v585 = vpop.permute.xlu0 %584
        %587 = vst.msk [vmem:[#allocation2 + $0x20] sm:$0x1] %vm486, %v585
        %v588 = vld [vmem:[%s575] sm:$0x1]
        %590 = vrot.lane.b32.xlu0 %v588, 26
        %v591 = vpop.permute.xlu0 %590
        %593 = vst.msk [vmem:[#allocation2 + $0x21] sm:$0x1] %vm486, %v591
        %v594 = vld [vmem:[%s297] sm:$0x1]
        %596 = vrot.lane.b32.xlu0 %v594, 28
        %v597 = vpop.permute.xlu0 %596
        %599 = vst.msk [vmem:[#allocation2 + $0x22] sm:$0x1] %vm486, %v597
        %v600 = vld [vmem:[%s297] sm:$0x1]
        %602 = vrot.lane.b32.xlu0 %v600, 27
        %v603 = vpop.permute.xlu0 %602
        %605 = vst.msk [vmem:[#allocation2 + $0x23] sm:$0x1] %vm486, %v603
        %v606 = vld [vmem:[%s297] sm:$0x1]
        %608 = vrot.lane.b32.xlu0 %v606, 26
        %v609 = vpop.permute.xlu0 %608
        %611 = vst.msk [vmem:[#allocation2 + $0x24] sm:$0x1] %vm486, %v609
        %v612 = vld [vmem:[%s462] sm:$0x1]
        %614 = vrot.lane.b32.xlu0 %v612, 28
        %v615 = vpop.permute.xlu0 %614
        %617 = vst.msk [vmem:[#allocation2 + $0x25] sm:$0x1] %vm486, %v615
        %v618 = vld [vmem:[%s462] sm:$0x1]
        %620 = vrot.lane.b32.xlu0 %v618, 27
        %v621 = vpop.permute.xlu0 %620
        %623 = vst.msk [vmem:[#allocation2 + $0x26] sm:$0x1] %vm486, %v621
        %v624 = vld [vmem:[%s462] sm:$0x1]
        %626 = vrot.lane.b32.xlu0 %v624, 26
        %v627 = vpop.permute.xlu0 %626
        %629 = vst.msk [vmem:[#allocation2 + $0x27] sm:$0x1] %vm486, %v627
        %s630 = sadd.s32 %s518, 32
        %s631 = scalar_lea.vmem %s155, %s630
        %v632 = vld [vmem:[%s631] sm:$0x1]
        %634 = vrot.lane.b32.xlu0 %v632, 28
        %v635 = vpop.permute.xlu0 %634
        %637 = vst.msk [vmem:[#allocation2 + $0x30] sm:$0x1] %vm486, %v635
        %v638 = vld [vmem:[%s631] sm:$0x1]
        %640 = vrot.lane.b32.xlu0 %v638, 27
        %v641 = vpop.permute.xlu0 %640
        %643 = vst.msk [vmem:[#allocation2 + $0x31] sm:$0x1] %vm486, %v641
        %v644 = vld [vmem:[%s631] sm:$0x1]
        %646 = vrot.lane.b32.xlu0 %v644, 26
        %v647 = vpop.permute.xlu0 %646
        %649 = vst.msk [vmem:[#allocation2 + $0x32] sm:$0x1] %vm486, %v647
        %v650 = vld [vmem:[%s350] sm:$0x1]
        %652 = vrot.lane.b32.xlu0 %v650, 42
        %v653 = vpop.permute.xlu0 %652
        %vm655 = vcmask 450896
        %656 = vst.msk [vmem:[#allocation2] sm:$0x1] %vm655, %v653
        %v657 = vld [vmem:[%s350] sm:$0x1]
        %659 = vrot.lane.b32.xlu0 %v657, 41
        %v660 = vpop.permute.xlu0 %659
        %662 = vst.msk [vmem:[#allocation2 + $0x1] sm:$0x1] %vm655, %v660
        %v663 = vld [vmem:[%s350] sm:$0x1]
        %665 = vrot.lane.b32.xlu0 %v663, 40
        %v666 = vpop.permute.xlu0 %665
        %668 = vst.msk [vmem:[#allocation2 + $0x2] sm:$0x1] %vm655, %v666
        %v669 = vld [vmem:[%s519] sm:$0x1]
        %671 = vrot.lane.b32.xlu0 %v669, 42
        %v672 = vpop.permute.xlu0 %671
        %674 = vst.msk [vmem:[#allocation2 + $0x3] sm:$0x1] %vm655, %v672
        %v675 = vld [vmem:[%s519] sm:$0x1]
        %677 = vrot.lane.b32.xlu0 %v675, 41
        %v678 = vpop.permute.xlu0 %677
        %680 = vst.msk [vmem:[#allocation2 + $0x4] sm:$0x1] %vm655, %v678
        %v681 = vld [vmem:[%s519] sm:$0x1]
        %683 = vrot.lane.b32.xlu0 %v681, 40
        %v684 = vpop.permute.xlu0 %683
        %686 = vst.msk [vmem:[#allocation2 + $0x5] sm:$0x1] %vm655, %v684
        %s687 = sadd.s32 %s157, 5
        %s688 = scalar_lea.vmem %s155, %s687
        %v689 = vld [vmem:[%s688] sm:$0x1]
        %691 = vrot.lane.b32.xlu0 %v689, 42
        %v692 = vpop.permute.xlu0 %691
        %694 = vst.msk [vmem:[#allocation2 + $0x6] sm:$0x1] %vm655, %v692
        %v695 = vld [vmem:[%s688] sm:$0x1]
        %697 = vrot.lane.b32.xlu0 %v695, 41
        %v698 = vpop.permute.xlu0 %697
        %700 = vst.msk [vmem:[#allocation2 + $0x7] sm:$0x1] %vm655, %v698
        %v701 = vld [vmem:[%s688] sm:$0x1]
        %703 = vrot.lane.b32.xlu0 %v701, 40
        %v704 = vpop.permute.xlu0 %703
        %706 = vst.msk [vmem:[#allocation2 + $0x10] sm:$0x1] %vm655, %v704
        %v707 = vld [vmem:[%s406] sm:$0x1]
        %709 = vrot.lane.b32.xlu0 %v707, 42
        %v710 = vpop.permute.xlu0 %709
        %712 = vst.msk [vmem:[#allocation2 + $0x11] sm:$0x1] %vm655, %v710
        %v713 = vld [vmem:[%s406] sm:$0x1]
        %715 = vrot.lane.b32.xlu0 %v713, 41
        %v716 = vpop.permute.xlu0 %715
        %718 = vst.msk [vmem:[#allocation2 + $0x12] sm:$0x1] %vm655, %v716
        %v719 = vld [vmem:[%s406] sm:$0x1]
        %721 = vrot.lane.b32.xlu0 %v719, 40
        %v722 = vpop.permute.xlu0 %721
        %724 = vst.msk [vmem:[#allocation2 + $0x13] sm:$0x1] %vm655, %v722
        %v725 = vld [vmem:[%s575] sm:$0x1]
        %727 = vrot.lane.b32.xlu0 %v725, 42
        %v728 = vpop.permute.xlu0 %727
        %730 = vst.msk [vmem:[#allocation2 + $0x14] sm:$0x1] %vm655, %v728
        %v731 = vld [vmem:[%s575] sm:$0x1]
        %733 = vrot.lane.b32.xlu0 %v731, 41
        %v734 = vpop.permute.xlu0 %733
        %736 = vst.msk [vmem:[#allocation2 + $0x15] sm:$0x1] %vm655, %v734
        %v737 = vld [vmem:[%s575] sm:$0x1]
        %739 = vrot.lane.b32.xlu0 %v737, 40
        %v740 = vpop.permute.xlu0 %739
        %742 = vst.msk [vmem:[#allocation2 + $0x16] sm:$0x1] %vm655, %v740
        %s743 = sadd.s32 %s687, 16
        %s744 = scalar_lea.vmem %s155, %s743
        %v745 = vld [vmem:[%s744] sm:$0x1]
        %747 = vrot.lane.b32.xlu0 %v745, 42
        %v748 = vpop.permute.xlu0 %747
        %750 = vst.msk [vmem:[#allocation2 + $0x17] sm:$0x1] %vm655, %v748
        %v751 = vld [vmem:[%s744] sm:$0x1]
        %753 = vrot.lane.b32.xlu0 %v751, 41
        %v754 = vpop.permute.xlu0 %753
        %756 = vst.msk [vmem:[#allocation2 + $0x20] sm:$0x1] %vm655, %v754
        %v757 = vld [vmem:[%s744] sm:$0x1]
        %759 = vrot.lane.b32.xlu0 %v757, 40
        %v760 = vpop.permute.xlu0 %759
        %762 = vst.msk [vmem:[#allocation2 + $0x21] sm:$0x1] %vm655, %v760
        %v763 = vld [vmem:[%s462] sm:$0x1]
        %765 = vrot.lane.b32.xlu0 %v763, 42
        %v766 = vpop.permute.xlu0 %765
        %768 = vst.msk [vmem:[#allocation2 + $0x22] sm:$0x1] %vm655, %v766
        %v769 = vld [vmem:[%s462] sm:$0x1]
        %771 = vrot.lane.b32.xlu0 %v769, 41
        %v772 = vpop.permute.xlu0 %771
        %774 = vst.msk [vmem:[#allocation2 + $0x23] sm:$0x1] %vm655, %v772
        %v775 = vld [vmem:[%s462] sm:$0x1]
        %777 = vrot.lane.b32.xlu0 %v775, 40
        %v778 = vpop.permute.xlu0 %777
        %780 = vst.msk [vmem:[#allocation2 + $0x24] sm:$0x1] %vm655, %v778
        %v781 = vld [vmem:[%s631] sm:$0x1]
        %783 = vrot.lane.b32.xlu0 %v781, 42
        %v784 = vpop.permute.xlu0 %783
        %786 = vst.msk [vmem:[#allocation2 + $0x25] sm:$0x1] %vm655, %v784
        %v787 = vld [vmem:[%s631] sm:$0x1]
        %789 = vrot.lane.b32.xlu0 %v787, 41
        %v790 = vpop.permute.xlu0 %789
        %792 = vst.msk [vmem:[#allocation2 + $0x26] sm:$0x1] %vm655, %v790
        %v793 = vld [vmem:[%s631] sm:$0x1]
        %795 = vrot.lane.b32.xlu0 %v793, 40
        %v796 = vpop.permute.xlu0 %795
        %798 = vst.msk [vmem:[#allocation2 + $0x27] sm:$0x1] %vm655, %v796
        %s799 = sadd.s32 %s687, 32
        %s800 = scalar_lea.vmem %s155, %s799
        %v801 = vld [vmem:[%s800] sm:$0x1]
        %803 = vrot.lane.b32.xlu0 %v801, 42
        %v804 = vpop.permute.xlu0 %803
        %806 = vst.msk [vmem:[#allocation2 + $0x30] sm:$0x1] %vm655, %v804
        %v807 = vld [vmem:[%s800] sm:$0x1]
        %809 = vrot.lane.b32.xlu0 %v807, 41
        %v810 = vpop.permute.xlu0 %809
        %812 = vst.msk [vmem:[#allocation2 + $0x31] sm:$0x1] %vm655, %v810
        %v813 = vld [vmem:[%s800] sm:$0x1]
        %815 = vrot.lane.b32.xlu0 %v813, 40
        %v816 = vpop.permute.xlu0 %815
        %818 = vst.msk [vmem:[#allocation2 + $0x32] sm:$0x1] %vm655, %v816
        %v819 = vld [vmem:[%s519] sm:$0x1]
        %821 = vrot.lane.b32.xlu0 %v819, 56
        %v822 = vpop.permute.xlu0 %821
        %vm824 = vcmask 565696
        %825 = vst.msk [vmem:[#allocation2] sm:$0x1] %vm824, %v822
        %v826 = vld [vmem:[%s519] sm:$0x1]
        %828 = vrot.lane.b32.xlu0 %v826, 55
        %v829 = vpop.permute.xlu0 %828
        %831 = vst.msk [vmem:[#allocation2 + $0x1] sm:$0x1] %vm824, %v829
        %v832 = vld [vmem:[%s519] sm:$0x1]
        %834 = vrot.lane.b32.xlu0 %v832, 54
        %v835 = vpop.permute.xlu0 %834
        %837 = vst.msk [vmem:[#allocation2 + $0x2] sm:$0x1] %vm824, %v835
        %v838 = vld [vmem:[%s688] sm:$0x1]
        %840 = vrot.lane.b32.xlu0 %v838, 56
        %v841 = vpop.permute.xlu0 %840
        %843 = vst.msk [vmem:[#allocation2 + $0x3] sm:$0x1] %vm824, %v841
        %v844 = vld [vmem:[%s688] sm:$0x1]
        %846 = vrot.lane.b32.xlu0 %v844, 55
        %v847 = vpop.permute.xlu0 %846
        %849 = vst.msk [vmem:[#allocation2 + $0x4] sm:$0x1] %vm824, %v847
        %v850 = vld [vmem:[%s688] sm:$0x1]
        %852 = vrot.lane.b32.xlu0 %v850, 54
        %v853 = vpop.permute.xlu0 %852
        %855 = vst.msk [vmem:[#allocation2 + $0x5] sm:$0x1] %vm824, %v853
        %s856 = sadd.s32 %s157, 6
        %s857 = scalar_lea.vmem %s155, %s856
        %v858 = vld [vmem:[%s857] sm:$0x1]
        %860 = vrot.lane.b32.xlu0 %v858, 56
        %v861 = vpop.permute.xlu0 %860
        %863 = vst.msk [vmem:[#allocation2 + $0x6] sm:$0x1] %vm824, %v861
        %v864 = vld [vmem:[%s857] sm:$0x1]
        %866 = vrot.lane.b32.xlu0 %v864, 55
        %v867 = vpop.permute.xlu0 %866
        %869 = vst.msk [vmem:[#allocation2 + $0x7] sm:$0x1] %vm824, %v867
        %v870 = vld [vmem:[%s857] sm:$0x1]
        %872 = vrot.lane.b32.xlu0 %v870, 54
        %v873 = vpop.permute.xlu0 %872
        %875 = vst.msk [vmem:[#allocation2 + $0x10] sm:$0x1] %vm824, %v873
        %v876 = vld [vmem:[%s575] sm:$0x1]
        %878 = vrot.lane.b32.xlu0 %v876, 56
        %v879 = vpop.permute.xlu0 %878
        %881 = vst.msk [vmem:[#allocation2 + $0x11] sm:$0x1] %vm824, %v879
        %v882 = vld [vmem:[%s575] sm:$0x1]
        %884 = vrot.lane.b32.xlu0 %v882, 55
        %v885 = vpop.permute.xlu0 %884
        %887 = vst.msk [vmem:[#allocation2 + $0x12] sm:$0x1] %vm824, %v885
        %v888 = vld [vmem:[%s575] sm:$0x1]
        %890 = vrot.lane.b32.xlu0 %v888, 54
        %v891 = vpop.permute.xlu0 %890
        %893 = vst.msk [vmem:[#allocation2 + $0x13] sm:$0x1] %vm824, %v891
        %v894 = vld [vmem:[%s744] sm:$0x1]
        %896 = vrot.lane.b32.xlu0 %v894, 56
        %v897 = vpop.permute.xlu0 %896
        %899 = vst.msk [vmem:[#allocation2 + $0x14] sm:$0x1] %vm824, %v897
        %v900 = vld [vmem:[%s744] sm:$0x1]
        %902 = vrot.lane.b32.xlu0 %v900, 55
        %v903 = vpop.permute.xlu0 %902
        %905 = vst.msk [vmem:[#allocation2 + $0x15] sm:$0x1] %vm824, %v903
        %v906 = vld [vmem:[%s744] sm:$0x1]
        %908 = vrot.lane.b32.xlu0 %v906, 54
        %v909 = vpop.permute.xlu0 %908
        %911 = vst.msk [vmem:[#allocation2 + $0x16] sm:$0x1] %vm824, %v909
        %s912 = sadd.s32 %s856, 16
        %s913 = scalar_lea.vmem %s155, %s912
        %v914 = vld [vmem:[%s913] sm:$0x1]
        %916 = vrot.lane.b32.xlu0 %v914, 56
        %v917 = vpop.permute.xlu0 %916
        %919 = vst.msk [vmem:[#allocation2 + $0x17] sm:$0x1] %vm824, %v917
        %v920 = vld [vmem:[%s913] sm:$0x1]
        %922 = vrot.lane.b32.xlu0 %v920, 55
        %v923 = vpop.permute.xlu0 %922
        %925 = vst.msk [vmem:[#allocation2 + $0x20] sm:$0x1] %vm824, %v923
        %v926 = vld [vmem:[%s913] sm:$0x1]
        %928 = vrot.lane.b32.xlu0 %v926, 54
        %v929 = vpop.permute.xlu0 %928
        %931 = vst.msk [vmem:[#allocation2 + $0x21] sm:$0x1] %vm824, %v929
        %v932 = vld [vmem:[%s631] sm:$0x1]
        %934 = vrot.lane.b32.xlu0 %v932, 56
        %v935 = vpop.permute.xlu0 %934
        %937 = vst.msk [vmem:[#allocation2 + $0x22] sm:$0x1] %vm824, %v935
        %v938 = vld [vmem:[%s631] sm:$0x1]
        %940 = vrot.lane.b32.xlu0 %v938, 55
        %v941 = vpop.permute.xlu0 %940
        %943 = vst.msk [vmem:[#allocation2 + $0x23] sm:$0x1] %vm824, %v941
        %v944 = vld [vmem:[%s631] sm:$0x1]
        %946 = vrot.lane.b32.xlu0 %v944, 54
        %v947 = vpop.permute.xlu0 %946
        %949 = vst.msk [vmem:[#allocation2 + $0x24] sm:$0x1] %vm824, %v947
        %v950 = vld [vmem:[%s800] sm:$0x1]
        %952 = vrot.lane.b32.xlu0 %v950, 56
        %v953 = vpop.permute.xlu0 %952
        %955 = vst.msk [vmem:[#allocation2 + $0x25] sm:$0x1] %vm824, %v953
        %v956 = vld [vmem:[%s800] sm:$0x1]
        %958 = vrot.lane.b32.xlu0 %v956, 55
        %v959 = vpop.permute.xlu0 %958
        %961 = vst.msk [vmem:[#allocation2 + $0x26] sm:$0x1] %vm824, %v959
        %v962 = vld [vmem:[%s800] sm:$0x1]
        %964 = vrot.lane.b32.xlu0 %v962, 54
        %v965 = vpop.permute.xlu0 %964
        %967 = vst.msk [vmem:[#allocation2 + $0x27] sm:$0x1] %vm824, %v965
        %s968 = sadd.s32 %s856, 32
        %s969 = scalar_lea.vmem %s155, %s968
        %v970 = vld [vmem:[%s969] sm:$0x1]
        %972 = vrot.lane.b32.xlu0 %v970, 56
        %v973 = vpop.permute.xlu0 %972
        %975 = vst.msk [vmem:[#allocation2 + $0x30] sm:$0x1] %vm824, %v973
        %v976 = vld [vmem:[%s969] sm:$0x1]
        %978 = vrot.lane.b32.xlu0 %v976, 55
        %v979 = vpop.permute.xlu0 %978
        %981 = vst.msk [vmem:[#allocation2 + $0x31] sm:$0x1] %vm824, %v979
        %v982 = vld [vmem:[%s969] sm:$0x1]
        %984 = vrot.lane.b32.xlu0 %v982, 54
        %v985 = vpop.permute.xlu0 %984
        %987 = vst.msk [vmem:[#allocation2 + $0x32] sm:$0x1] %vm824, %v985
        %v988 = vld [vmem:[%s688] sm:$0x1]
        %990 = vrot.lane.b32.xlu0 %v988, 70
        %v991 = vpop.permute.xlu0 %990
        %vm993 = vcmask 680496
        %994 = vst.msk [vmem:[#allocation2] sm:$0x1] %vm993, %v991
        %v995 = vld [vmem:[%s688] sm:$0x1]
        %997 = vrot.lane.b32.xlu0 %v995, 69
        %v998 = vpop.permute.xlu0 %997
        %1000 = vst.msk [vmem:[#allocation2 + $0x1] sm:$0x1] %vm993, %v998
        %v1001 = vld [vmem:[%s688] sm:$0x1]
        %1003 = vrot.lane.b32.xlu0 %v1001, 68
        %v1004 = vpop.permute.xlu0 %1003
        %1006 = vst.msk [vmem:[#allocation2 + $0x2] sm:$0x1] %vm993, %v1004
        %v1007 = vld [vmem:[%s857] sm:$0x1]
        %1009 = vrot.lane.b32.xlu0 %v1007, 70
        %v1010 = vpop.permute.xlu0 %1009
        %1012 = vst.msk [vmem:[#allocation2 + $0x3] sm:$0x1] %vm993, %v1010
        %v1013 = vld [vmem:[%s857] sm:$0x1]
        %1015 = vrot.lane.b32.xlu0 %v1013, 69
        %v1016 = vpop.permute.xlu0 %1015
        %1018 = vst.msk [vmem:[#allocation2 + $0x4] sm:$0x1] %vm993, %v1016
        %v1019 = vld [vmem:[%s857] sm:$0x1]
        %1021 = vrot.lane.b32.xlu0 %v1019, 68
        %v1022 = vpop.permute.xlu0 %1021
        %1024 = vst.msk [vmem:[#allocation2 + $0x5] sm:$0x1] %vm993, %v1022
        %s1025 = sadd.s32 %s157, 7
        %s1026 = scalar_lea.vmem %s155, %s1025
        %v1027 = vld [vmem:[%s1026] sm:$0x1]
        %1029 = vrot.lane.b32.xlu0 %v1027, 70
        %v1030 = vpop.permute.xlu0 %1029
        %1032 = vst.msk [vmem:[#allocation2 + $0x6] sm:$0x1] %vm993, %v1030
        %v1033 = vld [vmem:[%s1026] sm:$0x1]
        %1035 = vrot.lane.b32.xlu0 %v1033, 69
        %v1036 = vpop.permute.xlu0 %1035
        %1038 = vst.msk [vmem:[#allocation2 + $0x7] sm:$0x1] %vm993, %v1036
        %v1039 = vld [vmem:[%s1026] sm:$0x1]
        %1041 = vrot.lane.b32.xlu0 %v1039, 68
        %v1042 = vpop.permute.xlu0 %1041
        %1044 = vst.msk [vmem:[#allocation2 + $0x10] sm:$0x1] %vm993, %v1042
        %v1045 = vld [vmem:[%s744] sm:$0x1]
        %1047 = vrot.lane.b32.xlu0 %v1045, 70
        %v1048 = vpop.permute.xlu0 %1047
        %1050 = vst.msk [vmem:[#allocation2 + $0x11] sm:$0x1] %vm993, %v1048
        %v1051 = vld [vmem:[%s744] sm:$0x1]
        %1053 = vrot.lane.b32.xlu0 %v1051, 69
        %v1054 = vpop.permute.xlu0 %1053
        %1056 = vst.msk [vmem:[#allocation2 + $0x12] sm:$0x1] %vm993, %v1054
        %v1057 = vld [vmem:[%s744] sm:$0x1]
        %1059 = vrot.lane.b32.xlu0 %v1057, 68
        %v1060 = vpop.permute.xlu0 %1059
        %1062 = vst.msk [vmem:[#allocation2 + $0x13] sm:$0x1] %vm993, %v1060
        %v1063 = vld [vmem:[%s913] sm:$0x1]
        %1065 = vrot.lane.b32.xlu0 %v1063, 70
        %v1066 = vpop.permute.xlu0 %1065
        %1068 = vst.msk [vmem:[#allocation2 + $0x14] sm:$0x1] %vm993, %v1066
        %v1069 = vld [vmem:[%s913] sm:$0x1]
        %1071 = vrot.lane.b32.xlu0 %v1069, 69
        %v1072 = vpop.permute.xlu0 %1071
        %1074 = vst.msk [vmem:[#allocation2 + $0x15] sm:$0x1] %vm993, %v1072
        %v1075 = vld [vmem:[%s913] sm:$0x1]
        %1077 = vrot.lane.b32.xlu0 %v1075, 68
        %v1078 = vpop.permute.xlu0 %1077
        %1080 = vst.msk [vmem:[#allocation2 + $0x16] sm:$0x1] %vm993, %v1078
        %s1081 = sadd.s32 %s1025, 16
        %s1082 = scalar_lea.vmem %s155, %s1081
        %v1083 = vld [vmem:[%s1082] sm:$0x1]
        %1085 = vrot.lane.b32.xlu0 %v1083, 70
        %v1086 = vpop.permute.xlu0 %1085
        %1088 = vst.msk [vmem:[#allocation2 + $0x17] sm:$0x1] %vm993, %v1086
        %v1089 = vld [vmem:[%s1082] sm:$0x1]
        %1091 = vrot.lane.b32.xlu0 %v1089, 69
        %v1092 = vpop.permute.xlu0 %1091
        %1094 = vst.msk [vmem:[#allocation2 + $0x20] sm:$0x1] %vm993, %v1092
        %v1095 = vld [vmem:[%s1082] sm:$0x1]
        %1097 = vrot.lane.b32.xlu0 %v1095, 68
        %v1098 = vpop.permute.xlu0 %1097
        %1100 = vst.msk [vmem:[#allocation2 + $0x21] sm:$0x1] %vm993, %v1098
        %v1101 = vld [vmem:[%s800] sm:$0x1]
        %1103 = vrot.lane.b32.xlu0 %v1101, 70
        %v1104 = vpop.permute.xlu0 %1103
        %1106 = vst.msk [vmem:[#allocation2 + $0x22] sm:$0x1] %vm993, %v1104
        %v1107 = vld [vmem:[%s800] sm:$0x1]
        %1109 = vrot.lane.b32.xlu0 %v1107, 69
        %v1110 = vpop.permute.xlu0 %1109
        %1112 = vst.msk [vmem:[#allocation2 + $0x23] sm:$0x1] %vm993, %v1110
        %v1113 = vld [vmem:[%s800] sm:$0x1]
        %1115 = vrot.lane.b32.xlu0 %v1113, 68
        %v1116 = vpop.permute.xlu0 %1115
        %1118 = vst.msk [vmem:[#allocation2 + $0x24] sm:$0x1] %vm993, %v1116
        %v1119 = vld [vmem:[%s969] sm:$0x1]
        %1121 = vrot.lane.b32.xlu0 %v1119, 70
        %v1122 = vpop.permute.xlu0 %1121
        %1124 = vst.msk [vmem:[#allocation2 + $0x25] sm:$0x1] %vm993, %v1122
        %v1125 = vld [vmem:[%s969] sm:$0x1]
        %1127 = vrot.lane.b32.xlu0 %v1125, 69
        %v1128 = vpop.permute.xlu0 %1127
        %1130 = vst.msk [vmem:[#allocation2 + $0x26] sm:$0x1] %vm993, %v1128
        %v1131 = vld [vmem:[%s969] sm:$0x1]
        %1133 = vrot.lane.b32.xlu0 %v1131, 68
        %v1134 = vpop.permute.xlu0 %1133
        %1136 = vst.msk [vmem:[#allocation2 + $0x27] sm:$0x1] %vm993, %v1134
        %s1137 = sadd.s32 %s1025, 32
        %s1138 = scalar_lea.vmem %s155, %s1137
        %v1139 = vld [vmem:[%s1138] sm:$0x1]
        %1141 = vrot.lane.b32.xlu0 %v1139, 70
        %v1142 = vpop.permute.xlu0 %1141
        %1144 = vst.msk [vmem:[#allocation2 + $0x30] sm:$0x1] %vm993, %v1142
        %v1145 = vld [vmem:[%s1138] sm:$0x1]
        %1147 = vrot.lane.b32.xlu0 %v1145, 69
        %v1148 = vpop.permute.xlu0 %1147
        %1150 = vst.msk [vmem:[#allocation2 + $0x31] sm:$0x1] %vm993, %v1148
        %v1151 = vld [vmem:[%s1138] sm:$0x1]
        %1153 = vrot.lane.b32.xlu0 %v1151, 68
        %v1154 = vpop.permute.xlu0 %1153
        %1156 = vst.msk [vmem:[#allocation2 + $0x32] sm:$0x1] %vm993, %v1154
        %v1157 = vld [vmem:[%s857] sm:$0x1]
        %1159 = vrot.lane.b32.xlu0 %v1157, 84
        %v1160 = vpop.permute.xlu0 %1159
        %vm1162 = vcmask 795296
        %1163 = vst.msk [vmem:[#allocation2] sm:$0x1] %vm1162, %v1160
        %v1164 = vld [vmem:[%s857] sm:$0x1]
        %1166 = vrot.lane.b32.xlu0 %v1164, 83
        %v1167 = vpop.permute.xlu0 %1166
        %1169 = vst.msk [vmem:[#allocation2 + $0x1] sm:$0x1] %vm1162, %v1167
        %v1170 = vld [vmem:[%s857] sm:$0x1]
        %1172 = vrot.lane.b32.xlu0 %v1170, 82
        %v1173 = vpop.permute.xlu0 %1172
        %1175 = vst.msk [vmem:[#allocation2 + $0x2] sm:$0x1] %vm1162, %v1173
        %v1176 = vld [vmem:[%s1026] sm:$0x1]
        %1178 = vrot.lane.b32.xlu0 %v1176, 84
        %v1179 = vpop.permute.xlu0 %1178
        %1181 = vst.msk [vmem:[#allocation2 + $0x3] sm:$0x1] %vm1162, %v1179
        %v1182 = vld [vmem:[%s1026] sm:$0x1]
        %1184 = vrot.lane.b32.xlu0 %v1182, 83
        %v1185 = vpop.permute.xlu0 %1184
        %1187 = vst.msk [vmem:[#allocation2 + $0x4] sm:$0x1] %vm1162, %v1185
        %v1188 = vld [vmem:[%s1026] sm:$0x1]
        %1190 = vrot.lane.b32.xlu0 %v1188, 82
        %v1191 = vpop.permute.xlu0 %1190
        %1193 = vst.msk [vmem:[#allocation2 + $0x5] sm:$0x1] %vm1162, %v1191
        %s1194 = sadd.s32 %s157, 8
        %s1195 = scalar_lea.vmem %s155, %s1194
        %v1196 = vld [vmem:[%s1195] sm:$0x1]
        %1198 = vrot.lane.b32.xlu0 %v1196, 84
        %v1199 = vpop.permute.xlu0 %1198
        %1201 = vst.msk [vmem:[#allocation2 + $0x6] sm:$0x1] %vm1162, %v1199
        %v1202 = vld [vmem:[%s1195] sm:$0x1]
        %1204 = vrot.lane.b32.xlu0 %v1202, 83
        %v1205 = vpop.permute.xlu0 %1204
        %1207 = vst.msk [vmem:[#allocation2 + $0x7] sm:$0x1] %vm1162, %v1205
        %v1208 = vld [vmem:[%s1195] sm:$0x1]
        %1210 = vrot.lane.b32.xlu0 %v1208, 82
        %v1211 = vpop.permute.xlu0 %1210
        %1213 = vst.msk [vmem:[#allocation2 + $0x10] sm:$0x1] %vm1162, %v1211
        %v1214 = vld [vmem:[%s913] sm:$0x1]
        %1216 = vrot.lane.b32.xlu0 %v1214, 84
        %v1217 = vpop.permute.xlu0 %1216
        %1219 = vst.msk [vmem:[#allocation2 + $0x11] sm:$0x1] %vm1162, %v1217
        %v1220 = vld [vmem:[%s913] sm:$0x1]
        %1222 = vrot.lane.b32.xlu0 %v1220, 83
        %v1223 = vpop.permute.xlu0 %1222
        %1225 = vst.msk [vmem:[#allocation2 + $0x12] sm:$0x1] %vm1162, %v1223
        %v1226 = vld [vmem:[%s913] sm:$0x1]
        %1228 = vrot.lane.b32.xlu0 %v1226, 82
        %v1229 = vpop.permute.xlu0 %1228
        %1231 = vst.msk [vmem:[#allocation2 + $0x13] sm:$0x1] %vm1162, %v1229
        %v1232 = vld [vmem:[%s1082] sm:$0x1]
        %1234 = vrot.lane.b32.xlu0 %v1232, 84
        %v1235 = vpop.permute.xlu0 %1234
        %1237 = vst.msk [vmem:[#allocation2 + $0x14] sm:$0x1] %vm1162, %v1235
        %v1238 = vld [vmem:[%s1082] sm:$0x1]
        %1240 = vrot.lane.b32.xlu0 %v1238, 83
        %v1241 = vpop.permute.xlu0 %1240
        %1243 = vst.msk [vmem:[#allocation2 + $0x15] sm:$0x1] %vm1162, %v1241
        %v1244 = vld [vmem:[%s1082] sm:$0x1]
        %1246 = vrot.lane.b32.xlu0 %v1244, 82
        %v1247 = vpop.permute.xlu0 %1246
        %1249 = vst.msk [vmem:[#allocation2 + $0x16] sm:$0x1] %vm1162, %v1247
        %s1250 = sadd.s32 %s1194, 16
        %s1251 = scalar_lea.vmem %s155, %s1250
        %v1252 = vld [vmem:[%s1251] sm:$0x1]
        %1254 = vrot.lane.b32.xlu0 %v1252, 84
        %v1255 = vpop.permute.xlu0 %1254
        %1257 = vst.msk [vmem:[#allocation2 + $0x17] sm:$0x1] %vm1162, %v1255
        %v1258 = vld [vmem:[%s1251] sm:$0x1]
        %1260 = vrot.lane.b32.xlu0 %v1258, 83
        %v1261 = vpop.permute.xlu0 %1260
        %1263 = vst.msk [vmem:[#allocation2 + $0x20] sm:$0x1] %vm1162, %v1261
        %v1264 = vld [vmem:[%s1251] sm:$0x1]
        %1266 = vrot.lane.b32.xlu0 %v1264, 82
        %v1267 = vpop.permute.xlu0 %1266
        %1269 = vst.msk [vmem:[#allocation2 + $0x21] sm:$0x1] %vm1162, %v1267
        %v1270 = vld [vmem:[%s969] sm:$0x1]
        %1272 = vrot.lane.b32.xlu0 %v1270, 84
        %v1273 = vpop.permute.xlu0 %1272
        %1275 = vst.msk [vmem:[#allocation2 + $0x22] sm:$0x1] %vm1162, %v1273
        %v1276 = vld [vmem:[%s969] sm:$0x1]
        %1278 = vrot.lane.b32.xlu0 %v1276, 83
        %v1279 = vpop.permute.xlu0 %1278
        %1281 = vst.msk [vmem:[#allocation2 + $0x23] sm:$0x1] %vm1162, %v1279
        %v1282 = vld [vmem:[%s969] sm:$0x1]
        %1284 = vrot.lane.b32.xlu0 %v1282, 82
        %v1285 = vpop.permute.xlu0 %1284
        %1287 = vst.msk [vmem:[#allocation2 + $0x24] sm:$0x1] %vm1162, %v1285
        %v1288 = vld [vmem:[%s1138] sm:$0x1]
        %1290 = vrot.lane.b32.xlu0 %v1288, 84
        %v1291 = vpop.permute.xlu0 %1290
        %1293 = vst.msk [vmem:[#allocation2 + $0x25] sm:$0x1] %vm1162, %v1291
        %v1294 = vld [vmem:[%s1138] sm:$0x1]
        %1296 = vrot.lane.b32.xlu0 %v1294, 83
        %v1297 = vpop.permute.xlu0 %1296
        %1299 = vst.msk [vmem:[#allocation2 + $0x26] sm:$0x1] %vm1162, %v1297
        %v1300 = vld [vmem:[%s1138] sm:$0x1]
        %1302 = vrot.lane.b32.xlu0 %v1300, 82
        %v1303 = vpop.permute.xlu0 %1302
        %1305 = vst.msk [vmem:[#allocation2 + $0x27] sm:$0x1] %vm1162, %v1303
        %s1306 = sadd.s32 %s1194, 32
        %s1307 = scalar_lea.vmem %s155, %s1306
        %v1308 = vld [vmem:[%s1307] sm:$0x1]
        %1310 = vrot.lane.b32.xlu0 %v1308, 84
        %v1311 = vpop.permute.xlu0 %1310
        %1313 = vst.msk [vmem:[#allocation2 + $0x30] sm:$0x1] %vm1162, %v1311
        %v1314 = vld [vmem:[%s1307] sm:$0x1]
        %1316 = vrot.lane.b32.xlu0 %v1314, 83
        %v1317 = vpop.permute.xlu0 %1316
        %1319 = vst.msk [vmem:[#allocation2 + $0x31] sm:$0x1] %vm1162, %v1317
        %v1320 = vld [vmem:[%s1307] sm:$0x1]
        %1322 = vrot.lane.b32.xlu0 %v1320, 82
        %v1323 = vpop.permute.xlu0 %1322
        %1325 = vst.msk [vmem:[#allocation2 + $0x32] sm:$0x1] %vm1162, %v1323
        %v1326 = vld [vmem:[%s1026] sm:$0x1]
        %1328 = vrot.lane.b32.xlu0 %v1326, 98
        %v1329 = vpop.permute.xlu0 %1328
        %vm1331 = vcmask 910096
        %1332 = vst.msk [vmem:[#allocation2] sm:$0x1] %vm1331, %v1329
        %v1333 = vld [vmem:[%s1026] sm:$0x1]
        %1335 = vrot.lane.b32.xlu0 %v1333, 97
        %v1336 = vpop.permute.xlu0 %1335
        %1338 = vst.msk [vmem:[#allocation2 + $0x1] sm:$0x1] %vm1331, %v1336
        %v1339 = vld [vmem:[%s1026] sm:$0x1]
        %1341 = vrot.lane.b32.xlu0 %v1339, 96
        %v1342 = vpop.permute.xlu0 %1341
        %1344 = vst.msk [vmem:[#allocation2 + $0x2] sm:$0x1] %vm1331, %v1342
        %v1345 = vld [vmem:[%s1195] sm:$0x1]
        %1347 = vrot.lane.b32.xlu0 %v1345, 98
        %v1348 = vpop.permute.xlu0 %1347
        %1350 = vst.msk [vmem:[#allocation2 + $0x3] sm:$0x1] %vm1331, %v1348
        %v1351 = vld [vmem:[%s1195] sm:$0x1]
        %1353 = vrot.lane.b32.xlu0 %v1351, 97
        %v1354 = vpop.permute.xlu0 %1353
        %1356 = vst.msk [vmem:[#allocation2 + $0x4] sm:$0x1] %vm1331, %v1354
        %v1357 = vld [vmem:[%s1195] sm:$0x1]
        %1359 = vrot.lane.b32.xlu0 %v1357, 96
        %v1360 = vpop.permute.xlu0 %1359
        %1362 = vst.msk [vmem:[#allocation2 + $0x5] sm:$0x1] %vm1331, %v1360
        %s1363 = sadd.s32 %s157, 9
        %s1364 = scalar_lea.vmem %s155, %s1363
        %v1365 = vld [vmem:[%s1364] sm:$0x1]
        %1367 = vrot.lane.b32.xlu0 %v1365, 98
        %v1368 = vpop.permute.xlu0 %1367
        %1370 = vst.msk [vmem:[#allocation2 + $0x6] sm:$0x1] %vm1331, %v1368
        %v1371 = vld [vmem:[%s1364] sm:$0x1]
        %1373 = vrot.lane.b32.xlu0 %v1371, 97
        %v1374 = vpop.permute.xlu0 %1373
        %1376 = vst.msk [vmem:[#allocation2 + $0x7] sm:$0x1] %vm1331, %v1374
        %v1377 = vld [vmem:[%s1364] sm:$0x1]
        %1379 = vrot.lane.b32.xlu0 %v1377, 96
        %v1380 = vpop.permute.xlu0 %1379
        %1382 = vst.msk [vmem:[#allocation2 + $0x10] sm:$0x1] %vm1331, %v1380
        %v1383 = vld [vmem:[%s1082] sm:$0x1]
        %1385 = vrot.lane.b32.xlu0 %v1383, 98
        %v1386 = vpop.permute.xlu0 %1385
        %1388 = vst.msk [vmem:[#allocation2 + $0x11] sm:$0x1] %vm1331, %v1386
        %v1389 = vld [vmem:[%s1082] sm:$0x1]
        %1391 = vrot.lane.b32.xlu0 %v1389, 97
        %v1392 = vpop.permute.xlu0 %1391
        %1394 = vst.msk [vmem:[#allocation2 + $0x12] sm:$0x1] %vm1331, %v1392
        %v1395 = vld [vmem:[%s1082] sm:$0x1]
        %1397 = vrot.lane.b32.xlu0 %v1395, 96
        %v1398 = vpop.permute.xlu0 %1397
        %1400 = vst.msk [vmem:[#allocation2 + $0x13] sm:$0x1] %vm1331, %v1398
        %v1401 = vld [vmem:[%s1251] sm:$0x1]
        %1403 = vrot.lane.b32.xlu0 %v1401, 98
        %v1404 = vpop.permute.xlu0 %1403
        %1406 = vst.msk [vmem:[#allocation2 + $0x14] sm:$0x1] %vm1331, %v1404
        %v1407 = vld [vmem:[%s1251] sm:$0x1]
        %1409 = vrot.lane.b32.xlu0 %v1407, 97
        %v1410 = vpop.permute.xlu0 %1409
        %1412 = vst.msk [vmem:[#allocation2 + $0x15] sm:$0x1] %vm1331, %v1410
        %v1413 = vld [vmem:[%s1251] sm:$0x1]
        %1415 = vrot.lane.b32.xlu0 %v1413, 96
        %v1416 = vpop.permute.xlu0 %1415
        %1418 = vst.msk [vmem:[#allocation2 + $0x16] sm:$0x1] %vm1331, %v1416
        %s1419 = sadd.s32 %s1363, 16
        %s1420 = scalar_lea.vmem %s155, %s1419
        %v1421 = vld [vmem:[%s1420] sm:$0x1]
        %1423 = vrot.lane.b32.xlu0 %v1421, 98
        %v1424 = vpop.permute.xlu0 %1423
        %1426 = vst.msk [vmem:[#allocation2 + $0x17] sm:$0x1] %vm1331, %v1424
        %v1427 = vld [vmem:[%s1420] sm:$0x1]
        %1429 = vrot.lane.b32.xlu0 %v1427, 97
        %v1430 = vpop.permute.xlu0 %1429
        %1432 = vst.msk [vmem:[#allocation2 + $0x20] sm:$0x1] %vm1331, %v1430
        %v1433 = vld [vmem:[%s1420] sm:$0x1]
        %1435 = vrot.lane.b32.xlu0 %v1433, 96
        %v1436 = vpop.permute.xlu0 %1435
        %1438 = vst.msk [vmem:[#allocation2 + $0x21] sm:$0x1] %vm1331, %v1436
        %v1439 = vld [vmem:[%s1138] sm:$0x1]
        %1441 = vrot.lane.b32.xlu0 %v1439, 98
        %v1442 = vpop.permute.xlu0 %1441
        %1444 = vst.msk [vmem:[#allocation2 + $0x22] sm:$0x1] %vm1331, %v1442
        %v1445 = vld [vmem:[%s1138] sm:$0x1]
        %1447 = vrot.lane.b32.xlu0 %v1445, 97
        %v1448 = vpop.permute.xlu0 %1447
        %1450 = vst.msk [vmem:[#allocation2 + $0x23] sm:$0x1] %vm1331, %v1448
        %v1451 = vld [vmem:[%s1138] sm:$0x1]
        %1453 = vrot.lane.b32.xlu0 %v1451, 96
        %v1454 = vpop.permute.xlu0 %1453
        %1456 = vst.msk [vmem:[#allocation2 + $0x24] sm:$0x1] %vm1331, %v1454
        %v1457 = vld [vmem:[%s1307] sm:$0x1]
        %1459 = vrot.lane.b32.xlu0 %v1457, 98
        %v1460 = vpop.permute.xlu0 %1459
        %1462 = vst.msk [vmem:[#allocation2 + $0x25] sm:$0x1] %vm1331, %v1460
        %v1463 = vld [vmem:[%s1307] sm:$0x1]
        %1465 = vrot.lane.b32.xlu0 %v1463, 97
        %v1466 = vpop.permute.xlu0 %1465
        %1468 = vst.msk [vmem:[#allocation2 + $0x26] sm:$0x1] %vm1331, %v1466
        %v1469 = vld [vmem:[%s1307] sm:$0x1]
        %1471 = vrot.lane.b32.xlu0 %v1469, 96
        %v1472 = vpop.permute.xlu0 %1471
        %1474 = vst.msk [vmem:[#allocation2 + $0x27] sm:$0x1] %vm1331, %v1472
        %s1475 = sadd.s32 %s1363, 32
        %s1476 = scalar_lea.vmem %s155, %s1475
        %v1477 = vld [vmem:[%s1476] sm:$0x1]
        %1479 = vrot.lane.b32.xlu0 %v1477, 98
        %v1480 = vpop.permute.xlu0 %1479
        %1482 = vst.msk [vmem:[#allocation2 + $0x30] sm:$0x1] %vm1331, %v1480
        %v1483 = vld [vmem:[%s1476] sm:$0x1]
        %1485 = vrot.lane.b32.xlu0 %v1483, 97
        %v1486 = vpop.permute.xlu0 %1485
        %1488 = vst.msk [vmem:[#allocation2 + $0x31] sm:$0x1] %vm1331, %v1486
        %v1489 = vld [vmem:[%s1476] sm:$0x1]
        %1491 = vrot.lane.b32.xlu0 %v1489, 96
        %v1492 = vpop.permute.xlu0 %1491
        %1494 = vst.msk [vmem:[#allocation2 + $0x32] sm:$0x1] %vm1331, %v1492
        %v1495 = vld [vmem:[%s1195] sm:$0x1]
        %1497 = vrot.lane.b32.xlu0 %v1495, 112
        %v1498 = vpop.permute.xlu0 %1497
        %vm1500 = vcmask 1024896
        %1501 = vst.msk [vmem:[#allocation2] sm:$0x1] %vm1500, %v1498
        %v1502 = vld [vmem:[%s1195] sm:$0x1]
        %1504 = vrot.lane.b32.xlu0 %v1502, 111
        %v1505 = vpop.permute.xlu0 %1504
        %1507 = vst.msk [vmem:[#allocation2 + $0x1] sm:$0x1] %vm1500, %v1505
        %v1508 = vld [vmem:[%s1195] sm:$0x1]
        %1510 = vrot.lane.b32.xlu0 %v1508, 110
        %v1511 = vpop.permute.xlu0 %1510
        %1513 = vst.msk [vmem:[#allocation2 + $0x2] sm:$0x1] %vm1500, %v1511
        %v1514 = vld [vmem:[%s1364] sm:$0x1]
        %1516 = vrot.lane.b32.xlu0 %v1514, 112
        %v1517 = vpop.permute.xlu0 %1516
        %1519 = vst.msk [vmem:[#allocation2 + $0x3] sm:$0x1] %vm1500, %v1517
        %v1520 = vld [vmem:[%s1364] sm:$0x1]
        %1522 = vrot.lane.b32.xlu0 %v1520, 111
        %v1523 = vpop.permute.xlu0 %1522
        %1525 = vst.msk [vmem:[#allocation2 + $0x4] sm:$0x1] %vm1500, %v1523
        %v1526 = vld [vmem:[%s1364] sm:$0x1]
        %1528 = vrot.lane.b32.xlu0 %v1526, 110
        %v1529 = vpop.permute.xlu0 %1528
        %1531 = vst.msk [vmem:[#allocation2 + $0x5] sm:$0x1] %vm1500, %v1529
        %s1532 = sadd.s32 %s157, 10
        %s1533 = scalar_lea.vmem %s155, %s1532
        %v1534 = vld [vmem:[%s1533] sm:$0x1]
        %1536 = vrot.lane.b32.xlu0 %v1534, 112
        %v1537 = vpop.permute.xlu0 %1536
        %1539 = vst.msk [vmem:[#allocation2 + $0x6] sm:$0x1] %vm1500, %v1537
        %v1540 = vld [vmem:[%s1533] sm:$0x1]
        %1542 = vrot.lane.b32.xlu0 %v1540, 111
        %v1543 = vpop.permute.xlu0 %1542
        %1545 = vst.msk [vmem:[#allocation2 + $0x7] sm:$0x1] %vm1500, %v1543
        %v1546 = vld [vmem:[%s1533] sm:$0x1]
        %1548 = vrot.lane.b32.xlu0 %v1546, 110
        %v1549 = vpop.permute.xlu0 %1548
        %1551 = vst.msk [vmem:[#allocation2 + $0x10] sm:$0x1] %vm1500, %v1549
        %v1552 = vld [vmem:[%s1251] sm:$0x1]
        %1554 = vrot.lane.b32.xlu0 %v1552, 112
        %v1555 = vpop.permute.xlu0 %1554
        %1557 = vst.msk [vmem:[#allocation2 + $0x11] sm:$0x1] %vm1500, %v1555
        %v1558 = vld [vmem:[%s1251] sm:$0x1]
        %1560 = vrot.lane.b32.xlu0 %v1558, 111
        %v1561 = vpop.permute.xlu0 %1560
        %1563 = vst.msk [vmem:[#allocation2 + $0x12] sm:$0x1] %vm1500, %v1561
        %v1564 = vld [vmem:[%s1251] sm:$0x1]
        %1566 = vrot.lane.b32.xlu0 %v1564, 110
        %v1567 = vpop.permute.xlu0 %1566
        %1569 = vst.msk [vmem:[#allocation2 + $0x13] sm:$0x1] %vm1500, %v1567
        %v1570 = vld [vmem:[%s1420] sm:$0x1]
        %1572 = vrot.lane.b32.xlu0 %v1570, 112
        %v1573 = vpop.permute.xlu0 %1572
        %1575 = vst.msk [vmem:[#allocation2 + $0x14] sm:$0x1] %vm1500, %v1573
        %v1576 = vld [vmem:[%s1420] sm:$0x1]
        %1578 = vrot.lane.b32.xlu0 %v1576, 111
        %v1579 = vpop.permute.xlu0 %1578
        %1581 = vst.msk [vmem:[#allocation2 + $0x15] sm:$0x1] %vm1500, %v1579
        %v1582 = vld [vmem:[%s1420] sm:$0x1]
        %1584 = vrot.lane.b32.xlu0 %v1582, 110
        %v1585 = vpop.permute.xlu0 %1584
        %1587 = vst.msk [vmem:[#allocation2 + $0x16] sm:$0x1] %vm1500, %v1585
        %s1588 = sadd.s32 %s1532, 16
        %s1589 = scalar_lea.vmem %s155, %s1588
        %v1590 = vld [vmem:[%s1589] sm:$0x1]
        %1592 = vrot.lane.b32.xlu0 %v1590, 112
        %v1593 = vpop.permute.xlu0 %1592
        %1595 = vst.msk [vmem:[#allocation2 + $0x17] sm:$0x1] %vm1500, %v1593
        %v1596 = vld [vmem:[%s1589] sm:$0x1]
        %1598 = vrot.lane.b32.xlu0 %v1596, 111
        %v1599 = vpop.permute.xlu0 %1598
        %1601 = vst.msk [vmem:[#allocation2 + $0x20] sm:$0x1] %vm1500, %v1599
        %v1602 = vld [vmem:[%s1589] sm:$0x1]
        %1604 = vrot.lane.b32.xlu0 %v1602, 110
        %v1605 = vpop.permute.xlu0 %1604
        %1607 = vst.msk [vmem:[#allocation2 + $0x21] sm:$0x1] %vm1500, %v1605
        %v1608 = vld [vmem:[%s1307] sm:$0x1]
        %1610 = vrot.lane.b32.xlu0 %v1608, 112
        %v1611 = vpop.permute.xlu0 %1610
        %1613 = vst.msk [vmem:[#allocation2 + $0x22] sm:$0x1] %vm1500, %v1611
        %v1614 = vld [vmem:[%s1307] sm:$0x1]
        %1616 = vrot.lane.b32.xlu0 %v1614, 111
        %v1617 = vpop.permute.xlu0 %1616
        %1619 = vst.msk [vmem:[#allocation2 + $0x23] sm:$0x1] %vm1500, %v1617
        %v1620 = vld [vmem:[%s1307] sm:$0x1]
        %1622 = vrot.lane.b32.xlu0 %v1620, 110
        %v1623 = vpop.permute.xlu0 %1622
        %1625 = vst.msk [vmem:[#allocation2 + $0x24] sm:$0x1] %vm1500, %v1623
        %v1626 = vld [vmem:[%s1476] sm:$0x1]
        %1628 = vrot.lane.b32.xlu0 %v1626, 112
        %v1629 = vpop.permute.xlu0 %1628
        %1631 = vst.msk [vmem:[#allocation2 + $0x25] sm:$0x1] %vm1500, %v1629
        %v1632 = vld [vmem:[%s1476] sm:$0x1]
        %1634 = vrot.lane.b32.xlu0 %v1632, 111
        %v1635 = vpop.permute.xlu0 %1634
        %1637 = vst.msk [vmem:[#allocation2 + $0x26] sm:$0x1] %vm1500, %v1635
        %v1638 = vld [vmem:[%s1476] sm:$0x1]
        %1640 = vrot.lane.b32.xlu0 %v1638, 110
        %v1641 = vpop.permute.xlu0 %1640
        %1643 = vst.msk [vmem:[#allocation2 + $0x27] sm:$0x1] %vm1500, %v1641
        %s1644 = sadd.s32 %s1532, 32
        %s1645 = scalar_lea.vmem %s155, %s1644
        %v1646 = vld [vmem:[%s1645] sm:$0x1]
        %1648 = vrot.lane.b32.xlu0 %v1646, 112
        %v1649 = vpop.permute.xlu0 %1648
        %1651 = vst.msk [vmem:[#allocation2 + $0x30] sm:$0x1] %vm1500, %v1649
        %v1652 = vld [vmem:[%s1645] sm:$0x1]
        %1654 = vrot.lane.b32.xlu0 %v1652, 111
        %v1655 = vpop.permute.xlu0 %1654
        %1657 = vst.msk [vmem:[#allocation2 + $0x31] sm:$0x1] %vm1500, %v1655
        %v1658 = vld [vmem:[%s1645] sm:$0x1]
        %1660 = vrot.lane.b32.xlu0 %v1658, 110
        %v1661 = vpop.permute.xlu0 %1660
        %1663 = vst.msk [vmem:[#allocation2 + $0x32] sm:$0x1] %vm1500, %v1661
        %v1664 = vld [vmem:[%s1364] sm:$0x1]
        %1666 = vrot.lane.b32.xlu0 %v1664, 126
        %v1667 = vpop.permute.xlu0 %1666
        %vm1669 = vcmask 1041392
        %1670 = vst.msk [vmem:[#allocation2] sm:$0x1] %vm1669, %v1667
        %vm1671 = vcmask 90112
        %1672 = vst.msk [vmem:[#allocation2 + $0x8] sm:$0x1] %vm1671, %v1667
        %v1673 = vld [vmem:[%s1364] sm:$0x1]
        %1675 = vrot.lane.b32.xlu0 %v1673, 125
        %v1676 = vpop.permute.xlu0 %1675
        %1678 = vst.msk [vmem:[#allocation2 + $0x1] sm:$0x1] %vm1669, %v1676
        %1679 = vst.msk [vmem:[#allocation2 + $0x9] sm:$0x1] %vm1671, %v1676
        %v1680 = vld [vmem:[%s1364] sm:$0x1]
        %1682 = vrot.lane.b32.xlu0 %v1680, 124
        %v1683 = vpop.permute.xlu0 %1682
        %1685 = vst.msk [vmem:[#allocation2 + $0x2] sm:$0x1] %vm1669, %v1683
        %1686 = vst.msk [vmem:[#allocation2 + $0xa] sm:$0x1] %vm1671, %v1683
        %v1687 = vld [vmem:[%s1533] sm:$0x1]
        %1689 = vrot.lane.b32.xlu0 %v1687, 126
        %v1690 = vpop.permute.xlu0 %1689
        %1692 = vst.msk [vmem:[#allocation2 + $0x3] sm:$0x1] %vm1669, %v1690
        %1693 = vst.msk [vmem:[#allocation2 + $0xb] sm:$0x1] %vm1671, %v1690
        %v1694 = vld [vmem:[%s1533] sm:$0x1]
        %1696 = vrot.lane.b32.xlu0 %v1694, 125
        %v1697 = vpop.permute.xlu0 %1696
        %1699 = vst.msk [vmem:[#allocation2 + $0x4] sm:$0x1] %vm1669, %v1697
        %1700 = vst.msk [vmem:[#allocation2 + $0xc] sm:$0x1] %vm1671, %v1697
        %v1701 = vld [vmem:[%s1533] sm:$0x1]
        %1703 = vrot.lane.b32.xlu0 %v1701, 124
        %v1704 = vpop.permute.xlu0 %1703
        %1706 = vst.msk [vmem:[#allocation2 + $0x5] sm:$0x1] %vm1669, %v1704
        %1707 = vst.msk [vmem:[#allocation2 + $0xd] sm:$0x1] %vm1671, %v1704
        %s1708 = sadd.s32 %s157, 11
        %s1709 = scalar_lea.vmem %s155, %s1708
        %v1710 = vld [vmem:[%s1709] sm:$0x1]
        %1712 = vrot.lane.b32.xlu0 %v1710, 126
        %v1713 = vpop.permute.xlu0 %1712
        %1715 = vst.msk [vmem:[#allocation2 + $0x6] sm:$0x1] %vm1669, %v1713
        %1716 = vst.msk [vmem:[#allocation2 + $0xe] sm:$0x1] %vm1671, %v1713
        %v1717 = vld [vmem:[%s1709] sm:$0x1]
        %1719 = vrot.lane.b32.xlu0 %v1717, 125
        %v1720 = vpop.permute.xlu0 %1719
        %1722 = vst.msk [vmem:[#allocation2 + $0x7] sm:$0x1] %vm1669, %v1720
        %1723 = vst.msk [vmem:[#allocation2 + $0xf] sm:$0x1] %vm1671, %v1720
        %v1724 = vld [vmem:[%s1709] sm:$0x1]
        %1726 = vrot.lane.b32.xlu0 %v1724, 124
        %v1727 = vpop.permute.xlu0 %1726
        %1729 = vst.msk [vmem:[#allocation2 + $0x10] sm:$0x1] %vm1669, %v1727
        %1730 = vst.msk [vmem:[#allocation2 + $0x18] sm:$0x1] %vm1671, %v1727
        %v1731 = vld [vmem:[%s1420] sm:$0x1]
        %1733 = vrot.lane.b32.xlu0 %v1731, 126
        %v1734 = vpop.permute.xlu0 %1733
        %1736 = vst.msk [vmem:[#allocation2 + $0x11] sm:$0x1] %vm1669, %v1734
        %1737 = vst.msk [vmem:[#allocation2 + $0x19] sm:$0x1] %vm1671, %v1734
        %v1738 = vld [vmem:[%s1420] sm:$0x1]
        %1740 = vrot.lane.b32.xlu0 %v1738, 125
        %v1741 = vpop.permute.xlu0 %1740
        %1743 = vst.msk [vmem:[#allocation2 + $0x12] sm:$0x1] %vm1669, %v1741
        %1744 = vst.msk [vmem:[#allocation2 + $0x1a] sm:$0x1] %vm1671, %v1741
        %v1745 = vld [vmem:[%s1420] sm:$0x1]
        %1747 = vrot.lane.b32.xlu0 %v1745, 124
        %v1748 = vpop.permute.xlu0 %1747
        %1750 = vst.msk [vmem:[#allocation2 + $0x13] sm:$0x1] %vm1669, %v1748
        %1751 = vst.msk [vmem:[#allocation2 + $0x1b] sm:$0x1] %vm1671, %v1748
        %v1752 = vld [vmem:[%s1589] sm:$0x1]
        %1754 = vrot.lane.b32.xlu0 %v1752, 126
        %v1755 = vpop.permute.xlu0 %1754
        %1757 = vst.msk [vmem:[#allocation2 + $0x14] sm:$0x1] %vm1669, %v1755
        %1758 = vst.msk [vmem:[#allocation2 + $0x1c] sm:$0x1] %vm1671, %v1755
        %v1759 = vld [vmem:[%s1589] sm:$0x1]
        %1761 = vrot.lane.b32.xlu0 %v1759, 125
        %v1762 = vpop.permute.xlu0 %1761
        %1764 = vst.msk [vmem:[#allocation2 + $0x15] sm:$0x1] %vm1669, %v1762
        %1765 = vst.msk [vmem:[#allocation2 + $0x1d] sm:$0x1] %vm1671, %v1762
        %v1766 = vld [vmem:[%s1589] sm:$0x1]
        %1768 = vrot.lane.b32.xlu0 %v1766, 124
        %v1769 = vpop.permute.xlu0 %1768
        %1771 = vst.msk [vmem:[#allocation2 + $0x16] sm:$0x1] %vm1669, %v1769
        %1772 = vst.msk [vmem:[#allocation2 + $0x1e] sm:$0x1] %vm1671, %v1769
        %s1773 = sadd.s32 %s1708, 16
        %s1774 = scalar_lea.vmem %s155, %s1773
        %v1775 = vld [vmem:[%s1774] sm:$0x1]
        %1777 = vrot.lane.b32.xlu0 %v1775, 126
        %v1778 = vpop.permute.xlu0 %1777
        %1780 = vst.msk [vmem:[#allocation2 + $0x17] sm:$0x1] %vm1669, %v1778
        %1781 = vst.msk [vmem:[#allocation2 + $0x1f] sm:$0x1] %vm1671, %v1778
        %v1782 = vld [vmem:[%s1774] sm:$0x1]
        %1784 = vrot.lane.b32.xlu0 %v1782, 125
        %v1785 = vpop.permute.xlu0 %1784
        %1787 = vst.msk [vmem:[#allocation2 + $0x20] sm:$0x1] %vm1669, %v1785
        %1788 = vst.msk [vmem:[#allocation2 + $0x28] sm:$0x1] %vm1671, %v1785
        %v1789 = vld [vmem:[%s1774] sm:$0x1]
        %1791 = vrot.lane.b32.xlu0 %v1789, 124
        %v1792 = vpop.permute.xlu0 %1791
        %1794 = vst.msk [vmem:[#allocation2 + $0x21] sm:$0x1] %vm1669, %v1792
        %1795 = vst.msk [vmem:[#allocation2 + $0x29] sm:$0x1] %vm1671, %v1792
        %v1796 = vld [vmem:[%s1476] sm:$0x1]
        %1798 = vrot.lane.b32.xlu0 %v1796, 126
        %v1799 = vpop.permute.xlu0 %1798
        %1801 = vst.msk [vmem:[#allocation2 + $0x22] sm:$0x1] %vm1669, %v1799
        %1802 = vst.msk [vmem:[#allocation2 + $0x2a] sm:$0x1] %vm1671, %v1799
        %v1803 = vld [vmem:[%s1476] sm:$0x1]
        %1805 = vrot.lane.b32.xlu0 %v1803, 125
        %v1806 = vpop.permute.xlu0 %1805
        %1808 = vst.msk [vmem:[#allocation2 + $0x23] sm:$0x1] %vm1669, %v1806
        %1809 = vst.msk [vmem:[#allocation2 + $0x2b] sm:$0x1] %vm1671, %v1806
        %v1810 = vld [vmem:[%s1476] sm:$0x1]
        %1812 = vrot.lane.b32.xlu0 %v1810, 124
        %v1813 = vpop.permute.xlu0 %1812
        %1815 = vst.msk [vmem:[#allocation2 + $0x24] sm:$0x1] %vm1669, %v1813
        %1816 = vst.msk [vmem:[#allocation2 + $0x2c] sm:$0x1] %vm1671, %v1813
        %v1817 = vld [vmem:[%s1645] sm:$0x1]
        %1819 = vrot.lane.b32.xlu0 %v1817, 126
        %v1820 = vpop.permute.xlu0 %1819
        %1822 = vst.msk [vmem:[#allocation2 + $0x25] sm:$0x1] %vm1669, %v1820
        %1823 = vst.msk [vmem:[#allocation2 + $0x2d] sm:$0x1] %vm1671, %v1820
        %v1824 = vld [vmem:[%s1645] sm:$0x1]
        %1826 = vrot.lane.b32.xlu0 %v1824, 125
        %v1827 = vpop.permute.xlu0 %1826
        %1829 = vst.msk [vmem:[#allocation2 + $0x26] sm:$0x1] %vm1669, %v1827
        %1830 = vst.msk [vmem:[#allocation2 + $0x2e] sm:$0x1] %vm1671, %v1827
        %v1831 = vld [vmem:[%s1645] sm:$0x1]
        %1833 = vrot.lane.b32.xlu0 %v1831, 124
        %v1834 = vpop.permute.xlu0 %1833
        %1836 = vst.msk [vmem:[#allocation2 + $0x27] sm:$0x1] %vm1669, %v1834
        %1837 = vst.msk [vmem:[#allocation2 + $0x2f] sm:$0x1] %vm1671, %v1834
        %s1838 = sadd.s32 %s1708, 32
        %s1839 = scalar_lea.vmem %s155, %s1838
        %v1840 = vld [vmem:[%s1839] sm:$0x1]
        %1842 = vrot.lane.b32.xlu0 %v1840, 126
        %v1843 = vpop.permute.xlu0 %1842
        %1845 = vst.msk [vmem:[#allocation2 + $0x30] sm:$0x1] %vm1669, %v1843
        %1846 = vst.msk [vmem:[#allocation2 + $0x38] sm:$0x1] %vm1671, %v1843
        %v1847 = vld [vmem:[%s1839] sm:$0x1]
        %1849 = vrot.lane.b32.xlu0 %v1847, 125
        %v1850 = vpop.permute.xlu0 %1849
        %1852 = vst.msk [vmem:[#allocation2 + $0x31] sm:$0x1] %vm1669, %v1850
        %1853 = vst.msk [vmem:[#allocation2 + $0x39] sm:$0x1] %vm1671, %v1850
        %v1854 = vld [vmem:[%s1839] sm:$0x1]
        %1856 = vrot.lane.b32.xlu0 %v1854, 124
        %v1857 = vpop.permute.xlu0 %1856
        %1859 = vst.msk [vmem:[#allocation2 + $0x32] sm:$0x1] %vm1669, %v1857
        %1860 = vst.msk [vmem:[#allocation2 + $0x3a] sm:$0x1] %vm1671, %v1857
        %v1861 = vld [vmem:[%s1533] sm:$0x1]
        %1863 = vrot.lane.b32.xlu0 %v1861, 12
        %v1864 = vpop.permute.xlu0 %1863
        %vm1866 = vcmask 204896
        %1867 = vst.msk [vmem:[#allocation2 + $0x8] sm:$0x1] %vm1866, %v1864
        %v1868 = vld [vmem:[%s1533] sm:$0x1]
        %1870 = vrot.lane.b32.xlu0 %v1868, 11
        %v1871 = vpop.permute.xlu0 %1870
        %1873 = vst.msk [vmem:[#allocation2 + $0x9] sm:$0x1] %vm1866, %v1871
        %v1874 = vld [vmem:[%s1533] sm:$0x1]
        %1876 = vrot.lane.b32.xlu0 %v1874, 10
        %v1877 = vpop.permute.xlu0 %1876
        %1879 = vst.msk [vmem:[#allocation2 + $0xa] sm:$0x1] %vm1866, %v1877
        %v1880 = vld [vmem:[%s1709] sm:$0x1]
        %1882 = vrot.lane.b32.xlu0 %v1880, 12
        %v1883 = vpop.permute.xlu0 %1882
        %1885 = vst.msk [vmem:[#allocation2 + $0xb] sm:$0x1] %vm1866, %v1883
        %v1886 = vld [vmem:[%s1709] sm:$0x1]
        %1888 = vrot.lane.b32.xlu0 %v1886, 11
        %v1889 = vpop.permute.xlu0 %1888
        %1891 = vst.msk [vmem:[#allocation2 + $0xc] sm:$0x1] %vm1866, %v1889
        %v1892 = vld [vmem:[%s1709] sm:$0x1]
        %1894 = vrot.lane.b32.xlu0 %v1892, 10
        %v1895 = vpop.permute.xlu0 %1894
        %1897 = vst.msk [vmem:[#allocation2 + $0xd] sm:$0x1] %vm1866, %v1895
        %s1898 = sadd.s32 %s157, 12
        %s1899 = scalar_lea.vmem %s155, %s1898
        %v1900 = vld [vmem:[%s1899] sm:$0x1]
        %1902 = vrot.lane.b32.xlu0 %v1900, 12
        %v1903 = vpop.permute.xlu0 %1902
        %1905 = vst.msk [vmem:[#allocation2 + $0xe] sm:$0x1] %vm1866, %v1903
        %v1906 = vld [vmem:[%s1899] sm:$0x1]
        %1908 = vrot.lane.b32.xlu0 %v1906, 11
        %v1909 = vpop.permute.xlu0 %1908
        %1911 = vst.msk [vmem:[#allocation2 + $0xf] sm:$0x1] %vm1866, %v1909
        %v1912 = vld [vmem:[%s1899] sm:$0x1]
        %1914 = vrot.lane.b32.xlu0 %v1912, 10
        %v1915 = vpop.permute.xlu0 %1914
        %1917 = vst.msk [vmem:[#allocation2 + $0x18] sm:$0x1] %vm1866, %v1915
        %v1918 = vld [vmem:[%s1589] sm:$0x1]
        %1920 = vrot.lane.b32.xlu0 %v1918, 12
        %v1921 = vpop.permute.xlu0 %1920
        %1923 = vst.msk [vmem:[#allocation2 + $0x19] sm:$0x1] %vm1866, %v1921
        %v1924 = vld [vmem:[%s1589] sm:$0x1]
        %1926 = vrot.lane.b32.xlu0 %v1924, 11
        %v1927 = vpop.permute.xlu0 %1926
        %1929 = vst.msk [vmem:[#allocation2 + $0x1a] sm:$0x1] %vm1866, %v1927
        %v1930 = vld [vmem:[%s1589] sm:$0x1]
        %1932 = vrot.lane.b32.xlu0 %v1930, 10
        %v1933 = vpop.permute.xlu0 %1932
        %1935 = vst.msk [vmem:[#allocation2 + $0x1b] sm:$0x1] %vm1866, %v1933
        %v1936 = vld [vmem:[%s1774] sm:$0x1]
        %1938 = vrot.lane.b32.xlu0 %v1936, 12
        %v1939 = vpop.permute.xlu0 %1938
        %1941 = vst.msk [vmem:[#allocation2 + $0x1c] sm:$0x1] %vm1866, %v1939
        %v1942 = vld [vmem:[%s1774] sm:$0x1]
        %1944 = vrot.lane.b32.xlu0 %v1942, 11
        %v1945 = vpop.permute.xlu0 %1944
        %1947 = vst.msk [vmem:[#allocation2 + $0x1d] sm:$0x1] %vm1866, %v1945
        %v1948 = vld [vmem:[%s1774] sm:$0x1]
        %1950 = vrot.lane.b32.xlu0 %v1948, 10
        %v1951 = vpop.permute.xlu0 %1950
        %1953 = vst.msk [vmem:[#allocation2 + $0x1e] sm:$0x1] %vm1866, %v1951
        %s1954 = sadd.s32 %s1898, 16
        %s1955 = scalar_lea.vmem %s155, %s1954
        %v1956 = vld [vmem:[%s1955] sm:$0x1]
        %1958 = vrot.lane.b32.xlu0 %v1956, 12
        %v1959 = vpop.permute.xlu0 %1958
        %1961 = vst.msk [vmem:[#allocation2 + $0x1f] sm:$0x1] %vm1866, %v1959
        %v1962 = vld [vmem:[%s1955] sm:$0x1]
        %1964 = vrot.lane.b32.xlu0 %v1962, 11
        %v1965 = vpop.permute.xlu0 %1964
        %1967 = vst.msk [vmem:[#allocation2 + $0x28] sm:$0x1] %vm1866, %v1965
        %v1968 = vld [vmem:[%s1955] sm:$0x1]
        %1970 = vrot.lane.b32.xlu0 %v1968, 10
        %v1971 = vpop.permute.xlu0 %1970
        %1973 = vst.msk [vmem:[#allocation2 + $0x29] sm:$0x1] %vm1866, %v1971
        %v1974 = vld [vmem:[%s1645] sm:$0x1]
        %1976 = vrot.lane.b32.xlu0 %v1974, 12
        %v1977 = vpop.permute.xlu0 %1976
        %1979 = vst.msk [vmem:[#allocation2 + $0x2a] sm:$0x1] %vm1866, %v1977
        %v1980 = vld [vmem:[%s1645] sm:$0x1]
        %1982 = vrot.lane.b32.xlu0 %v1980, 11
        %v1983 = vpop.permute.xlu0 %1982
        %1985 = vst.msk [vmem:[#allocation2 + $0x2b] sm:$0x1] %vm1866, %v1983
        %v1986 = vld [vmem:[%s1645] sm:$0x1]
        %1988 = vrot.lane.b32.xlu0 %v1986, 10
        %v1989 = vpop.permute.xlu0 %1988
        %1991 = vst.msk [vmem:[#allocation2 + $0x2c] sm:$0x1] %vm1866, %v1989
        %v1992 = vld [vmem:[%s1839] sm:$0x1]
        %1994 = vrot.lane.b32.xlu0 %v1992, 12
        %v1995 = vpop.permute.xlu0 %1994
        %1997 = vst.msk [vmem:[#allocation2 + $0x2d] sm:$0x1] %vm1866, %v1995
        %v1998 = vld [vmem:[%s1839] sm:$0x1]
        %2000 = vrot.lane.b32.xlu0 %v1998, 11
        %v2001 = vpop.permute.xlu0 %2000
        %2003 = vst.msk [vmem:[#allocation2 + $0x2e] sm:$0x1] %vm1866, %v2001
        %v2004 = vld [vmem:[%s1839] sm:$0x1]
        %2006 = vrot.lane.b32.xlu0 %v2004, 10
        %v2007 = vpop.permute.xlu0 %2006
        %2009 = vst.msk [vmem:[#allocation2 + $0x2f] sm:$0x1] %vm1866, %v2007
        %s2010 = sadd.s32 %s1898, 32
        %s2011 = scalar_lea.vmem %s155, %s2010
        %v2012 = vld [vmem:[%s2011] sm:$0x1]
        %2014 = vrot.lane.b32.xlu0 %v2012, 12
        %v2015 = vpop.permute.xlu0 %2014
        %2017 = vst.msk [vmem:[#allocation2 + $0x38] sm:$0x1] %vm1866, %v2015
        %v2018 = vld [vmem:[%s2011] sm:$0x1]
        %2020 = vrot.lane.b32.xlu0 %v2018, 11
        %v2021 = vpop.permute.xlu0 %2020
        %2023 = vst.msk [vmem:[#allocation2 + $0x39] sm:$0x1] %vm1866, %v2021
        %v2024 = vld [vmem:[%s2011] sm:$0x1]
        %2026 = vrot.lane.b32.xlu0 %v2024, 10
        %v2027 = vpop.permute.xlu0 %2026
        %2029 = vst.msk [vmem:[#allocation2 + $0x3a] sm:$0x1] %vm1866, %v2027
        %v2030 = vld [vmem:[%s1709] sm:$0x1]
        %2032 = vrot.lane.b32.xlu0 %v2030, 26
        %v2033 = vpop.permute.xlu0 %2032
        %vm2035 = vcmask 319696
        %2036 = vst.msk [vmem:[#allocation2 + $0x8] sm:$0x1] %vm2035, %v2033
        %v2037 = vld [vmem:[%s1709] sm:$0x1]
        %2039 = vrot.lane.b32.xlu0 %v2037, 25
        %v2040 = vpop.permute.xlu0 %2039
        %2042 = vst.msk [vmem:[#allocation2 + $0x9] sm:$0x1] %vm2035, %v2040
        %v2043 = vld [vmem:[%s1709] sm:$0x1]
        %2045 = vrot.lane.b32.xlu0 %v2043, 24
        %v2046 = vpop.permute.xlu0 %2045
        %2048 = vst.msk [vmem:[#allocation2 + $0xa] sm:$0x1] %vm2035, %v2046
        %v2049 = vld [vmem:[%s1899] sm:$0x1]
        %2051 = vrot.lane.b32.xlu0 %v2049, 26
        %v2052 = vpop.permute.xlu0 %2051
        %2054 = vst.msk [vmem:[#allocation2 + $0xb] sm:$0x1] %vm2035, %v2052
        %v2055 = vld [vmem:[%s1899] sm:$0x1]
        %2057 = vrot.lane.b32.xlu0 %v2055, 25
        %v2058 = vpop.permute.xlu0 %2057
        %2060 = vst.msk [vmem:[#allocation2 + $0xc] sm:$0x1] %vm2035, %v2058
        %v2061 = vld [vmem:[%s1899] sm:$0x1]
        %2063 = vrot.lane.b32.xlu0 %v2061, 24
        %v2064 = vpop.permute.xlu0 %2063
        %2066 = vst.msk [vmem:[#allocation2 + $0xd] sm:$0x1] %vm2035, %v2064
        %s2067 = sadd.s32 %s157, 13
        %s2068 = scalar_lea.vmem %s155, %s2067
        %v2069 = vld [vmem:[%s2068] sm:$0x1]
        %2071 = vrot.lane.b32.xlu0 %v2069, 26
        %v2072 = vpop.permute.xlu0 %2071
        %2074 = vst.msk [vmem:[#allocation2 + $0xe] sm:$0x1] %vm2035, %v2072
        %v2075 = vld [vmem:[%s2068] sm:$0x1]
        %2077 = vrot.lane.b32.xlu0 %v2075, 25
        %v2078 = vpop.permute.xlu0 %2077
        %2080 = vst.msk [vmem:[#allocation2 + $0xf] sm:$0x1] %vm2035, %v2078
        %v2081 = vld [vmem:[%s2068] sm:$0x1]
        %2083 = vrot.lane.b32.xlu0 %v2081, 24
        %v2084 = vpop.permute.xlu0 %2083
        %2086 = vst.msk [vmem:[#allocation2 + $0x18] sm:$0x1] %vm2035, %v2084
        %v2087 = vld [vmem:[%s1774] sm:$0x1]
        %2089 = vrot.lane.b32.xlu0 %v2087, 26
        %v2090 = vpop.permute.xlu0 %2089
        %2092 = vst.msk [vmem:[#allocation2 + $0x19] sm:$0x1] %vm2035, %v2090
        %v2093 = vld [vmem:[%s1774] sm:$0x1]
        %2095 = vrot.lane.b32.xlu0 %v2093, 25
        %v2096 = vpop.permute.xlu0 %2095
        %2098 = vst.msk [vmem:[#allocation2 + $0x1a] sm:$0x1] %vm2035, %v2096
        %v2099 = vld [vmem:[%s1774] sm:$0x1]
        %2101 = vrot.lane.b32.xlu0 %v2099, 24
        %v2102 = vpop.permute.xlu0 %2101
        %2104 = vst.msk [vmem:[#allocation2 + $0x1b] sm:$0x1] %vm2035, %v2102
        %v2105 = vld [vmem:[%s1955] sm:$0x1]
        %2107 = vrot.lane.b32.xlu0 %v2105, 26
        %v2108 = vpop.permute.xlu0 %2107
        %2110 = vst.msk [vmem:[#allocation2 + $0x1c] sm:$0x1] %vm2035, %v2108
        %v2111 = vld [vmem:[%s1955] sm:$0x1]
        %2113 = vrot.lane.b32.xlu0 %v2111, 25
        %v2114 = vpop.permute.xlu0 %2113
        %2116 = vst.msk [vmem:[#allocation2 + $0x1d] sm:$0x1] %vm2035, %v2114
        %v2117 = vld [vmem:[%s1955] sm:$0x1]
        %2119 = vrot.lane.b32.xlu0 %v2117, 24
        %v2120 = vpop.permute.xlu0 %2119
        %2122 = vst.msk [vmem:[#allocation2 + $0x1e] sm:$0x1] %vm2035, %v2120
        %s2123 = sadd.s32 %s2067, 16
        %s2124 = scalar_lea.vmem %s155, %s2123
        %v2125 = vld [vmem:[%s2124] sm:$0x1]
        %2127 = vrot.lane.b32.xlu0 %v2125, 26
        %v2128 = vpop.permute.xlu0 %2127
        %2130 = vst.msk [vmem:[#allocation2 + $0x1f] sm:$0x1] %vm2035, %v2128
        %v2131 = vld [vmem:[%s2124] sm:$0x1]
        %2133 = vrot.lane.b32.xlu0 %v2131, 25
        %v2134 = vpop.permute.xlu0 %2133
        %2136 = vst.msk [vmem:[#allocation2 + $0x28] sm:$0x1] %vm2035, %v2134
        %v2137 = vld [vmem:[%s2124] sm:$0x1]
        %2139 = vrot.lane.b32.xlu0 %v2137, 24
        %v2140 = vpop.permute.xlu0 %2139
        %2142 = vst.msk [vmem:[#allocation2 + $0x29] sm:$0x1] %vm2035, %v2140
        %v2143 = vld [vmem:[%s1839] sm:$0x1]
        %2145 = vrot.lane.b32.xlu0 %v2143, 26
        %v2146 = vpop.permute.xlu0 %2145
        %2148 = vst.msk [vmem:[#allocation2 + $0x2a] sm:$0x1] %vm2035, %v2146
        %v2149 = vld [vmem:[%s1839] sm:$0x1]
        %2151 = vrot.lane.b32.xlu0 %v2149, 25
        %v2152 = vpop.permute.xlu0 %2151
        %2154 = vst.msk [vmem:[#allocation2 + $0x2b] sm:$0x1] %vm2035, %v2152
        %v2155 = vld [vmem:[%s1839] sm:$0x1]
        %2157 = vrot.lane.b32.xlu0 %v2155, 24
        %v2158 = vpop.permute.xlu0 %2157
        %2160 = vst.msk [vmem:[#allocation2 + $0x2c] sm:$0x1] %vm2035, %v2158
        %v2161 = vld [vmem:[%s2011] sm:$0x1]
        %2163 = vrot.lane.b32.xlu0 %v2161, 26
        %v2164 = vpop.permute.xlu0 %2163
        %2166 = vst.msk [vmem:[#allocation2 + $0x2d] sm:$0x1] %vm2035, %v2164
        %v2167 = vld [vmem:[%s2011] sm:$0x1]
        %2169 = vrot.lane.b32.xlu0 %v2167, 25
        %v2170 = vpop.permute.xlu0 %2169
        %2172 = vst.msk [vmem:[#allocation2 + $0x2e] sm:$0x1] %vm2035, %v2170
        %v2173 = vld [vmem:[%s2011] sm:$0x1]
        %2175 = vrot.lane.b32.xlu0 %v2173, 24
        %v2176 = vpop.permute.xlu0 %2175
        %2178 = vst.msk [vmem:[#allocation2 + $0x2f] sm:$0x1] %vm2035, %v2176
        %s2179 = sadd.s32 %s2067, 32
        %s2180 = scalar_lea.vmem %s155, %s2179
        %v2181 = vld [vmem:[%s2180] sm:$0x1]
        %2183 = vrot.lane.b32.xlu0 %v2181, 26
        %v2184 = vpop.permute.xlu0 %2183
        %2186 = vst.msk [vmem:[#allocation2 + $0x38] sm:$0x1] %vm2035, %v2184
        %v2187 = vld [vmem:[%s2180] sm:$0x1]
        %2189 = vrot.lane.b32.xlu0 %v2187, 25
        %v2190 = vpop.permute.xlu0 %2189
        %2192 = vst.msk [vmem:[#allocation2 + $0x39] sm:$0x1] %vm2035, %v2190
        %v2193 = vld [vmem:[%s2180] sm:$0x1]
        %2195 = vrot.lane.b32.xlu0 %v2193, 24
        %v2196 = vpop.permute.xlu0 %2195
        %2198 = vst.msk [vmem:[#allocation2 + $0x3a] sm:$0x1] %vm2035, %v2196
        %v2199 = vld [vmem:[%s1899] sm:$0x1]
        %2201 = vrot.lane.b32.xlu0 %v2199, 40
        %v2202 = vpop.permute.xlu0 %2201
        %vm2204 = vcmask 434496
        %2205 = vst.msk [vmem:[#allocation2 + $0x8] sm:$0x1] %vm2204, %v2202
        %v2206 = vld [vmem:[%s1899] sm:$0x1]
        %2208 = vrot.lane.b32.xlu0 %v2206, 39
        %v2209 = vpop.permute.xlu0 %2208
        %2211 = vst.msk [vmem:[#allocation2 + $0x9] sm:$0x1] %vm2204, %v2209
        %v2212 = vld [vmem:[%s1899] sm:$0x1]
        %2214 = vrot.lane.b32.xlu0 %v2212, 38
        %v2215 = vpop.permute.xlu0 %2214
        %2217 = vst.msk [vmem:[#allocation2 + $0xa] sm:$0x1] %vm2204, %v2215
        %v2218 = vld [vmem:[%s2068] sm:$0x1]
        %2220 = vrot.lane.b32.xlu0 %v2218, 40
        %v2221 = vpop.permute.xlu0 %2220
        %2223 = vst.msk [vmem:[#allocation2 + $0xb] sm:$0x1] %vm2204, %v2221
        %v2224 = vld [vmem:[%s2068] sm:$0x1]
        %2226 = vrot.lane.b32.xlu0 %v2224, 39
        %v2227 = vpop.permute.xlu0 %2226
        %2229 = vst.msk [vmem:[#allocation2 + $0xc] sm:$0x1] %vm2204, %v2227
        %v2230 = vld [vmem:[%s2068] sm:$0x1]
        %2232 = vrot.lane.b32.xlu0 %v2230, 38
        %v2233 = vpop.permute.xlu0 %2232
        %2235 = vst.msk [vmem:[#allocation2 + $0xd] sm:$0x1] %vm2204, %v2233
        %s2236 = sadd.s32 %s157, 14
        %s2237 = scalar_lea.vmem %s155, %s2236
        %v2238 = vld [vmem:[%s2237] sm:$0x1]
        %2240 = vrot.lane.b32.xlu0 %v2238, 40
        %v2241 = vpop.permute.xlu0 %2240
        %2243 = vst.msk [vmem:[#allocation2 + $0xe] sm:$0x1] %vm2204, %v2241
        %v2244 = vld [vmem:[%s2237] sm:$0x1]
        %2246 = vrot.lane.b32.xlu0 %v2244, 39
        %v2247 = vpop.permute.xlu0 %2246
        %2249 = vst.msk [vmem:[#allocation2 + $0xf] sm:$0x1] %vm2204, %v2247
        %v2250 = vld [vmem:[%s2237] sm:$0x1]
        %2252 = vrot.lane.b32.xlu0 %v2250, 38
        %v2253 = vpop.permute.xlu0 %2252
        %2255 = vst.msk [vmem:[#allocation2 + $0x18] sm:$0x1] %vm2204, %v2253
        %v2256 = vld [vmem:[%s1955] sm:$0x1]
        %2258 = vrot.lane.b32.xlu0 %v2256, 40
        %v2259 = vpop.permute.xlu0 %2258
        %2261 = vst.msk [vmem:[#allocation2 + $0x19] sm:$0x1] %vm2204, %v2259
        %v2262 = vld [vmem:[%s1955] sm:$0x1]
        %2264 = vrot.lane.b32.xlu0 %v2262, 39
        %v2265 = vpop.permute.xlu0 %2264
        %2267 = vst.msk [vmem:[#allocation2 + $0x1a] sm:$0x1] %vm2204, %v2265
        %v2268 = vld [vmem:[%s1955] sm:$0x1]
        %2270 = vrot.lane.b32.xlu0 %v2268, 38
        %v2271 = vpop.permute.xlu0 %2270
        %2273 = vst.msk [vmem:[#allocation2 + $0x1b] sm:$0x1] %vm2204, %v2271
        %v2274 = vld [vmem:[%s2124] sm:$0x1]
        %2276 = vrot.lane.b32.xlu0 %v2274, 40
        %v2277 = vpop.permute.xlu0 %2276
        %2279 = vst.msk [vmem:[#allocation2 + $0x1c] sm:$0x1] %vm2204, %v2277
        %v2280 = vld [vmem:[%s2124] sm:$0x1]
        %2282 = vrot.lane.b32.xlu0 %v2280, 39
        %v2283 = vpop.permute.xlu0 %2282
        %2285 = vst.msk [vmem:[#allocation2 + $0x1d] sm:$0x1] %vm2204, %v2283
        %v2286 = vld [vmem:[%s2124] sm:$0x1]
        %2288 = vrot.lane.b32.xlu0 %v2286, 38
        %v2289 = vpop.permute.xlu0 %2288
        %2291 = vst.msk [vmem:[#allocation2 + $0x1e] sm:$0x1] %vm2204, %v2289
        %s2292 = sadd.s32 %s2236, 16
        %s2293 = scalar_lea.vmem %s155, %s2292
        %v2294 = vld [vmem:[%s2293] sm:$0x1]
        %2296 = vrot.lane.b32.xlu0 %v2294, 40
        %v2297 = vpop.permute.xlu0 %2296
        %2299 = vst.msk [vmem:[#allocation2 + $0x1f] sm:$0x1] %vm2204, %v2297
        %v2300 = vld [vmem:[%s2293] sm:$0x1]
        %2302 = vrot.lane.b32.xlu0 %v2300, 39
        %v2303 = vpop.permute.xlu0 %2302
        %2305 = vst.msk [vmem:[#allocation2 + $0x28] sm:$0x1] %vm2204, %v2303
        %v2306 = vld [vmem:[%s2293] sm:$0x1]
        %2308 = vrot.lane.b32.xlu0 %v2306, 38
        %v2309 = vpop.permute.xlu0 %2308
        %2311 = vst.msk [vmem:[#allocation2 + $0x29] sm:$0x1] %vm2204, %v2309
        %v2312 = vld [vmem:[%s2011] sm:$0x1]
        %2314 = vrot.lane.b32.xlu0 %v2312, 40
        %v2315 = vpop.permute.xlu0 %2314
        %2317 = vst.msk [vmem:[#allocation2 + $0x2a] sm:$0x1] %vm2204, %v2315
        %v2318 = vld [vmem:[%s2011] sm:$0x1]
        %2320 = vrot.lane.b32.xlu0 %v2318, 39
        %v2321 = vpop.permute.xlu0 %2320
        %2323 = vst.msk [vmem:[#allocation2 + $0x2b] sm:$0x1] %vm2204, %v2321
        %v2324 = vld [vmem:[%s2011] sm:$0x1]
        %2326 = vrot.lane.b32.xlu0 %v2324, 38
        %v2327 = vpop.permute.xlu0 %2326
        %2329 = vst.msk [vmem:[#allocation2 + $0x2c] sm:$0x1] %vm2204, %v2327
        %v2330 = vld [vmem:[%s2180] sm:$0x1]
        %2332 = vrot.lane.b32.xlu0 %v2330, 40
        %v2333 = vpop.permute.xlu0 %2332
        %2335 = vst.msk [vmem:[#allocation2 + $0x2d] sm:$0x1] %vm2204, %v2333
        %v2336 = vld [vmem:[%s2180] sm:$0x1]
        %2338 = vrot.lane.b32.xlu0 %v2336, 39
        %v2339 = vpop.permute.xlu0 %2338
        %2341 = vst.msk [vmem:[#allocation2 + $0x2e] sm:$0x1] %vm2204, %v2339
        %v2342 = vld [vmem:[%s2180] sm:$0x1]
        %2344 = vrot.lane.b32.xlu0 %v2342, 38
        %v2345 = vpop.permute.xlu0 %2344
        %2347 = vst.msk [vmem:[#allocation2 + $0x2f] sm:$0x1] %vm2204, %v2345
        %s2348 = sadd.s32 %s2236, 32
        %s2349 = scalar_lea.vmem %s155, %s2348
        %v2350 = vld [vmem:[%s2349] sm:$0x1]
        %2352 = vrot.lane.b32.xlu0 %v2350, 40
        %v2353 = vpop.permute.xlu0 %2352
        %2355 = vst.msk [vmem:[#allocation2 + $0x38] sm:$0x1] %vm2204, %v2353
        %v2356 = vld [vmem:[%s2349] sm:$0x1]
        %2358 = vrot.lane.b32.xlu0 %v2356, 39
        %v2359 = vpop.permute.xlu0 %2358
        %2361 = vst.msk [vmem:[#allocation2 + $0x39] sm:$0x1] %vm2204, %v2359
        %v2362 = vld [vmem:[%s2349] sm:$0x1]
        %2364 = vrot.lane.b32.xlu0 %v2362, 38
        %v2365 = vpop.permute.xlu0 %2364
        %2367 = vst.msk [vmem:[#allocation2 + $0x3a] sm:$0x1] %vm2204, %v2365
        %v2368 = vld [vmem:[%s2068] sm:$0x1]
        %2370 = vrot.lane.b32.xlu0 %v2368, 54
        %v2371 = vpop.permute.xlu0 %2370
        %vm2373 = vcmask 549296
        %2374 = vst.msk [vmem:[#allocation2 + $0x8] sm:$0x1] %vm2373, %v2371
        %v2375 = vld [vmem:[%s2068] sm:$0x1]
        %2377 = vrot.lane.b32.xlu0 %v2375, 53
        %v2378 = vpop.permute.xlu0 %2377
        %2380 = vst.msk [vmem:[#allocation2 + $0x9] sm:$0x1] %vm2373, %v2378
        %v2381 = vld [vmem:[%s2068] sm:$0x1]
        %2383 = vrot.lane.b32.xlu0 %v2381, 52
        %v2384 = vpop.permute.xlu0 %2383
        %2386 = vst.msk [vmem:[#allocation2 + $0xa] sm:$0x1] %vm2373, %v2384
        %v2387 = vld [vmem:[%s2237] sm:$0x1]
        %2389 = vrot.lane.b32.xlu0 %v2387, 54
        %v2390 = vpop.permute.xlu0 %2389
        %2392 = vst.msk [vmem:[#allocation2 + $0xb] sm:$0x1] %vm2373, %v2390
        %v2393 = vld [vmem:[%s2237] sm:$0x1]
        %2395 = vrot.lane.b32.xlu0 %v2393, 53
        %v2396 = vpop.permute.xlu0 %2395
        %2398 = vst.msk [vmem:[#allocation2 + $0xc] sm:$0x1] %vm2373, %v2396
        %v2399 = vld [vmem:[%s2237] sm:$0x1]
        %2401 = vrot.lane.b32.xlu0 %v2399, 52
        %v2402 = vpop.permute.xlu0 %2401
        %2404 = vst.msk [vmem:[#allocation2 + $0xd] sm:$0x1] %vm2373, %v2402
        %s2405 = sadd.s32 %s157, 15
        %s2406 = scalar_lea.vmem %s155, %s2405
        %v2407 = vld [vmem:[%s2406] sm:$0x1]
        %2409 = vrot.lane.b32.xlu0 %v2407, 54
        %v2410 = vpop.permute.xlu0 %2409
        %2412 = vst.msk [vmem:[#allocation2 + $0xe] sm:$0x1] %vm2373, %v2410
        %v2413 = vld [vmem:[%s2406] sm:$0x1]
        %2415 = vrot.lane.b32.xlu0 %v2413, 53
        %v2416 = vpop.permute.xlu0 %2415
        %2418 = vst.msk [vmem:[#allocation2 + $0xf] sm:$0x1] %vm2373, %v2416
        %v2419 = vld [vmem:[%s2406] sm:$0x1]
        %2421 = vrot.lane.b32.xlu0 %v2419, 52
        %v2422 = vpop.permute.xlu0 %2421
        %2424 = vst.msk [vmem:[#allocation2 + $0x18] sm:$0x1] %vm2373, %v2422
        %v2425 = vld [vmem:[%s2124] sm:$0x1]
        %2427 = vrot.lane.b32.xlu0 %v2425, 54
        %v2428 = vpop.permute.xlu0 %2427
        %2430 = vst.msk [vmem:[#allocation2 + $0x19] sm:$0x1] %vm2373, %v2428
        %v2431 = vld [vmem:[%s2124] sm:$0x1]
        %2433 = vrot.lane.b32.xlu0 %v2431, 53
        %v2434 = vpop.permute.xlu0 %2433
        %2436 = vst.msk [vmem:[#allocation2 + $0x1a] sm:$0x1] %vm2373, %v2434
        %v2437 = vld [vmem:[%s2124] sm:$0x1]
        %2439 = vrot.lane.b32.xlu0 %v2437, 52
        %v2440 = vpop.permute.xlu0 %2439
        %2442 = vst.msk [vmem:[#allocation2 + $0x1b] sm:$0x1] %vm2373, %v2440
        %v2443 = vld [vmem:[%s2293] sm:$0x1]
        %2445 = vrot.lane.b32.xlu0 %v2443, 54
        %v2446 = vpop.permute.xlu0 %2445
        %2448 = vst.msk [vmem:[#allocation2 + $0x1c] sm:$0x1] %vm2373, %v2446
        %v2449 = vld [vmem:[%s2293] sm:$0x1]
        %2451 = vrot.lane.b32.xlu0 %v2449, 53
        %v2452 = vpop.permute.xlu0 %2451
        %2454 = vst.msk [vmem:[#allocation2 + $0x1d] sm:$0x1] %vm2373, %v2452
        %v2455 = vld [vmem:[%s2293] sm:$0x1]
        %2457 = vrot.lane.b32.xlu0 %v2455, 52
        %v2458 = vpop.permute.xlu0 %2457
        %2460 = vst.msk [vmem:[#allocation2 + $0x1e] sm:$0x1] %vm2373, %v2458
        %s2461 = sadd.s32 %s2405, 16
        %s2462 = scalar_lea.vmem %s155, %s2461
        %v2463 = vld [vmem:[%s2462] sm:$0x1]
        %2465 = vrot.lane.b32.xlu0 %v2463, 54
        %v2466 = vpop.permute.xlu0 %2465
        %2468 = vst.msk [vmem:[#allocation2 + $0x1f] sm:$0x1] %vm2373, %v2466
        %v2469 = vld [vmem:[%s2462] sm:$0x1]
        %2471 = vrot.lane.b32.xlu0 %v2469, 53
        %v2472 = vpop.permute.xlu0 %2471
        %2474 = vst.msk [vmem:[#allocation2 + $0x28] sm:$0x1] %vm2373, %v2472
        %v2475 = vld [vmem:[%s2462] sm:$0x1]
        %2477 = vrot.lane.b32.xlu0 %v2475, 52
        %v2478 = vpop.permute.xlu0 %2477
        %2480 = vst.msk [vmem:[#allocation2 + $0x29] sm:$0x1] %vm2373, %v2478
        %v2481 = vld [vmem:[%s2180] sm:$0x1]
        %2483 = vrot.lane.b32.xlu0 %v2481, 54
        %v2484 = vpop.permute.xlu0 %2483
        %2486 = vst.msk [vmem:[#allocation2 + $0x2a] sm:$0x1] %vm2373, %v2484
        %v2487 = vld [vmem:[%s2180] sm:$0x1]
        %2489 = vrot.lane.b32.xlu0 %v2487, 53
        %v2490 = vpop.permute.xlu0 %2489
        %2492 = vst.msk [vmem:[#allocation2 + $0x2b] sm:$0x1] %vm2373, %v2490
        %v2493 = vld [vmem:[%s2180] sm:$0x1]
        %2495 = vrot.lane.b32.xlu0 %v2493, 52
        %v2496 = vpop.permute.xlu0 %2495
        %2498 = vst.msk [vmem:[#allocation2 + $0x2c] sm:$0x1] %vm2373, %v2496
        %v2499 = vld [vmem:[%s2349] sm:$0x1]
        %2501 = vrot.lane.b32.xlu0 %v2499, 54
        %v2502 = vpop.permute.xlu0 %2501
        %2504 = vst.msk [vmem:[#allocation2 + $0x2d] sm:$0x1] %vm2373, %v2502
        %v2505 = vld [vmem:[%s2349] sm:$0x1]
        %2507 = vrot.lane.b32.xlu0 %v2505, 53
        %v2508 = vpop.permute.xlu0 %2507
        %2510 = vst.msk [vmem:[#allocation2 + $0x2e] sm:$0x1] %vm2373, %v2508
        %v2511 = vld [vmem:[%s2349] sm:$0x1]
        %2513 = vrot.lane.b32.xlu0 %v2511, 52
        %v2514 = vpop.permute.xlu0 %2513
        %2516 = vst.msk [vmem:[#allocation2 + $0x2f] sm:$0x1] %vm2373, %v2514
        %s2517 = sadd.s32 %s2405, 32
        %s2518 = scalar_lea.vmem %s155, %s2517
        %v2519 = vld [vmem:[%s2518] sm:$0x1]
        %2521 = vrot.lane.b32.xlu0 %v2519, 54
        %v2522 = vpop.permute.xlu0 %2521
        %2524 = vst.msk [vmem:[#allocation2 + $0x38] sm:$0x1] %vm2373, %v2522
        %v2525 = vld [vmem:[%s2518] sm:$0x1]
        %2527 = vrot.lane.b32.xlu0 %v2525, 53
        %v2528 = vpop.permute.xlu0 %2527
        %2530 = vst.msk [vmem:[#allocation2 + $0x39] sm:$0x1] %vm2373, %v2528
        %v2531 = vld [vmem:[%s2518] sm:$0x1]
        %2533 = vrot.lane.b32.xlu0 %v2531, 52
        %v2534 = vpop.permute.xlu0 %2533
        %2536 = vst.msk [vmem:[#allocation2 + $0x3a] sm:$0x1] %vm2373, %v2534
        %v2537 = vld [vmem:[%s1] sm:$0xff]
        %v2538 = vld [vmem:[%s1 + $0x8] sm:$0xff]
        %v2539 = vld [vmem:[%s1 + $0x10] sm:$0xff]
        %v2540 = vld [vmem:[%s1 + $0x18] sm:$0xff]
        %v2541 = vld [vmem:[%s1 + $0x20] sm:$0xff]
        %v2542 = vld [vmem:[%s1 + $0x28] sm:$0xff]
        %v2543 = vld [vmem:[%s1 + $0x30] sm:$0xff]
        %v2544 = vld [vmem:[%s1 + $0x38] sm:$0xff]
        %v2545 = vld [vmem:[#allocation2] sm:$0xff]
        %v2546 = vld [vmem:[#allocation2 + $0x8] sm:$0xff]
        %v2547 = vld [vmem:[#allocation2 + $0x10] sm:$0xff]
        %v2548 = vld [vmem:[#allocation2 + $0x18] sm:$0xff]
        %v2549 = vld [vmem:[#allocation2 + $0x20] sm:$0xff]
        %v2550 = vld [vmem:[#allocation2 + $0x28] sm:$0xff]
        %v2551 = vld [vmem:[#allocation2 + $0x30] sm:$0xff]
        %v2552 = vld [vmem:[#allocation2 + $0x38] sm:$0xff]
        %vm2553 = vcmask 261120
        %v2555 = vsel %vm2553, %v2537, 0
        %v2558 = vsel %vm2553, %v2538, 0
        %v2561 = vsel %vm2553, %v2539, 0
        %v2564 = vsel %vm2553, %v2540, 0
        %v2567 = vsel %vm2553, %v2541, 0
        %v2570 = vsel %vm2553, %v2542, 0
        %v2573 = vsel %vm2553, %v2543, 0
        %v2576 = vsel %vm2553, %v2544, 0
        %2578 = vmatprep.subr.mxu0 %v2546
        %2579 = vmatpush1.msra.mxu0 %v2545
        %2580 = vmatprep.subr.mxu0 %v2548
        %2581 = vmatpush1.msra.mxu0 %v2547
        %2582 = vmatprep.subr.mxu0 %v2550
        %2583 = vmatpush1.msra.mxu0 %v2549
        %2584 = vmatprep.subr.mxu0 %v2552
        %2585 = vmatpush1.msra.mxu0 %v2551
        %2586 = vmatprep.subr.mxu0 0.0
        %2587 = vmatpush1.msra.mxu0 0.0
        %2588 = vmatprep.subr.mxu0 0.0
        %2589 = vmatpush1.msra.mxu0 0.0
        %2590 = vmatprep.subr.mxu0 0.0
        %2591 = vmatpush1.msra.mxu0 0.0
        %2592 = vmatprep.subr.mxu0 0.0
        %2593 = vmatpush1.msra.mxu0 0.0
        %2594 = vmatprep.subr.mxu0 0.0
        %2595 = vmatpush1.msra.mxu0 0.0
        %2596 = vmatprep.subr.mxu0 0.0
        %2597 = vmatpush1.msra.mxu0 0.0
        %2598 = vmatprep.subr.mxu0 0.0
        %2599 = vmatpush1.msra.mxu0 0.0
        %2600 = vmatprep.subr.mxu0 0.0
        %2601 = vmatpush1.msra.mxu0 0.0
        %2602 = vmatprep.subr.mxu0 0.0
        %2603 = vmatpush1.msra.mxu0 0.0
        %2604 = vmatprep.subr.mxu0 0.0
        %2605 = vmatpush1.msra.mxu0 0.0
        %2606 = vmatprep.subr.mxu0 0.0
        %2607 = vmatpush1.msra.mxu0 0.0
        %2608 = vmatprep.subr.mxu0 0.0
        %2609 = vmatpush1.msra.mxu0 0.0
        %2610 = vmatprep.subr.mxu0 0.0
        %2611 = vmatpush1.msra.mxu0 0.0
        %2612 = vmatprep.subr.mxu0 0.0
        %2613 = vmatpush1.msra.mxu0 0.0
        %2614 = vmatprep.subr.mxu0 0.0
        %2615 = vmatpush1.msra.mxu0 0.0
        %2616 = vmatprep.subr.mxu0 0.0
        %2617 = vmatpush1.msra.mxu0 0.0
        %2618 = vmatprep.subr.mxu0 0.0
        %2619 = vmatpush1.msra.mxu0 0.0
        %2620 = vmatprep.subr.mxu0 0.0
        %2621 = vmatpush1.msra.mxu0 0.0
        %2622 = vmatprep.subr.mxu0 0.0
        %2623 = vmatpush1.msra.mxu0 0.0
        %2624 = vmatprep.subr.mxu0 0.0
        %2625 = vmatpush1.msra.mxu0 0.0
        %2626 = vmatprep.subr.mxu0 0.0
        %2627 = vmatpush1.msra.mxu0 0.0
        %2628 = vmatprep.subr.mxu0 0.0
        %2629 = vmatpush1.msra.mxu0 0.0
        %2630 = vmatprep.subr.mxu0 0.0
        %2631 = vmatpush1.msra.mxu0 0.0
        %2632 = vmatprep.subr.mxu0 0.0
        %2633 = vmatpush1.msra.mxu0 0.0
        %2634 = vmatprep.subr.mxu0 0.0
        %2635 = vmatpush1.msra.mxu0 0.0
        %2636 = vmatprep.subr.mxu0 0.0
        %2637 = vmatpush1.msra.mxu0 0.0
        %2638 = vmatprep.subr.mxu0 0.0
        %2639 = vmatpush1.msra.mxu0 0.0
        %2640 = vmatprep.subr.mxu0 0.0
        %2641 = vmatpush1.msra.mxu0 0.0
        %2642 = vmatprep.mubr.f32.mxu0 0.0
        %2643 = vmatmul.mubr.f32.gmra.mrb[0].mxu0 %v2555
        %v2644 = vpop.f32.mrb[0].mxu0
        %v2645 = vadd.f32 0.0, %v2644
        %v2646 = vpop.f32.mrb[0].mxu0
        %v2647 = vadd.f32 0.0, %v2646
        %2648 = vmatprep.mubr.f32.mxu0 0.0
        %2649 = vmatmul.mubr.f32.gmra.mrb[0].mxu0 %v2558
        %v2650 = vpop.f32.mrb[0].mxu0
        %v2651 = vadd.f32 0.0, %v2650
        %v2652 = vpop.f32.mrb[0].mxu0
        %v2653 = vadd.f32 0.0, %v2652
        %2654 = vmatprep.mubr.f32.mxu0 0.0
        %2655 = vmatmul.mubr.f32.gmra.mrb[0].mxu0 %v2561
        %v2656 = vpop.f32.mrb[0].mxu0
        %v2657 = vadd.f32 0.0, %v2656
        %v2658 = vpop.f32.mrb[0].mxu0
        %v2659 = vadd.f32 0.0, %v2658
        %2660 = vmatprep.mubr.f32.mxu0 0.0
        %2661 = vmatmul.mubr.f32.gmra.mrb[0].mxu0 %v2564
        %v2662 = vpop.f32.mrb[0].mxu0
        %v2663 = vadd.f32 0.0, %v2662
        %v2664 = vpop.f32.mrb[0].mxu0
        %v2665 = vadd.f32 0.0, %v2664
        %2666 = vmatprep.mubr.f32.mxu0 0.0
        %2667 = vmatmul.mubr.f32.gmra.mrb[0].mxu0 %v2567
        %v2668 = vpop.f32.mrb[0].mxu0
        %v2669 = vadd.f32 0.0, %v2668
        %v2670 = vpop.f32.mrb[0].mxu0
        %v2671 = vadd.f32 0.0, %v2670
        %2672 = vmatprep.mubr.f32.mxu0 0.0
        %2673 = vmatmul.mubr.f32.gmra.mrb[0].mxu0 %v2570
        %v2674 = vpop.f32.mrb[0].mxu0
        %v2675 = vadd.f32 0.0, %v2674
        %v2676 = vpop.f32.mrb[0].mxu0
        %v2677 = vadd.f32 0.0, %v2676
        %2678 = vmatprep.mubr.f32.mxu0 0.0
        %2679 = vmatmul.mubr.f32.gmra.mrb[0].mxu0 %v2573
        %v2680 = vpop.f32.mrb[0].mxu0
        %v2681 = vadd.f32 0.0, %v2680
        %v2682 = vpop.f32.mrb[0].mxu0
        %v2683 = vadd.f32 0.0, %v2682
        %2684 = vmatprep.mubr.f32.mxu0 0.0
        %2685 = vmatmul.mubr.f32.gmra.mrb[0].mxu0 %v2576
        %v2686 = vpop.f32.mrb[0].mxu0
        %v2687 = vadd.f32 0.0, %v2686
        %v2688 = vpop.f32.mrb[0].mxu0
        %v2689 = vadd.f32 0.0, %v2688
        %2690 = vdwg.mxu0
        %2691 = vst [vmem:[%s150] sm:$0xff] %v2645
        %vm2692 = vcmask 556032
        %2693 = vst.msk [vmem:[%s150 + $0x8] sm:$0xff] %vm2692, %v2647
        %2694 = vst [vmem:[%s150 + $0x10] sm:$0xff] %v2651
        %2695 = vst.msk [vmem:[%s150 + $0x18] sm:$0xff] %vm2692, %v2653
        %2696 = vst [vmem:[%s150 + $0x20] sm:$0xff] %v2657
        %2697 = vst.msk [vmem:[%s150 + $0x28] sm:$0xff] %vm2692, %v2659
        %2698 = vst [vmem:[%s150 + $0x30] sm:$0xff] %v2663
        %2699 = vst.msk [vmem:[%s150 + $0x38] sm:$0xff] %vm2692, %v2665
        %2700 = vst [vmem:[%s150 + $0x40] sm:$0xff] %v2669
        %2701 = vst.msk [vmem:[%s150 + $0x48] sm:$0xff] %vm2692, %v2671
        %2702 = vst [vmem:[%s150 + $0x50] sm:$0xff] %v2675
        %2703 = vst.msk [vmem:[%s150 + $0x58] sm:$0xff] %vm2692, %v2677
        %2704 = vst [vmem:[%s150 + $0x60] sm:$0xff] %v2681
        %2705 = vst.msk [vmem:[%s150 + $0x68] sm:$0xff] %vm2692, %v2683
        %2706 = vst [vmem:[%s150 + $0x70] sm:$0xff] %v2687
        %2707 = vst.msk [vmem:[%s150 + $0x78] sm:$0xff] %vm2692, %v2689
        %s2708 = sand.u32 %s85, 1
        %s2709 = scalar_lea.sflag [#allocation4], %s2708
        %s2710 = sand.u32 %s85, 1
        %s2711 = smul.addr %s2710, 128
        %s2712 = scalar_lea.vmem [#allocation3], %s2711
        // Predicated region
        $region29: #{tpu_custom_call.1} parent=27 // pred_check
          %p2713 = pneg %p95
        $region30: #{tpu_custom_call.1} parent=27 // pred_check_branch
          %2715 = sbr.rel (%p2713) target = $region32
        $region31: #{tpu_custom_call.1} parent=27 // pred_region
          %s2716 = smul.u32 2, %s21
          %s2718 = ssub.s32 2048, 2048
          %2719 = vsyncadd %s2709, %s2718
          %s2720 = smul.addr %s20, 16
          %s2721 = sadd.s32 %s2716, %s2720
          %s2722 = smul.addr %s2721, 128
          %s2723 = scalar_lea.hbm %s2, %s2722
          %s2724 = sshll.u32 %s2712, 4
          %s2725 = int_to_ptr.vmem [resolvable:$true] %s2724
          %2730 = dma.vmem_to_hbm [thread:$0]  %s2725, 2048, %s2723, %s2709, 256, 256, 16
        $region32: #{tpu_custom_call.1} parent=27 // pred_fallthru
          _
      $region28: #{tpu_custom_call.1} parent=5 // pred_fallthru
        _
      %p2731 = scmp.le.s32.totalorder 2, %s11
      // Predicated region
      $region33: #{tpu_custom_call.1} parent=5 // pred_check
        %p2732 = pneg %p2731
      $region34: #{tpu_custom_call.1} parent=5 // pred_check_branch
        %2734 = sbr.rel (%p2732) target = $region36
      $region35: #{tpu_custom_call.1} parent=5 // pred_region
        %s2735 = ssub.s32 %s11, 2
        // Predicated region
        $region37: #{tpu_custom_call.1} parent=35 // pred_check
          %p2736 = pneg %p101
        $region38: #{tpu_custom_call.1} parent=35 // pred_check_branch
          %2738 = sbr.rel (%p2736) target = $region40
        $region39: #{tpu_custom_call.1} parent=35 // pred_region
          %s2739 = sand.u32 %s86, 1
          %s2740 = scalar_lea.sflag [#allocation4], %s2739
          %s2741 = sand.u32 %s86, 1
          %s2742 = smul.addr %s2741, 128
          %s2743 = scalar_lea.vmem [#allocation3], %s2742
          %2744 = dma.done %s2740, 2048
        $region40: #{tpu_custom_call.1} parent=35 // pred_fallthru
          _
      $region36: #{tpu_custom_call.1} parent=5 // pred_fallthru
        _
    $region6: #{tpu_custom_call.1} parent=1 // loop_footer
      %s15 = sadd.s32 1, %s11
    $region7: #{tpu_custom_call.1} parent=1 // loop_footer_branch
      %10 = sbr.rel target = $region3
    $region8: #{tpu_custom_call.1} parent=1 // loop_exit
      _
    %2745 = vsyncpa [#allocation4], 1
    %s2746 = scalar_lea.sflag [#allocation4], 1
    %2747 = vsyncpa %s2746, 1

</llo_original>
